<compile_context>
chip_gen: v6e
topology: v6e:2x2x1
jax: 0.10.0
libtpu: 0.0.40
codegen_flags: <defaults>
</compile_context>

<pallas_src>
import math
import functools

import jax
import jax.numpy as jnp
from jax.experimental import pallas as pl
from jax.experimental.pallas import tpu as pltpu


# ---------------------------------------------------------------------------
# Config
# ---------------------------------------------------------------------------

CONFIG = dict(
    vocab_size=50,
    hidden_size=32,
    num_heads=4,
    num_layers=2,
    intermediate_size=64,
    max_position=16,
    type_vocab_size=2,
)

# Packed small-parameter slab row layout (width padded to 128 lanes).
ROW_EMB_LN_G = 0
ROW_EMB_LN_B = 1
ROW_POOL_B = 2
LAYER_ROWS_BASE = 3
ROWS_PER_LAYER = 8
(R_QKV_B, R_AO_B, R_ATTN_LN_G, R_ATTN_LN_B,
 R_FF1_B, R_FF2_B, R_OUT_LN_G, R_OUT_LN_B) = range(ROWS_PER_LAYER)


# ---------------------------------------------------------------------------
# Fused whole-model Pallas kernel
# ---------------------------------------------------------------------------

def _bert_encoder_kernel(emb_ref, mask_ref, small_ref, qkvw_ref, aow_ref,
                         f1w_ref, f2w_ref, pw_ref, out_ref, pool_ref, *,
                         num_layers, num_heads, head_dim, hidden, inter,
                         seq, batch_block, collect_hidden):
    """One grid step == batch_block sequences, all layers fused, rows fused."""
    H, Dh, I, S, Bb = hidden, head_dim, inter, seq, batch_block
    N = Bb * S                                      # fused row count
    scale = 1.0 / math.sqrt(Dh)
    f32 = jnp.float32

    def vec(row, width):                            # (1, width) slice of the slab
        return small_ref[row:row + 1, 0:width]

    def vec_at(row, start, width):
        return small_ref[row:row + 1, start:start + width]

    def layer_norm(x, g, b):                        # HF eps = 1e-12
        mean = jnp.mean(x, axis=-1, keepdims=True)
        diff = x - mean
        var = jnp.mean(diff * diff, axis=-1, keepdims=True)
        return diff * jax.lax.rsqrt(var + 1e-12) * g + b

    def gelu(x):
        # TODO(synk): HF BERT default 'gelu' is the exact erf form; tanh approximation used here.
        return 0.5 * x * (1.0 + jnp.tanh(0.7978845608028654 * (x + 0.044715 * x * x * x)))

    mask = mask_ref[0]                              # (N, N) block-diag additive mask

    # --- embedding LayerNorm ---
    x = layer_norm(emb_ref[...], vec(ROW_EMB_LN_G, H), vec(ROW_EMB_LN_B, H))
    if collect_hidden:
        out_ref[0, :, :] = x

    for l in range(num_layers):
        base = LAYER_ROWS_BASE + ROWS_PER_LAYER * l

        # --- attention: per-head Q/K/V from weight-ref slices (no activation
        #     lane slicing); softmax batched over heads in one shot ---
        score_parts, v_parts = [], []
        for hd in range(num_heads):
            lo = hd * Dh
            q = (jnp.dot(x, qkvw_ref[l, :, lo:lo + Dh],
                         preferred_element_type=f32)
                 + vec_at(base + R_QKV_B, lo, Dh))                       # (N, Dh)
            k = (jnp.dot(x, qkvw_ref[l, :, H + lo:H + lo + Dh],
                         preferred_element_type=f32)
                 + vec_at(base + R_QKV_B, H + lo, Dh))
            v = (jnp.dot(x, qkvw_ref[l, :, 2 * H + lo:2 * H + lo + Dh],
                         preferred_element_type=f32)
                 + vec_at(base + R_QKV_B, 2 * H + lo, Dh))
            score_parts.append(
                jnp.dot(q, k.T, preferred_element_type=f32) * scale + mask)  # (N, N)
            v_parts.append(v)

        scores = jnp.concatenate(score_parts, axis=0)                    # (nH*N, N)
        m = jnp.max(scores, axis=-1, keepdims=True)
        p = jnp.exp(scores - m)
        p = p * pl.reciprocal(jnp.sum(p, axis=-1, keepdims=True), approx=True)

        attn = None
        for hd in range(num_heads):
            lo = hd * Dh
            ctx = jnp.dot(p[hd * N:(hd + 1) * N, :], v_parts[hd],
                          preferred_element_type=f32)                    # (N, Dh)
            part = jnp.dot(ctx, aow_ref[l, lo:lo + Dh, :],
                           preferred_element_type=f32)                   # (N, H)
            attn = part if attn is None else attn + part
        attn = attn + vec(base + R_AO_B, H)

        # --- residual + LayerNorm fused ---
        x = layer_norm(attn + x, vec(base + R_ATTN_LN_G, H), vec(base + R_ATTN_LN_B, H))

        # --- FFN: GELU intermediate, output, residual + LayerNorm fused ---
        interm = gelu(jnp.dot(x, f1w_ref[l], preferred_element_type=f32)
                      + vec(base + R_FF1_B, I))
        ff = jnp.dot(interm, f2w_ref[l], preferred_element_type=f32) + vec(base + R_FF2_B, H)
        x = layer_norm(ff + x, vec(base + R_OUT_LN_G, H), vec(base + R_OUT_LN_B, H))

        if collect_hidden:
            out_ref[l + 1, :, :] = x

    if not collect_hidden:
        out_ref[...] = x

    # --- pooler: tanh(dense(CLS rows only)) ---
    cls = jnp.concatenate([x[bi * S:bi * S + 1, :] for bi in range(Bb)], axis=0)  # (Bb, H)
    pooled = jnp.tanh(jnp.dot(cls, pw_ref[...], preferred_element_type=f32)
                      + vec(ROW_POOL_B, H))
    pool_ref[0, :, :] = pooled


def bert_encoder_pallas(emb_flat, add_mask, params, cfg, *, batch,
                        grid_blocks=1, output_hidden_states=True):
    """emb_flat: (B*S, H) f32; add_mask: (grid_blocks, Bb*S, Bb*S) additive f32."""
    BS, H = emb_flat.shape
    L = cfg["num_layers"]
    nH = cfg["num_heads"]
    I = cfg["intermediate_size"]
    S = BS // batch
    Bb = batch // grid_blocks
    N = Bb * S
    Dh = H // nH

    kernel = functools.partial(
        _bert_encoder_kernel,
        num_layers=L, num_heads=nH, head_dim=Dh, hidden=H, inter=I,
        seq=S, batch_block=Bb, collect_hidden=output_hidden_states)

    def resident(shape):
        # full-array block, constant index_map, single-buffered: DMA'd once,
        # stays in VMEM across grid steps.
        nd = len(shape)
        return pl.BlockSpec(shape, lambda b, _n=nd: (0,) * _n,
                            pipeline_mode=pl.Buffered(1))

    in_specs = [
        pl.BlockSpec((N, H), lambda b: (b, 0)),        # fused (rows, H) activations
        pl.BlockSpec((1, N, N), lambda b: (b, 0, 0)),  # block-diag additive mask
        resident(params["small"].shape),               # packed biases + LN params
        resident(params["qkv_w"].shape),               # (L, H, 3H)
        resident(params["ao_w"].shape),                # (L, H, H)
        resident(params["ff1_w"].shape),               # (L, H, I)
        resident(params["ff2_w"].shape),               # (L, I, H)
        resident(params["pooler_w"].shape),            # (H, H)
    ]

    if output_hidden_states:
        main_spec = pl.BlockSpec((L + 1, N, H), lambda b: (0, b, 0))
        main_shape = jax.ShapeDtypeStruct((L + 1, BS, H), jnp.float32)
    else:
        main_spec = pl.BlockSpec((N, H), lambda b: (b, 0))
        main_shape = jax.ShapeDtypeStruct((BS, H), jnp.float32)

    out_specs = [main_spec,
                 pl.BlockSpec((1, Bb, H), lambda b: (b, 0, 0))]
    out_shape = [main_shape,
                 jax.ShapeDtypeStruct((grid_blocks, Bb, H), jnp.float32)]

    main_out, pooled = pl.pallas_call(
        kernel,
        grid=(grid_blocks,),
        in_specs=in_specs,
        out_specs=out_specs,
        out_shape=out_shape,
        compiler_params=pltpu.CompilerParams(
            dimension_semantics=("parallel",)),
    )(emb_flat, add_mask, params["small"],
      params["qkv_w"], params["ao_w"], params["ff1_w"], params["ff2_w"],
      params["pooler_w"])
    return main_out, pooled


# ---------------------------------------------------------------------------
# Synthetic deterministic parameters (stored once in kernel-ready layout)
# ---------------------------------------------------------------------------

def init_params(key, cfg):
    H, I, L = cfg["hidden_size"], cfg["intermediate_size"], cfg["num_layers"]

    def normal(k, shape):
        return (0.02 * jax.random.normal(k, shape)).astype(jnp.float32)

    keys = iter(jax.random.split(key, 4 + 4 * L))
    p = {
        "word_emb": normal(next(keys), (cfg["vocab_size"], H)),
        "pos_emb": normal(next(keys), (cfg["max_position"], H)),
        "type_emb": normal(next(keys), (cfg["type_vocab_size"], H)),
        "pooler_w": normal(next(keys), (H, H)),
        "qkv_w": jnp.stack([normal(next(keys), (H, 3 * H)) for _ in range(L)]),
        "ao_w": jnp.stack([normal(next(keys), (H, H)) for _ in range(L)]),
        "ff1_w": jnp.stack([normal(next(keys), (H, I)) for _ in range(L)]),
        "ff2_w": jnp.stack([normal(next(keys), (I, H)) for _ in range(L)]),
    }

    # --- packed small-parameter slab: biases + LayerNorm params, lane-padded ---
    rows = LAYER_ROWS_BASE + ROWS_PER_LAYER * L
    rows_padded = ((rows + 7) // 8) * 8
    small = jnp.zeros((rows_padded, 128), jnp.float32)

    def put(s, row, v):
        v = jnp.asarray(v, jnp.float32).reshape(-1)
        return s.at[row, :v.shape[0]].set(v)

    small = put(small, ROW_EMB_LN_G, jnp.ones((H,)))      # emb LN gamma
    small = put(small, ROW_EMB_LN_B, jnp.zeros((H,)))     # emb LN beta
    small = put(small, ROW_POOL_B, jnp.zeros((H,)))       # pooler bias
    for l in range(L):
        base = LAYER_ROWS_BASE + ROWS_PER_LAYER * l
        small = put(small, base + R_QKV_B, jnp.zeros((3 * H,)))
        small = put(small, base + R_AO_B, jnp.zeros((H,)))
        small = put(small, base + R_ATTN_LN_G, jnp.ones((H,)))
        small = put(small, base + R_ATTN_LN_B, jnp.zeros((H,)))
        small = put(small, base + R_FF1_B, jnp.zeros((I,)))
        small = put(small, base + R_FF2_B, jnp.zeros((H,)))
        small = put(small, base + R_OUT_LN_G, jnp.ones((H,)))
        small = put(small, base + R_OUT_LN_B, jnp.zeros((H,)))
    p["small"] = small
    return p


# ---------------------------------------------------------------------------
# BERT forward (mirrors BertModel(..., output_hidden_states=True))
# ---------------------------------------------------------------------------

def bert_forward(params, input_ids, attention_mask, token_type_ids, cfg=CONFIG,
                 grid_blocks=1, output_hidden_states=True):
    B, S = input_ids.shape
    H = cfg["hidden_size"]
    L = cfg["num_layers"]

    # grid_blocks=1 collapses the grid (best on single-TC v5e/v6e); pass 2 on
    # v7x to shard the batch over both TensorCores.
    if grid_blocks < 1 or grid_blocks > B or B % grid_blocks != 0:
        grid_blocks = 1
    Bb = B // grid_blocks
    N = Bb * S

    # --- embeddings (gather = plain-JAX glue) ---
    emb = (params["word_emb"][input_ids]
           + params["pos_emb"][jnp.arange(S)][None, :, :]
           + params["type_emb"][token_type_ids]).astype(jnp.float32)
    emb_flat = emb.reshape(B * S, H)

    # Block-diagonal additive attention mask per grid block:
    # query row i may attend key j iff same sequence AND key j is unpadded.
    amf = attention_mask.astype(jnp.float32)                               # (B, S)
    seq_block = jnp.kron(jnp.eye(Bb, dtype=jnp.float32),
                         jnp.ones((S, S), jnp.float32))                    # (N, N)
    key_ok = amf.reshape(grid_blocks, N)                                   # (g, N)
    allowed = seq_block[None, :, :] * key_ok[:, None, :]                   # (g, N, N)
    add_mask = (1.0 - allowed) * (-1e9)

    # --- fused Pallas kernel: LN + all encoder layers + pooler ---
    main_out, pooled = bert_encoder_pallas(
        emb_flat, add_mask, params, cfg, batch=B, grid_blocks=grid_blocks,
        output_hidden_states=output_hidden_states)

    pooler_output = pooled.reshape(B, H)
    if output_hidden_states:
        hs = main_out.reshape(L + 1, B, S, H)
        hidden_states = tuple(hs[i] for i in range(L + 1))
        last_hidden = hidden_states[-1]
    else:
        hidden_states = None
        last_hidden = main_out.reshape(B, S, H)

    return {
        "last_hidden_state": last_hidden,
        "pooler_output": pooler_output,
        "hidden_states": hidden_states,
    }


def _split_output(o, lo, hi):
    return {
        "last_hidden_state": o["last_hidden_state"][lo:hi],
        "pooler_output": o["pooler_output"][lo:hi],
        "hidden_states": tuple(h[lo:hi] for h in o["hidden_states"]),
    }


def bert_wrapper_forward(params, input_ids, attention_mask, token_type_ids):
    """Reproduces BertWrapper.forward: list of 1 -> single output, list of 2 -> tuple."""
    if len(input_ids) == 1:
        return bert_forward(params, input_ids[0], attention_mask[0], token_type_ids[0])

    # Two-input branch: if shapes match, batch-concatenate and run ONE fused
    # forward (halves kernel launches), then split the outputs.
    if input_ids[0].shape == input_ids[1].shape:
        b0 = input_ids[0].shape[0]
        ids = jnp.concatenate([input_ids[0], input_ids[1]], axis=0)
        am = jnp.concatenate([attention_mask[0], attention_mask[1]], axis=0)
        tt = jnp.concatenate([token_type_ids[0], token_type_ids[1]], axis=0)
        out = bert_forward(params, ids, am, tt)
        return _split_output(out, 0, b0), _split_output(out, b0, ids.shape[0])

    return (bert_forward(params, input_ids[0], attention_mask[0], token_type_ids[0]),
            bert_forward(params, input_ids[1], attention_mask[1], token_type_ids[1]))


# ---------------------------------------------------------------------------
# main
# ---------------------------------------------------------------------------

if __name__ == "__main__":
    key = jax.random.PRNGKey(0)
    pkey, k0, k1, k2, k3 = jax.random.split(key, 5)

    params = init_params(pkey, CONFIG)

    B, S = 2, 8
    ids0 = jax.random.randint(k0, (B, S), 0, CONFIG["vocab_size"], dtype=jnp.int32)
    ids1 = jax.random.randint(k1, (B, S), 0, CONFIG["vocab_size"], dtype=jnp.int32)
    tt0 = jax.random.randint(k2, (B, S), 0, CONFIG["type_vocab_size"], dtype=jnp.int32)
    tt1 = jax.random.randint(k3, (B, S), 0, CONFIG["type_vocab_size"], dtype=jnp.int32)
    # attention masks: second sequence has a couple of padded positions
    am0 = jnp.ones((B, S), dtype=jnp.int32)
    am1 = jnp.concatenate([jnp.ones((B, S - 2), jnp.int32), jnp.zeros((B, 2), jnp.int32)], axis=1)

    # Exercise the two-input branch of BertWrapper.forward.
    out = bert_wrapper_forward(params, [ids0, ids1], [am0, am1], [tt0, tt1])
    out = jax.block_until_ready(out)

    assert isinstance(out, tuple) and len(out) == 2
    assert out[0]["last_hidden_state"].shape == (B, S, CONFIG["hidden_size"])
    assert out[0]["pooler_output"].shape == (B, CONFIG["hidden_size"])
    assert len(out[0]["hidden_states"]) == CONFIG["num_layers"] + 1
    assert all(jnp.all(jnp.isfinite(o["last_hidden_state"])) for o in out)
    assert all(jnp.all(jnp.isfinite(o["pooler_output"])) for o in out)

    # Also exercise the single-input branch.
    out_single = jax.block_until_ready(
        bert_wrapper_forward(params, [ids0], [am0], [tt0]))
    assert out_single["last_hidden_state"].shape == (B, S, CONFIG["hidden_size"])
    assert jnp.all(jnp.isfinite(out_single["pooler_output"]))

    print("KERNEL_OK")
</pallas_src>

<mosaic_0001>
module attributes {stable_mosaic.version = 11 : i64} {
  func.func @_bert_encoder_kernel(%arg0: i32, %arg1: memref<32x32xf32, #tpu.memory_space<vmem>>, %arg2: memref<1x32x32xf32, #tpu.memory_space<vmem>>, %arg3: memref<24x128xf32, #tpu.memory_space<vmem>>, %arg4: memref<2x32x96xf32, #tpu.memory_space<vmem>>, %arg5: memref<2x32x32xf32, #tpu.memory_space<vmem>>, %arg6: memref<2x32x64xf32, #tpu.memory_space<vmem>>, %arg7: memref<2x64x32xf32, #tpu.memory_space<vmem>>, %arg8: memref<32x32xf32, #tpu.memory_space<vmem>>, %arg9: memref<3x32x32xf32, #tpu.memory_space<vmem>>, %arg10: memref<1x4x32xf32, #tpu.memory_space<vmem>>) attributes {dimension_semantics = [#tpu.dimension_semantics<parallel>], iteration_bounds = array<i64: 1>, scalar_prefetch = 0 : i64, scratch_operands = 0 : i64, tpu.core_type = #tpu.core_type<tc>, window_params = [{transform_indices = @transform_0, window_bounds = array<i64: 32, 32>}, {transform_indices = @transform_1, window_bounds = array<i64: 1, 32, 32>}, {pipeline_mode = #tpu.pipeline_mode<synchronous>, transform_indices = @transform_2, window_bounds = array<i64: 24, 128>}, {pipeline_mode = #tpu.pipeline_mode<synchronous>, transform_indices = @transform_3, window_bounds = array<i64: 2, 32, 96>}, {pipeline_mode = #tpu.pipeline_mode<synchronous>, transform_indices = @transform_4, window_bounds = array<i64: 2, 32, 32>}, {pipeline_mode = #tpu.pipeline_mode<synchronous>, transform_indices = @transform_5, window_bounds = array<i64: 2, 32, 64>}, {pipeline_mode = #tpu.pipeline_mode<synchronous>, transform_indices = @transform_6, window_bounds = array<i64: 2, 64, 32>}, {pipeline_mode = #tpu.pipeline_mode<synchronous>, transform_indices = @transform_7, window_bounds = array<i64: 32, 32>}, {transform_indices = @transform_8, window_bounds = array<i64: 3, 32, 32>}, {transform_indices = @transform_9, window_bounds = array<i64: 1, 4, 32>}]} {
    %c0 = arith.constant 0 : index
    %c0_0 = arith.constant 0 : index
    %c0_1 = arith.constant 0 : index
    %0 = vector.load %arg2[%c0, %c0_0, %c0_1] : memref<1x32x32xf32, #tpu.memory_space<vmem>>, vector<1x32x32xf32>
    %1 = vector.shape_cast %0 : vector<1x32x32xf32> to vector<32x32xf32>
    %c0_2 = arith.constant 0 : index
    %c0_3 = arith.constant 0 : index
    %2 = vector.load %arg1[%c0_2, %c0_3] : memref<32x32xf32, #tpu.memory_space<vmem>>, vector<32x32xf32>
    %c0_4 = arith.constant 0 : index
    %c0_5 = arith.constant 0 : index
    %3 = vector.load %arg3[%c0_4, %c0_5] : memref<24x128xf32, #tpu.memory_space<vmem>>, vector<1x32xf32>
    %c1 = arith.constant 1 : index
    %c0_6 = arith.constant 0 : index
    %4 = vector.load %arg3[%c1, %c0_6] : memref<24x128xf32, #tpu.memory_space<vmem>>, vector<1x32xf32>
    %cst = arith.constant dense<0.000000e+00> : vector<32xf32>
    %5 = vector.multi_reduction <add>, %2, %cst [1] : vector<32x32xf32> to vector<32xf32>
    %6 = vector.shape_cast %5 : vector<32xf32> to vector<32x1xf32>
    %cst_7 = arith.constant 3.200000e+01 : f32
    %7 = vector.broadcast %cst_7 : f32 to vector<32x1xf32>
    %8 = arith.divf %6, %7 : vector<32x1xf32>
    %9 = vector.broadcast %8 : vector<32x1xf32> to vector<32x32xf32>
    %10 = arith.subf %2, %9 : vector<32x32xf32>
    %11 = arith.mulf %10, %10 : vector<32x32xf32>
    %cst_8 = arith.constant dense<0.000000e+00> : vector<32xf32>
    %12 = vector.multi_reduction <add>, %11, %cst_8 [1] : vector<32x32xf32> to vector<32xf32>
    %13 = vector.shape_cast %12 : vector<32xf32> to vector<32x1xf32>
    %cst_9 = arith.constant 3.200000e+01 : f32
    %14 = vector.broadcast %cst_9 : f32 to vector<32x1xf32>
    %15 = arith.divf %13, %14 : vector<32x1xf32>
    %cst_10 = arith.constant 9.99999996E-13 : f32
    %16 = vector.broadcast %cst_10 : f32 to vector<32x1xf32>
    %17 = arith.addf %15, %16 : vector<32x1xf32>
    %18 = math.rsqrt %17 : vector<32x1xf32>
    %19 = vector.broadcast %18 : vector<32x1xf32> to vector<32x32xf32>
    %20 = arith.mulf %10, %19 : vector<32x32xf32>
    %21 = vector.broadcast %3 : vector<1x32xf32> to vector<32x32xf32>
    %22 = arith.mulf %20, %21 : vector<32x32xf32>
    %23 = vector.broadcast %4 : vector<1x32xf32> to vector<32x32xf32>
    %24 = arith.addf %22, %23 : vector<32x32xf32>
    %c0_11 = arith.constant 0 : index
    %c0_12 = arith.constant 0 : index
    %c0_13 = arith.constant 0 : index
    %25 = vector.load %arg9[%c0_11, %c0_12, %c0_13] : memref<3x32x32xf32, #tpu.memory_space<vmem>>, vector<1x32x32xf32>
    %26 = vector.shape_cast %25 : vector<1x32x32xf32> to vector<32x32xf32>
    %27 = vector.shape_cast %24 : vector<32x32xf32> to vector<1x32x32xf32>
    tpu.vector_store %arg9[%c0_11, %c0_12, %c0_13], %27 {strides = array<i32>} : memref<3x32x32xf32, #tpu.memory_space<vmem>>, vector<1x32x32xf32>,
    %c0_14 = arith.constant 0 : index
    %c0_15 = arith.constant 0 : index
    %c0_16 = arith.constant 0 : index
    %28 = vector.load %arg4[%c0_14, %c0_15, %c0_16] : memref<2x32x96xf32, #tpu.memory_space<vmem>>, vector<1x32x8xf32>
    %29 = vector.shape_cast %28 : vector<1x32x8xf32> to vector<32x8xf32>
    %cst_17 = arith.constant dense<0.000000e+00> : vector<32x8xf32>
    %30 = tpu.matmul %24, %29, %cst_17 {dimension_numbers = #tpu.dot_dimension_numbers<[1], [0], [0], [1], [0, 0, 1, 1], [], []>} : vector<32x32xf32>, vector<32x8xf32>, vector<32x8xf32> -> vector<32x8xf32>
    %c3 = arith.constant 3 : index
    %c0_18 = arith.constant 0 : index
    %31 = vector.load %arg3[%c3, %c0_18] : memref<24x128xf32, #tpu.memory_space<vmem>>, vector<1x8xf32>
    %32 = vector.broadcast %31 : vector<1x8xf32> to vector<32x8xf32>
    %33 = arith.addf %30, %32 : vector<32x8xf32>
    %c0_19 = arith.constant 0 : index
    %c0_20 = arith.constant 0 : index
    %c32 = arith.constant 32 : index
    %34 = vector.load %arg4[%c0_19, %c0_20, %c32] : memref<2x32x96xf32, #tpu.memory_space<vmem>>, vector<1x32x8xf32>
    %35 = vector.shape_cast %34 : vector<1x32x8xf32> to vector<32x8xf32>
    %cst_21 = arith.constant dense<0.000000e+00> : vector<32x8xf32>
    %36 = tpu.matmul %24, %35, %cst_21 {dimension_numbers = #tpu.dot_dimension_numbers<[1], [0], [0], [1], [0, 0, 1, 1], [], []>} : vector<32x32xf32>, vector<32x8xf32>, vector<32x8xf32> -> vector<32x8xf32>
    %c3_22 = arith.constant 3 : index
    %c32_23 = arith.constant 32 : index
    %37 = vector.load %arg3[%c3_22, %c32_23] : memref<24x128xf32, #tpu.memory_space<vmem>>, vector<1x8xf32>
    %38 = vector.broadcast %37 : vector<1x8xf32> to vector<32x8xf32>
    %39 = arith.addf %36, %38 : vector<32x8xf32>
    %c0_24 = arith.constant 0 : index
    %c0_25 = arith.constant 0 : index
    %c64 = arith.constant 64 : index
    %40 = vector.load %arg4[%c0_24, %c0_25, %c64] : memref<2x32x96xf32, #tpu.memory_space<vmem>>, vector<1x32x8xf32>
    %41 = vector.shape_cast %40 : vector<1x32x8xf32> to vector<32x8xf32>
    %cst_26 = arith.constant dense<0.000000e+00> : vector<32x8xf32>
    %42 = tpu.matmul %24, %41, %cst_26 {dimension_numbers = #tpu.dot_dimension_numbers<[1], [0], [0], [1], [0, 0, 1, 1], [], []>} : vector<32x32xf32>, vector<32x8xf32>, vector<32x8xf32> -> vector<32x8xf32>
    %c3_27 = arith.constant 3 : index
    %c64_28 = arith.constant 64 : index
    %43 = vector.load %arg3[%c3_27, %c64_28] : memref<24x128xf32, #tpu.memory_space<vmem>>, vector<1x8xf32>
    %44 = vector.broadcast %43 : vector<1x8xf32> to vector<32x8xf32>
    %45 = arith.addf %42, %44 : vector<32x8xf32>
    %46 = tpu.transpose %39, [1, 0] : vector<32x8xf32> -> vector<8x32xf32>
    %cst_29 = arith.constant dense<0.000000e+00> : vector<32x32xf32>
    %47 = tpu.matmul %33, %46, %cst_29 {dimension_numbers = #tpu.dot_dimension_numbers<[1], [0], [0], [1], [0, 0, 1, 1], [], []>} : vector<32x8xf32>, vector<8x32xf32>, vector<32x32xf32> -> vector<32x32xf32>
    %cst_30 = arith.constant 0.353553385 : f32
    %48 = vector.broadcast %cst_30 : f32 to vector<32x32xf32>
    %49 = arith.mulf %47, %48 : vector<32x32xf32>
    %50 = arith.addf %49, %1 : vector<32x32xf32>
    %c0_31 = arith.constant 0 : index
    %c0_32 = arith.constant 0 : index
    %c8 = arith.constant 8 : index
    %51 = vector.load %arg4[%c0_31, %c0_32, %c8] : memref<2x32x96xf32, #tpu.memory_space<vmem>>, vector<1x32x8xf32>
    %52 = vector.shape_cast %51 : vector<1x32x8xf32> to vector<32x8xf32>
    %cst_33 = arith.constant dense<0.000000e+00> : vector<32x8xf32>
    %53 = tpu.matmul %24, %52, %cst_33 {dimension_numbers = #tpu.dot_dimension_numbers<[1], [0], [0], [1], [0, 0, 1, 1], [], []>} : vector<32x32xf32>, vector<32x8xf32>, vector<32x8xf32> -> vector<32x8xf32>
    %c3_34 = arith.constant 3 : index
    %c8_35 = arith.constant 8 : index
    %54 = vector.load %arg3[%c3_34, %c8_35] : memref<24x128xf32, #tpu.memory_space<vmem>>, vector<1x8xf32>
    %55 = vector.broadcast %54 : vector<1x8xf32> to vector<32x8xf32>
    %56 = arith.addf %53, %55 : vector<32x8xf32>
    %c0_36 = arith.constant 0 : index
    %c0_37 = arith.constant 0 : index
    %c40 = arith.constant 40 : index
    %57 = vector.load %arg4[%c0_36, %c0_37, %c40] : memref<2x32x96xf32, #tpu.memory_space<vmem>>, vector<1x32x8xf32>
    %58 = vector.shape_cast %57 : vector<1x32x8xf32> to vector<32x8xf32>
    %cst_38 = arith.constant dense<0.000000e+00> : vector<32x8xf32>
    %59 = tpu.matmul %24, %58, %cst_38 {dimension_numbers = #tpu.dot_dimension_numbers<[1], [0], [0], [1], [0, 0, 1, 1], [], []>} : vector<32x32xf32>, vector<32x8xf32>, vector<32x8xf32> -> vector<32x8xf32>
    %c3_39 = arith.constant 3 : index
    %c40_40 = arith.constant 40 : index
    %60 = vector.load %arg3[%c3_39, %c40_40] : memref<24x128xf32, #tpu.memory_space<vmem>>, vector<1x8xf32>
    %61 = vector.broadcast %60 : vector<1x8xf32> to vector<32x8xf32>
    %62 = arith.addf %59, %61 : vector<32x8xf32>
    %c0_41 = arith.constant 0 : index
    %c0_42 = arith.constant 0 : index
    %c72 = arith.constant 72 : index
    %63 = vector.load %arg4[%c0_41, %c0_42, %c72] : memref<2x32x96xf32, #tpu.memory_space<vmem>>, vector<1x32x8xf32>
    %64 = vector.shape_cast %63 : vector<1x32x8xf32> to vector<32x8xf32>
    %cst_43 = arith.constant dense<0.000000e+00> : vector<32x8xf32>
    %65 = tpu.matmul %24, %64, %cst_43 {dimension_numbers = #tpu.dot_dimension_numbers<[1], [0], [0], [1], [0, 0, 1, 1], [], []>} : vector<32x32xf32>, vector<32x8xf32>, vector<32x8xf32> -> vector<32x8xf32>
    %c3_44 = arith.constant 3 : index
    %c72_45 = arith.constant 72 : index
    %66 = vector.load %arg3[%c3_44, %c72_45] : memref<24x128xf32, #tpu.memory_space<vmem>>, vector<1x8xf32>
    %67 = vector.broadcast %66 : vector<1x8xf32> to vector<32x8xf32>
    %68 = arith.addf %65, %67 : vector<32x8xf32>
    %69 = tpu.transpose %62, [1, 0] : vector<32x8xf32> -> vector<8x32xf32>
    %cst_46 = arith.constant dense<0.000000e+00> : vector<32x32xf32>
    %70 = tpu.matmul %56, %69, %cst_46 {dimension_numbers = #tpu.dot_dimension_numbers<[1], [0], [0], [1], [0, 0, 1, 1], [], []>} : vector<32x8xf32>, vector<8x32xf32>, vector<32x32xf32> -> vector<32x32xf32>
    %cst_47 = arith.constant 0.353553385 : f32
    %71 = vector.broadcast %cst_47 : f32 to vector<32x32xf32>
    %72 = arith.mulf %70, %71 : vector<32x32xf32>
    %73 = arith.addf %72, %1 : vector<32x32xf32>
    %c0_48 = arith.constant 0 : index
    %c0_49 = arith.constant 0 : index
    %c16 = arith.constant 16 : index
    %74 = vector.load %arg4[%c0_48, %c0_49, %c16] : memref<2x32x96xf32, #tpu.memory_space<vmem>>, vector<1x32x8xf32>
    %75 = vector.shape_cast %74 : vector<1x32x8xf32> to vector<32x8xf32>
    %cst_50 = arith.constant dense<0.000000e+00> : vector<32x8xf32>
    %76 = tpu.matmul %24, %75, %cst_50 {dimension_numbers = #tpu.dot_dimension_numbers<[1], [0], [0], [1], [0, 0, 1, 1], [], []>} : vector<32x32xf32>, vector<32x8xf32>, vector<32x8xf32> -> vector<32x8xf32>
    %c3_51 = arith.constant 3 : index
    %c16_52 = arith.constant 16 : index
    %77 = vector.load %arg3[%c3_51, %c16_52] : memref<24x128xf32, #tpu.memory_space<vmem>>, vector<1x8xf32>
    %78 = vector.broadcast %77 : vector<1x8xf32> to vector<32x8xf32>
    %79 = arith.addf %76, %78 : vector<32x8xf32>
    %c0_53 = arith.constant 0 : index
    %c0_54 = arith.constant 0 : index
    %c48 = arith.constant 48 : index
    %80 = vector.load %arg4[%c0_53, %c0_54, %c48] : memref<2x32x96xf32, #tpu.memory_space<vmem>>, vector<1x32x8xf32>
    %81 = vector.shape_cast %80 : vector<1x32x8xf32> to vector<32x8xf32>
    %cst_55 = arith.constant dense<0.000000e+00> : vector<32x8xf32>
    %82 = tpu.matmul %24, %81, %cst_55 {dimension_numbers = #tpu.dot_dimension_numbers<[1], [0], [0], [1], [0, 0, 1, 1], [], []>} : vector<32x32xf32>, vector<32x8xf32>, vector<32x8xf32> -> vector<32x8xf32>
    %c3_56 = arith.constant 3 : index
    %c48_57 = arith.constant 48 : index
    %83 = vector.load %arg3[%c3_56, %c48_57] : memref<24x128xf32, #tpu.memory_space<vmem>>, vector<1x8xf32>
    %84 = vector.broadcast %83 : vector<1x8xf32> to vector<32x8xf32>
    %85 = arith.addf %82, %84 : vector<32x8xf32>
    %c0_58 = arith.constant 0 : index
    %c0_59 = arith.constant 0 : index
    %c80 = arith.constant 80 : index
    %86 = vector.load %arg4[%c0_58, %c0_59, %c80] : memref<2x32x96xf32, #tpu.memory_space<vmem>>, vector<1x32x8xf32>
    %87 = vector.shape_cast %86 : vector<1x32x8xf32> to vector<32x8xf32>
    %cst_60 = arith.constant dense<0.000000e+00> : vector<32x8xf32>
    %88 = tpu.matmul %24, %87, %cst_60 {dimension_numbers = #tpu.dot_dimension_numbers<[1], [0], [0], [1], [0, 0, 1, 1], [], []>} : vector<32x32xf32>, vector<32x8xf32>, vector<32x8xf32> -> vector<32x8xf32>
    %c3_61 = arith.constant 3 : index
    %c80_62 = arith.constant 80 : index
    %89 = vector.load %arg3[%c3_61, %c80_62] : memref<24x128xf32, #tpu.memory_space<vmem>>, vector<1x8xf32>
    %90 = vector.broadcast %89 : vector<1x8xf32> to vector<32x8xf32>
    %91 = arith.addf %88, %90 : vector<32x8xf32>
    %92 = tpu.transpose %85, [1, 0] : vector<32x8xf32> -> vector<8x32xf32>
    %cst_63 = arith.constant dense<0.000000e+00> : vector<32x32xf32>
    %93 = tpu.matmul %79, %92, %cst_63 {dimension_numbers = #tpu.dot_dimension_numbers<[1], [0], [0], [1], [0, 0, 1, 1], [], []>} : vector<32x8xf32>, vector<8x32xf32>, vector<32x32xf32> -> vector<32x32xf32>
    %cst_64 = arith.constant 0.353553385 : f32
    %94 = vector.broadcast %cst_64 : f32 to vector<32x32xf32>
    %95 = arith.mulf %93, %94 : vector<32x32xf32>
    %96 = arith.addf %95, %1 : vector<32x32xf32>
    %c0_65 = arith.constant 0 : index
    %c0_66 = arith.constant 0 : index
    %c24 = arith.constant 24 : index
    %97 = vector.load %arg4[%c0_65, %c0_66, %c24] : memref<2x32x96xf32, #tpu.memory_space<vmem>>, vector<1x32x8xf32>
    %98 = vector.shape_cast %97 : vector<1x32x8xf32> to vector<32x8xf32>
    %cst_67 = arith.constant dense<0.000000e+00> : vector<32x8xf32>
    %99 = tpu.matmul %24, %98, %cst_67 {dimension_numbers = #tpu.dot_dimension_numbers<[1], [0], [0], [1], [0, 0, 1, 1], [], []>} : vector<32x32xf32>, vector<32x8xf32>, vector<32x8xf32> -> vector<32x8xf32>
    %c3_68 = arith.constant 3 : index
    %c24_69 = arith.constant 24 : index
    %100 = vector.load %arg3[%c3_68, %c24_69] : memref<24x128xf32, #tpu.memory_space<vmem>>, vector<1x8xf32>
    %101 = vector.broadcast %100 : vector<1x8xf32> to vector<32x8xf32>
    %102 = arith.addf %99, %101 : vector<32x8xf32>
    %c0_70 = arith.constant 0 : index
    %c0_71 = arith.constant 0 : index
    %c56 = arith.constant 56 : index
    %103 = vector.load %arg4[%c0_70, %c0_71, %c56] : memref<2x32x96xf32, #tpu.memory_space<vmem>>, vector<1x32x8xf32>
    %104 = vector.shape_cast %103 : vector<1x32x8xf32> to vector<32x8xf32>
    %cst_72 = arith.constant dense<0.000000e+00> : vector<32x8xf32>
    %105 = tpu.matmul %24, %104, %cst_72 {dimension_numbers = #tpu.dot_dimension_numbers<[1], [0], [0], [1], [0, 0, 1, 1], [], []>} : vector<32x32xf32>, vector<32x8xf32>, vector<32x8xf32> -> vector<32x8xf32>
    %c3_73 = arith.constant 3 : index
    %c56_74 = arith.constant 56 : index
    %106 = vector.load %arg3[%c3_73, %c56_74] : memref<24x128xf32, #tpu.memory_space<vmem>>, vector<1x8xf32>
    %107 = vector.broadcast %106 : vector<1x8xf32> to vector<32x8xf32>
    %108 = arith.addf %105, %107 : vector<32x8xf32>
    %c0_75 = arith.constant 0 : index
    %c0_76 = arith.constant 0 : index
    %c88 = arith.constant 88 : index
    %109 = vector.load %arg4[%c0_75, %c0_76, %c88] : memref<2x32x96xf32, #tpu.memory_space<vmem>>, vector<1x32x8xf32>
    %110 = vector.shape_cast %109 : vector<1x32x8xf32> to vector<32x8xf32>
    %cst_77 = arith.constant dense<0.000000e+00> : vector<32x8xf32>
    %111 = tpu.matmul %24, %110, %cst_77 {dimension_numbers = #tpu.dot_dimension_numbers<[1], [0], [0], [1], [0, 0, 1, 1], [], []>} : vector<32x32xf32>, vector<32x8xf32>, vector<32x8xf32> -> vector<32x8xf32>
    %c3_78 = arith.constant 3 : index
    %c88_79 = arith.constant 88 : index
    %112 = vector.load %arg3[%c3_78, %c88_79] : memref<24x128xf32, #tpu.memory_space<vmem>>, vector<1x8xf32>
    %113 = vector.broadcast %112 : vector<1x8xf32> to vector<32x8xf32>
    %114 = arith.addf %111, %113 : vector<32x8xf32>
    %115 = tpu.transpose %108, [1, 0] : vector<32x8xf32> -> vector<8x32xf32>
    %cst_80 = arith.constant dense<0.000000e+00> : vector<32x32xf32>
    %116 = tpu.matmul %102, %115, %cst_80 {dimension_numbers = #tpu.dot_dimension_numbers<[1], [0], [0], [1], [0, 0, 1, 1], [], []>} : vector<32x8xf32>, vector<8x32xf32>, vector<32x32xf32> -> vector<32x32xf32>
    %cst_81 = arith.constant 0.353553385 : f32
    %117 = vector.broadcast %cst_81 : f32 to vector<32x32xf32>
    %118 = arith.mulf %116, %117 : vector<32x32xf32>
    %119 = arith.addf %118, %1 : vector<32x32xf32>
    %120 = tpu.concatenate %50, %73, %96, %119 in 0 : vector<32x32xf32>, vector<32x32xf32>, vector<32x32xf32>, vector<32x32xf32> -> vector<128x32xf32>
    %cst_82 = arith.constant dense<0xFF800000> : vector<128xf32>
    %121 = vector.multi_reduction <maximumf>, %120, %cst_82 [1] : vector<128x32xf32> to vector<128xf32>
    %122 = vector.shape_cast %121 : vector<128xf32> to vector<128x1xf32>
    %123 = vector.broadcast %122 : vector<128x1xf32> to vector<128x32xf32>
    %124 = arith.subf %120, %123 : vector<128x32xf32>
    %125 = math.exp %124 : vector<128x32xf32>
    %cst_83 = arith.constant dense<0.000000e+00> : vector<128xf32>
    %126 = vector.multi_reduction <add>, %125, %cst_83 [1] : vector<128x32xf32> to vector<128xf32>
    %127 = vector.shape_cast %126 : vector<128xf32> to vector<128x1xf32>
    %128 = tpu.reciprocal %127 {approx = true} : vector<128x1xf32> -> vector<128x1xf32>
    %129 = vector.broadcast %128 : vector<128x1xf32> to vector<128x32xf32>
    %130 = arith.mulf %125, %129 : vector<128x32xf32>
    %131 = vector.extract_strided_slice %130 {offsets = [0, 0], sizes = [32, 32], strides = [1, 1]} : vector<128x32xf32> to vector<32x32xf32>
    %cst_84 = arith.constant dense<0.000000e+00> : vector<32x8xf32>
    %132 = tpu.matmul %131, %45, %cst_84 {dimension_numbers = #tpu.dot_dimension_numbers<[1], [0], [0], [1], [0, 0, 1, 1], [], []>} : vector<32x32xf32>, vector<32x8xf32>, vector<32x8xf32> -> vector<32x8xf32>
    %c0_85 = arith.constant 0 : index
    %c0_86 = arith.constant 0 : index
    %c0_87 = arith.constant 0 : index
    %133 = vector.load %arg5[%c0_85, %c0_86, %c0_87] : memref<2x32x32xf32, #tpu.memory_space<vmem>>, vector<1x8x32xf32>
    %134 = vector.shape_cast %133 : vector<1x8x32xf32> to vector<8x32xf32>
    %cst_88 = arith.constant dense<0.000000e+00> : vector<32x32xf32>
    %135 = tpu.matmul %132, %134, %cst_88 {dimension_numbers = #tpu.dot_dimension_numbers<[1], [0], [0], [1], [0, 0, 1, 1], [], []>} : vector<32x8xf32>, vector<8x32xf32>, vector<32x32xf32> -> vector<32x32xf32>
    %136 = vector.extract_strided_slice %130 {offsets = [32, 0], sizes = [32, 32], strides = [1, 1]} : vector<128x32xf32> to vector<32x32xf32>
    %cst_89 = arith.constant dense<0.000000e+00> : vector<32x8xf32>
    %137 = tpu.matmul %136, %68, %cst_89 {dimension_numbers = #tpu.dot_dimension_numbers<[1], [0], [0], [1], [0, 0, 1, 1], [], []>} : vector<32x32xf32>, vector<32x8xf32>, vector<32x8xf32> -> vector<32x8xf32>
    %c0_90 = arith.constant 0 : index
    %c8_91 = arith.constant 8 : index
    %c0_92 = arith.constant 0 : index
    %138 = vector.load %arg5[%c0_90, %c8_91, %c0_92] : memref<2x32x32xf32, #tpu.memory_space<vmem>>, vector<1x8x32xf32>
    %139 = vector.shape_cast %138 : vector<1x8x32xf32> to vector<8x32xf32>
    %cst_93 = arith.constant dense<0.000000e+00> : vector<32x32xf32>
    %140 = tpu.matmul %137, %139, %cst_93 {dimension_numbers = #tpu.dot_dimension_numbers<[1], [0], [0], [1], [0, 0, 1, 1], [], []>} : vector<32x8xf32>, vector<8x32xf32>, vector<32x32xf32> -> vector<32x32xf32>
    %141 = arith.addf %135, %140 : vector<32x32xf32>
    %142 = vector.extract_strided_slice %130 {offsets = [64, 0], sizes = [32, 32], strides = [1, 1]} : vector<128x32xf32> to vector<32x32xf32>
    %cst_94 = arith.constant dense<0.000000e+00> : vector<32x8xf32>
    %143 = tpu.matmul %142, %91, %cst_94 {dimension_numbers = #tpu.dot_dimension_numbers<[1], [0], [0], [1], [0, 0, 1, 1], [], []>} : vector<32x32xf32>, vector<32x8xf32>, vector<32x8xf32> -> vector<32x8xf32>
    %c0_95 = arith.constant 0 : index
    %c16_96 = arith.constant 16 : index
    %c0_97 = arith.constant 0 : index
    %144 = vector.load %arg5[%c0_95, %c16_96, %c0_97] : memref<2x32x32xf32, #tpu.memory_space<vmem>>, vector<1x8x32xf32>
    %145 = vector.shape_cast %144 : vector<1x8x32xf32> to vector<8x32xf32>
    %cst_98 = arith.constant dense<0.000000e+00> : vector<32x32xf32>
    %146 = tpu.matmul %143, %145, %cst_98 {dimension_numbers = #tpu.dot_dimension_numbers<[1], [0], [0], [1], [0, 0, 1, 1], [], []>} : vector<32x8xf32>, vector<8x32xf32>, vector<32x32xf32> -> vector<32x32xf32>
    %147 = arith.addf %141, %146 : vector<32x32xf32>
    %148 = vector.extract_strided_slice %130 {offsets = [96, 0], sizes = [32, 32], strides = [1, 1]} : vector<128x32xf32> to vector<32x32xf32>
    %cst_99 = arith.constant dense<0.000000e+00> : vector<32x8xf32>
    %149 = tpu.matmul %148, %114, %cst_99 {dimension_numbers = #tpu.dot_dimension_numbers<[1], [0], [0], [1], [0, 0, 1, 1], [], []>} : vector<32x32xf32>, vector<32x8xf32>, vector<32x8xf32> -> vector<32x8xf32>
    %c0_100 = arith.constant 0 : index
    %c24_101 = arith.constant 24 : index
    %c0_102 = arith.constant 0 : index
    %150 = vector.load %arg5[%c0_100, %c24_101, %c0_102] : memref<2x32x32xf32, #tpu.memory_space<vmem>>, vector<1x8x32xf32>
    %151 = vector.shape_cast %150 : vector<1x8x32xf32> to vector<8x32xf32>
    %cst_103 = arith.constant dense<0.000000e+00> : vector<32x32xf32>
    %152 = tpu.matmul %149, %151, %cst_103 {dimension_numbers = #tpu.dot_dimension_numbers<[1], [0], [0], [1], [0, 0, 1, 1], [], []>} : vector<32x8xf32>, vector<8x32xf32>, vector<32x32xf32> -> vector<32x32xf32>
    %153 = arith.addf %147, %152 : vector<32x32xf32>
    %c4 = arith.constant 4 : index
    %c0_104 = arith.constant 0 : index
    %154 = vector.load %arg3[%c4, %c0_104] : memref<24x128xf32, #tpu.memory_space<vmem>>, vector<1x32xf32>
    %155 = vector.broadcast %154 : vector<1x32xf32> to vector<32x32xf32>
    %156 = arith.addf %153, %155 : vector<32x32xf32>
    %157 = arith.addf %156, %24 : vector<32x32xf32>
    %c5 = arith.constant 5 : index
    %c0_105 = arith.constant 0 : index
    %158 = vector.load %arg3[%c5, %c0_105] : memref<24x128xf32, #tpu.memory_space<vmem>>, vector<1x32xf32>
    %c6 = arith.constant 6 : index
    %c0_106 = arith.constant 0 : index
    %159 = vector.load %arg3[%c6, %c0_106] : memref<24x128xf32, #tpu.memory_space<vmem>>, vector<1x32xf32>
    %cst_107 = arith.constant dense<0.000000e+00> : vector<32xf32>
    %160 = vector.multi_reduction <add>, %157, %cst_107 [1] : vector<32x32xf32> to vector<32xf32>
    %161 = vector.shape_cast %160 : vector<32xf32> to vector<32x1xf32>
    %cst_108 = arith.constant 3.200000e+01 : f32
    %162 = vector.broadcast %cst_108 : f32 to vector<32x1xf32>
    %163 = arith.divf %161, %162 : vector<32x1xf32>
    %164 = vector.broadcast %163 : vector<32x1xf32> to vector<32x32xf32>
    %165 = arith.subf %157, %164 : vector<32x32xf32>
    %166 = arith.mulf %165, %165 : vector<32x32xf32>
    %cst_109 = arith.constant dense<0.000000e+00> : vector<32xf32>
    %167 = vector.multi_reduction <add>, %166, %cst_109 [1] : vector<32x32xf32> to vector<32xf32>
    %168 = vector.shape_cast %167 : vector<32xf32> to vector<32x1xf32>
    %cst_110 = arith.constant 3.200000e+01 : f32
    %169 = vector.broadcast %cst_110 : f32 to vector<32x1xf32>
    %170 = arith.divf %168, %169 : vector<32x1xf32>
    %cst_111 = arith.constant 9.99999996E-13 : f32
    %171 = vector.broadcast %cst_111 : f32 to vector<32x1xf32>
    %172 = arith.addf %170, %171 : vector<32x1xf32>
    %173 = math.rsqrt %172 : vector<32x1xf32>
    %174 = vector.broadcast %173 : vector<32x1xf32> to vector<32x32xf32>
    %175 = arith.mulf %165, %174 : vector<32x32xf32>
    %176 = vector.broadcast %158 : vector<1x32xf32> to vector<32x32xf32>
    %177 = arith.mulf %175, %176 : vector<32x32xf32>
    %178 = vector.broadcast %159 : vector<1x32xf32> to vector<32x32xf32>
    %179 = arith.addf %177, %178 : vector<32x32xf32>
    %c0_112 = arith.constant 0 : index
    %c0_113 = arith.constant 0 : index
    %c0_114 = arith.constant 0 : index
    %180 = vector.load %arg6[%c0_112, %c0_113, %c0_114] : memref<2x32x64xf32, #tpu.memory_space<vmem>>, vector<1x32x64xf32>
    %181 = vector.shape_cast %180 : vector<1x32x64xf32> to vector<32x64xf32>
    %cst_115 = arith.constant dense<0.000000e+00> : vector<32x64xf32>
    %182 = tpu.matmul %179, %181, %cst_115 {dimension_numbers = #tpu.dot_dimension_numbers<[1], [0], [0], [1], [0, 0, 1, 1], [], []>} : vector<32x32xf32>, vector<32x64xf32>, vector<32x64xf32> -> vector<32x64xf32>
    %c7 = arith.constant 7 : index
    %c0_116 = arith.constant 0 : index
    %183 = vector.load %arg3[%c7, %c0_116] : memref<24x128xf32, #tpu.memory_space<vmem>>, vector<1x64xf32>
    %184 = vector.broadcast %183 : vector<1x64xf32> to vector<32x64xf32>
    %185 = arith.addf %182, %184 : vector<32x64xf32>
    %cst_117 = arith.constant 5.000000e-01 : f32
    %186 = vector.broadcast %cst_117 : f32 to vector<32x64xf32>
    %187 = arith.mulf %186, %185 : vector<32x64xf32>
    %cst_118 = arith.constant 4.471500e-02 : f32
    %188 = vector.broadcast %cst_118 : f32 to vector<32x64xf32>
    %189 = arith.mulf %188, %185 : vector<32x64xf32>
    %190 = arith.mulf %189, %185 : vector<32x64xf32>
    %191 = arith.mulf %190, %185 : vector<32x64xf32>
    %192 = arith.addf %185, %191 : vector<32x64xf32>
    %cst_119 = arith.constant 0.797884583 : f32
    %193 = vector.broadcast %cst_119 : f32 to vector<32x64xf32>
    %194 = arith.mulf %193, %192 : vector<32x64xf32>
    %195 = math.tanh %194 : vector<32x64xf32>
    %cst_120 = arith.constant 1.000000e+00 : f32
    %196 = vector.broadcast %cst_120 : f32 to vector<32x64xf32>
    %197 = arith.addf %196, %195 : vector<32x64xf32>
    %198 = arith.mulf %187, %197 : vector<32x64xf32>
    %c0_121 = arith.constant 0 : index
    %c0_122 = arith.constant 0 : index
    %c0_123 = arith.constant 0 : index
    %199 = vector.load %arg7[%c0_121, %c0_122, %c0_123] : memref<2x64x32xf32, #tpu.memory_space<vmem>>, vector<1x64x32xf32>
    %200 = vector.shape_cast %199 : vector<1x64x32xf32> to vector<64x32xf32>
    %cst_124 = arith.constant dense<0.000000e+00> : vector<32x32xf32>
    %201 = tpu.matmul %198, %200, %cst_124 {dimension_numbers = #tpu.dot_dimension_numbers<[1], [0], [0], [1], [0, 0, 1, 1], [], []>} : vector<32x64xf32>, vector<64x32xf32>, vector<32x32xf32> -> vector<32x32xf32>
    %c8_125 = arith.constant 8 : index
    %c0_126 = arith.constant 0 : index
    %202 = vector.load %arg3[%c8_125, %c0_126] : memref<24x128xf32, #tpu.memory_space<vmem>>, vector<1x32xf32>
    %203 = vector.broadcast %202 : vector<1x32xf32> to vector<32x32xf32>
    %204 = arith.addf %201, %203 : vector<32x32xf32>
    %205 = arith.addf %204, %179 : vector<32x32xf32>
    %c9 = arith.constant 9 : index
    %c0_127 = arith.constant 0 : index
    %206 = vector.load %arg3[%c9, %c0_127] : memref<24x128xf32, #tpu.memory_space<vmem>>, vector<1x32xf32>
    %c10 = arith.constant 10 : index
    %c0_128 = arith.constant 0 : index
    %207 = vector.load %arg3[%c10, %c0_128] : memref<24x128xf32, #tpu.memory_space<vmem>>, vector<1x32xf32>
    %cst_129 = arith.constant dense<0.000000e+00> : vector<32xf32>
    %208 = vector.multi_reduction <add>, %205, %cst_129 [1] : vector<32x32xf32> to vector<32xf32>
    %209 = vector.shape_cast %208 : vector<32xf32> to vector<32x1xf32>
    %cst_130 = arith.constant 3.200000e+01 : f32
    %210 = vector.broadcast %cst_130 : f32 to vector<32x1xf32>
    %211 = arith.divf %209, %210 : vector<32x1xf32>
    %212 = vector.broadcast %211 : vector<32x1xf32> to vector<32x32xf32>
    %213 = arith.subf %205, %212 : vector<32x32xf32>
    %214 = arith.mulf %213, %213 : vector<32x32xf32>
    %cst_131 = arith.constant dense<0.000000e+00> : vector<32xf32>
    %215 = vector.multi_reduction <add>, %214, %cst_131 [1] : vector<32x32xf32> to vector<32xf32>
    %216 = vector.shape_cast %215 : vector<32xf32> to vector<32x1xf32>
    %cst_132 = arith.constant 3.200000e+01 : f32
    %217 = vector.broadcast %cst_132 : f32 to vector<32x1xf32>
    %218 = arith.divf %216, %217 : vector<32x1xf32>
    %cst_133 = arith.constant 9.99999996E-13 : f32
    %219 = vector.broadcast %cst_133 : f32 to vector<32x1xf32>
    %220 = arith.addf %218, %219 : vector<32x1xf32>
    %221 = math.rsqrt %220 : vector<32x1xf32>
    %222 = vector.broadcast %221 : vector<32x1xf32> to vector<32x32xf32>
    %223 = arith.mulf %213, %222 : vector<32x32xf32>
    %224 = vector.broadcast %206 : vector<1x32xf32> to vector<32x32xf32>
    %225 = arith.mulf %223, %224 : vector<32x32xf32>
    %226 = vector.broadcast %207 : vector<1x32xf32> to vector<32x32xf32>
    %227 = arith.addf %225, %226 : vector<32x32xf32>
    %c1_134 = arith.constant 1 : index
    %c0_135 = arith.constant 0 : index
    %c0_136 = arith.constant 0 : index
    %228 = vector.load %arg9[%c1_134, %c0_135, %c0_136] : memref<3x32x32xf32, #tpu.memory_space<vmem>>, vector<1x32x32xf32>
    %229 = vector.shape_cast %228 : vector<1x32x32xf32> to vector<32x32xf32>
    %230 = vector.shape_cast %227 : vector<32x32xf32> to vector<1x32x32xf32>
    tpu.vector_store %arg9[%c1_134, %c0_135, %c0_136], %230 {strides = array<i32>} : memref<3x32x32xf32, #tpu.memory_space<vmem>>, vector<1x32x32xf32>,
    %c1_137 = arith.constant 1 : index
    %c0_138 = arith.constant 0 : index
    %c0_139 = arith.constant 0 : index
    %231 = vector.load %arg4[%c1_137, %c0_138, %c0_139] : memref<2x32x96xf32, #tpu.memory_space<vmem>>, vector<1x32x8xf32>
    %232 = vector.shape_cast %231 : vector<1x32x8xf32> to vector<32x8xf32>
    %cst_140 = arith.constant dense<0.000000e+00> : vector<32x8xf32>
    %233 = tpu.matmul %227, %232, %cst_140 {dimension_numbers = #tpu.dot_dimension_numbers<[1], [0], [0], [1], [0, 0, 1, 1], [], []>} : vector<32x32xf32>, vector<32x8xf32>, vector<32x8xf32> -> vector<32x8xf32>
    %c11 = arith.constant 11 : index
    %c0_141 = arith.constant 0 : index
    %234 = vector.load %arg3[%c11, %c0_141] : memref<24x128xf32, #tpu.memory_space<vmem>>, vector<1x8xf32>
    %235 = vector.broadcast %234 : vector<1x8xf32> to vector<32x8xf32>
    %236 = arith.addf %233, %235 : vector<32x8xf32>
    %c1_142 = arith.constant 1 : index
    %c0_143 = arith.constant 0 : index
    %c32_144 = arith.constant 32 : index
    %237 = vector.load %arg4[%c1_142, %c0_143, %c32_144] : memref<2x32x96xf32, #tpu.memory_space<vmem>>, vector<1x32x8xf32>
    %238 = vector.shape_cast %237 : vector<1x32x8xf32> to vector<32x8xf32>
    %cst_145 = arith.constant dense<0.000000e+00> : vector<32x8xf32>
    %239 = tpu.matmul %227, %238, %cst_145 {dimension_numbers = #tpu.dot_dimension_numbers<[1], [0], [0], [1], [0, 0, 1, 1], [], []>} : vector<32x32xf32>, vector<32x8xf32>, vector<32x8xf32> -> vector<32x8xf32>
    %c11_146 = arith.constant 11 : index
    %c32_147 = arith.constant 32 : index
    %240 = vector.load %arg3[%c11_146, %c32_147] : memref<24x128xf32, #tpu.memory_space<vmem>>, vector<1x8xf32>
    %241 = vector.broadcast %240 : vector<1x8xf32> to vector<32x8xf32>
    %242 = arith.addf %239, %241 : vector<32x8xf32>
    %c1_148 = arith.constant 1 : index
    %c0_149 = arith.constant 0 : index
    %c64_150 = arith.constant 64 : index
    %243 = vector.load %arg4[%c1_148, %c0_149, %c64_150] : memref<2x32x96xf32, #tpu.memory_space<vmem>>, vector<1x32x8xf32>
    %244 = vector.shape_cast %243 : vector<1x32x8xf32> to vector<32x8xf32>
    %cst_151 = arith.constant dense<0.000000e+00> : vector<32x8xf32>
    %245 = tpu.matmul %227, %244, %cst_151 {dimension_numbers = #tpu.dot_dimension_numbers<[1], [0], [0], [1], [0, 0, 1, 1], [], []>} : vector<32x32xf32>, vector<32x8xf32>, vector<32x8xf32> -> vector<32x8xf32>
    %c11_152 = arith.constant 11 : index
    %c64_153 = arith.constant 64 : index
    %246 = vector.load %arg3[%c11_152, %c64_153] : memref<24x128xf32, #tpu.memory_space<vmem>>, vector<1x8xf32>
    %247 = vector.broadcast %246 : vector<1x8xf32> to vector<32x8xf32>
    %248 = arith.addf %245, %247 : vector<32x8xf32>
    %249 = tpu.transpose %242, [1, 0] : vector<32x8xf32> -> vector<8x32xf32>
    %cst_154 = arith.constant dense<0.000000e+00> : vector<32x32xf32>
    %250 = tpu.matmul %236, %249, %cst_154 {dimension_numbers = #tpu.dot_dimension_numbers<[1], [0], [0], [1], [0, 0, 1, 1], [], []>} : vector<32x8xf32>, vector<8x32xf32>, vector<32x32xf32> -> vector<32x32xf32>
    %cst_155 = arith.constant 0.353553385 : f32
    %251 = vector.broadcast %cst_155 : f32 to vector<32x32xf32>
    %252 = arith.mulf %250, %251 : vector<32x32xf32>
    %253 = arith.addf %252, %1 : vector<32x32xf32>
    %c1_156 = arith.constant 1 : index
    %c0_157 = arith.constant 0 : index
    %c8_158 = arith.constant 8 : index
    %254 = vector.load %arg4[%c1_156, %c0_157, %c8_158] : memref<2x32x96xf32, #tpu.memory_space<vmem>>, vector<1x32x8xf32>
    %255 = vector.shape_cast %254 : vector<1x32x8xf32> to vector<32x8xf32>
    %cst_159 = arith.constant dense<0.000000e+00> : vector<32x8xf32>
    %256 = tpu.matmul %227, %255, %cst_159 {dimension_numbers = #tpu.dot_dimension_numbers<[1], [0], [0], [1], [0, 0, 1, 1], [], []>} : vector<32x32xf32>, vector<32x8xf32>, vector<32x8xf32> -> vector<32x8xf32>
    %c11_160 = arith.constant 11 : index
    %c8_161 = arith.constant 8 : index
    %257 = vector.load %arg3[%c11_160, %c8_161] : memref<24x128xf32, #tpu.memory_space<vmem>>, vector<1x8xf32>
    %258 = vector.broadcast %257 : vector<1x8xf32> to vector<32x8xf32>
    %259 = arith.addf %256, %258 : vector<32x8xf32>
    %c1_162 = arith.constant 1 : index
    %c0_163 = arith.constant 0 : index
    %c40_164 = arith.constant 40 : index
    %260 = vector.load %arg4[%c1_162, %c0_163, %c40_164] : memref<2x32x96xf32, #tpu.memory_space<vmem>>, vector<1x32x8xf32>
    %261 = vector.shape_cast %260 : vector<1x32x8xf32> to vector<32x8xf32>
    %cst_165 = arith.constant dense<0.000000e+00> : vector<32x8xf32>
    %262 = tpu.matmul %227, %261, %cst_165 {dimension_numbers = #tpu.dot_dimension_numbers<[1], [0], [0], [1], [0, 0, 1, 1], [], []>} : vector<32x32xf32>, vector<32x8xf32>, vector<32x8xf32> -> vector<32x8xf32>
    %c11_166 = arith.constant 11 : index
    %c40_167 = arith.constant 40 : index
    %263 = vector.load %arg3[%c11_166, %c40_167] : memref<24x128xf32, #tpu.memory_space<vmem>>, vector<1x8xf32>
    %264 = vector.broadcast %263 : vector<1x8xf32> to vector<32x8xf32>
    %265 = arith.addf %262, %264 : vector<32x8xf32>
    %c1_168 = arith.constant 1 : index
    %c0_169 = arith.constant 0 : index
    %c72_170 = arith.constant 72 : index
    %266 = vector.load %arg4[%c1_168, %c0_169, %c72_170] : memref<2x32x96xf32, #tpu.memory_space<vmem>>, vector<1x32x8xf32>
    %267 = vector.shape_cast %266 : vector<1x32x8xf32> to vector<32x8xf32>
    %cst_171 = arith.constant dense<0.000000e+00> : vector<32x8xf32>
    %268 = tpu.matmul %227, %267, %cst_171 {dimension_numbers = #tpu.dot_dimension_numbers<[1], [0], [0], [1], [0, 0, 1, 1], [], []>} : vector<32x32xf32>, vector<32x8xf32>, vector<32x8xf32> -> vector<32x8xf32>
    %c11_172 = arith.constant 11 : index
    %c72_173 = arith.constant 72 : index
    %269 = vector.load %arg3[%c11_172, %c72_173] : memref<24x128xf32, #tpu.memory_space<vmem>>, vector<1x8xf32>
    %270 = vector.broadcast %269 : vector<1x8xf32> to vector<32x8xf32>
    %271 = arith.addf %268, %270 : vector<32x8xf32>
    %272 = tpu.transpose %265, [1, 0] : vector<32x8xf32> -> vector<8x32xf32>
    %cst_174 = arith.constant dense<0.000000e+00> : vector<32x32xf32>
    %273 = tpu.matmul %259, %272, %cst_174 {dimension_numbers = #tpu.dot_dimension_numbers<[1], [0], [0], [1], [0, 0, 1, 1], [], []>} : vector<32x8xf32>, vector<8x32xf32>, vector<32x32xf32> -> vector<32x32xf32>
    %cst_175 = arith.constant 0.353553385 : f32
    %274 = vector.broadcast %cst_175 : f32 to vector<32x32xf32>
    %275 = arith.mulf %273, %274 : vector<32x32xf32>
    %276 = arith.addf %275, %1 : vector<32x32xf32>
    %c1_176 = arith.constant 1 : index
    %c0_177 = arith.constant 0 : index
    %c16_178 = arith.constant 16 : index
    %277 = vector.load %arg4[%c1_176, %c0_177, %c16_178] : memref<2x32x96xf32, #tpu.memory_space<vmem>>, vector<1x32x8xf32>
    %278 = vector.shape_cast %277 : vector<1x32x8xf32> to vector<32x8xf32>
    %cst_179 = arith.constant dense<0.000000e+00> : vector<32x8xf32>
    %279 = tpu.matmul %227, %278, %cst_179 {dimension_numbers = #tpu.dot_dimension_numbers<[1], [0], [0], [1], [0, 0, 1, 1], [], []>} : vector<32x32xf32>, vector<32x8xf32>, vector<32x8xf32> -> vector<32x8xf32>
    %c11_180 = arith.constant 11 : index
    %c16_181 = arith.constant 16 : index
    %280 = vector.load %arg3[%c11_180, %c16_181] : memref<24x128xf32, #tpu.memory_space<vmem>>, vector<1x8xf32>
    %281 = vector.broadcast %280 : vector<1x8xf32> to vector<32x8xf32>
    %282 = arith.addf %279, %281 : vector<32x8xf32>
    %c1_182 = arith.constant 1 : index
    %c0_183 = arith.constant 0 : index
    %c48_184 = arith.constant 48 : index
    %283 = vector.load %arg4[%c1_182, %c0_183, %c48_184] : memref<2x32x96xf32, #tpu.memory_space<vmem>>, vector<1x32x8xf32>
    %284 = vector.shape_cast %283 : vector<1x32x8xf32> to vector<32x8xf32>
    %cst_185 = arith.constant dense<0.000000e+00> : vector<32x8xf32>
    %285 = tpu.matmul %227, %284, %cst_185 {dimension_numbers = #tpu.dot_dimension_numbers<[1], [0], [0], [1], [0, 0, 1, 1], [], []>} : vector<32x32xf32>, vector<32x8xf32>, vector<32x8xf32> -> vector<32x8xf32>
    %c11_186 = arith.constant 11 : index
    %c48_187 = arith.constant 48 : index
    %286 = vector.load %arg3[%c11_186, %c48_187] : memref<24x128xf32, #tpu.memory_space<vmem>>, vector<1x8xf32>
    %287 = vector.broadcast %286 : vector<1x8xf32> to vector<32x8xf32>
    %288 = arith.addf %285, %287 : vector<32x8xf32>
    %c1_188 = arith.constant 1 : index
    %c0_189 = arith.constant 0 : index
    %c80_190 = arith.constant 80 : index
    %289 = vector.load %arg4[%c1_188, %c0_189, %c80_190] : memref<2x32x96xf32, #tpu.memory_space<vmem>>, vector<1x32x8xf32>
    %290 = vector.shape_cast %289 : vector<1x32x8xf32> to vector<32x8xf32>
    %cst_191 = arith.constant dense<0.000000e+00> : vector<32x8xf32>
    %291 = tpu.matmul %227, %290, %cst_191 {dimension_numbers = #tpu.dot_dimension_numbers<[1], [0], [0], [1], [0, 0, 1, 1], [], []>} : vector<32x32xf32>, vector<32x8xf32>, vector<32x8xf32> -> vector<32x8xf32>
    %c11_192 = arith.constant 11 : index
    %c80_193 = arith.constant 80 : index
    %292 = vector.load %arg3[%c11_192, %c80_193] : memref<24x128xf32, #tpu.memory_space<vmem>>, vector<1x8xf32>
    %293 = vector.broadcast %292 : vector<1x8xf32> to vector<32x8xf32>
    %294 = arith.addf %291, %293 : vector<32x8xf32>
    %295 = tpu.transpose %288, [1, 0] : vector<32x8xf32> -> vector<8x32xf32>
    %cst_194 = arith.constant dense<0.000000e+00> : vector<32x32xf32>
    %296 = tpu.matmul %282, %295, %cst_194 {dimension_numbers = #tpu.dot_dimension_numbers<[1], [0], [0], [1], [0, 0, 1, 1], [], []>} : vector<32x8xf32>, vector<8x32xf32>, vector<32x32xf32> -> vector<32x32xf32>
    %cst_195 = arith.constant 0.353553385 : f32
    %297 = vector.broadcast %cst_195 : f32 to vector<32x32xf32>
    %298 = arith.mulf %296, %297 : vector<32x32xf32>
    %299 = arith.addf %298, %1 : vector<32x32xf32>
    %c1_196 = arith.constant 1 : index
    %c0_197 = arith.constant 0 : index
    %c24_198 = arith.constant 24 : index
    %300 = vector.load %arg4[%c1_196, %c0_197, %c24_198] : memref<2x32x96xf32, #tpu.memory_space<vmem>>, vector<1x32x8xf32>
    %301 = vector.shape_cast %300 : vector<1x32x8xf32> to vector<32x8xf32>
    %cst_199 = arith.constant dense<0.000000e+00> : vector<32x8xf32>
    %302 = tpu.matmul %227, %301, %cst_199 {dimension_numbers = #tpu.dot_dimension_numbers<[1], [0], [0], [1], [0, 0, 1, 1], [], []>} : vector<32x32xf32>, vector<32x8xf32>, vector<32x8xf32> -> vector<32x8xf32>
    %c11_200 = arith.constant 11 : index
    %c24_201 = arith.constant 24 : index
    %303 = vector.load %arg3[%c11_200, %c24_201] : memref<24x128xf32, #tpu.memory_space<vmem>>, vector<1x8xf32>
    %304 = vector.broadcast %303 : vector<1x8xf32> to vector<32x8xf32>
    %305 = arith.addf %302, %304 : vector<32x8xf32>
    %c1_202 = arith.constant 1 : index
    %c0_203 = arith.constant 0 : index
    %c56_204 = arith.constant 56 : index
    %306 = vector.load %arg4[%c1_202, %c0_203, %c56_204] : memref<2x32x96xf32, #tpu.memory_space<vmem>>, vector<1x32x8xf32>
    %307 = vector.shape_cast %306 : vector<1x32x8xf32> to vector<32x8xf32>
    %cst_205 = arith.constant dense<0.000000e+00> : vector<32x8xf32>
    %308 = tpu.matmul %227, %307, %cst_205 {dimension_numbers = #tpu.dot_dimension_numbers<[1], [0], [0], [1], [0, 0, 1, 1], [], []>} : vector<32x32xf32>, vector<32x8xf32>, vector<32x8xf32> -> vector<32x8xf32>
    %c11_206 = arith.constant 11 : index
    %c56_207 = arith.constant 56 : index
    %309 = vector.load %arg3[%c11_206, %c56_207] : memref<24x128xf32, #tpu.memory_space<vmem>>, vector<1x8xf32>
    %310 = vector.broadcast %309 : vector<1x8xf32> to vector<32x8xf32>
    %311 = arith.addf %308, %310 : vector<32x8xf32>
    %c1_208 = arith.constant 1 : index
    %c0_209 = arith.constant 0 : index
    %c88_210 = arith.constant 88 : index
    %312 = vector.load %arg4[%c1_208, %c0_209, %c88_210] : memref<2x32x96xf32, #tpu.memory_space<vmem>>, vector<1x32x8xf32>
    %313 = vector.shape_cast %312 : vector<1x32x8xf32> to vector<32x8xf32>
    %cst_211 = arith.constant dense<0.000000e+00> : vector<32x8xf32>
    %314 = tpu.matmul %227, %313, %cst_211 {dimension_numbers = #tpu.dot_dimension_numbers<[1], [0], [0], [1], [0, 0, 1, 1], [], []>} : vector<32x32xf32>, vector<32x8xf32>, vector<32x8xf32> -> vector<32x8xf32>
    %c11_212 = arith.constant 11 : index
    %c88_213 = arith.constant 88 : index
    %315 = vector.load %arg3[%c11_212, %c88_213] : memref<24x128xf32, #tpu.memory_space<vmem>>, vector<1x8xf32>
    %316 = vector.broadcast %315 : vector<1x8xf32> to vector<32x8xf32>
    %317 = arith.addf %314, %316 : vector<32x8xf32>
    %318 = tpu.transpose %311, [1, 0] : vector<32x8xf32> -> vector<8x32xf32>
    %cst_214 = arith.constant dense<0.000000e+00> : vector<32x32xf32>
    %319 = tpu.matmul %305, %318, %cst_214 {dimension_numbers = #tpu.dot_dimension_numbers<[1], [0], [0], [1], [0, 0, 1, 1], [], []>} : vector<32x8xf32>, vector<8x32xf32>, vector<32x32xf32> -> vector<32x32xf32>
    %cst_215 = arith.constant 0.353553385 : f32
    %320 = vector.broadcast %cst_215 : f32 to vector<32x32xf32>
    %321 = arith.mulf %319, %320 : vector<32x32xf32>
    %322 = arith.addf %321, %1 : vector<32x32xf32>
    %323 = tpu.concatenate %253, %276, %299, %322 in 0 : vector<32x32xf32>, vector<32x32xf32>, vector<32x32xf32>, vector<32x32xf32> -> vector<128x32xf32>
    %cst_216 = arith.constant dense<0xFF800000> : vector<128xf32>
    %324 = vector.multi_reduction <maximumf>, %323, %cst_216 [1] : vector<128x32xf32> to vector<128xf32>
    %325 = vector.shape_cast %324 : vector<128xf32> to vector<128x1xf32>
    %326 = vector.broadcast %325 : vector<128x1xf32> to vector<128x32xf32>
    %327 = arith.subf %323, %326 : vector<128x32xf32>
    %328 = math.exp %327 : vector<128x32xf32>
    %cst_217 = arith.constant dense<0.000000e+00> : vector<128xf32>
    %329 = vector.multi_reduction <add>, %328, %cst_217 [1] : vector<128x32xf32> to vector<128xf32>
    %330 = vector.shape_cast %329 : vector<128xf32> to vector<128x1xf32>
    %331 = tpu.reciprocal %330 {approx = true} : vector<128x1xf32> -> vector<128x1xf32>
    %332 = vector.broadcast %331 : vector<128x1xf32> to vector<128x32xf32>
    %333 = arith.mulf %328, %332 : vector<128x32xf32>
    %334 = vector.extract_strided_slice %333 {offsets = [0, 0], sizes = [32, 32], strides = [1, 1]} : vector<128x32xf32> to vector<32x32xf32>
    %cst_218 = arith.constant dense<0.000000e+00> : vector<32x8xf32>
    %335 = tpu.matmul %334, %248, %cst_218 {dimension_numbers = #tpu.dot_dimension_numbers<[1], [0], [0], [1], [0, 0, 1, 1], [], []>} : vector<32x32xf32>, vector<32x8xf32>, vector<32x8xf32> -> vector<32x8xf32>
    %c1_219 = arith.constant 1 : index
    %c0_220 = arith.constant 0 : index
    %c0_221 = arith.constant 0 : index
    %336 = vector.load %arg5[%c1_219, %c0_220, %c0_221] : memref<2x32x32xf32, #tpu.memory_space<vmem>>, vector<1x8x32xf32>
    %337 = vector.shape_cast %336 : vector<1x8x32xf32> to vector<8x32xf32>
    %cst_222 = arith.constant dense<0.000000e+00> : vector<32x32xf32>
    %338 = tpu.matmul %335, %337, %cst_222 {dimension_numbers = #tpu.dot_dimension_numbers<[1], [0], [0], [1], [0, 0, 1, 1], [], []>} : vector<32x8xf32>, vector<8x32xf32>, vector<32x32xf32> -> vector<32x32xf32>
    %339 = vector.extract_strided_slice %333 {offsets = [32, 0], sizes = [32, 32], strides = [1, 1]} : vector<128x32xf32> to vector<32x32xf32>
    %cst_223 = arith.constant dense<0.000000e+00> : vector<32x8xf32>
    %340 = tpu.matmul %339, %271, %cst_223 {dimension_numbers = #tpu.dot_dimension_numbers<[1], [0], [0], [1], [0, 0, 1, 1], [], []>} : vector<32x32xf32>, vector<32x8xf32>, vector<32x8xf32> -> vector<32x8xf32>
    %c1_224 = arith.constant 1 : index
    %c8_225 = arith.constant 8 : index
    %c0_226 = arith.constant 0 : index
    %341 = vector.load %arg5[%c1_224, %c8_225, %c0_226] : memref<2x32x32xf32, #tpu.memory_space<vmem>>, vector<1x8x32xf32>
    %342 = vector.shape_cast %341 : vector<1x8x32xf32> to vector<8x32xf32>
    %cst_227 = arith.constant dense<0.000000e+00> : vector<32x32xf32>
    %343 = tpu.matmul %340, %342, %cst_227 {dimension_numbers = #tpu.dot_dimension_numbers<[1], [0], [0], [1], [0, 0, 1, 1], [], []>} : vector<32x8xf32>, vector<8x32xf32>, vector<32x32xf32> -> vector<32x32xf32>
    %344 = arith.addf %338, %343 : vector<32x32xf32>
    %345 = vector.extract_strided_slice %333 {offsets = [64, 0], sizes = [32, 32], strides = [1, 1]} : vector<128x32xf32> to vector<32x32xf32>
    %cst_228 = arith.constant dense<0.000000e+00> : vector<32x8xf32>
    %346 = tpu.matmul %345, %294, %cst_228 {dimension_numbers = #tpu.dot_dimension_numbers<[1], [0], [0], [1], [0, 0, 1, 1], [], []>} : vector<32x32xf32>, vector<32x8xf32>, vector<32x8xf32> -> vector<32x8xf32>
    %c1_229 = arith.constant 1 : index
    %c16_230 = arith.constant 16 : index
    %c0_231 = arith.constant 0 : index
    %347 = vector.load %arg5[%c1_229, %c16_230, %c0_231] : memref<2x32x32xf32, #tpu.memory_space<vmem>>, vector<1x8x32xf32>
    %348 = vector.shape_cast %347 : vector<1x8x32xf32> to vector<8x32xf32>
    %cst_232 = arith.constant dense<0.000000e+00> : vector<32x32xf32>
    %349 = tpu.matmul %346, %348, %cst_232 {dimension_numbers = #tpu.dot_dimension_numbers<[1], [0], [0], [1], [0, 0, 1, 1], [], []>} : vector<32x8xf32>, vector<8x32xf32>, vector<32x32xf32> -> vector<32x32xf32>
    %350 = arith.addf %344, %349 : vector<32x32xf32>
    %351 = vector.extract_strided_slice %333 {offsets = [96, 0], sizes = [32, 32], strides = [1, 1]} : vector<128x32xf32> to vector<32x32xf32>
    %cst_233 = arith.constant dense<0.000000e+00> : vector<32x8xf32>
    %352 = tpu.matmul %351, %317, %cst_233 {dimension_numbers = #tpu.dot_dimension_numbers<[1], [0], [0], [1], [0, 0, 1, 1], [], []>} : vector<32x32xf32>, vector<32x8xf32>, vector<32x8xf32> -> vector<32x8xf32>
    %c1_234 = arith.constant 1 : index
    %c24_235 = arith.constant 24 : index
    %c0_236 = arith.constant 0 : index
    %353 = vector.load %arg5[%c1_234, %c24_235, %c0_236] : memref<2x32x32xf32, #tpu.memory_space<vmem>>, vector<1x8x32xf32>
    %354 = vector.shape_cast %353 : vector<1x8x32xf32> to vector<8x32xf32>
    %cst_237 = arith.constant dense<0.000000e+00> : vector<32x32xf32>
    %355 = tpu.matmul %352, %354, %cst_237 {dimension_numbers = #tpu.dot_dimension_numbers<[1], [0], [0], [1], [0, 0, 1, 1], [], []>} : vector<32x8xf32>, vector<8x32xf32>, vector<32x32xf32> -> vector<32x32xf32>
    %356 = arith.addf %350, %355 : vector<32x32xf32>
    %c12 = arith.constant 12 : index
    %c0_238 = arith.constant 0 : index
    %357 = vector.load %arg3[%c12, %c0_238] : memref<24x128xf32, #tpu.memory_space<vmem>>, vector<1x32xf32>
    %358 = vector.broadcast %357 : vector<1x32xf32> to vector<32x32xf32>
    %359 = arith.addf %356, %358 : vector<32x32xf32>
    %360 = arith.addf %359, %227 : vector<32x32xf32>
    %c13 = arith.constant 13 : index
    %c0_239 = arith.constant 0 : index
    %361 = vector.load %arg3[%c13, %c0_239] : memref<24x128xf32, #tpu.memory_space<vmem>>, vector<1x32xf32>
    %c14 = arith.constant 14 : index
    %c0_240 = arith.constant 0 : index
    %362 = vector.load %arg3[%c14, %c0_240] : memref<24x128xf32, #tpu.memory_space<vmem>>, vector<1x32xf32>
    %cst_241 = arith.constant dense<0.000000e+00> : vector<32xf32>
    %363 = vector.multi_reduction <add>, %360, %cst_241 [1] : vector<32x32xf32> to vector<32xf32>
    %364 = vector.shape_cast %363 : vector<32xf32> to vector<32x1xf32>
    %cst_242 = arith.constant 3.200000e+01 : f32
    %365 = vector.broadcast %cst_242 : f32 to vector<32x1xf32>
    %366 = arith.divf %364, %365 : vector<32x1xf32>
    %367 = vector.broadcast %366 : vector<32x1xf32> to vector<32x32xf32>
    %368 = arith.subf %360, %367 : vector<32x32xf32>
    %369 = arith.mulf %368, %368 : vector<32x32xf32>
    %cst_243 = arith.constant dense<0.000000e+00> : vector<32xf32>
    %370 = vector.multi_reduction <add>, %369, %cst_243 [1] : vector<32x32xf32> to vector<32xf32>
    %371 = vector.shape_cast %370 : vector<32xf32> to vector<32x1xf32>
    %cst_244 = arith.constant 3.200000e+01 : f32
    %372 = vector.broadcast %cst_244 : f32 to vector<32x1xf32>
    %373 = arith.divf %371, %372 : vector<32x1xf32>
    %cst_245 = arith.constant 9.99999996E-13 : f32
    %374 = vector.broadcast %cst_245 : f32 to vector<32x1xf32>
    %375 = arith.addf %373, %374 : vector<32x1xf32>
    %376 = math.rsqrt %375 : vector<32x1xf32>
    %377 = vector.broadcast %376 : vector<32x1xf32> to vector<32x32xf32>
    %378 = arith.mulf %368, %377 : vector<32x32xf32>
    %379 = vector.broadcast %361 : vector<1x32xf32> to vector<32x32xf32>
    %380 = arith.mulf %378, %379 : vector<32x32xf32>
    %381 = vector.broadcast %362 : vector<1x32xf32> to vector<32x32xf32>
    %382 = arith.addf %380, %381 : vector<32x32xf32>
    %c1_246 = arith.constant 1 : index
    %c0_247 = arith.constant 0 : index
    %c0_248 = arith.constant 0 : index
    %383 = vector.load %arg6[%c1_246, %c0_247, %c0_248] : memref<2x32x64xf32, #tpu.memory_space<vmem>>, vector<1x32x64xf32>
    %384 = vector.shape_cast %383 : vector<1x32x64xf32> to vector<32x64xf32>
    %cst_249 = arith.constant dense<0.000000e+00> : vector<32x64xf32>
    %385 = tpu.matmul %382, %384, %cst_249 {dimension_numbers = #tpu.dot_dimension_numbers<[1], [0], [0], [1], [0, 0, 1, 1], [], []>} : vector<32x32xf32>, vector<32x64xf32>, vector<32x64xf32> -> vector<32x64xf32>
    %c15 = arith.constant 15 : index
    %c0_250 = arith.constant 0 : index
    %386 = vector.load %arg3[%c15, %c0_250] : memref<24x128xf32, #tpu.memory_space<vmem>>, vector<1x64xf32>
    %387 = vector.broadcast %386 : vector<1x64xf32> to vector<32x64xf32>
    %388 = arith.addf %385, %387 : vector<32x64xf32>
    %cst_251 = arith.constant 5.000000e-01 : f32
    %389 = vector.broadcast %cst_251 : f32 to vector<32x64xf32>
    %390 = arith.mulf %389, %388 : vector<32x64xf32>
    %cst_252 = arith.constant 4.471500e-02 : f32
    %391 = vector.broadcast %cst_252 : f32 to vector<32x64xf32>
    %392 = arith.mulf %391, %388 : vector<32x64xf32>
    %393 = arith.mulf %392, %388 : vector<32x64xf32>
    %394 = arith.mulf %393, %388 : vector<32x64xf32>
    %395 = arith.addf %388, %394 : vector<32x64xf32>
    %cst_253 = arith.constant 0.797884583 : f32
    %396 = vector.broadcast %cst_253 : f32 to vector<32x64xf32>
    %397 = arith.mulf %396, %395 : vector<32x64xf32>
    %398 = math.tanh %397 : vector<32x64xf32>
    %cst_254 = arith.constant 1.000000e+00 : f32
    %399 = vector.broadcast %cst_254 : f32 to vector<32x64xf32>
    %400 = arith.addf %399, %398 : vector<32x64xf32>
    %401 = arith.mulf %390, %400 : vector<32x64xf32>
    %c1_255 = arith.constant 1 : index
    %c0_256 = arith.constant 0 : index
    %c0_257 = arith.constant 0 : index
    %402 = vector.load %arg7[%c1_255, %c0_256, %c0_257] : memref<2x64x32xf32, #tpu.memory_space<vmem>>, vector<1x64x32xf32>
    %403 = vector.shape_cast %402 : vector<1x64x32xf32> to vector<64x32xf32>
    %cst_258 = arith.constant dense<0.000000e+00> : vector<32x32xf32>
    %404 = tpu.matmul %401, %403, %cst_258 {dimension_numbers = #tpu.dot_dimension_numbers<[1], [0], [0], [1], [0, 0, 1, 1], [], []>} : vector<32x64xf32>, vector<64x32xf32>, vector<32x32xf32> -> vector<32x32xf32>
    %c16_259 = arith.constant 16 : index
    %c0_260 = arith.constant 0 : index
    %405 = vector.load %arg3[%c16_259, %c0_260] : memref<24x128xf32, #tpu.memory_space<vmem>>, vector<1x32xf32>
    %406 = vector.broadcast %405 : vector<1x32xf32> to vector<32x32xf32>
    %407 = arith.addf %404, %406 : vector<32x32xf32>
    %408 = arith.addf %407, %382 : vector<32x32xf32>
    %c17 = arith.constant 17 : index
    %c0_261 = arith.constant 0 : index
    %409 = vector.load %arg3[%c17, %c0_261] : memref<24x128xf32, #tpu.memory_space<vmem>>, vector<1x32xf32>
    %c18 = arith.constant 18 : index
    %c0_262 = arith.constant 0 : index
    %410 = vector.load %arg3[%c18, %c0_262] : memref<24x128xf32, #tpu.memory_space<vmem>>, vector<1x32xf32>
    %cst_263 = arith.constant dense<0.000000e+00> : vector<32xf32>
    %411 = vector.multi_reduction <add>, %408, %cst_263 [1] : vector<32x32xf32> to vector<32xf32>
    %412 = vector.shape_cast %411 : vector<32xf32> to vector<32x1xf32>
    %cst_264 = arith.constant 3.200000e+01 : f32
    %413 = vector.broadcast %cst_264 : f32 to vector<32x1xf32>
    %414 = arith.divf %412, %413 : vector<32x1xf32>
    %415 = vector.broadcast %414 : vector<32x1xf32> to vector<32x32xf32>
    %416 = arith.subf %408, %415 : vector<32x32xf32>
    %417 = arith.mulf %416, %416 : vector<32x32xf32>
    %cst_265 = arith.constant dense<0.000000e+00> : vector<32xf32>
    %418 = vector.multi_reduction <add>, %417, %cst_265 [1] : vector<32x32xf32> to vector<32xf32>
    %419 = vector.shape_cast %418 : vector<32xf32> to vector<32x1xf32>
    %cst_266 = arith.constant 3.200000e+01 : f32
    %420 = vector.broadcast %cst_266 : f32 to vector<32x1xf32>
    %421 = arith.divf %419, %420 : vector<32x1xf32>
    %cst_267 = arith.constant 9.99999996E-13 : f32
    %422 = vector.broadcast %cst_267 : f32 to vector<32x1xf32>
    %423 = arith.addf %421, %422 : vector<32x1xf32>
    %424 = math.rsqrt %423 : vector<32x1xf32>
    %425 = vector.broadcast %424 : vector<32x1xf32> to vector<32x32xf32>
    %426 = arith.mulf %416, %425 : vector<32x32xf32>
    %427 = vector.broadcast %409 : vector<1x32xf32> to vector<32x32xf32>
    %428 = arith.mulf %426, %427 : vector<32x32xf32>
    %429 = vector.broadcast %410 : vector<1x32xf32> to vector<32x32xf32>
    %430 = arith.addf %428, %429 : vector<32x32xf32>
    %c2 = arith.constant 2 : index
    %c0_268 = arith.constant 0 : index
    %c0_269 = arith.constant 0 : index
    %431 = vector.load %arg9[%c2, %c0_268, %c0_269] : memref<3x32x32xf32, #tpu.memory_space<vmem>>, vector<1x32x32xf32>
    %432 = vector.shape_cast %431 : vector<1x32x32xf32> to vector<32x32xf32>
    %433 = vector.shape_cast %430 : vector<32x32xf32> to vector<1x32x32xf32>
    tpu.vector_store %arg9[%c2, %c0_268, %c0_269], %433 {strides = array<i32>} : memref<3x32x32xf32, #tpu.memory_space<vmem>>, vector<1x32x32xf32>,
    %434 = vector.extract_strided_slice %430 {offsets = [0, 0], sizes = [1, 32], strides = [1, 1]} : vector<32x32xf32> to vector<1x32xf32>
    %435 = vector.extract_strided_slice %430 {offsets = [8, 0], sizes = [1, 32], strides = [1, 1]} : vector<32x32xf32> to vector<1x32xf32>
    %436 = vector.extract_strided_slice %430 {offsets = [16, 0], sizes = [1, 32], strides = [1, 1]} : vector<32x32xf32> to vector<1x32xf32>
    %437 = vector.extract_strided_slice %430 {offsets = [24, 0], sizes = [1, 32], strides = [1, 1]} : vector<32x32xf32> to vector<1x32xf32>
    %438 = tpu.concatenate %434, %435, %436, %437 in 0 : vector<1x32xf32>, vector<1x32xf32>, vector<1x32xf32>, vector<1x32xf32> -> vector<4x32xf32>
    %c0_270 = arith.constant 0 : index
    %c0_271 = arith.constant 0 : index
    %439 = vector.load %arg8[%c0_270, %c0_271] : memref<32x32xf32, #tpu.memory_space<vmem>>, vector<32x32xf32>
    %cst_272 = arith.constant dense<0.000000e+00> : vector<4x32xf32>
    %440 = tpu.matmul %438, %439, %cst_272 {dimension_numbers = #tpu.dot_dimension_numbers<[1], [0], [0], [1], [0, 0, 1, 1], [], []>} : vector<4x32xf32>, vector<32x32xf32>, vector<4x32xf32> -> vector<4x32xf32>
    %c2_273 = arith.constant 2 : index
    %c0_274 = arith.constant 0 : index
    %441 = vector.load %arg3[%c2_273, %c0_274] : memref<24x128xf32, #tpu.memory_space<vmem>>, vector<1x32xf32>
    %442 = vector.broadcast %441 : vector<1x32xf32> to vector<4x32xf32>
    %443 = arith.addf %440, %442 : vector<4x32xf32>
    %444 = math.tanh %443 : vector<4x32xf32>
    %c0_275 = arith.constant 0 : index
    %c0_276 = arith.constant 0 : index
    %c0_277 = arith.constant 0 : index
    %445 = vector.load %arg10[%c0_275, %c0_276, %c0_277] : memref<1x4x32xf32, #tpu.memory_space<vmem>>, vector<1x4x32xf32>
    %446 = vector.shape_cast %445 : vector<1x4x32xf32> to vector<4x32xf32>
    %447 = vector.shape_cast %444 : vector<4x32xf32> to vector<1x4x32xf32>
    tpu.vector_store %arg10[%c0_275, %c0_276, %c0_277], %447 {strides = array<i32>} : memref<1x4x32xf32, #tpu.memory_space<vmem>>, vector<1x4x32xf32>,
    return
  }
  func.func @transform_0(%arg0: i32) -> (i32, i32) {
    %c0_i32 = arith.constant 0 : i32
    %c0_i32_0 = arith.constant 0 : i32
    return %arg0, %c0_i32 : i32, i32
  }
  func.func @transform_1(%arg0: i32) -> (i32, i32, i32) {
    %c0_i32 = arith.constant 0 : i32
    %c0_i32_0 = arith.constant 0 : i32
    %c0_i32_1 = arith.constant 0 : i32
    return %arg0, %c0_i32, %c0_i32_0 : i32, i32, i32
  }
  func.func @transform_2(%arg0: i32) -> (i32, i32) {
    %c0_i32 = arith.constant 0 : i32
    %c0_i32_0 = arith.constant 0 : i32
    %c0_i32_1 = arith.constant 0 : i32
    return %c0_i32, %c0_i32_0 : i32, i32
  }
  func.func @transform_3(%arg0: i32) -> (i32, i32, i32) {
    %c0_i32 = arith.constant 0 : i32
    %c0_i32_0 = arith.constant 0 : i32
    %c0_i32_1 = arith.constant 0 : i32
    %c0_i32_2 = arith.constant 0 : i32
    return %c0_i32, %c0_i32_0, %c0_i32_1 : i32, i32, i32
  }
  func.func @transform_4(%arg0: i32) -> (i32, i32, i32) {
    %c0_i32 = arith.constant 0 : i32
    %c0_i32_0 = arith.constant 0 : i32
    %c0_i32_1 = arith.constant 0 : i32
    %c0_i32_2 = arith.constant 0 : i32
    return %c0_i32, %c0_i32_0, %c0_i32_1 : i32, i32, i32
  }
  func.func @transform_5(%arg0: i32) -> (i32, i32, i32) {
    %c0_i32 = arith.constant 0 : i32
    %c0_i32_0 = arith.constant 0 : i32
    %c0_i32_1 = arith.constant 0 : i32
    %c0_i32_2 = arith.constant 0 : i32
    return %c0_i32, %c0_i32_0, %c0_i32_1 : i32, i32, i32
  }
  func.func @transform_6(%arg0: i32) -> (i32, i32, i32) {
    %c0_i32 = arith.constant 0 : i32
    %c0_i32_0 = arith.constant 0 : i32
    %c0_i32_1 = arith.constant 0 : i32
    %c0_i32_2 = arith.constant 0 : i32
    return %c0_i32, %c0_i32_0, %c0_i32_1 : i32, i32, i32
  }
  func.func @transform_7(%arg0: i32) -> (i32, i32) {
    %c0_i32 = arith.constant 0 : i32
    %c0_i32_0 = arith.constant 0 : i32
    %c0_i32_1 = arith.constant 0 : i32
    return %c0_i32, %c0_i32_0 : i32, i32
  }
  func.func @transform_8(%arg0: i32) -> (i32, i32, i32) {
    %c0_i32 = arith.constant 0 : i32
    %c0_i32_0 = arith.constant 0 : i32
    %c0_i32_1 = arith.constant 0 : i32
    return %c0_i32, %arg0, %c0_i32_0 : i32, i32, i32
  }
  func.func @transform_9(%arg0: i32) -> (i32, i32, i32) {
    %c0_i32 = arith.constant 0 : i32
    %c0_i32_0 = arith.constant 0 : i32
    %c0_i32_1 = arith.constant 0 : i32
    return %arg0, %c0_i32, %c0_i32_0 : i32, i32, i32
  }
}

</mosaic_0001>

<llo_original>
// kernel: tpu_custom_call.1
$region0: #{tpu_custom_call.1}
  #allocation0 [shape = 'u32[]', space=smem, size = 0x4, offset = 0x4, fixed_abs, tag = 'smem constant byte address 0x4 - core index']
  #allocation1 [shape = 'u32[144,128]{1,0:T(1,128)}', space=vmem, size = 0x12000, scoped, tag = 'internal scratch']
  %s0 = inlined_call_operand.hbm [shape: f32[32,32], index: 0, kind: input, shape index: {}]
  %s1 = inlined_call_operand.hbm [shape: f32[1,32,32], index: 1, kind: input, shape index: {}]
  %s2 = inlined_call_operand.hbm [shape: f32[24,128], index: 2, kind: input, shape index: {}]
  %s3 = inlined_call_operand.vmem [shape: f32[2,32,96], index: 3, kind: input, shape index: {}]
  %s4 = inlined_call_operand.vmem [shape: f32[2,32,32], index: 4, kind: input, shape index: {}]
  %s5 = inlined_call_operand.vmem [shape: f32[2,32,64], index: 5, kind: input, shape index: {}]
  %s6 = inlined_call_operand.vmem [shape: f32[2,64,32], index: 6, kind: input, shape index: {}]
  %s7 = inlined_call_operand.hbm [shape: f32[32,32], index: 7, kind: input, shape index: {}]
  %s8 = inlined_call_operand.hbm [shape: f32[3,32,32], index: 8, kind: output, shape index: {0}]
  %s9 = inlined_call_operand.hbm [shape: f32[1,4,32], index: 9, kind: output, shape index: {1}]
  %10 = xla_tuple %s8, %s9
  %s11 = sld [smem:[#allocation0]]
  $region66: #{tpu_custom_call.1} parent=0
    _
  %s13 = ssub.s32 1, %s11
  %s14 = scalar_select 0, %s13, %s11
  $region1: #{tpu_custom_call.1} parent=0
    #allocation2 [shape = 'u8[16384]{0}', space=vmem, size = 0x4000, scoped, tag = 'input window, operand 0, single buffered']
    #allocation3 [shape = 's32[1]{0}', space=sflag, size = 0x4, scoped, tag = 'scoped memory for tpu_custom_call.1']
    #allocation4 [shape = 's32[1]{0}', space=sflag, size = 0x4, scoped, tag = 'scoped memory for tpu_custom_call.1']
    #allocation5 [shape = 'u8[16384]{0}', space=vmem, size = 0x4000, scoped, tag = 'input window, operand 1, single buffered']
    #allocation6 [shape = 's32[1]{0}', space=sflag, size = 0x4, scoped, tag = 'scoped memory for tpu_custom_call.1']
    #allocation7 [shape = 'u8[12288]{0}', space=vmem, size = 0x3000, scoped, tag = 'input window, operand 2, single buffered']
    #allocation8 [shape = 'u8[16384]{0}', space=vmem, size = 0x4000, scoped, tag = 'input window, operand 7, single buffered']
    #allocation9 [shape = 's32[1]{0}', space=sflag, size = 0x4, scoped, tag = 'scoped memory for tpu_custom_call.1']
    #allocation10 [shape = 'u8[49152]{0}', space=vmem, size = 0xc000, scoped, tag = 'output window, operand 0, single buffered']
    #allocation11 [shape = 'u8[2048]{0}', space=vmem, size = 0x800, scoped, tag = 'output window, operand 1, single buffered']
    #allocation12 [shape = 's32[1]{0}', space=sflag, size = 0x4, scoped, tag = 'scoped memory for tpu_custom_call.1']
    %15 = vsyncpa [#allocation3], 0
    %16 = vsyncpa [#allocation6], 0
    %17 = vsyncpa [#allocation9], 0
    %18 = vsyncpa [#allocation4], 0
    %19 = vsyncpa [#allocation12], 0
    // Predicated region
    $region2: #{tpu_custom_call.1} parent=1 // pred_check
      _
    $region3: #{tpu_custom_call.1} parent=1 // pred_check_branch
      %21 = sbr.rel (0) target = $region5
    $region4: #{tpu_custom_call.1} parent=1 // pred_region
      %s23 = ssub.s32 512, 512
      %24 = vsyncadd [#allocation3], %s23
      %s25 = sshll.u32 [#allocation2], 4
      %s26 = int_to_ptr.vmem [resolvable:$true] %s25
      %31 = dma.hbm_to_vmem [thread:$0]  %s0, 512, %s26, [#allocation3], 128, 128, 8
    $region5: #{tpu_custom_call.1} parent=1 // pred_fallthru
      _
    // Predicated region
    $region6: #{tpu_custom_call.1} parent=1 // pred_check
      _
    $region7: #{tpu_custom_call.1} parent=1 // pred_check_branch
      %33 = sbr.rel (0) target = $region9
    $region8: #{tpu_custom_call.1} parent=1 // pred_region
      %s35 = ssub.s32 512, 512
      %36 = vsyncadd [#allocation6], %s35
      %s37 = sshll.u32 [#allocation5], 4
      %s38 = int_to_ptr.vmem [resolvable:$true] %s37
      %43 = dma.hbm_to_vmem [thread:$0]  %s1, 512, %s38, [#allocation6], 128, 128, 8
    $region9: #{tpu_custom_call.1} parent=1 // pred_fallthru
      _
    // Predicated region
    $region10: #{tpu_custom_call.1} parent=1 // pred_check
      _
    $region11: #{tpu_custom_call.1} parent=1 // pred_check_branch
      %45 = sbr.rel (0) target = $region13
    $region12: #{tpu_custom_call.1} parent=1 // pred_region
      %s47 = ssub.s32 384, 384
      %48 = vsyncadd [#allocation6], %s47
      %s49 = sshll.u32 [#allocation7], 4
      %s50 = int_to_ptr.vmem [resolvable:$true] %s49
      %55 = dma.hbm_to_vmem [thread:$0]  %s2, 384, %s50, [#allocation6], 128, 128, 8
    $region13: #{tpu_custom_call.1} parent=1 // pred_fallthru
      _
    // Predicated region
    $region14: #{tpu_custom_call.1} parent=1 // pred_check
      _
    $region15: #{tpu_custom_call.1} parent=1 // pred_check_branch
      %57 = sbr.rel (0) target = $region17
    $region16: #{tpu_custom_call.1} parent=1 // pred_region
      _
    $region17: #{tpu_custom_call.1} parent=1 // pred_fallthru
      _
    // Predicated region
    $region18: #{tpu_custom_call.1} parent=1 // pred_check
      _
    $region19: #{tpu_custom_call.1} parent=1 // pred_check_branch
      %59 = sbr.rel (0) target = $region21
    $region20: #{tpu_custom_call.1} parent=1 // pred_region
      _
    $region21: #{tpu_custom_call.1} parent=1 // pred_fallthru
      _
    // Predicated region
    $region22: #{tpu_custom_call.1} parent=1 // pred_check
      _
    $region23: #{tpu_custom_call.1} parent=1 // pred_check_branch
      %61 = sbr.rel (0) target = $region25
    $region24: #{tpu_custom_call.1} parent=1 // pred_region
      _
    $region25: #{tpu_custom_call.1} parent=1 // pred_fallthru
      _
    // Predicated region
    $region26: #{tpu_custom_call.1} parent=1 // pred_check
      _
    $region27: #{tpu_custom_call.1} parent=1 // pred_check_branch
      %63 = sbr.rel (0) target = $region29
    $region28: #{tpu_custom_call.1} parent=1 // pred_region
      _
    $region29: #{tpu_custom_call.1} parent=1 // pred_fallthru
      _
    // Predicated region
    $region30: #{tpu_custom_call.1} parent=1 // pred_check
      _
    $region31: #{tpu_custom_call.1} parent=1 // pred_check_branch
      %65 = sbr.rel (0) target = $region33
    $region32: #{tpu_custom_call.1} parent=1 // pred_region
      %s67 = ssub.s32 512, 512
      %68 = vsyncadd [#allocation9], %s67
      %s69 = sshll.u32 [#allocation8], 4
      %s70 = int_to_ptr.vmem [resolvable:$true] %s69
      %75 = dma.hbm_to_vmem [thread:$0]  %s7, 512, %s70, [#allocation9], 128, 128, 8
    $region33: #{tpu_custom_call.1} parent=1 // pred_fallthru
      _
    // Predicated region
    $region34: #{tpu_custom_call.1} parent=1 // pred_check
      _
    $region35: #{tpu_custom_call.1} parent=1 // pred_check_branch
      %77 = sbr.rel (0) target = $region37
    $region36: #{tpu_custom_call.1} parent=1 // pred_region
      %78 = dma.done [#allocation3], 512
    $region37: #{tpu_custom_call.1} parent=1 // pred_fallthru
      _
    // Predicated region
    $region38: #{tpu_custom_call.1} parent=1 // pred_check
      _
    $region39: #{tpu_custom_call.1} parent=1 // pred_check_branch
      %80 = sbr.rel (0) target = $region41
    $region40: #{tpu_custom_call.1} parent=1 // pred_region
      %81 = dma.done [#allocation6], 512
    $region41: #{tpu_custom_call.1} parent=1 // pred_fallthru
      _
    // Predicated region
    $region42: #{tpu_custom_call.1} parent=1 // pred_check
      _
    $region43: #{tpu_custom_call.1} parent=1 // pred_check_branch
      %83 = sbr.rel (0) target = $region45
    $region44: #{tpu_custom_call.1} parent=1 // pred_region
      %84 = dma.done [#allocation6], 384
    $region45: #{tpu_custom_call.1} parent=1 // pred_fallthru
      _
    // Predicated region
    $region46: #{tpu_custom_call.1} parent=1 // pred_check
      _
    $region47: #{tpu_custom_call.1} parent=1 // pred_check_branch
      %86 = sbr.rel (0) target = $region49
    $region48: #{tpu_custom_call.1} parent=1 // pred_region
      %87 = dma.done [#allocation9], 512
    $region49: #{tpu_custom_call.1} parent=1 // pred_fallthru
      _
    %v88 = vld [vmem:[#allocation5] sm:$0xff]
    %v89 = vld [vmem:[#allocation5 + $0x8] sm:$0xff]
    %v90 = vld [vmem:[#allocation5 + $0x10] sm:$0xff]
    %v91 = vld [vmem:[#allocation5 + $0x18] sm:$0xff]
    %v92 = vld [vmem:[#allocation2] sm:$0xff]
    %v93 = vld [vmem:[#allocation2 + $0x8] sm:$0xff]
    %v94 = vld [vmem:[#allocation2 + $0x10] sm:$0xff]
    %v95 = vld [vmem:[#allocation2 + $0x18] sm:$0xff]
    %v96 = vld [vmem:[#allocation7] sm:$0x1]
    %v97 = vld [vmem:[#allocation7 + $0x1] sm:$0x1]
    %vm98 = vcmask 261120
    %v99 = vsel %vm98, %v92, 0.0
    %100 = vadd.xlane.f32.xlu0 %v99
    %v101 = vpop.xlane.xlu0 %100
    %v102 = vsel %vm98, %v93, 0.0
    %103 = vadd.xlane.f32.xlu0 %v102
    %v104 = vpop.xlane.xlu0 %103
    %v105 = vsel %vm98, %v94, 0.0
    %106 = vadd.xlane.f32.xlu0 %v105
    %v107 = vpop.xlane.xlu0 %106
    %v108 = vsel %vm98, %v95, 0.0
    %109 = vadd.xlane.f32.xlu0 %v108
    %v110 = vpop.xlane.xlu0 %109
    %v111 = vrcp.pop 32.0
    %v112 = vmul.f32 %v101, %v111
    %v113 = vmul.f32 %v104, %v111
    %v114 = vmul.f32 %v107, %v111
    %v115 = vmul.f32 %v110, %v111
    %v116 = vsub.f32 %v92, %v112
    %v117 = vsub.f32 %v93, %v113
    %v118 = vsub.f32 %v94, %v114
    %v119 = vsub.f32 %v95, %v115
    %v120 = vmul.f32 %v116, %v116
    %v121 = vmul.f32 %v117, %v117
    %v122 = vmul.f32 %v118, %v118
    %v123 = vmul.f32 %v119, %v119
    %v124 = vsel %vm98, %v120, 0.0
    %125 = vadd.xlane.f32.xlu0 %v124
    %v126 = vpop.xlane.xlu0 %125
    %v127 = vsel %vm98, %v121, 0.0
    %128 = vadd.xlane.f32.xlu0 %v127
    %v129 = vpop.xlane.xlu0 %128
    %v130 = vsel %vm98, %v122, 0.0
    %131 = vadd.xlane.f32.xlu0 %v130
    %v132 = vpop.xlane.xlu0 %131
    %v133 = vsel %vm98, %v123, 0.0
    %134 = vadd.xlane.f32.xlu0 %v133
    %v135 = vpop.xlane.xlu0 %134
    %v136 = vmul.f32 %v126, %v111
    %v137 = vmul.f32 %v129, %v111
    %v138 = vmul.f32 %v132, %v111
    %v139 = vmul.f32 %v135, %v111
    %v140 = vadd.f32 %v136, 1e-12
    %v141 = vadd.f32 %v137, 1e-12
    %v142 = vadd.f32 %v138, 1e-12
    %v143 = vadd.f32 %v139, 1e-12
    %v144 = vrsqrt.pop %v140
    %v145 = vrsqrt.pop %v141
    %v146 = vrsqrt.pop %v142
    %v147 = vrsqrt.pop %v143
    %v148 = vmul.f32 %v116, %v144
    %v149 = vmul.f32 %v117, %v145
    %v150 = vmul.f32 %v118, %v146
    %v151 = vmul.f32 %v119, %v147
    %v152 = vlaneseq
    %v153 = vshrl.u32 %v152, 7
    %v154 = vsub.s32 0, %v153
    %v155 = vrot.slane %v96, %v154
    %v156 = vmul.f32 %v148, %v155
    %v157 = vmul.f32 %v149, %v155
    %v158 = vmul.f32 %v150, %v155
    %v159 = vmul.f32 %v151, %v155
    %v160 = vlaneseq
    %v161 = vshrl.u32 %v160, 7
    %v162 = vsub.s32 0, %v161
    %v163 = vrot.slane %v97, %v162
    %v164 = vadd.f32 %v156, %v163
    %v165 = vadd.f32 %v157, %v163
    %v166 = vadd.f32 %v158, %v163
    %v167 = vadd.f32 %v159, %v163
    %168 = vst.msk [vmem:[#allocation10] sm:$0xff] %vm98, %v164
    %169 = vst.msk [vmem:[#allocation10 + $0x8] sm:$0xff] %vm98, %v165
    %170 = vst.msk [vmem:[#allocation10 + $0x10] sm:$0xff] %vm98, %v166
    %171 = vst.msk [vmem:[#allocation10 + $0x18] sm:$0xff] %vm98, %v167
    %v172 = vld [vmem:[%s3] sm:$0xff]
    %v173 = vld [vmem:[%s3 + $0x8] sm:$0xff]
    %v174 = vld [vmem:[%s3 + $0x10] sm:$0xff]
    %v175 = vld [vmem:[%s3 + $0x18] sm:$0xff]
    %v176 = vld [vmem:[#allocation7 + $0x3] sm:$0x1]
    %v177 = vlaneseq
    %v178 = vshrl.u32 %v177, 7
    %v179 = vsub.s32 0, %v178
    %v180 = vrot.slane %v176, %v179
    %v182 = vsel %vm98, %v164, 0
    %v185 = vsel %vm98, %v165, 0
    %v188 = vsel %vm98, %v166, 0
    %v191 = vsel %vm98, %v167, 0
    %193 = vmatprep.subr.mxu0 0.0
    %194 = vmatpush1.msra.mxu0 0.0
    %195 = vmatprep.subr.mxu0 0.0
    %196 = vmatpush1.msra.mxu0 0.0
    %197 = vmatprep.subr.mxu0 0.0
    %198 = vmatpush1.msra.mxu0 0.0
    %199 = vmatprep.subr.mxu0 0.0
    %200 = vmatpush1.msra.mxu0 0.0
    %201 = vmatprep.subr.mxu0 0.0
    %202 = vmatpush1.msra.mxu0 0.0
    %203 = vmatprep.subr.mxu0 0.0
    %204 = vmatpush1.msra.mxu0 0.0
    %205 = vmatprep.subr.mxu0 0.0
    %206 = vmatpush1.msra.mxu0 0.0
    %207 = vmatprep.subr.mxu0 0.0
    %208 = vmatpush1.msra.mxu0 0.0
    %209 = vmatprep.subr.mxu0 0.0
    %210 = vmatpush1.msra.mxu0 0.0
    %211 = vmatprep.subr.mxu0 0.0
    %212 = vmatpush1.msra.mxu0 0.0
    %213 = vmatprep.subr.mxu0 0.0
    %214 = vmatpush1.msra.mxu0 0.0
    %215 = vmatprep.subr.mxu0 0.0
    %216 = vmatpush1.msra.mxu0 0.0
    %217 = vmatprep.subr.mxu0 0.0
    %218 = vmatpush1.msra.mxu0 %v175
    %219 = vmatprep.subr.mxu0 0.0
    %220 = vmatpush1.msra.mxu0 %v174
    %221 = vmatprep.subr.mxu0 0.0
    %222 = vmatpush1.msra.mxu0 %v173
    %223 = vmatprep.subr.mxu0 0.0
    %224 = vmatpush1.msra.mxu0 %v172
    %225 = vmatprep.subr.mxu0 0.0
    %226 = vmatpush2.msra.mxu0 0.0
    %227 = vmatprep.subr.mxu0 0.0
    %228 = vmatpush2.msra.mxu0 0.0
    %229 = vmatprep.subr.mxu0 0.0
    %230 = vmatpush2.msra.mxu0 0.0
    %231 = vmatprep.subr.mxu0 0.0
    %232 = vmatpush2.msra.mxu0 0.0
    %233 = vmatprep.subr.mxu0 0.0
    %234 = vmatpush2.msra.mxu0 0.0
    %235 = vmatprep.subr.mxu0 0.0
    %236 = vmatpush2.msra.mxu0 0.0
    %237 = vmatprep.subr.mxu0 0.0
    %238 = vmatpush2.msra.mxu0 0.0
    %239 = vmatprep.subr.mxu0 0.0
    %240 = vmatpush2.msra.mxu0 0.0
    %241 = vmatprep.subr.mxu0 0.0
    %242 = vmatpush2.msra.mxu0 0.0
    %243 = vmatprep.subr.mxu0 0.0
    %244 = vmatpush2.msra.mxu0 0.0
    %245 = vmatprep.subr.mxu0 0.0
    %246 = vmatpush2.msra.mxu0 0.0
    %247 = vmatprep.subr.mxu0 0.0
    %248 = vmatpush2.msra.mxu0 0.0
    %249 = vmatprep.subr.mxu0 0.0
    %250 = vmatpush2.msra.mxu0 0.0
    %251 = vmatprep.subr.mxu0 0.0
    %252 = vmatpush2.msra.mxu0 0.0
    %253 = vmatprep.subr.mxu0 0.0
    %254 = vmatpush2.msra.mxu0 0.0
    %255 = vmatprep.subr.mxu0 0.0
    %256 = vmatpush2.msra.mxu0 0.0
    %257 = vmatprep.mubr.f32.mxu0 0.0
    %258 = vmatmul.mubr.f32.gmra.mxu0 %v182
    %v259 = vpop.f32.mrf.mxu0
    %v260 = vadd.f32 %v180, %v259
    %v261 = vpop.f32.mrf.mxu0
    %262 = vmatprep.mubr.f32.mxu0 0.0
    %263 = vmatmul.mubr.f32.gmra.mxu0 %v185
    %v264 = vpop.f32.mrf.mxu0
    %v265 = vadd.f32 %v180, %v264
    %v266 = vpop.f32.mrf.mxu0
    %267 = vmatprep.mubr.f32.mxu0 0.0
    %268 = vmatmul.mubr.f32.gmra.mxu0 %v188
    %v269 = vpop.f32.mrf.mxu0
    %v270 = vadd.f32 %v180, %v269
    %v271 = vpop.f32.mrf.mxu0
    %272 = vmatprep.mubr.f32.mxu0 0.0
    %273 = vmatmul.mubr.f32.gmra.mxu0 %v191
    %v274 = vpop.f32.mrf.mxu0
    %v275 = vadd.f32 %v180, %v274
    %v276 = vpop.f32.mrf.mxu0
    %277 = vdwg.mxu0
    %282 = vrot.lane.b32.xlu0 %v172, 96
    %v283 = vpop.permute.xlu0 %282
    %284 = vrot.lane.b32.xlu0 %v173, 96
    %v285 = vpop.permute.xlu0 %284
    %286 = vrot.lane.b32.xlu0 %v174, 96
    %v287 = vpop.permute.xlu0 %286
    %288 = vrot.lane.b32.xlu0 %v175, 96
    %v289 = vpop.permute.xlu0 %288
    %295 = vrot.lane.b32.xlu0 %v180, 96
    %v296 = vpop.permute.xlu0 %295
    %298 = vmatprep.subr.mxu0 0.0
    %299 = vmatpush1.msra.mxu0 0.0
    %300 = vmatprep.subr.mxu0 0.0
    %301 = vmatpush1.msra.mxu0 0.0
    %302 = vmatprep.subr.mxu0 0.0
    %303 = vmatpush1.msra.mxu0 0.0
    %304 = vmatprep.subr.mxu0 0.0
    %305 = vmatpush1.msra.mxu0 0.0
    %306 = vmatprep.subr.mxu0 0.0
    %307 = vmatpush1.msra.mxu0 0.0
    %308 = vmatprep.subr.mxu0 0.0
    %309 = vmatpush1.msra.mxu0 0.0
    %310 = vmatprep.subr.mxu0 0.0
    %311 = vmatpush1.msra.mxu0 0.0
    %312 = vmatprep.subr.mxu0 0.0
    %313 = vmatpush1.msra.mxu0 0.0
    %314 = vmatprep.subr.mxu0 0.0
    %315 = vmatpush1.msra.mxu0 0.0
    %316 = vmatprep.subr.mxu0 0.0
    %317 = vmatpush1.msra.mxu0 0.0
    %318 = vmatprep.subr.mxu0 0.0
    %319 = vmatpush1.msra.mxu0 0.0
    %320 = vmatprep.subr.mxu0 0.0
    %321 = vmatpush1.msra.mxu0 0.0
    %322 = vmatprep.subr.mxu0 0.0
    %323 = vmatpush1.msra.mxu0 %v289
    %324 = vmatprep.subr.mxu0 0.0
    %325 = vmatpush1.msra.mxu0 %v287
    %326 = vmatprep.subr.mxu0 0.0
    %327 = vmatpush1.msra.mxu0 %v285
    %328 = vmatprep.subr.mxu0 0.0
    %329 = vmatpush1.msra.mxu0 %v283
    %330 = vmatprep.subr.mxu0 0.0
    %331 = vmatpush2.msra.mxu0 0.0
    %332 = vmatprep.subr.mxu0 0.0
    %333 = vmatpush2.msra.mxu0 0.0
    %334 = vmatprep.subr.mxu0 0.0
    %335 = vmatpush2.msra.mxu0 0.0
    %336 = vmatprep.subr.mxu0 0.0
    %337 = vmatpush2.msra.mxu0 0.0
    %338 = vmatprep.subr.mxu0 0.0
    %339 = vmatpush2.msra.mxu0 0.0
    %340 = vmatprep.subr.mxu0 0.0
    %341 = vmatpush2.msra.mxu0 0.0
    %342 = vmatprep.subr.mxu0 0.0
    %343 = vmatpush2.msra.mxu0 0.0
    %344 = vmatprep.subr.mxu0 0.0
    %345 = vmatpush2.msra.mxu0 0.0
    %346 = vmatprep.subr.mxu0 0.0
    %347 = vmatpush2.msra.mxu0 0.0
    %348 = vmatprep.subr.mxu0 0.0
    %349 = vmatpush2.msra.mxu0 0.0
    %350 = vmatprep.subr.mxu0 0.0
    %351 = vmatpush2.msra.mxu0 0.0
    %352 = vmatprep.subr.mxu0 0.0
    %353 = vmatpush2.msra.mxu0 0.0
    %354 = vmatprep.subr.mxu0 0.0
    %355 = vmatpush2.msra.mxu0 0.0
    %356 = vmatprep.subr.mxu0 0.0
    %357 = vmatpush2.msra.mxu0 0.0
    %358 = vmatprep.subr.mxu0 0.0
    %359 = vmatpush2.msra.mxu0 0.0
    %360 = vmatprep.subr.mxu0 0.0
    %361 = vmatpush2.msra.mxu0 0.0
    %362 = vmatprep.mubr.f32.mxu0 0.0
    %363 = vmatmul.mubr.f32.gmra.mxu0 %v182
    %v364 = vpop.f32.mrf.mxu0
    %v365 = vadd.f32 %v296, %v364
    %v366 = vpop.f32.mrf.mxu0
    %367 = vmatprep.mubr.f32.mxu0 0.0
    %368 = vmatmul.mubr.f32.gmra.mxu0 %v185
    %v369 = vpop.f32.mrf.mxu0
    %v370 = vadd.f32 %v296, %v369
    %v371 = vpop.f32.mrf.mxu0
    %372 = vmatprep.mubr.f32.mxu0 0.0
    %373 = vmatmul.mubr.f32.gmra.mxu0 %v188
    %v374 = vpop.f32.mrf.mxu0
    %v375 = vadd.f32 %v296, %v374
    %v376 = vpop.f32.mrf.mxu0
    %377 = vmatprep.mubr.f32.mxu0 0.0
    %378 = vmatmul.mubr.f32.gmra.mxu0 %v191
    %v379 = vpop.f32.mrf.mxu0
    %v380 = vadd.f32 %v296, %v379
    %v381 = vpop.f32.mrf.mxu0
    %382 = vdwg.mxu0
    %383 = vrot.lane.b32.xlu0 %v172, 64
    %v384 = vpop.permute.xlu0 %383
    %385 = vrot.lane.b32.xlu0 %v173, 64
    %v386 = vpop.permute.xlu0 %385
    %387 = vrot.lane.b32.xlu0 %v174, 64
    %v388 = vpop.permute.xlu0 %387
    %389 = vrot.lane.b32.xlu0 %v175, 64
    %v390 = vpop.permute.xlu0 %389
    %395 = vrot.lane.b32.xlu0 %v180, 64
    %v396 = vpop.permute.xlu0 %395
    %398 = vmatprep.subr.mxu0 0.0
    %399 = vmatpush1.msra.mxu0 0.0
    %400 = vmatprep.subr.mxu0 0.0
    %401 = vmatpush1.msra.mxu0 0.0
    %402 = vmatprep.subr.mxu0 0.0
    %403 = vmatpush1.msra.mxu0 0.0
    %404 = vmatprep.subr.mxu0 0.0
    %405 = vmatpush1.msra.mxu0 0.0
    %406 = vmatprep.subr.mxu0 0.0
    %407 = vmatpush1.msra.mxu0 0.0
    %408 = vmatprep.subr.mxu0 0.0
    %409 = vmatpush1.msra.mxu0 0.0
    %410 = vmatprep.subr.mxu0 0.0
    %411 = vmatpush1.msra.mxu0 0.0
    %412 = vmatprep.subr.mxu0 0.0
    %413 = vmatpush1.msra.mxu0 0.0
    %414 = vmatprep.subr.mxu0 0.0
    %415 = vmatpush1.msra.mxu0 0.0
    %416 = vmatprep.subr.mxu0 0.0
    %417 = vmatpush1.msra.mxu0 0.0
    %418 = vmatprep.subr.mxu0 0.0
    %419 = vmatpush1.msra.mxu0 0.0
    %420 = vmatprep.subr.mxu0 0.0
    %421 = vmatpush1.msra.mxu0 0.0
    %422 = vmatprep.subr.mxu0 0.0
    %423 = vmatpush1.msra.mxu0 %v390
    %424 = vmatprep.subr.mxu0 0.0
    %425 = vmatpush1.msra.mxu0 %v388
    %426 = vmatprep.subr.mxu0 0.0
    %427 = vmatpush1.msra.mxu0 %v386
    %428 = vmatprep.subr.mxu0 0.0
    %429 = vmatpush1.msra.mxu0 %v384
    %430 = vmatprep.subr.mxu0 0.0
    %431 = vmatpush2.msra.mxu0 0.0
    %432 = vmatprep.subr.mxu0 0.0
    %433 = vmatpush2.msra.mxu0 0.0
    %434 = vmatprep.subr.mxu0 0.0
    %435 = vmatpush2.msra.mxu0 0.0
    %436 = vmatprep.subr.mxu0 0.0
    %437 = vmatpush2.msra.mxu0 0.0
    %438 = vmatprep.subr.mxu0 0.0
    %439 = vmatpush2.msra.mxu0 0.0
    %440 = vmatprep.subr.mxu0 0.0
    %441 = vmatpush2.msra.mxu0 0.0
    %442 = vmatprep.subr.mxu0 0.0
    %443 = vmatpush2.msra.mxu0 0.0
    %444 = vmatprep.subr.mxu0 0.0
    %445 = vmatpush2.msra.mxu0 0.0
    %446 = vmatprep.subr.mxu0 0.0
    %447 = vmatpush2.msra.mxu0 0.0
    %448 = vmatprep.subr.mxu0 0.0
    %449 = vmatpush2.msra.mxu0 0.0
    %450 = vmatprep.subr.mxu0 0.0
    %451 = vmatpush2.msra.mxu0 0.0
    %452 = vmatprep.subr.mxu0 0.0
    %453 = vmatpush2.msra.mxu0 0.0
    %454 = vmatprep.subr.mxu0 0.0
    %455 = vmatpush2.msra.mxu0 0.0
    %456 = vmatprep.subr.mxu0 0.0
    %457 = vmatpush2.msra.mxu0 0.0
    %458 = vmatprep.subr.mxu0 0.0
    %459 = vmatpush2.msra.mxu0 0.0
    %460 = vmatprep.subr.mxu0 0.0
    %461 = vmatpush2.msra.mxu0 0.0
    %462 = vmatprep.mubr.f32.mxu0 0.0
    %463 = vmatmul.mubr.f32.gmra.mxu0 %v182
    %v464 = vpop.f32.mrf.mxu0
    %v465 = vadd.f32 %v396, %v464
    %v466 = vpop.f32.mrf.mxu0
    %467 = vmatprep.mubr.f32.mxu0 0.0
    %468 = vmatmul.mubr.f32.gmra.mxu0 %v185
    %v469 = vpop.f32.mrf.mxu0
    %v470 = vadd.f32 %v396, %v469
    %v471 = vpop.f32.mrf.mxu0
    %472 = vmatprep.mubr.f32.mxu0 0.0
    %473 = vmatmul.mubr.f32.gmra.mxu0 %v188
    %v474 = vpop.f32.mrf.mxu0
    %v475 = vadd.f32 %v396, %v474
    %v476 = vpop.f32.mrf.mxu0
    %477 = vmatprep.mubr.f32.mxu0 0.0
    %478 = vmatmul.mubr.f32.gmra.mxu0 %v191
    %v479 = vpop.f32.mrf.mxu0
    %v480 = vadd.f32 %v396, %v479
    %v481 = vpop.f32.mrf.mxu0
    %482 = vdwg.mxu0
    %vm483 = vcmask 64512
    %v485 = vsel %vm483, %v260, 0
    %v488 = vsel %vm483, %v265, 0
    %v491 = vsel %vm483, %v270, 0
    %v494 = vsel %vm483, %v275, 0
    %v497 = vsel %vm483, %v365, 0
    %v500 = vsel %vm483, %v370, 0
    %v503 = vsel %vm483, %v375, 0
    %v506 = vsel %vm483, %v380, 0
    %508 = vmatprep.subr.mxu0 0.0
    %509 = vmatpush1.xpose.msra.mxu0 0.0
    %510 = vmatprep.subr.mxu0 0.0
    %511 = vmatpush1.xpose.msra.mxu0 0.0
    %512 = vmatprep.subr.mxu0 0.0
    %513 = vmatpush1.xpose.msra.mxu0 0.0
    %514 = vmatprep.subr.mxu0 0.0
    %515 = vmatpush1.xpose.msra.mxu0 0.0
    %516 = vmatprep.subr.mxu0 0.0
    %517 = vmatpush1.xpose.msra.mxu0 0.0
    %518 = vmatprep.subr.mxu0 0.0
    %519 = vmatpush1.xpose.msra.mxu0 0.0
    %520 = vmatprep.subr.mxu0 0.0
    %521 = vmatpush1.xpose.msra.mxu0 0.0
    %522 = vmatprep.subr.mxu0 0.0
    %523 = vmatpush1.xpose.msra.mxu0 0.0
    %524 = vmatprep.subr.mxu0 0.0
    %525 = vmatpush1.xpose.msra.mxu0 0.0
    %526 = vmatprep.subr.mxu0 0.0
    %527 = vmatpush1.xpose.msra.mxu0 0.0
    %528 = vmatprep.subr.mxu0 0.0
    %529 = vmatpush1.xpose.msra.mxu0 0.0
    %530 = vmatprep.subr.mxu0 0.0
    %531 = vmatpush1.xpose.msra.mxu0 0.0
    %532 = vmatprep.subr.mxu0 0.0
    %533 = vmatpush1.xpose.msra.mxu0 %v506
    %534 = vmatprep.subr.mxu0 0.0
    %535 = vmatpush1.xpose.msra.mxu0 %v503
    %536 = vmatprep.subr.mxu0 0.0
    %537 = vmatpush1.xpose.msra.mxu0 %v500
    %538 = vmatprep.subr.mxu0 0.0
    %539 = vmatpush1.xpose.msra.mxu0 %v497
    %540 = vmatprep.subr.mxu0 0.0
    %541 = vmatpush2.xpose.msra.mxu0 0.0
    %542 = vmatprep.subr.mxu0 0.0
    %543 = vmatpush2.xpose.msra.mxu0 0.0
    %544 = vmatprep.subr.mxu0 0.0
    %545 = vmatpush2.xpose.msra.mxu0 0.0
    %546 = vmatprep.subr.mxu0 0.0
    %547 = vmatpush2.xpose.msra.mxu0 0.0
    %548 = vmatprep.subr.mxu0 0.0
    %549 = vmatpush2.xpose.msra.mxu0 0.0
    %550 = vmatprep.subr.mxu0 0.0
    %551 = vmatpush2.xpose.msra.mxu0 0.0
    %552 = vmatprep.subr.mxu0 0.0
    %553 = vmatpush2.xpose.msra.mxu0 0.0
    %554 = vmatprep.subr.mxu0 0.0
    %555 = vmatpush2.xpose.msra.mxu0 0.0
    %556 = vmatprep.subr.mxu0 0.0
    %557 = vmatpush2.xpose.msra.mxu0 0.0
    %558 = vmatprep.subr.mxu0 0.0
    %559 = vmatpush2.xpose.msra.mxu0 0.0
    %560 = vmatprep.subr.mxu0 0.0
    %561 = vmatpush2.xpose.msra.mxu0 0.0
    %562 = vmatprep.subr.mxu0 0.0
    %563 = vmatpush2.xpose.msra.mxu0 0.0
    %564 = vmatprep.subr.mxu0 0.0
    %565 = vmatpush2.xpose.msra.mxu0 0.0
    %566 = vmatprep.subr.mxu0 0.0
    %567 = vmatpush2.xpose.msra.mxu0 0.0
    %568 = vmatprep.subr.mxu0 0.0
    %569 = vmatpush2.xpose.msra.mxu0 0.0
    %570 = vmatprep.subr.mxu0 0.0
    %571 = vmatpush2.xpose.msra.mxu0 0.0
    %572 = vmatprep.mubr.f32.mxu0 0.0
    %573 = vmatmul.mubr.f32.gmra.mxu0 %v485
    %v574 = vpop.f32.mrf.mxu0
    %v575 = vadd.f32 0.0, %v574
    %v576 = vpop.f32.mrf.mxu0
    %577 = vmatprep.mubr.f32.mxu0 0.0
    %578 = vmatmul.mubr.f32.gmra.mxu0 %v488
    %v579 = vpop.f32.mrf.mxu0
    %v580 = vadd.f32 0.0, %v579
    %v581 = vpop.f32.mrf.mxu0
    %582 = vmatprep.mubr.f32.mxu0 0.0
    %583 = vmatmul.mubr.f32.gmra.mxu0 %v491
    %v584 = vpop.f32.mrf.mxu0
    %v585 = vadd.f32 0.0, %v584
    %v586 = vpop.f32.mrf.mxu0
    %587 = vmatprep.mubr.f32.mxu0 0.0
    %588 = vmatmul.mubr.f32.gmra.mxu0 %v494
    %v589 = vpop.f32.mrf.mxu0
    %v590 = vadd.f32 0.0, %v589
    %v591 = vpop.f32.mrf.mxu0
    %592 = vdwg.mxu0
    %v593 = vmul.f32 %v575, 0.35355338
    %v594 = vmul.f32 %v580, 0.35355338
    %v595 = vmul.f32 %v585, 0.35355338
    %v596 = vmul.f32 %v590, 0.35355338
    %v597 = vadd.f32 %v593, %v88
    %v598 = vadd.f32 %v594, %v89
    %v599 = vadd.f32 %v595, %v90
    %v600 = vadd.f32 %v596, %v91
    %601 = vrot.lane.b32.xlu0 %v172, 120
    %v602 = vpop.permute.xlu0 %601
    %603 = vrot.lane.b32.xlu0 %v173, 120
    %v604 = vpop.permute.xlu0 %603
    %605 = vrot.lane.b32.xlu0 %v174, 120
    %v606 = vpop.permute.xlu0 %605
    %607 = vrot.lane.b32.xlu0 %v175, 120
    %v608 = vpop.permute.xlu0 %607
    %613 = vrot.lane.b32.xlu0 %v180, 120
    %v614 = vpop.permute.xlu0 %613
    %616 = vmatprep.subr.mxu0 0.0
    %617 = vmatpush1.msra.mxu0 0.0
    %618 = vmatprep.subr.mxu0 0.0
    %619 = vmatpush1.msra.mxu0 0.0
    %620 = vmatprep.subr.mxu0 0.0
    %621 = vmatpush1.msra.mxu0 0.0
    %622 = vmatprep.subr.mxu0 0.0
    %623 = vmatpush1.msra.mxu0 0.0
    %624 = vmatprep.subr.mxu0 0.0
    %625 = vmatpush1.msra.mxu0 0.0
    %626 = vmatprep.subr.mxu0 0.0
    %627 = vmatpush1.msra.mxu0 0.0
    %628 = vmatprep.subr.mxu0 0.0
    %629 = vmatpush1.msra.mxu0 0.0
    %630 = vmatprep.subr.mxu0 0.0
    %631 = vmatpush1.msra.mxu0 0.0
    %632 = vmatprep.subr.mxu0 0.0
    %633 = vmatpush1.msra.mxu0 0.0
    %634 = vmatprep.subr.mxu0 0.0
    %635 = vmatpush1.msra.mxu0 0.0
    %636 = vmatprep.subr.mxu0 0.0
    %637 = vmatpush1.msra.mxu0 0.0
    %638 = vmatprep.subr.mxu0 0.0
    %639 = vmatpush1.msra.mxu0 0.0
    %640 = vmatprep.subr.mxu0 0.0
    %641 = vmatpush1.msra.mxu0 %v608
    %642 = vmatprep.subr.mxu0 0.0
    %643 = vmatpush1.msra.mxu0 %v606
    %644 = vmatprep.subr.mxu0 0.0
    %645 = vmatpush1.msra.mxu0 %v604
    %646 = vmatprep.subr.mxu0 0.0
    %647 = vmatpush1.msra.mxu0 %v602
    %648 = vmatprep.subr.mxu0 0.0
    %649 = vmatpush2.msra.mxu0 0.0
    %650 = vmatprep.subr.mxu0 0.0
    %651 = vmatpush2.msra.mxu0 0.0
    %652 = vmatprep.subr.mxu0 0.0
    %653 = vmatpush2.msra.mxu0 0.0
    %654 = vmatprep.subr.mxu0 0.0
    %655 = vmatpush2.msra.mxu0 0.0
    %656 = vmatprep.subr.mxu0 0.0
    %657 = vmatpush2.msra.mxu0 0.0
    %658 = vmatprep.subr.mxu0 0.0
    %659 = vmatpush2.msra.mxu0 0.0
    %660 = vmatprep.subr.mxu0 0.0
    %661 = vmatpush2.msra.mxu0 0.0
    %662 = vmatprep.subr.mxu0 0.0
    %663 = vmatpush2.msra.mxu0 0.0
    %664 = vmatprep.subr.mxu0 0.0
    %665 = vmatpush2.msra.mxu0 0.0
    %666 = vmatprep.subr.mxu0 0.0
    %667 = vmatpush2.msra.mxu0 0.0
    %668 = vmatprep.subr.mxu0 0.0
    %669 = vmatpush2.msra.mxu0 0.0
    %670 = vmatprep.subr.mxu0 0.0
    %671 = vmatpush2.msra.mxu0 0.0
    %672 = vmatprep.subr.mxu0 0.0
    %673 = vmatpush2.msra.mxu0 0.0
    %674 = vmatprep.subr.mxu0 0.0
    %675 = vmatpush2.msra.mxu0 0.0
    %676 = vmatprep.subr.mxu0 0.0
    %677 = vmatpush2.msra.mxu0 0.0
    %678 = vmatprep.subr.mxu0 0.0
    %679 = vmatpush2.msra.mxu0 0.0
    %680 = vmatprep.mubr.f32.mxu0 0.0
    %681 = vmatmul.mubr.f32.gmra.mxu0 %v182
    %v682 = vpop.f32.mrf.mxu0
    %v683 = vadd.f32 %v614, %v682
    %v684 = vpop.f32.mrf.mxu0
    %685 = vmatprep.mubr.f32.mxu0 0.0
    %686 = vmatmul.mubr.f32.gmra.mxu0 %v185
    %v687 = vpop.f32.mrf.mxu0
    %v688 = vadd.f32 %v614, %v687
    %v689 = vpop.f32.mrf.mxu0
    %690 = vmatprep.mubr.f32.mxu0 0.0
    %691 = vmatmul.mubr.f32.gmra.mxu0 %v188
    %v692 = vpop.f32.mrf.mxu0
    %v693 = vadd.f32 %v614, %v692
    %v694 = vpop.f32.mrf.mxu0
    %695 = vmatprep.mubr.f32.mxu0 0.0
    %696 = vmatmul.mubr.f32.gmra.mxu0 %v191
    %v697 = vpop.f32.mrf.mxu0
    %v698 = vadd.f32 %v614, %v697
    %v699 = vpop.f32.mrf.mxu0
    %700 = vdwg.mxu0
    %701 = vrot.lane.b32.xlu0 %v172, 88
    %v702 = vpop.permute.xlu0 %701
    %703 = vrot.lane.b32.xlu0 %v173, 88
    %v704 = vpop.permute.xlu0 %703
    %705 = vrot.lane.b32.xlu0 %v174, 88
    %v706 = vpop.permute.xlu0 %705
    %707 = vrot.lane.b32.xlu0 %v175, 88
    %v708 = vpop.permute.xlu0 %707
    %713 = vrot.lane.b32.xlu0 %v180, 88
    %v714 = vpop.permute.xlu0 %713
    %716 = vmatprep.subr.mxu0 0.0
    %717 = vmatpush1.msra.mxu0 0.0
    %718 = vmatprep.subr.mxu0 0.0
    %719 = vmatpush1.msra.mxu0 0.0
    %720 = vmatprep.subr.mxu0 0.0
    %721 = vmatpush1.msra.mxu0 0.0
    %722 = vmatprep.subr.mxu0 0.0
    %723 = vmatpush1.msra.mxu0 0.0
    %724 = vmatprep.subr.mxu0 0.0
    %725 = vmatpush1.msra.mxu0 0.0
    %726 = vmatprep.subr.mxu0 0.0
    %727 = vmatpush1.msra.mxu0 0.0
    %728 = vmatprep.subr.mxu0 0.0
    %729 = vmatpush1.msra.mxu0 0.0
    %730 = vmatprep.subr.mxu0 0.0
    %731 = vmatpush1.msra.mxu0 0.0
    %732 = vmatprep.subr.mxu0 0.0
    %733 = vmatpush1.msra.mxu0 0.0
    %734 = vmatprep.subr.mxu0 0.0
    %735 = vmatpush1.msra.mxu0 0.0
    %736 = vmatprep.subr.mxu0 0.0
    %737 = vmatpush1.msra.mxu0 0.0
    %738 = vmatprep.subr.mxu0 0.0
    %739 = vmatpush1.msra.mxu0 0.0
    %740 = vmatprep.subr.mxu0 0.0
    %741 = vmatpush1.msra.mxu0 %v708
    %742 = vmatprep.subr.mxu0 0.0
    %743 = vmatpush1.msra.mxu0 %v706
    %744 = vmatprep.subr.mxu0 0.0
    %745 = vmatpush1.msra.mxu0 %v704
    %746 = vmatprep.subr.mxu0 0.0
    %747 = vmatpush1.msra.mxu0 %v702
    %748 = vmatprep.subr.mxu0 0.0
    %749 = vmatpush2.msra.mxu0 0.0
    %750 = vmatprep.subr.mxu0 0.0
    %751 = vmatpush2.msra.mxu0 0.0
    %752 = vmatprep.subr.mxu0 0.0
    %753 = vmatpush2.msra.mxu0 0.0
    %754 = vmatprep.subr.mxu0 0.0
    %755 = vmatpush2.msra.mxu0 0.0
    %756 = vmatprep.subr.mxu0 0.0
    %757 = vmatpush2.msra.mxu0 0.0
    %758 = vmatprep.subr.mxu0 0.0
    %759 = vmatpush2.msra.mxu0 0.0
    %760 = vmatprep.subr.mxu0 0.0
    %761 = vmatpush2.msra.mxu0 0.0
    %762 = vmatprep.subr.mxu0 0.0
    %763 = vmatpush2.msra.mxu0 0.0
    %764 = vmatprep.subr.mxu0 0.0
    %765 = vmatpush2.msra.mxu0 0.0
    %766 = vmatprep.subr.mxu0 0.0
    %767 = vmatpush2.msra.mxu0 0.0
    %768 = vmatprep.subr.mxu0 0.0
    %769 = vmatpush2.msra.mxu0 0.0
    %770 = vmatprep.subr.mxu0 0.0
    %771 = vmatpush2.msra.mxu0 0.0
    %772 = vmatprep.subr.mxu0 0.0
    %773 = vmatpush2.msra.mxu0 0.0
    %774 = vmatprep.subr.mxu0 0.0
    %775 = vmatpush2.msra.mxu0 0.0
    %776 = vmatprep.subr.mxu0 0.0
    %777 = vmatpush2.msra.mxu0 0.0
    %778 = vmatprep.subr.mxu0 0.0
    %779 = vmatpush2.msra.mxu0 0.0
    %780 = vmatprep.mubr.f32.mxu0 0.0
    %781 = vmatmul.mubr.f32.gmra.mxu0 %v182
    %v782 = vpop.f32.mrf.mxu0
    %v783 = vadd.f32 %v714, %v782
    %v784 = vpop.f32.mrf.mxu0
    %785 = vmatprep.mubr.f32.mxu0 0.0
    %786 = vmatmul.mubr.f32.gmra.mxu0 %v185
    %v787 = vpop.f32.mrf.mxu0
    %v788 = vadd.f32 %v714, %v787
    %v789 = vpop.f32.mrf.mxu0
    %790 = vmatprep.mubr.f32.mxu0 0.0
    %791 = vmatmul.mubr.f32.gmra.mxu0 %v188
    %v792 = vpop.f32.mrf.mxu0
    %v793 = vadd.f32 %v714, %v792
    %v794 = vpop.f32.mrf.mxu0
    %795 = vmatprep.mubr.f32.mxu0 0.0
    %796 = vmatmul.mubr.f32.gmra.mxu0 %v191
    %v797 = vpop.f32.mrf.mxu0
    %v798 = vadd.f32 %v714, %v797
    %v799 = vpop.f32.mrf.mxu0
    %800 = vdwg.mxu0
    %801 = vrot.lane.b32.xlu0 %v172, 56
    %v802 = vpop.permute.xlu0 %801
    %803 = vrot.lane.b32.xlu0 %v173, 56
    %v804 = vpop.permute.xlu0 %803
    %805 = vrot.lane.b32.xlu0 %v174, 56
    %v806 = vpop.permute.xlu0 %805
    %807 = vrot.lane.b32.xlu0 %v175, 56
    %v808 = vpop.permute.xlu0 %807
    %813 = vrot.lane.b32.xlu0 %v180, 56
    %v814 = vpop.permute.xlu0 %813
    %816 = vmatprep.subr.mxu0 0.0
    %817 = vmatpush1.msra.mxu0 0.0
    %818 = vmatprep.subr.mxu0 0.0
    %819 = vmatpush1.msra.mxu0 0.0
    %820 = vmatprep.subr.mxu0 0.0
    %821 = vmatpush1.msra.mxu0 0.0
    %822 = vmatprep.subr.mxu0 0.0
    %823 = vmatpush1.msra.mxu0 0.0
    %824 = vmatprep.subr.mxu0 0.0
    %825 = vmatpush1.msra.mxu0 0.0
    %826 = vmatprep.subr.mxu0 0.0
    %827 = vmatpush1.msra.mxu0 0.0
    %828 = vmatprep.subr.mxu0 0.0
    %829 = vmatpush1.msra.mxu0 0.0
    %830 = vmatprep.subr.mxu0 0.0
    %831 = vmatpush1.msra.mxu0 0.0
    %832 = vmatprep.subr.mxu0 0.0
    %833 = vmatpush1.msra.mxu0 0.0
    %834 = vmatprep.subr.mxu0 0.0
    %835 = vmatpush1.msra.mxu0 0.0
    %836 = vmatprep.subr.mxu0 0.0
    %837 = vmatpush1.msra.mxu0 0.0
    %838 = vmatprep.subr.mxu0 0.0
    %839 = vmatpush1.msra.mxu0 0.0
    %840 = vmatprep.subr.mxu0 0.0
    %841 = vmatpush1.msra.mxu0 %v808
    %842 = vmatprep.subr.mxu0 0.0
    %843 = vmatpush1.msra.mxu0 %v806
    %844 = vmatprep.subr.mxu0 0.0
    %845 = vmatpush1.msra.mxu0 %v804
    %846 = vmatprep.subr.mxu0 0.0
    %847 = vmatpush1.msra.mxu0 %v802
    %848 = vmatprep.subr.mxu0 0.0
    %849 = vmatpush2.msra.mxu0 0.0
    %850 = vmatprep.subr.mxu0 0.0
    %851 = vmatpush2.msra.mxu0 0.0
    %852 = vmatprep.subr.mxu0 0.0
    %853 = vmatpush2.msra.mxu0 0.0
    %854 = vmatprep.subr.mxu0 0.0
    %855 = vmatpush2.msra.mxu0 0.0
    %856 = vmatprep.subr.mxu0 0.0
    %857 = vmatpush2.msra.mxu0 0.0
    %858 = vmatprep.subr.mxu0 0.0
    %859 = vmatpush2.msra.mxu0 0.0
    %860 = vmatprep.subr.mxu0 0.0
    %861 = vmatpush2.msra.mxu0 0.0
    %862 = vmatprep.subr.mxu0 0.0
    %863 = vmatpush2.msra.mxu0 0.0
    %864 = vmatprep.subr.mxu0 0.0
    %865 = vmatpush2.msra.mxu0 0.0
    %866 = vmatprep.subr.mxu0 0.0
    %867 = vmatpush2.msra.mxu0 0.0
    %868 = vmatprep.subr.mxu0 0.0
    %869 = vmatpush2.msra.mxu0 0.0
    %870 = vmatprep.subr.mxu0 0.0
    %871 = vmatpush2.msra.mxu0 0.0
    %872 = vmatprep.subr.mxu0 0.0
    %873 = vmatpush2.msra.mxu0 0.0
    %874 = vmatprep.subr.mxu0 0.0
    %875 = vmatpush2.msra.mxu0 0.0
    %876 = vmatprep.subr.mxu0 0.0
    %877 = vmatpush2.msra.mxu0 0.0
    %878 = vmatprep.subr.mxu0 0.0
    %879 = vmatpush2.msra.mxu0 0.0
    %880 = vmatprep.mubr.f32.mxu0 0.0
    %881 = vmatmul.mubr.f32.gmra.mxu0 %v182
    %v882 = vpop.f32.mrf.mxu0
    %v883 = vadd.f32 %v814, %v882
    %v884 = vpop.f32.mrf.mxu0
    %885 = vmatprep.mubr.f32.mxu0 0.0
    %886 = vmatmul.mubr.f32.gmra.mxu0 %v185
    %v887 = vpop.f32.mrf.mxu0
    %v888 = vadd.f32 %v814, %v887
    %v889 = vpop.f32.mrf.mxu0
    %890 = vmatprep.mubr.f32.mxu0 0.0
    %891 = vmatmul.mubr.f32.gmra.mxu0 %v188
    %v892 = vpop.f32.mrf.mxu0
    %v893 = vadd.f32 %v814, %v892
    %v894 = vpop.f32.mrf.mxu0
    %895 = vmatprep.mubr.f32.mxu0 0.0
    %896 = vmatmul.mubr.f32.gmra.mxu0 %v191
    %v897 = vpop.f32.mrf.mxu0
    %v898 = vadd.f32 %v814, %v897
    %v899 = vpop.f32.mrf.mxu0
    %900 = vdwg.mxu0
    %v902 = vsel %vm483, %v683, 0
    %v905 = vsel %vm483, %v688, 0
    %v908 = vsel %vm483, %v693, 0
    %v911 = vsel %vm483, %v698, 0
    %v914 = vsel %vm483, %v783, 0
    %v917 = vsel %vm483, %v788, 0
    %v920 = vsel %vm483, %v793, 0
    %v923 = vsel %vm483, %v798, 0
    %925 = vmatprep.subr.mxu0 0.0
    %926 = vmatpush1.xpose.msra.mxu0 0.0
    %927 = vmatprep.subr.mxu0 0.0
    %928 = vmatpush1.xpose.msra.mxu0 0.0
    %929 = vmatprep.subr.mxu0 0.0
    %930 = vmatpush1.xpose.msra.mxu0 0.0
    %931 = vmatprep.subr.mxu0 0.0
    %932 = vmatpush1.xpose.msra.mxu0 0.0
    %933 = vmatprep.subr.mxu0 0.0
    %934 = vmatpush1.xpose.msra.mxu0 0.0
    %935 = vmatprep.subr.mxu0 0.0
    %936 = vmatpush1.xpose.msra.mxu0 0.0
    %937 = vmatprep.subr.mxu0 0.0
    %938 = vmatpush1.xpose.msra.mxu0 0.0
    %939 = vmatprep.subr.mxu0 0.0
    %940 = vmatpush1.xpose.msra.mxu0 0.0
    %941 = vmatprep.subr.mxu0 0.0
    %942 = vmatpush1.xpose.msra.mxu0 0.0
    %943 = vmatprep.subr.mxu0 0.0
    %944 = vmatpush1.xpose.msra.mxu0 0.0
    %945 = vmatprep.subr.mxu0 0.0
    %946 = vmatpush1.xpose.msra.mxu0 0.0
    %947 = vmatprep.subr.mxu0 0.0
    %948 = vmatpush1.xpose.msra.mxu0 0.0
    %949 = vmatprep.subr.mxu0 0.0
    %950 = vmatpush1.xpose.msra.mxu0 %v923
    %951 = vmatprep.subr.mxu0 0.0
    %952 = vmatpush1.xpose.msra.mxu0 %v920
    %953 = vmatprep.subr.mxu0 0.0
    %954 = vmatpush1.xpose.msra.mxu0 %v917
    %955 = vmatprep.subr.mxu0 0.0
    %956 = vmatpush1.xpose.msra.mxu0 %v914
    %957 = vmatprep.subr.mxu0 0.0
    %958 = vmatpush2.xpose.msra.mxu0 0.0
    %959 = vmatprep.subr.mxu0 0.0
    %960 = vmatpush2.xpose.msra.mxu0 0.0
    %961 = vmatprep.subr.mxu0 0.0
    %962 = vmatpush2.xpose.msra.mxu0 0.0
    %963 = vmatprep.subr.mxu0 0.0
    %964 = vmatpush2.xpose.msra.mxu0 0.0
    %965 = vmatprep.subr.mxu0 0.0
    %966 = vmatpush2.xpose.msra.mxu0 0.0
    %967 = vmatprep.subr.mxu0 0.0
    %968 = vmatpush2.xpose.msra.mxu0 0.0
    %969 = vmatprep.subr.mxu0 0.0
    %970 = vmatpush2.xpose.msra.mxu0 0.0
    %971 = vmatprep.subr.mxu0 0.0
    %972 = vmatpush2.xpose.msra.mxu0 0.0
    %973 = vmatprep.subr.mxu0 0.0
    %974 = vmatpush2.xpose.msra.mxu0 0.0
    %975 = vmatprep.subr.mxu0 0.0
    %976 = vmatpush2.xpose.msra.mxu0 0.0
    %977 = vmatprep.subr.mxu0 0.0
    %978 = vmatpush2.xpose.msra.mxu0 0.0
    %979 = vmatprep.subr.mxu0 0.0
    %980 = vmatpush2.xpose.msra.mxu0 0.0
    %981 = vmatprep.subr.mxu0 0.0
    %982 = vmatpush2.xpose.msra.mxu0 0.0
    %983 = vmatprep.subr.mxu0 0.0
    %984 = vmatpush2.xpose.msra.mxu0 0.0
    %985 = vmatprep.subr.mxu0 0.0
    %986 = vmatpush2.xpose.msra.mxu0 0.0
    %987 = vmatprep.subr.mxu0 0.0
    %988 = vmatpush2.xpose.msra.mxu0 0.0
    %989 = vmatprep.mubr.f32.mxu0 0.0
    %990 = vmatmul.mubr.f32.gmra.mxu0 %v902
    %v991 = vpop.f32.mrf.mxu0
    %v992 = vadd.f32 0.0, %v991
    %v993 = vpop.f32.mrf.mxu0
    %994 = vmatprep.mubr.f32.mxu0 0.0
    %995 = vmatmul.mubr.f32.gmra.mxu0 %v905
    %v996 = vpop.f32.mrf.mxu0
    %v997 = vadd.f32 0.0, %v996
    %v998 = vpop.f32.mrf.mxu0
    %999 = vmatprep.mubr.f32.mxu0 0.0
    %1000 = vmatmul.mubr.f32.gmra.mxu0 %v908
    %v1001 = vpop.f32.mrf.mxu0
    %v1002 = vadd.f32 0.0, %v1001
    %v1003 = vpop.f32.mrf.mxu0
    %1004 = vmatprep.mubr.f32.mxu0 0.0
    %1005 = vmatmul.mubr.f32.gmra.mxu0 %v911
    %v1006 = vpop.f32.mrf.mxu0
    %v1007 = vadd.f32 0.0, %v1006
    %v1008 = vpop.f32.mrf.mxu0
    %1009 = vdwg.mxu0
    %v1010 = vmul.f32 %v992, 0.35355338
    %v1011 = vmul.f32 %v997, 0.35355338
    %v1012 = vmul.f32 %v1002, 0.35355338
    %v1013 = vmul.f32 %v1007, 0.35355338
    %v1014 = vadd.f32 %v1010, %v88
    %v1015 = vadd.f32 %v1011, %v89
    %v1016 = vadd.f32 %v1012, %v90
    %v1017 = vadd.f32 %v1013, %v91
    %1018 = vrot.lane.b32.xlu0 %v172, 112
    %v1019 = vpop.permute.xlu0 %1018
    %1020 = vrot.lane.b32.xlu0 %v173, 112
    %v1021 = vpop.permute.xlu0 %1020
    %1022 = vrot.lane.b32.xlu0 %v174, 112
    %v1023 = vpop.permute.xlu0 %1022
    %1024 = vrot.lane.b32.xlu0 %v175, 112
    %v1025 = vpop.permute.xlu0 %1024
    %1030 = vrot.lane.b32.xlu0 %v180, 112
    %v1031 = vpop.permute.xlu0 %1030
    %1033 = vmatprep.subr.mxu0 0.0
    %1034 = vmatpush1.msra.mxu0 0.0
    %1035 = vmatprep.subr.mxu0 0.0
    %1036 = vmatpush1.msra.mxu0 0.0
    %1037 = vmatprep.subr.mxu0 0.0
    %1038 = vmatpush1.msra.mxu0 0.0
    %1039 = vmatprep.subr.mxu0 0.0
    %1040 = vmatpush1.msra.mxu0 0.0
    %1041 = vmatprep.subr.mxu0 0.0
    %1042 = vmatpush1.msra.mxu0 0.0
    %1043 = vmatprep.subr.mxu0 0.0
    %1044 = vmatpush1.msra.mxu0 0.0
    %1045 = vmatprep.subr.mxu0 0.0
    %1046 = vmatpush1.msra.mxu0 0.0
    %1047 = vmatprep.subr.mxu0 0.0
    %1048 = vmatpush1.msra.mxu0 0.0
    %1049 = vmatprep.subr.mxu0 0.0
    %1050 = vmatpush1.msra.mxu0 0.0
    %1051 = vmatprep.subr.mxu0 0.0
    %1052 = vmatpush1.msra.mxu0 0.0
    %1053 = vmatprep.subr.mxu0 0.0
    %1054 = vmatpush1.msra.mxu0 0.0
    %1055 = vmatprep.subr.mxu0 0.0
    %1056 = vmatpush1.msra.mxu0 0.0
    %1057 = vmatprep.subr.mxu0 0.0
    %1058 = vmatpush1.msra.mxu0 %v1025
    %1059 = vmatprep.subr.mxu0 0.0
    %1060 = vmatpush1.msra.mxu0 %v1023
    %1061 = vmatprep.subr.mxu0 0.0
    %1062 = vmatpush1.msra.mxu0 %v1021
    %1063 = vmatprep.subr.mxu0 0.0
    %1064 = vmatpush1.msra.mxu0 %v1019
    %1065 = vmatprep.subr.mxu0 0.0
    %1066 = vmatpush2.msra.mxu0 0.0
    %1067 = vmatprep.subr.mxu0 0.0
    %1068 = vmatpush2.msra.mxu0 0.0
    %1069 = vmatprep.subr.mxu0 0.0
    %1070 = vmatpush2.msra.mxu0 0.0
    %1071 = vmatprep.subr.mxu0 0.0
    %1072 = vmatpush2.msra.mxu0 0.0
    %1073 = vmatprep.subr.mxu0 0.0
    %1074 = vmatpush2.msra.mxu0 0.0
    %1075 = vmatprep.subr.mxu0 0.0
    %1076 = vmatpush2.msra.mxu0 0.0
    %1077 = vmatprep.subr.mxu0 0.0
    %1078 = vmatpush2.msra.mxu0 0.0
    %1079 = vmatprep.subr.mxu0 0.0
    %1080 = vmatpush2.msra.mxu0 0.0
    %1081 = vmatprep.subr.mxu0 0.0
    %1082 = vmatpush2.msra.mxu0 0.0
    %1083 = vmatprep.subr.mxu0 0.0
    %1084 = vmatpush2.msra.mxu0 0.0
    %1085 = vmatprep.subr.mxu0 0.0
    %1086 = vmatpush2.msra.mxu0 0.0
    %1087 = vmatprep.subr.mxu0 0.0
    %1088 = vmatpush2.msra.mxu0 0.0
    %1089 = vmatprep.subr.mxu0 0.0
    %1090 = vmatpush2.msra.mxu0 0.0
    %1091 = vmatprep.subr.mxu0 0.0
    %1092 = vmatpush2.msra.mxu0 0.0
    %1093 = vmatprep.subr.mxu0 0.0
    %1094 = vmatpush2.msra.mxu0 0.0
    %1095 = vmatprep.subr.mxu0 0.0
    %1096 = vmatpush2.msra.mxu0 0.0
    %1097 = vmatprep.mubr.f32.mxu0 0.0
    %1098 = vmatmul.mubr.f32.gmra.mxu0 %v182
    %v1099 = vpop.f32.mrf.mxu0
    %v1100 = vadd.f32 %v1031, %v1099
    %v1101 = vpop.f32.mrf.mxu0
    %1102 = vmatprep.mubr.f32.mxu0 0.0
    %1103 = vmatmul.mubr.f32.gmra.mxu0 %v185
    %v1104 = vpop.f32.mrf.mxu0
    %v1105 = vadd.f32 %v1031, %v1104
    %v1106 = vpop.f32.mrf.mxu0
    %1107 = vmatprep.mubr.f32.mxu0 0.0
    %1108 = vmatmul.mubr.f32.gmra.mxu0 %v188
    %v1109 = vpop.f32.mrf.mxu0
    %v1110 = vadd.f32 %v1031, %v1109
    %v1111 = vpop.f32.mrf.mxu0
    %1112 = vmatprep.mubr.f32.mxu0 0.0
    %1113 = vmatmul.mubr.f32.gmra.mxu0 %v191
    %v1114 = vpop.f32.mrf.mxu0
    %v1115 = vadd.f32 %v1031, %v1114
    %v1116 = vpop.f32.mrf.mxu0
    %1117 = vdwg.mxu0
    %1118 = vrot.lane.b32.xlu0 %v172, 80
    %v1119 = vpop.permute.xlu0 %1118
    %1120 = vrot.lane.b32.xlu0 %v173, 80
    %v1121 = vpop.permute.xlu0 %1120
    %1122 = vrot.lane.b32.xlu0 %v174, 80
    %v1123 = vpop.permute.xlu0 %1122
    %1124 = vrot.lane.b32.xlu0 %v175, 80
    %v1125 = vpop.permute.xlu0 %1124
    %1130 = vrot.lane.b32.xlu0 %v180, 80
    %v1131 = vpop.permute.xlu0 %1130
    %1133 = vmatprep.subr.mxu0 0.0
    %1134 = vmatpush1.msra.mxu0 0.0
    %1135 = vmatprep.subr.mxu0 0.0
    %1136 = vmatpush1.msra.mxu0 0.0
    %1137 = vmatprep.subr.mxu0 0.0
    %1138 = vmatpush1.msra.mxu0 0.0
    %1139 = vmatprep.subr.mxu0 0.0
    %1140 = vmatpush1.msra.mxu0 0.0
    %1141 = vmatprep.subr.mxu0 0.0
    %1142 = vmatpush1.msra.mxu0 0.0
    %1143 = vmatprep.subr.mxu0 0.0
    %1144 = vmatpush1.msra.mxu0 0.0
    %1145 = vmatprep.subr.mxu0 0.0
    %1146 = vmatpush1.msra.mxu0 0.0
    %1147 = vmatprep.subr.mxu0 0.0
    %1148 = vmatpush1.msra.mxu0 0.0
    %1149 = vmatprep.subr.mxu0 0.0
    %1150 = vmatpush1.msra.mxu0 0.0
    %1151 = vmatprep.subr.mxu0 0.0
    %1152 = vmatpush1.msra.mxu0 0.0
    %1153 = vmatprep.subr.mxu0 0.0
    %1154 = vmatpush1.msra.mxu0 0.0
    %1155 = vmatprep.subr.mxu0 0.0
    %1156 = vmatpush1.msra.mxu0 0.0
    %1157 = vmatprep.subr.mxu0 0.0
    %1158 = vmatpush1.msra.mxu0 %v1125
    %1159 = vmatprep.subr.mxu0 0.0
    %1160 = vmatpush1.msra.mxu0 %v1123
    %1161 = vmatprep.subr.mxu0 0.0
    %1162 = vmatpush1.msra.mxu0 %v1121
    %1163 = vmatprep.subr.mxu0 0.0
    %1164 = vmatpush1.msra.mxu0 %v1119
    %1165 = vmatprep.subr.mxu0 0.0
    %1166 = vmatpush2.msra.mxu0 0.0
    %1167 = vmatprep.subr.mxu0 0.0
    %1168 = vmatpush2.msra.mxu0 0.0
    %1169 = vmatprep.subr.mxu0 0.0
    %1170 = vmatpush2.msra.mxu0 0.0
    %1171 = vmatprep.subr.mxu0 0.0
    %1172 = vmatpush2.msra.mxu0 0.0
    %1173 = vmatprep.subr.mxu0 0.0
    %1174 = vmatpush2.msra.mxu0 0.0
    %1175 = vmatprep.subr.mxu0 0.0
    %1176 = vmatpush2.msra.mxu0 0.0
    %1177 = vmatprep.subr.mxu0 0.0
    %1178 = vmatpush2.msra.mxu0 0.0
    %1179 = vmatprep.subr.mxu0 0.0
    %1180 = vmatpush2.msra.mxu0 0.0
    %1181 = vmatprep.subr.mxu0 0.0
    %1182 = vmatpush2.msra.mxu0 0.0
    %1183 = vmatprep.subr.mxu0 0.0
    %1184 = vmatpush2.msra.mxu0 0.0
    %1185 = vmatprep.subr.mxu0 0.0
    %1186 = vmatpush2.msra.mxu0 0.0
    %1187 = vmatprep.subr.mxu0 0.0
    %1188 = vmatpush2.msra.mxu0 0.0
    %1189 = vmatprep.subr.mxu0 0.0
    %1190 = vmatpush2.msra.mxu0 0.0
    %1191 = vmatprep.subr.mxu0 0.0
    %1192 = vmatpush2.msra.mxu0 0.0
    %1193 = vmatprep.subr.mxu0 0.0
    %1194 = vmatpush2.msra.mxu0 0.0
    %1195 = vmatprep.subr.mxu0 0.0
    %1196 = vmatpush2.msra.mxu0 0.0
    %1197 = vmatprep.mubr.f32.mxu0 0.0
    %1198 = vmatmul.mubr.f32.gmra.mxu0 %v182
    %v1199 = vpop.f32.mrf.mxu0
    %v1200 = vadd.f32 %v1131, %v1199
    %v1201 = vpop.f32.mrf.mxu0
    %1202 = vmatprep.mubr.f32.mxu0 0.0
    %1203 = vmatmul.mubr.f32.gmra.mxu0 %v185
    %v1204 = vpop.f32.mrf.mxu0
    %v1205 = vadd.f32 %v1131, %v1204
    %v1206 = vpop.f32.mrf.mxu0
    %1207 = vmatprep.mubr.f32.mxu0 0.0
    %1208 = vmatmul.mubr.f32.gmra.mxu0 %v188
    %v1209 = vpop.f32.mrf.mxu0
    %v1210 = vadd.f32 %v1131, %v1209
    %v1211 = vpop.f32.mrf.mxu0
    %1212 = vmatprep.mubr.f32.mxu0 0.0
    %1213 = vmatmul.mubr.f32.gmra.mxu0 %v191
    %v1214 = vpop.f32.mrf.mxu0
    %v1215 = vadd.f32 %v1131, %v1214
    %v1216 = vpop.f32.mrf.mxu0
    %1217 = vdwg.mxu0
    %1218 = vrot.lane.b32.xlu0 %v172, 48
    %v1219 = vpop.permute.xlu0 %1218
    %1220 = vrot.lane.b32.xlu0 %v173, 48
    %v1221 = vpop.permute.xlu0 %1220
    %1222 = vrot.lane.b32.xlu0 %v174, 48
    %v1223 = vpop.permute.xlu0 %1222
    %1224 = vrot.lane.b32.xlu0 %v175, 48
    %v1225 = vpop.permute.xlu0 %1224
    %1230 = vrot.lane.b32.xlu0 %v180, 48
    %v1231 = vpop.permute.xlu0 %1230
    %1233 = vmatprep.subr.mxu0 0.0
    %1234 = vmatpush1.msra.mxu0 0.0
    %1235 = vmatprep.subr.mxu0 0.0
    %1236 = vmatpush1.msra.mxu0 0.0
    %1237 = vmatprep.subr.mxu0 0.0
    %1238 = vmatpush1.msra.mxu0 0.0
    %1239 = vmatprep.subr.mxu0 0.0
    %1240 = vmatpush1.msra.mxu0 0.0
    %1241 = vmatprep.subr.mxu0 0.0
    %1242 = vmatpush1.msra.mxu0 0.0
    %1243 = vmatprep.subr.mxu0 0.0
    %1244 = vmatpush1.msra.mxu0 0.0
    %1245 = vmatprep.subr.mxu0 0.0
    %1246 = vmatpush1.msra.mxu0 0.0
    %1247 = vmatprep.subr.mxu0 0.0
    %1248 = vmatpush1.msra.mxu0 0.0
    %1249 = vmatprep.subr.mxu0 0.0
    %1250 = vmatpush1.msra.mxu0 0.0
    %1251 = vmatprep.subr.mxu0 0.0
    %1252 = vmatpush1.msra.mxu0 0.0
    %1253 = vmatprep.subr.mxu0 0.0
    %1254 = vmatpush1.msra.mxu0 0.0
    %1255 = vmatprep.subr.mxu0 0.0
    %1256 = vmatpush1.msra.mxu0 0.0
    %1257 = vmatprep.subr.mxu0 0.0
    %1258 = vmatpush1.msra.mxu0 %v1225
    %1259 = vmatprep.subr.mxu0 0.0
    %1260 = vmatpush1.msra.mxu0 %v1223
    %1261 = vmatprep.subr.mxu0 0.0
    %1262 = vmatpush1.msra.mxu0 %v1221
    %1263 = vmatprep.subr.mxu0 0.0
    %1264 = vmatpush1.msra.mxu0 %v1219
    %1265 = vmatprep.subr.mxu0 0.0
    %1266 = vmatpush2.msra.mxu0 0.0
    %1267 = vmatprep.subr.mxu0 0.0
    %1268 = vmatpush2.msra.mxu0 0.0
    %1269 = vmatprep.subr.mxu0 0.0
    %1270 = vmatpush2.msra.mxu0 0.0
    %1271 = vmatprep.subr.mxu0 0.0
    %1272 = vmatpush2.msra.mxu0 0.0
    %1273 = vmatprep.subr.mxu0 0.0
    %1274 = vmatpush2.msra.mxu0 0.0
    %1275 = vmatprep.subr.mxu0 0.0
    %1276 = vmatpush2.msra.mxu0 0.0
    %1277 = vmatprep.subr.mxu0 0.0
    %1278 = vmatpush2.msra.mxu0 0.0
    %1279 = vmatprep.subr.mxu0 0.0
    %1280 = vmatpush2.msra.mxu0 0.0
    %1281 = vmatprep.subr.mxu0 0.0
    %1282 = vmatpush2.msra.mxu0 0.0
    %1283 = vmatprep.subr.mxu0 0.0
    %1284 = vmatpush2.msra.mxu0 0.0
    %1285 = vmatprep.subr.mxu0 0.0
    %1286 = vmatpush2.msra.mxu0 0.0
    %1287 = vmatprep.subr.mxu0 0.0
    %1288 = vmatpush2.msra.mxu0 0.0
    %1289 = vmatprep.subr.mxu0 0.0
    %1290 = vmatpush2.msra.mxu0 0.0
    %1291 = vmatprep.subr.mxu0 0.0
    %1292 = vmatpush2.msra.mxu0 0.0
    %1293 = vmatprep.subr.mxu0 0.0
    %1294 = vmatpush2.msra.mxu0 0.0
    %1295 = vmatprep.subr.mxu0 0.0
    %1296 = vmatpush2.msra.mxu0 0.0
    %1297 = vmatprep.mubr.f32.mxu0 0.0
    %1298 = vmatmul.mubr.f32.gmra.mxu0 %v182
    %v1299 = vpop.f32.mrf.mxu0
    %v1300 = vadd.f32 %v1231, %v1299
    %v1301 = vpop.f32.mrf.mxu0
    %1302 = vmatprep.mubr.f32.mxu0 0.0
    %1303 = vmatmul.mubr.f32.gmra.mxu0 %v185
    %v1304 = vpop.f32.mrf.mxu0
    %v1305 = vadd.f32 %v1231, %v1304
    %v1306 = vpop.f32.mrf.mxu0
    %1307 = vmatprep.mubr.f32.mxu0 0.0
    %1308 = vmatmul.mubr.f32.gmra.mxu0 %v188
    %v1309 = vpop.f32.mrf.mxu0
    %v1310 = vadd.f32 %v1231, %v1309
    %v1311 = vpop.f32.mrf.mxu0
    %1312 = vmatprep.mubr.f32.mxu0 0.0
    %1313 = vmatmul.mubr.f32.gmra.mxu0 %v191
    %v1314 = vpop.f32.mrf.mxu0
    %v1315 = vadd.f32 %v1231, %v1314
    %v1316 = vpop.f32.mrf.mxu0
    %1317 = vdwg.mxu0
    %v1319 = vsel %vm483, %v1100, 0
    %v1322 = vsel %vm483, %v1105, 0
    %v1325 = vsel %vm483, %v1110, 0
    %v1328 = vsel %vm483, %v1115, 0
    %v1331 = vsel %vm483, %v1200, 0
    %v1334 = vsel %vm483, %v1205, 0
    %v1337 = vsel %vm483, %v1210, 0
    %v1340 = vsel %vm483, %v1215, 0
    %1342 = vmatprep.subr.mxu0 0.0
    %1343 = vmatpush1.xpose.msra.mxu0 0.0
    %1344 = vmatprep.subr.mxu0 0.0
    %1345 = vmatpush1.xpose.msra.mxu0 0.0
    %1346 = vmatprep.subr.mxu0 0.0
    %1347 = vmatpush1.xpose.msra.mxu0 0.0
    %1348 = vmatprep.subr.mxu0 0.0
    %1349 = vmatpush1.xpose.msra.mxu0 0.0
    %1350 = vmatprep.subr.mxu0 0.0
    %1351 = vmatpush1.xpose.msra.mxu0 0.0
    %1352 = vmatprep.subr.mxu0 0.0
    %1353 = vmatpush1.xpose.msra.mxu0 0.0
    %1354 = vmatprep.subr.mxu0 0.0
    %1355 = vmatpush1.xpose.msra.mxu0 0.0
    %1356 = vmatprep.subr.mxu0 0.0
    %1357 = vmatpush1.xpose.msra.mxu0 0.0
    %1358 = vmatprep.subr.mxu0 0.0
    %1359 = vmatpush1.xpose.msra.mxu0 0.0
    %1360 = vmatprep.subr.mxu0 0.0
    %1361 = vmatpush1.xpose.msra.mxu0 0.0
    %1362 = vmatprep.subr.mxu0 0.0
    %1363 = vmatpush1.xpose.msra.mxu0 0.0
    %1364 = vmatprep.subr.mxu0 0.0
    %1365 = vmatpush1.xpose.msra.mxu0 0.0
    %1366 = vmatprep.subr.mxu0 0.0
    %1367 = vmatpush1.xpose.msra.mxu0 %v1340
    %1368 = vmatprep.subr.mxu0 0.0
    %1369 = vmatpush1.xpose.msra.mxu0 %v1337
    %1370 = vmatprep.subr.mxu0 0.0
    %1371 = vmatpush1.xpose.msra.mxu0 %v1334
    %1372 = vmatprep.subr.mxu0 0.0
    %1373 = vmatpush1.xpose.msra.mxu0 %v1331
    %1374 = vmatprep.subr.mxu0 0.0
    %1375 = vmatpush2.xpose.msra.mxu0 0.0
    %1376 = vmatprep.subr.mxu0 0.0
    %1377 = vmatpush2.xpose.msra.mxu0 0.0
    %1378 = vmatprep.subr.mxu0 0.0
    %1379 = vmatpush2.xpose.msra.mxu0 0.0
    %1380 = vmatprep.subr.mxu0 0.0
    %1381 = vmatpush2.xpose.msra.mxu0 0.0
    %1382 = vmatprep.subr.mxu0 0.0
    %1383 = vmatpush2.xpose.msra.mxu0 0.0
    %1384 = vmatprep.subr.mxu0 0.0
    %1385 = vmatpush2.xpose.msra.mxu0 0.0
    %1386 = vmatprep.subr.mxu0 0.0
    %1387 = vmatpush2.xpose.msra.mxu0 0.0
    %1388 = vmatprep.subr.mxu0 0.0
    %1389 = vmatpush2.xpose.msra.mxu0 0.0
    %1390 = vmatprep.subr.mxu0 0.0
    %1391 = vmatpush2.xpose.msra.mxu0 0.0
    %1392 = vmatprep.subr.mxu0 0.0
    %1393 = vmatpush2.xpose.msra.mxu0 0.0
    %1394 = vmatprep.subr.mxu0 0.0
    %1395 = vmatpush2.xpose.msra.mxu0 0.0
    %1396 = vmatprep.subr.mxu0 0.0
    %1397 = vmatpush2.xpose.msra.mxu0 0.0
    %1398 = vmatprep.subr.mxu0 0.0
    %1399 = vmatpush2.xpose.msra.mxu0 0.0
    %1400 = vmatprep.subr.mxu0 0.0
    %1401 = vmatpush2.xpose.msra.mxu0 0.0
    %1402 = vmatprep.subr.mxu0 0.0
    %1403 = vmatpush2.xpose.msra.mxu0 0.0
    %1404 = vmatprep.subr.mxu0 0.0
    %1405 = vmatpush2.xpose.msra.mxu0 0.0
    %1406 = vmatprep.mubr.f32.mxu0 0.0
    %1407 = vmatmul.mubr.f32.gmra.mxu0 %v1319
    %v1408 = vpop.f32.mrf.mxu0
    %v1409 = vadd.f32 0.0, %v1408
    %v1410 = vpop.f32.mrf.mxu0
    %1411 = vmatprep.mubr.f32.mxu0 0.0
    %1412 = vmatmul.mubr.f32.gmra.mxu0 %v1322
    %v1413 = vpop.f32.mrf.mxu0
    %v1414 = vadd.f32 0.0, %v1413
    %v1415 = vpop.f32.mrf.mxu0
    %1416 = vmatprep.mubr.f32.mxu0 0.0
    %1417 = vmatmul.mubr.f32.gmra.mxu0 %v1325
    %v1418 = vpop.f32.mrf.mxu0
    %v1419 = vadd.f32 0.0, %v1418
    %v1420 = vpop.f32.mrf.mxu0
    %1421 = vmatprep.mubr.f32.mxu0 0.0
    %1422 = vmatmul.mubr.f32.gmra.mxu0 %v1328
    %v1423 = vpop.f32.mrf.mxu0
    %v1424 = vadd.f32 0.0, %v1423
    %v1425 = vpop.f32.mrf.mxu0
    %1426 = vdwg.mxu0
    %v1427 = vmul.f32 %v1409, 0.35355338
    %v1428 = vmul.f32 %v1414, 0.35355338
    %v1429 = vmul.f32 %v1419, 0.35355338
    %v1430 = vmul.f32 %v1424, 0.35355338
    %v1431 = vadd.f32 %v1427, %v88
    %v1432 = vadd.f32 %v1428, %v89
    %v1433 = vadd.f32 %v1429, %v90
    %v1434 = vadd.f32 %v1430, %v91
    %1435 = vrot.lane.b32.xlu0 %v172, 104
    %v1436 = vpop.permute.xlu0 %1435
    %1437 = vrot.lane.b32.xlu0 %v173, 104
    %v1438 = vpop.permute.xlu0 %1437
    %1439 = vrot.lane.b32.xlu0 %v174, 104
    %v1440 = vpop.permute.xlu0 %1439
    %1441 = vrot.lane.b32.xlu0 %v175, 104
    %v1442 = vpop.permute.xlu0 %1441
    %1447 = vrot.lane.b32.xlu0 %v180, 104
    %v1448 = vpop.permute.xlu0 %1447
    %1450 = vmatprep.subr.mxu0 0.0
    %1451 = vmatpush1.msra.mxu0 0.0
    %1452 = vmatprep.subr.mxu0 0.0
    %1453 = vmatpush1.msra.mxu0 0.0
    %1454 = vmatprep.subr.mxu0 0.0
    %1455 = vmatpush1.msra.mxu0 0.0
    %1456 = vmatprep.subr.mxu0 0.0
    %1457 = vmatpush1.msra.mxu0 0.0
    %1458 = vmatprep.subr.mxu0 0.0
    %1459 = vmatpush1.msra.mxu0 0.0
    %1460 = vmatprep.subr.mxu0 0.0
    %1461 = vmatpush1.msra.mxu0 0.0
    %1462 = vmatprep.subr.mxu0 0.0
    %1463 = vmatpush1.msra.mxu0 0.0
    %1464 = vmatprep.subr.mxu0 0.0
    %1465 = vmatpush1.msra.mxu0 0.0
    %1466 = vmatprep.subr.mxu0 0.0
    %1467 = vmatpush1.msra.mxu0 0.0
    %1468 = vmatprep.subr.mxu0 0.0
    %1469 = vmatpush1.msra.mxu0 0.0
    %1470 = vmatprep.subr.mxu0 0.0
    %1471 = vmatpush1.msra.mxu0 0.0
    %1472 = vmatprep.subr.mxu0 0.0
    %1473 = vmatpush1.msra.mxu0 0.0
    %1474 = vmatprep.subr.mxu0 0.0
    %1475 = vmatpush1.msra.mxu0 %v1442
    %1476 = vmatprep.subr.mxu0 0.0
    %1477 = vmatpush1.msra.mxu0 %v1440
    %1478 = vmatprep.subr.mxu0 0.0
    %1479 = vmatpush1.msra.mxu0 %v1438
    %1480 = vmatprep.subr.mxu0 0.0
    %1481 = vmatpush1.msra.mxu0 %v1436
    %1482 = vmatprep.subr.mxu0 0.0
    %1483 = vmatpush2.msra.mxu0 0.0
    %1484 = vmatprep.subr.mxu0 0.0
    %1485 = vmatpush2.msra.mxu0 0.0
    %1486 = vmatprep.subr.mxu0 0.0
    %1487 = vmatpush2.msra.mxu0 0.0
    %1488 = vmatprep.subr.mxu0 0.0
    %1489 = vmatpush2.msra.mxu0 0.0
    %1490 = vmatprep.subr.mxu0 0.0
    %1491 = vmatpush2.msra.mxu0 0.0
    %1492 = vmatprep.subr.mxu0 0.0
    %1493 = vmatpush2.msra.mxu0 0.0
    %1494 = vmatprep.subr.mxu0 0.0
    %1495 = vmatpush2.msra.mxu0 0.0
    %1496 = vmatprep.subr.mxu0 0.0
    %1497 = vmatpush2.msra.mxu0 0.0
    %1498 = vmatprep.subr.mxu0 0.0
    %1499 = vmatpush2.msra.mxu0 0.0
    %1500 = vmatprep.subr.mxu0 0.0
    %1501 = vmatpush2.msra.mxu0 0.0
    %1502 = vmatprep.subr.mxu0 0.0
    %1503 = vmatpush2.msra.mxu0 0.0
    %1504 = vmatprep.subr.mxu0 0.0
    %1505 = vmatpush2.msra.mxu0 0.0
    %1506 = vmatprep.subr.mxu0 0.0
    %1507 = vmatpush2.msra.mxu0 0.0
    %1508 = vmatprep.subr.mxu0 0.0
    %1509 = vmatpush2.msra.mxu0 0.0
    %1510 = vmatprep.subr.mxu0 0.0
    %1511 = vmatpush2.msra.mxu0 0.0
    %1512 = vmatprep.subr.mxu0 0.0
    %1513 = vmatpush2.msra.mxu0 0.0
    %1514 = vmatprep.mubr.f32.mxu0 0.0
    %1515 = vmatmul.mubr.f32.gmra.mxu0 %v182
    %v1516 = vpop.f32.mrf.mxu0
    %v1517 = vadd.f32 %v1448, %v1516
    %v1518 = vpop.f32.mrf.mxu0
    %1519 = vmatprep.mubr.f32.mxu0 0.0
    %1520 = vmatmul.mubr.f32.gmra.mxu0 %v185
    %v1521 = vpop.f32.mrf.mxu0
    %v1522 = vadd.f32 %v1448, %v1521
    %v1523 = vpop.f32.mrf.mxu0
    %1524 = vmatprep.mubr.f32.mxu0 0.0
    %1525 = vmatmul.mubr.f32.gmra.mxu0 %v188
    %v1526 = vpop.f32.mrf.mxu0
    %v1527 = vadd.f32 %v1448, %v1526
    %v1528 = vpop.f32.mrf.mxu0
    %1529 = vmatprep.mubr.f32.mxu0 0.0
    %1530 = vmatmul.mubr.f32.gmra.mxu0 %v191
    %v1531 = vpop.f32.mrf.mxu0
    %v1532 = vadd.f32 %v1448, %v1531
    %v1533 = vpop.f32.mrf.mxu0
    %1534 = vdwg.mxu0
    %1535 = vrot.lane.b32.xlu0 %v172, 72
    %v1536 = vpop.permute.xlu0 %1535
    %1537 = vrot.lane.b32.xlu0 %v173, 72
    %v1538 = vpop.permute.xlu0 %1537
    %1539 = vrot.lane.b32.xlu0 %v174, 72
    %v1540 = vpop.permute.xlu0 %1539
    %1541 = vrot.lane.b32.xlu0 %v175, 72
    %v1542 = vpop.permute.xlu0 %1541
    %1547 = vrot.lane.b32.xlu0 %v180, 72
    %v1548 = vpop.permute.xlu0 %1547
    %1550 = vmatprep.subr.mxu0 0.0
    %1551 = vmatpush1.msra.mxu0 0.0
    %1552 = vmatprep.subr.mxu0 0.0
    %1553 = vmatpush1.msra.mxu0 0.0
    %1554 = vmatprep.subr.mxu0 0.0
    %1555 = vmatpush1.msra.mxu0 0.0
    %1556 = vmatprep.subr.mxu0 0.0
    %1557 = vmatpush1.msra.mxu0 0.0
    %1558 = vmatprep.subr.mxu0 0.0
    %1559 = vmatpush1.msra.mxu0 0.0
    %1560 = vmatprep.subr.mxu0 0.0
    %1561 = vmatpush1.msra.mxu0 0.0
    %1562 = vmatprep.subr.mxu0 0.0
    %1563 = vmatpush1.msra.mxu0 0.0
    %1564 = vmatprep.subr.mxu0 0.0
    %1565 = vmatpush1.msra.mxu0 0.0
    %1566 = vmatprep.subr.mxu0 0.0
    %1567 = vmatpush1.msra.mxu0 0.0
    %1568 = vmatprep.subr.mxu0 0.0
    %1569 = vmatpush1.msra.mxu0 0.0
    %1570 = vmatprep.subr.mxu0 0.0
    %1571 = vmatpush1.msra.mxu0 0.0
    %1572 = vmatprep.subr.mxu0 0.0
    %1573 = vmatpush1.msra.mxu0 0.0
    %1574 = vmatprep.subr.mxu0 0.0
    %1575 = vmatpush1.msra.mxu0 %v1542
    %1576 = vmatprep.subr.mxu0 0.0
    %1577 = vmatpush1.msra.mxu0 %v1540
    %1578 = vmatprep.subr.mxu0 0.0
    %1579 = vmatpush1.msra.mxu0 %v1538
    %1580 = vmatprep.subr.mxu0 0.0
    %1581 = vmatpush1.msra.mxu0 %v1536
    %1582 = vmatprep.subr.mxu0 0.0
    %1583 = vmatpush2.msra.mxu0 0.0
    %1584 = vmatprep.subr.mxu0 0.0
    %1585 = vmatpush2.msra.mxu0 0.0
    %1586 = vmatprep.subr.mxu0 0.0
    %1587 = vmatpush2.msra.mxu0 0.0
    %1588 = vmatprep.subr.mxu0 0.0
    %1589 = vmatpush2.msra.mxu0 0.0
    %1590 = vmatprep.subr.mxu0 0.0
    %1591 = vmatpush2.msra.mxu0 0.0
    %1592 = vmatprep.subr.mxu0 0.0
    %1593 = vmatpush2.msra.mxu0 0.0
    %1594 = vmatprep.subr.mxu0 0.0
    %1595 = vmatpush2.msra.mxu0 0.0
    %1596 = vmatprep.subr.mxu0 0.0
    %1597 = vmatpush2.msra.mxu0 0.0
    %1598 = vmatprep.subr.mxu0 0.0
    %1599 = vmatpush2.msra.mxu0 0.0
    %1600 = vmatprep.subr.mxu0 0.0
    %1601 = vmatpush2.msra.mxu0 0.0
    %1602 = vmatprep.subr.mxu0 0.0
    %1603 = vmatpush2.msra.mxu0 0.0
    %1604 = vmatprep.subr.mxu0 0.0
    %1605 = vmatpush2.msra.mxu0 0.0
    %1606 = vmatprep.subr.mxu0 0.0
    %1607 = vmatpush2.msra.mxu0 0.0
    %1608 = vmatprep.subr.mxu0 0.0
    %1609 = vmatpush2.msra.mxu0 0.0
    %1610 = vmatprep.subr.mxu0 0.0
    %1611 = vmatpush2.msra.mxu0 0.0
    %1612 = vmatprep.subr.mxu0 0.0
    %1613 = vmatpush2.msra.mxu0 0.0
    %1614 = vmatprep.mubr.f32.mxu0 0.0
    %1615 = vmatmul.mubr.f32.gmra.mxu0 %v182
    %v1616 = vpop.f32.mrf.mxu0
    %v1617 = vadd.f32 %v1548, %v1616
    %v1618 = vpop.f32.mrf.mxu0
    %1619 = vmatprep.mubr.f32.mxu0 0.0
    %1620 = vmatmul.mubr.f32.gmra.mxu0 %v185
    %v1621 = vpop.f32.mrf.mxu0
    %v1622 = vadd.f32 %v1548, %v1621
    %v1623 = vpop.f32.mrf.mxu0
    %1624 = vmatprep.mubr.f32.mxu0 0.0
    %1625 = vmatmul.mubr.f32.gmra.mxu0 %v188
    %v1626 = vpop.f32.mrf.mxu0
    %v1627 = vadd.f32 %v1548, %v1626
    %v1628 = vpop.f32.mrf.mxu0
    %1629 = vmatprep.mubr.f32.mxu0 0.0
    %1630 = vmatmul.mubr.f32.gmra.mxu0 %v191
    %v1631 = vpop.f32.mrf.mxu0
    %v1632 = vadd.f32 %v1548, %v1631
    %v1633 = vpop.f32.mrf.mxu0
    %1634 = vdwg.mxu0
    %1635 = vrot.lane.b32.xlu0 %v172, 40
    %v1636 = vpop.permute.xlu0 %1635
    %1637 = vrot.lane.b32.xlu0 %v173, 40
    %v1638 = vpop.permute.xlu0 %1637
    %1639 = vrot.lane.b32.xlu0 %v174, 40
    %v1640 = vpop.permute.xlu0 %1639
    %1641 = vrot.lane.b32.xlu0 %v175, 40
    %v1642 = vpop.permute.xlu0 %1641
    %1647 = vrot.lane.b32.xlu0 %v180, 40
    %v1648 = vpop.permute.xlu0 %1647
    %1650 = vmatprep.subr.mxu0 0.0
    %1651 = vmatpush1.msra.mxu0 0.0
    %1652 = vmatprep.subr.mxu0 0.0
    %1653 = vmatpush1.msra.mxu0 0.0
    %1654 = vmatprep.subr.mxu0 0.0
    %1655 = vmatpush1.msra.mxu0 0.0
    %1656 = vmatprep.subr.mxu0 0.0
    %1657 = vmatpush1.msra.mxu0 0.0
    %1658 = vmatprep.subr.mxu0 0.0
    %1659 = vmatpush1.msra.mxu0 0.0
    %1660 = vmatprep.subr.mxu0 0.0
    %1661 = vmatpush1.msra.mxu0 0.0
    %1662 = vmatprep.subr.mxu0 0.0
    %1663 = vmatpush1.msra.mxu0 0.0
    %1664 = vmatprep.subr.mxu0 0.0
    %1665 = vmatpush1.msra.mxu0 0.0
    %1666 = vmatprep.subr.mxu0 0.0
    %1667 = vmatpush1.msra.mxu0 0.0
    %1668 = vmatprep.subr.mxu0 0.0
    %1669 = vmatpush1.msra.mxu0 0.0
    %1670 = vmatprep.subr.mxu0 0.0
    %1671 = vmatpush1.msra.mxu0 0.0
    %1672 = vmatprep.subr.mxu0 0.0
    %1673 = vmatpush1.msra.mxu0 0.0
    %1674 = vmatprep.subr.mxu0 0.0
    %1675 = vmatpush1.msra.mxu0 %v1642
    %1676 = vmatprep.subr.mxu0 0.0
    %1677 = vmatpush1.msra.mxu0 %v1640
    %1678 = vmatprep.subr.mxu0 0.0
    %1679 = vmatpush1.msra.mxu0 %v1638
    %1680 = vmatprep.subr.mxu0 0.0
    %1681 = vmatpush1.msra.mxu0 %v1636
    %1682 = vmatprep.subr.mxu0 0.0
    %1683 = vmatpush2.msra.mxu0 0.0
    %1684 = vmatprep.subr.mxu0 0.0
    %1685 = vmatpush2.msra.mxu0 0.0
    %1686 = vmatprep.subr.mxu0 0.0
    %1687 = vmatpush2.msra.mxu0 0.0
    %1688 = vmatprep.subr.mxu0 0.0
    %1689 = vmatpush2.msra.mxu0 0.0
    %1690 = vmatprep.subr.mxu0 0.0
    %1691 = vmatpush2.msra.mxu0 0.0
    %1692 = vmatprep.subr.mxu0 0.0
    %1693 = vmatpush2.msra.mxu0 0.0
    %1694 = vmatprep.subr.mxu0 0.0
    %1695 = vmatpush2.msra.mxu0 0.0
    %1696 = vmatprep.subr.mxu0 0.0
    %1697 = vmatpush2.msra.mxu0 0.0
    %1698 = vmatprep.subr.mxu0 0.0
    %1699 = vmatpush2.msra.mxu0 0.0
    %1700 = vmatprep.subr.mxu0 0.0
    %1701 = vmatpush2.msra.mxu0 0.0
    %1702 = vmatprep.subr.mxu0 0.0
    %1703 = vmatpush2.msra.mxu0 0.0
    %1704 = vmatprep.subr.mxu0 0.0
    %1705 = vmatpush2.msra.mxu0 0.0
    %1706 = vmatprep.subr.mxu0 0.0
    %1707 = vmatpush2.msra.mxu0 0.0
    %1708 = vmatprep.subr.mxu0 0.0
    %1709 = vmatpush2.msra.mxu0 0.0
    %1710 = vmatprep.subr.mxu0 0.0
    %1711 = vmatpush2.msra.mxu0 0.0
    %1712 = vmatprep.subr.mxu0 0.0
    %1713 = vmatpush2.msra.mxu0 0.0
    %1714 = vmatprep.mubr.f32.mxu0 0.0
    %1715 = vmatmul.mubr.f32.gmra.mxu0 %v182
    %v1716 = vpop.f32.mrf.mxu0
    %v1717 = vadd.f32 %v1648, %v1716
    %v1718 = vpop.f32.mrf.mxu0
    %1719 = vmatprep.mubr.f32.mxu0 0.0
    %1720 = vmatmul.mubr.f32.gmra.mxu0 %v185
    %v1721 = vpop.f32.mrf.mxu0
    %v1722 = vadd.f32 %v1648, %v1721
    %v1723 = vpop.f32.mrf.mxu0
    %1724 = vmatprep.mubr.f32.mxu0 0.0
    %1725 = vmatmul.mubr.f32.gmra.mxu0 %v188
    %v1726 = vpop.f32.mrf.mxu0
    %v1727 = vadd.f32 %v1648, %v1726
    %v1728 = vpop.f32.mrf.mxu0
    %1729 = vmatprep.mubr.f32.mxu0 0.0
    %1730 = vmatmul.mubr.f32.gmra.mxu0 %v191
    %v1731 = vpop.f32.mrf.mxu0
    %v1732 = vadd.f32 %v1648, %v1731
    %v1733 = vpop.f32.mrf.mxu0
    %1734 = vdwg.mxu0
    %v1736 = vsel %vm483, %v1517, 0
    %v1739 = vsel %vm483, %v1522, 0
    %v1742 = vsel %vm483, %v1527, 0
    %v1745 = vsel %vm483, %v1532, 0
    %v1748 = vsel %vm483, %v1617, 0
    %v1751 = vsel %vm483, %v1622, 0
    %v1754 = vsel %vm483, %v1627, 0
    %v1757 = vsel %vm483, %v1632, 0
    %1759 = vmatprep.subr.mxu0 0.0
    %1760 = vmatpush1.xpose.msra.mxu0 0.0
    %1761 = vmatprep.subr.mxu0 0.0
    %1762 = vmatpush1.xpose.msra.mxu0 0.0
    %1763 = vmatprep.subr.mxu0 0.0
    %1764 = vmatpush1.xpose.msra.mxu0 0.0
    %1765 = vmatprep.subr.mxu0 0.0
    %1766 = vmatpush1.xpose.msra.mxu0 0.0
    %1767 = vmatprep.subr.mxu0 0.0
    %1768 = vmatpush1.xpose.msra.mxu0 0.0
    %1769 = vmatprep.subr.mxu0 0.0
    %1770 = vmatpush1.xpose.msra.mxu0 0.0
    %1771 = vmatprep.subr.mxu0 0.0
    %1772 = vmatpush1.xpose.msra.mxu0 0.0
    %1773 = vmatprep.subr.mxu0 0.0
    %1774 = vmatpush1.xpose.msra.mxu0 0.0
    %1775 = vmatprep.subr.mxu0 0.0
    %1776 = vmatpush1.xpose.msra.mxu0 0.0
    %1777 = vmatprep.subr.mxu0 0.0
    %1778 = vmatpush1.xpose.msra.mxu0 0.0
    %1779 = vmatprep.subr.mxu0 0.0
    %1780 = vmatpush1.xpose.msra.mxu0 0.0
    %1781 = vmatprep.subr.mxu0 0.0
    %1782 = vmatpush1.xpose.msra.mxu0 0.0
    %1783 = vmatprep.subr.mxu0 0.0
    %1784 = vmatpush1.xpose.msra.mxu0 %v1757
    %1785 = vmatprep.subr.mxu0 0.0
    %1786 = vmatpush1.xpose.msra.mxu0 %v1754
    %1787 = vmatprep.subr.mxu0 0.0
    %1788 = vmatpush1.xpose.msra.mxu0 %v1751
    %1789 = vmatprep.subr.mxu0 0.0
    %1790 = vmatpush1.xpose.msra.mxu0 %v1748
    %1791 = vmatprep.subr.mxu0 0.0
    %1792 = vmatpush2.xpose.msra.mxu0 0.0
    %1793 = vmatprep.subr.mxu0 0.0
    %1794 = vmatpush2.xpose.msra.mxu0 0.0
    %1795 = vmatprep.subr.mxu0 0.0
    %1796 = vmatpush2.xpose.msra.mxu0 0.0
    %1797 = vmatprep.subr.mxu0 0.0
    %1798 = vmatpush2.xpose.msra.mxu0 0.0
    %1799 = vmatprep.subr.mxu0 0.0
    %1800 = vmatpush2.xpose.msra.mxu0 0.0
    %1801 = vmatprep.subr.mxu0 0.0
    %1802 = vmatpush2.xpose.msra.mxu0 0.0
    %1803 = vmatprep.subr.mxu0 0.0
    %1804 = vmatpush2.xpose.msra.mxu0 0.0
    %1805 = vmatprep.subr.mxu0 0.0
    %1806 = vmatpush2.xpose.msra.mxu0 0.0
    %1807 = vmatprep.subr.mxu0 0.0
    %1808 = vmatpush2.xpose.msra.mxu0 0.0
    %1809 = vmatprep.subr.mxu0 0.0
    %1810 = vmatpush2.xpose.msra.mxu0 0.0
    %1811 = vmatprep.subr.mxu0 0.0
    %1812 = vmatpush2.xpose.msra.mxu0 0.0
    %1813 = vmatprep.subr.mxu0 0.0
    %1814 = vmatpush2.xpose.msra.mxu0 0.0
    %1815 = vmatprep.subr.mxu0 0.0
    %1816 = vmatpush2.xpose.msra.mxu0 0.0
    %1817 = vmatprep.subr.mxu0 0.0
    %1818 = vmatpush2.xpose.msra.mxu0 0.0
    %1819 = vmatprep.subr.mxu0 0.0
    %1820 = vmatpush2.xpose.msra.mxu0 0.0
    %1821 = vmatprep.subr.mxu0 0.0
    %1822 = vmatpush2.xpose.msra.mxu0 0.0
    %1823 = vmatprep.mubr.f32.mxu0 0.0
    %1824 = vmatmul.mubr.f32.gmra.mxu0 %v1736
    %v1825 = vpop.f32.mrf.mxu0
    %v1826 = vadd.f32 0.0, %v1825
    %v1827 = vpop.f32.mrf.mxu0
    %1828 = vmatprep.mubr.f32.mxu0 0.0
    %1829 = vmatmul.mubr.f32.gmra.mxu0 %v1739
    %v1830 = vpop.f32.mrf.mxu0
    %v1831 = vadd.f32 0.0, %v1830
    %v1832 = vpop.f32.mrf.mxu0
    %1833 = vmatprep.mubr.f32.mxu0 0.0
    %1834 = vmatmul.mubr.f32.gmra.mxu0 %v1742
    %v1835 = vpop.f32.mrf.mxu0
    %v1836 = vadd.f32 0.0, %v1835
    %v1837 = vpop.f32.mrf.mxu0
    %1838 = vmatprep.mubr.f32.mxu0 0.0
    %1839 = vmatmul.mubr.f32.gmra.mxu0 %v1745
    %v1840 = vpop.f32.mrf.mxu0
    %v1841 = vadd.f32 0.0, %v1840
    %v1842 = vpop.f32.mrf.mxu0
    %1843 = vdwg.mxu0
    %v1844 = vmul.f32 %v1826, 0.35355338
    %v1845 = vmul.f32 %v1831, 0.35355338
    %v1846 = vmul.f32 %v1836, 0.35355338
    %v1847 = vmul.f32 %v1841, 0.35355338
    %v1848 = vadd.f32 %v1844, %v88
    %v1849 = vadd.f32 %v1845, %v89
    %v1850 = vadd.f32 %v1846, %v90
    %v1851 = vadd.f32 %v1847, %v91
    %v1852 = vsel %vm98, %v597, -inf
    %1853 = vmax.xlane.f32.xlu0 %v1852
    %v1854 = vpop.xlane.xlu0 %1853
    %v1855 = vsel %vm98, %v598, -inf
    %1856 = vmax.xlane.f32.xlu0 %v1855
    %v1857 = vpop.xlane.xlu0 %1856
    %v1858 = vsel %vm98, %v599, -inf
    %1859 = vmax.xlane.f32.xlu0 %v1858
    %v1860 = vpop.xlane.xlu0 %1859
    %v1861 = vsel %vm98, %v600, -inf
    %1862 = vmax.xlane.f32.xlu0 %v1861
    %v1863 = vpop.xlane.xlu0 %1862
    %v1864 = vsel %vm98, %v1014, -inf
    %1865 = vmax.xlane.f32.xlu0 %v1864
    %v1866 = vpop.xlane.xlu0 %1865
    %v1867 = vsel %vm98, %v1015, -inf
    %1868 = vmax.xlane.f32.xlu0 %v1867
    %v1869 = vpop.xlane.xlu0 %1868
    %v1870 = vsel %vm98, %v1016, -inf
    %1871 = vmax.xlane.f32.xlu0 %v1870
    %v1872 = vpop.xlane.xlu0 %1871
    %v1873 = vsel %vm98, %v1017, -inf
    %1874 = vmax.xlane.f32.xlu0 %v1873
    %v1875 = vpop.xlane.xlu0 %1874
    %v1876 = vsel %vm98, %v1431, -inf
    %1877 = vmax.xlane.f32.xlu0 %v1876
    %v1878 = vpop.xlane.xlu0 %1877
    %v1879 = vsel %vm98, %v1432, -inf
    %1880 = vmax.xlane.f32.xlu0 %v1879
    %v1881 = vpop.xlane.xlu0 %1880
    %v1882 = vsel %vm98, %v1433, -inf
    %1883 = vmax.xlane.f32.xlu0 %v1882
    %v1884 = vpop.xlane.xlu0 %1883
    %v1885 = vsel %vm98, %v1434, -inf
    %1886 = vmax.xlane.f32.xlu0 %v1885
    %v1887 = vpop.xlane.xlu0 %1886
    %v1888 = vsel %vm98, %v1848, -inf
    %1889 = vmax.xlane.f32.xlu0 %v1888
    %v1890 = vpop.xlane.xlu0 %1889
    %v1891 = vsel %vm98, %v1849, -inf
    %1892 = vmax.xlane.f32.xlu0 %v1891
    %v1893 = vpop.xlane.xlu0 %1892
    %v1894 = vsel %vm98, %v1850, -inf
    %1895 = vmax.xlane.f32.xlu0 %v1894
    %v1896 = vpop.xlane.xlu0 %1895
    %v1897 = vsel %vm98, %v1851, -inf
    %1898 = vmax.xlane.f32.xlu0 %v1897
    %v1899 = vpop.xlane.xlu0 %1898
    %v1900 = vsub.f32 %v597, %v1854
    %v1901 = vsub.f32 %v598, %v1857
    %v1902 = vsub.f32 %v599, %v1860
    %v1903 = vsub.f32 %v600, %v1863
    %v1904 = vsub.f32 %v1014, %v1866
    %v1905 = vsub.f32 %v1015, %v1869
    %v1906 = vsub.f32 %v1016, %v1872
    %v1907 = vsub.f32 %v1017, %v1875
    %v1908 = vsub.f32 %v1431, %v1878
    %v1909 = vsub.f32 %v1432, %v1881
    %v1910 = vsub.f32 %v1433, %v1884
    %v1911 = vsub.f32 %v1434, %v1887
    %v1912 = vsub.f32 %v1848, %v1890
    %v1913 = vsub.f32 %v1849, %v1893
    %v1914 = vsub.f32 %v1850, %v1896
    %v1915 = vsub.f32 %v1851, %v1899
    %v1916 = vmul.f32 %v1900, 1.442695
    %v1917 = vpow.pop %v1916
    %v1918 = vmul.f32 %v1901, 1.442695
    %v1919 = vpow.pop %v1918
    %v1920 = vmul.f32 %v1902, 1.442695
    %v1921 = vpow.pop %v1920
    %v1922 = vmul.f32 %v1903, 1.442695
    %v1923 = vpow.pop %v1922
    %v1924 = vmul.f32 %v1904, 1.442695
    %v1925 = vpow.pop %v1924
    %v1926 = vmul.f32 %v1905, 1.442695
    %v1927 = vpow.pop %v1926
    %v1928 = vmul.f32 %v1906, 1.442695
    %v1929 = vpow.pop %v1928
    %v1930 = vmul.f32 %v1907, 1.442695
    %v1931 = vpow.pop %v1930
    %v1932 = vmul.f32 %v1908, 1.442695
    %v1933 = vpow.pop %v1932
    %v1934 = vmul.f32 %v1909, 1.442695
    %v1935 = vpow.pop %v1934
    %v1936 = vmul.f32 %v1910, 1.442695
    %v1937 = vpow.pop %v1936
    %v1938 = vmul.f32 %v1911, 1.442695
    %v1939 = vpow.pop %v1938
    %v1940 = vmul.f32 %v1912, 1.442695
    %v1941 = vpow.pop %v1940
    %v1942 = vmul.f32 %v1913, 1.442695
    %v1943 = vpow.pop %v1942
    %v1944 = vmul.f32 %v1914, 1.442695
    %v1945 = vpow.pop %v1944
    %v1946 = vmul.f32 %v1915, 1.442695
    %v1947 = vpow.pop %v1946
    %v1948 = vsel %vm98, %v1917, 0.0
    %1949 = vadd.xlane.f32.xlu0 %v1948
    %v1950 = vpop.xlane.xlu0 %1949
    %v1951 = vsel %vm98, %v1919, 0.0
    %1952 = vadd.xlane.f32.xlu0 %v1951
    %v1953 = vpop.xlane.xlu0 %1952
    %v1954 = vsel %vm98, %v1921, 0.0
    %1955 = vadd.xlane.f32.xlu0 %v1954
    %v1956 = vpop.xlane.xlu0 %1955
    %v1957 = vsel %vm98, %v1923, 0.0
    %1958 = vadd.xlane.f32.xlu0 %v1957
    %v1959 = vpop.xlane.xlu0 %1958
    %v1960 = vsel %vm98, %v1925, 0.0
    %1961 = vadd.xlane.f32.xlu0 %v1960
    %v1962 = vpop.xlane.xlu0 %1961
    %v1963 = vsel %vm98, %v1927, 0.0
    %1964 = vadd.xlane.f32.xlu0 %v1963
    %v1965 = vpop.xlane.xlu0 %1964
    %v1966 = vsel %vm98, %v1929, 0.0
    %1967 = vadd.xlane.f32.xlu0 %v1966
    %v1968 = vpop.xlane.xlu0 %1967
    %v1969 = vsel %vm98, %v1931, 0.0
    %1970 = vadd.xlane.f32.xlu0 %v1969
    %v1971 = vpop.xlane.xlu0 %1970
    %v1972 = vsel %vm98, %v1933, 0.0
    %1973 = vadd.xlane.f32.xlu0 %v1972
    %v1974 = vpop.xlane.xlu0 %1973
    %v1975 = vsel %vm98, %v1935, 0.0
    %1976 = vadd.xlane.f32.xlu0 %v1975
    %v1977 = vpop.xlane.xlu0 %1976
    %v1978 = vsel %vm98, %v1937, 0.0
    %1979 = vadd.xlane.f32.xlu0 %v1978
    %v1980 = vpop.xlane.xlu0 %1979
    %v1981 = vsel %vm98, %v1939, 0.0
    %1982 = vadd.xlane.f32.xlu0 %v1981
    %v1983 = vpop.xlane.xlu0 %1982
    %v1984 = vsel %vm98, %v1941, 0.0
    %1985 = vadd.xlane.f32.xlu0 %v1984
    %v1986 = vpop.xlane.xlu0 %1985
    %v1987 = vsel %vm98, %v1943, 0.0
    %1988 = vadd.xlane.f32.xlu0 %v1987
    %v1989 = vpop.xlane.xlu0 %1988
    %v1990 = vsel %vm98, %v1945, 0.0
    %1991 = vadd.xlane.f32.xlu0 %v1990
    %v1992 = vpop.xlane.xlu0 %1991
    %v1993 = vsel %vm98, %v1947, 0.0
    %1994 = vadd.xlane.f32.xlu0 %v1993
    %v1995 = vpop.xlane.xlu0 %1994
    %v1996 = vrcp.pop %v1950
    %v1997 = vrcp.pop %v1953
    %v1998 = vrcp.pop %v1956
    %v1999 = vrcp.pop %v1959
    %v2000 = vrcp.pop %v1962
    %v2001 = vrcp.pop %v1965
    %v2002 = vrcp.pop %v1968
    %v2003 = vrcp.pop %v1971
    %v2004 = vrcp.pop %v1974
    %v2005 = vrcp.pop %v1977
    %v2006 = vrcp.pop %v1980
    %v2007 = vrcp.pop %v1983
    %v2008 = vrcp.pop %v1986
    %v2009 = vrcp.pop %v1989
    %v2010 = vrcp.pop %v1992
    %v2011 = vrcp.pop %v1995
    %v2012 = vmul.f32 %v1917, %v1996
    %v2013 = vmul.f32 %v1919, %v1997
    %v2014 = vmul.f32 %v1921, %v1998
    %v2015 = vmul.f32 %v1923, %v1999
    %v2016 = vmul.f32 %v1925, %v2000
    %v2017 = vmul.f32 %v1927, %v2001
    %v2018 = vmul.f32 %v1929, %v2002
    %v2019 = vmul.f32 %v1931, %v2003
    %v2020 = vmul.f32 %v1933, %v2004
    %v2021 = vmul.f32 %v1935, %v2005
    %v2022 = vmul.f32 %v1937, %v2006
    %v2023 = vmul.f32 %v1939, %v2007
    %v2024 = vmul.f32 %v1941, %v2008
    %v2025 = vmul.f32 %v1943, %v2009
    %v2026 = vmul.f32 %v1945, %v2010
    %v2027 = vmul.f32 %v1947, %v2011
    %v2029 = vsel %vm98, %v2012, 0
    %v2032 = vsel %vm98, %v2013, 0
    %v2035 = vsel %vm98, %v2014, 0
    %v2038 = vsel %vm98, %v2015, 0
    %2040 = vmatprep.subr.mxu0 0.0
    %2041 = vmatpush1.msra.mxu0 0.0
    %2042 = vmatprep.subr.mxu0 0.0
    %2043 = vmatpush1.msra.mxu0 0.0
    %2044 = vmatprep.subr.mxu0 0.0
    %2045 = vmatpush1.msra.mxu0 0.0
    %2046 = vmatprep.subr.mxu0 0.0
    %2047 = vmatpush1.msra.mxu0 0.0
    %2048 = vmatprep.subr.mxu0 0.0
    %2049 = vmatpush1.msra.mxu0 0.0
    %2050 = vmatprep.subr.mxu0 0.0
    %2051 = vmatpush1.msra.mxu0 0.0
    %2052 = vmatprep.subr.mxu0 0.0
    %2053 = vmatpush1.msra.mxu0 0.0
    %2054 = vmatprep.subr.mxu0 0.0
    %2055 = vmatpush1.msra.mxu0 0.0
    %2056 = vmatprep.subr.mxu0 0.0
    %2057 = vmatpush1.msra.mxu0 0.0
    %2058 = vmatprep.subr.mxu0 0.0
    %2059 = vmatpush1.msra.mxu0 0.0
    %2060 = vmatprep.subr.mxu0 0.0
    %2061 = vmatpush1.msra.mxu0 0.0
    %2062 = vmatprep.subr.mxu0 0.0
    %2063 = vmatpush1.msra.mxu0 0.0
    %2064 = vmatprep.subr.mxu0 0.0
    %2065 = vmatpush1.msra.mxu0 %v480
    %2066 = vmatprep.subr.mxu0 0.0
    %2067 = vmatpush1.msra.mxu0 %v475
    %2068 = vmatprep.subr.mxu0 0.0
    %2069 = vmatpush1.msra.mxu0 %v470
    %2070 = vmatprep.subr.mxu0 0.0
    %2071 = vmatpush1.msra.mxu0 %v465
    %2072 = vmatprep.subr.mxu0 0.0
    %2073 = vmatpush2.msra.mxu0 0.0
    %2074 = vmatprep.subr.mxu0 0.0
    %2075 = vmatpush2.msra.mxu0 0.0
    %2076 = vmatprep.subr.mxu0 0.0
    %2077 = vmatpush2.msra.mxu0 0.0
    %2078 = vmatprep.subr.mxu0 0.0
    %2079 = vmatpush2.msra.mxu0 0.0
    %2080 = vmatprep.subr.mxu0 0.0
    %2081 = vmatpush2.msra.mxu0 0.0
    %2082 = vmatprep.subr.mxu0 0.0
    %2083 = vmatpush2.msra.mxu0 0.0
    %2084 = vmatprep.subr.mxu0 0.0
    %2085 = vmatpush2.msra.mxu0 0.0
    %2086 = vmatprep.subr.mxu0 0.0
    %2087 = vmatpush2.msra.mxu0 0.0
    %2088 = vmatprep.subr.mxu0 0.0
    %2089 = vmatpush2.msra.mxu0 0.0
    %2090 = vmatprep.subr.mxu0 0.0
    %2091 = vmatpush2.msra.mxu0 0.0
    %2092 = vmatprep.subr.mxu0 0.0
    %2093 = vmatpush2.msra.mxu0 0.0
    %2094 = vmatprep.subr.mxu0 0.0
    %2095 = vmatpush2.msra.mxu0 0.0
    %2096 = vmatprep.subr.mxu0 0.0
    %2097 = vmatpush2.msra.mxu0 0.0
    %2098 = vmatprep.subr.mxu0 0.0
    %2099 = vmatpush2.msra.mxu0 0.0
    %2100 = vmatprep.subr.mxu0 0.0
    %2101 = vmatpush2.msra.mxu0 0.0
    %2102 = vmatprep.subr.mxu0 0.0
    %2103 = vmatpush2.msra.mxu0 0.0
    %2104 = vmatprep.mubr.f32.mxu0 0.0
    %2105 = vmatmul.mubr.f32.gmra.mxu0 %v2029
    %v2106 = vpop.f32.mrf.mxu0
    %v2107 = vadd.f32 0.0, %v2106
    %v2108 = vpop.f32.mrf.mxu0
    %2109 = vmatprep.mubr.f32.mxu0 0.0
    %2110 = vmatmul.mubr.f32.gmra.mxu0 %v2032
    %v2111 = vpop.f32.mrf.mxu0
    %v2112 = vadd.f32 0.0, %v2111
    %v2113 = vpop.f32.mrf.mxu0
    %2114 = vmatprep.mubr.f32.mxu0 0.0
    %2115 = vmatmul.mubr.f32.gmra.mxu0 %v2035
    %v2116 = vpop.f32.mrf.mxu0
    %v2117 = vadd.f32 0.0, %v2116
    %v2118 = vpop.f32.mrf.mxu0
    %2119 = vmatprep.mubr.f32.mxu0 0.0
    %2120 = vmatmul.mubr.f32.gmra.mxu0 %v2038
    %v2121 = vpop.f32.mrf.mxu0
    %v2122 = vadd.f32 0.0, %v2121
    %v2123 = vpop.f32.mrf.mxu0
    %2124 = vdwg.mxu0
    %v2125 = vld [vmem:[%s4] sm:$0xff]
    %v2127 = vsel %vm98, %v2016, 0
    %v2130 = vsel %vm98, %v2017, 0
    %v2133 = vsel %vm98, %v2018, 0
    %v2136 = vsel %vm98, %v2019, 0
    %2138 = vmatprep.subr.mxu0 0.0
    %2139 = vmatpush1.msra.mxu0 0.0
    %2140 = vmatprep.subr.mxu0 0.0
    %2141 = vmatpush1.msra.mxu0 0.0
    %2142 = vmatprep.subr.mxu0 0.0
    %2143 = vmatpush1.msra.mxu0 0.0
    %2144 = vmatprep.subr.mxu0 0.0
    %2145 = vmatpush1.msra.mxu0 0.0
    %2146 = vmatprep.subr.mxu0 0.0
    %2147 = vmatpush1.msra.mxu0 0.0
    %2148 = vmatprep.subr.mxu0 0.0
    %2149 = vmatpush1.msra.mxu0 0.0
    %2150 = vmatprep.subr.mxu0 0.0
    %2151 = vmatpush1.msra.mxu0 0.0
    %2152 = vmatprep.subr.mxu0 0.0
    %2153 = vmatpush1.msra.mxu0 0.0
    %2154 = vmatprep.subr.mxu0 0.0
    %2155 = vmatpush1.msra.mxu0 0.0
    %2156 = vmatprep.subr.mxu0 0.0
    %2157 = vmatpush1.msra.mxu0 0.0
    %2158 = vmatprep.subr.mxu0 0.0
    %2159 = vmatpush1.msra.mxu0 0.0
    %2160 = vmatprep.subr.mxu0 0.0
    %2161 = vmatpush1.msra.mxu0 0.0
    %2162 = vmatprep.subr.mxu0 0.0
    %2163 = vmatpush1.msra.mxu0 %v898
    %2164 = vmatprep.subr.mxu0 0.0
    %2165 = vmatpush1.msra.mxu0 %v893
    %2166 = vmatprep.subr.mxu0 0.0
    %2167 = vmatpush1.msra.mxu0 %v888
    %2168 = vmatprep.subr.mxu0 0.0
    %2169 = vmatpush1.msra.mxu0 %v883
    %2170 = vmatprep.subr.mxu0 0.0
    %2171 = vmatpush2.msra.mxu0 0.0
    %2172 = vmatprep.subr.mxu0 0.0
    %2173 = vmatpush2.msra.mxu0 0.0
    %2174 = vmatprep.subr.mxu0 0.0
    %2175 = vmatpush2.msra.mxu0 0.0
    %2176 = vmatprep.subr.mxu0 0.0
    %2177 = vmatpush2.msra.mxu0 0.0
    %2178 = vmatprep.subr.mxu0 0.0
    %2179 = vmatpush2.msra.mxu0 0.0
    %2180 = vmatprep.subr.mxu0 0.0
    %2181 = vmatpush2.msra.mxu0 0.0
    %2182 = vmatprep.subr.mxu0 0.0
    %2183 = vmatpush2.msra.mxu0 0.0
    %2184 = vmatprep.subr.mxu0 0.0
    %2185 = vmatpush2.msra.mxu0 0.0
    %2186 = vmatprep.subr.mxu0 0.0
    %2187 = vmatpush2.msra.mxu0 0.0
    %2188 = vmatprep.subr.mxu0 0.0
    %2189 = vmatpush2.msra.mxu0 0.0
    %2190 = vmatprep.subr.mxu0 0.0
    %2191 = vmatpush2.msra.mxu0 0.0
    %2192 = vmatprep.subr.mxu0 0.0
    %2193 = vmatpush2.msra.mxu0 0.0
    %2194 = vmatprep.subr.mxu0 0.0
    %2195 = vmatpush2.msra.mxu0 0.0
    %2196 = vmatprep.subr.mxu0 0.0
    %2197 = vmatpush2.msra.mxu0 0.0
    %2198 = vmatprep.subr.mxu0 0.0
    %2199 = vmatpush2.msra.mxu0 0.0
    %2200 = vmatprep.subr.mxu0 0.0
    %2201 = vmatpush2.msra.mxu0 0.0
    %2202 = vmatprep.mubr.f32.mxu0 0.0
    %2203 = vmatmul.mubr.f32.gmra.mxu0 %v2127
    %v2204 = vpop.f32.mrf.mxu0
    %v2205 = vadd.f32 0.0, %v2204
    %v2206 = vpop.f32.mrf.mxu0
    %2207 = vmatprep.mubr.f32.mxu0 0.0
    %2208 = vmatmul.mubr.f32.gmra.mxu0 %v2130
    %v2209 = vpop.f32.mrf.mxu0
    %v2210 = vadd.f32 0.0, %v2209
    %v2211 = vpop.f32.mrf.mxu0
    %2212 = vmatprep.mubr.f32.mxu0 0.0
    %2213 = vmatmul.mubr.f32.gmra.mxu0 %v2133
    %v2214 = vpop.f32.mrf.mxu0
    %v2215 = vadd.f32 0.0, %v2214
    %v2216 = vpop.f32.mrf.mxu0
    %2217 = vmatprep.mubr.f32.mxu0 0.0
    %2218 = vmatmul.mubr.f32.gmra.mxu0 %v2136
    %v2219 = vpop.f32.mrf.mxu0
    %v2220 = vadd.f32 0.0, %v2219
    %v2221 = vpop.f32.mrf.mxu0
    %2222 = vdwg.mxu0
    %v2223 = vld [vmem:[%s4 + $0x8] sm:$0xff]
    %v2225 = vsel %vm483, %v2205, 0
    %v2228 = vsel %vm483, %v2210, 0
    %v2231 = vsel %vm483, %v2215, 0
    %v2234 = vsel %vm483, %v2220, 0
    %2236 = vmatprep.subr.mxu0 0.0
    %2237 = vmatpush1.msra.mxu0 0.0
    %2238 = vmatprep.subr.mxu0 0.0
    %2239 = vmatpush1.msra.mxu0 0.0
    %2240 = vmatprep.subr.mxu0 0.0
    %2241 = vmatpush1.msra.mxu0 0.0
    %2242 = vmatprep.subr.mxu0 0.0
    %2243 = vmatpush1.msra.mxu0 0.0
    %2244 = vmatprep.subr.mxu0 0.0
    %2245 = vmatpush1.msra.mxu0 0.0
    %2246 = vmatprep.subr.mxu0 0.0
    %2247 = vmatpush1.msra.mxu0 0.0
    %2248 = vmatprep.subr.mxu0 0.0
    %2249 = vmatpush1.msra.mxu0 0.0
    %2250 = vmatprep.subr.mxu0 0.0
    %2251 = vmatpush1.msra.mxu0 0.0
    %2252 = vmatprep.subr.mxu0 0.0
    %2253 = vmatpush1.msra.mxu0 0.0
    %2254 = vmatprep.subr.mxu0 0.0
    %2255 = vmatpush1.msra.mxu0 0.0
    %2256 = vmatprep.subr.mxu0 0.0
    %2257 = vmatpush1.msra.mxu0 0.0
    %2258 = vmatprep.subr.mxu0 0.0
    %2259 = vmatpush1.msra.mxu0 0.0
    %2260 = vmatprep.subr.mxu0 0.0
    %2261 = vmatpush1.msra.mxu0 0.0
    %2262 = vmatprep.subr.mxu0 0.0
    %2263 = vmatpush1.msra.mxu0 0.0
    %2264 = vmatprep.subr.mxu0 0.0
    %2265 = vmatpush1.msra.mxu0 0.0
    %2266 = vmatprep.subr.mxu0 0.0
    %2267 = vmatpush1.msra.mxu0 %v2223
    %2268 = vmatprep.subr.mxu0 0.0
    %2269 = vmatpush2.msra.mxu0 0.0
    %2270 = vmatprep.subr.mxu0 0.0
    %2271 = vmatpush2.msra.mxu0 0.0
    %2272 = vmatprep.subr.mxu0 0.0
    %2273 = vmatpush2.msra.mxu0 0.0
    %2274 = vmatprep.subr.mxu0 0.0
    %2275 = vmatpush2.msra.mxu0 0.0
    %2276 = vmatprep.subr.mxu0 0.0
    %2277 = vmatpush2.msra.mxu0 0.0
    %2278 = vmatprep.subr.mxu0 0.0
    %2279 = vmatpush2.msra.mxu0 0.0
    %2280 = vmatprep.subr.mxu0 0.0
    %2281 = vmatpush2.msra.mxu0 0.0
    %2282 = vmatprep.subr.mxu0 0.0
    %2283 = vmatpush2.msra.mxu0 0.0
    %2284 = vmatprep.subr.mxu0 0.0
    %2285 = vmatpush2.msra.mxu0 0.0
    %2286 = vmatprep.subr.mxu0 0.0
    %2287 = vmatpush2.msra.mxu0 0.0
    %2288 = vmatprep.subr.mxu0 0.0
    %2289 = vmatpush2.msra.mxu0 0.0
    %2290 = vmatprep.subr.mxu0 0.0
    %2291 = vmatpush2.msra.mxu0 0.0
    %2292 = vmatprep.subr.mxu0 0.0
    %2293 = vmatpush2.msra.mxu0 0.0
    %2294 = vmatprep.subr.mxu0 0.0
    %2295 = vmatpush2.msra.mxu0 0.0
    %2296 = vmatprep.subr.mxu0 0.0
    %2297 = vmatpush2.msra.mxu0 0.0
    %2298 = vmatprep.subr.mxu0 0.0
    %2299 = vmatpush2.msra.mxu0 0.0
    %2300 = vmatprep.mubr.f32.mxu0 0.0
    %2301 = vmatmul.mubr.f32.gmra.mxu0 %v2225
    %v2302 = vpop.f32.mrf.mxu0
    %v2303 = vadd.f32 0.0, %v2302
    %v2304 = vpop.f32.mrf.mxu0
    %2305 = vmatprep.mubr.f32.mxu0 0.0
    %2306 = vmatmul.mubr.f32.gmra.mxu0 %v2228
    %v2307 = vpop.f32.mrf.mxu0
    %v2308 = vadd.f32 0.0, %v2307
    %v2309 = vpop.f32.mrf.mxu0
    %2310 = vmatprep.mubr.f32.mxu0 0.0
    %2311 = vmatmul.mubr.f32.gmra.mxu0 %v2231
    %v2312 = vpop.f32.mrf.mxu0
    %v2313 = vadd.f32 0.0, %v2312
    %v2314 = vpop.f32.mrf.mxu0
    %2315 = vmatprep.mubr.f32.mxu0 0.0
    %2316 = vmatmul.mubr.f32.gmra.mxu0 %v2234
    %v2317 = vpop.f32.mrf.mxu0
    %v2318 = vadd.f32 0.0, %v2317
    %v2319 = vpop.f32.mrf.mxu0
    %2320 = vdwg.mxu0
    %v2322 = vsel %vm483, %v2107, 0
    %v2325 = vsel %vm483, %v2112, 0
    %v2328 = vsel %vm483, %v2117, 0
    %v2331 = vsel %vm483, %v2122, 0
    %2333 = vmatprep.subr.mxu0 0.0
    %2334 = vmatpush1.msra.mxu0 0.0
    %2335 = vmatprep.subr.mxu0 0.0
    %2336 = vmatpush1.msra.mxu0 0.0
    %2337 = vmatprep.subr.mxu0 0.0
    %2338 = vmatpush1.msra.mxu0 0.0
    %2339 = vmatprep.subr.mxu0 0.0
    %2340 = vmatpush1.msra.mxu0 0.0
    %2341 = vmatprep.subr.mxu0 0.0
    %2342 = vmatpush1.msra.mxu0 0.0
    %2343 = vmatprep.subr.mxu0 0.0
    %2344 = vmatpush1.msra.mxu0 0.0
    %2345 = vmatprep.subr.mxu0 0.0
    %2346 = vmatpush1.msra.mxu0 0.0
    %2347 = vmatprep.subr.mxu0 0.0
    %2348 = vmatpush1.msra.mxu0 0.0
    %2349 = vmatprep.subr.mxu0 0.0
    %2350 = vmatpush1.msra.mxu0 0.0
    %2351 = vmatprep.subr.mxu0 0.0
    %2352 = vmatpush1.msra.mxu0 0.0
    %2353 = vmatprep.subr.mxu0 0.0
    %2354 = vmatpush1.msra.mxu0 0.0
    %2355 = vmatprep.subr.mxu0 0.0
    %2356 = vmatpush1.msra.mxu0 0.0
    %2357 = vmatprep.subr.mxu0 0.0
    %2358 = vmatpush1.msra.mxu0 0.0
    %2359 = vmatprep.subr.mxu0 0.0
    %2360 = vmatpush1.msra.mxu0 0.0
    %2361 = vmatprep.subr.mxu0 0.0
    %2362 = vmatpush1.msra.mxu0 0.0
    %2363 = vmatprep.subr.mxu0 0.0
    %2364 = vmatpush1.msra.mxu0 %v2125
    %2365 = vmatprep.subr.mxu0 0.0
    %2366 = vmatpush2.msra.mxu0 0.0
    %2367 = vmatprep.subr.mxu0 0.0
    %2368 = vmatpush2.msra.mxu0 0.0
    %2369 = vmatprep.subr.mxu0 0.0
    %2370 = vmatpush2.msra.mxu0 0.0
    %2371 = vmatprep.subr.mxu0 0.0
    %2372 = vmatpush2.msra.mxu0 0.0
    %2373 = vmatprep.subr.mxu0 0.0
    %2374 = vmatpush2.msra.mxu0 0.0
    %2375 = vmatprep.subr.mxu0 0.0
    %2376 = vmatpush2.msra.mxu0 0.0
    %2377 = vmatprep.subr.mxu0 0.0
    %2378 = vmatpush2.msra.mxu0 0.0
    %2379 = vmatprep.subr.mxu0 0.0
    %2380 = vmatpush2.msra.mxu0 0.0
    %2381 = vmatprep.subr.mxu0 0.0
    %2382 = vmatpush2.msra.mxu0 0.0
    %2383 = vmatprep.subr.mxu0 0.0
    %2384 = vmatpush2.msra.mxu0 0.0
    %2385 = vmatprep.subr.mxu0 0.0
    %2386 = vmatpush2.msra.mxu0 0.0
    %2387 = vmatprep.subr.mxu0 0.0
    %2388 = vmatpush2.msra.mxu0 0.0
    %2389 = vmatprep.subr.mxu0 0.0
    %2390 = vmatpush2.msra.mxu0 0.0
    %2391 = vmatprep.subr.mxu0 0.0
    %2392 = vmatpush2.msra.mxu0 0.0
    %2393 = vmatprep.subr.mxu0 0.0
    %2394 = vmatpush2.msra.mxu0 0.0
    %2395 = vmatprep.subr.mxu0 0.0
    %2396 = vmatpush2.msra.mxu0 0.0
    %2397 = vmatprep.mubr.f32.mxu0 0.0
    %2398 = vmatmul.mubr.f32.gmra.mxu0 %v2322
    %v2399 = vpop.f32.mrf.mxu0
    %v2400 = vadd.f32 %v2303, %v2399
    %v2401 = vpop.f32.mrf.mxu0
    %2402 = vmatprep.mubr.f32.mxu0 0.0
    %2403 = vmatmul.mubr.f32.gmra.mxu0 %v2325
    %v2404 = vpop.f32.mrf.mxu0
    %v2405 = vadd.f32 %v2308, %v2404
    %v2406 = vpop.f32.mrf.mxu0
    %2407 = vmatprep.mubr.f32.mxu0 0.0
    %2408 = vmatmul.mubr.f32.gmra.mxu0 %v2328
    %v2409 = vpop.f32.mrf.mxu0
    %v2410 = vadd.f32 %v2313, %v2409
    %v2411 = vpop.f32.mrf.mxu0
    %2412 = vmatprep.mubr.f32.mxu0 0.0
    %2413 = vmatmul.mubr.f32.gmra.mxu0 %v2331
    %v2414 = vpop.f32.mrf.mxu0
    %v2415 = vadd.f32 %v2318, %v2414
    %v2416 = vpop.f32.mrf.mxu0
    %2417 = vdwg.mxu0
    %v2419 = vsel %vm98, %v2020, 0
    %v2422 = vsel %vm98, %v2021, 0
    %v2425 = vsel %vm98, %v2022, 0
    %v2428 = vsel %vm98, %v2023, 0
    %2430 = vmatprep.subr.mxu0 0.0
    %2431 = vmatpush1.msra.mxu0 0.0
    %2432 = vmatprep.subr.mxu0 0.0
    %2433 = vmatpush1.msra.mxu0 0.0
    %2434 = vmatprep.subr.mxu0 0.0
    %2435 = vmatpush1.msra.mxu0 0.0
    %2436 = vmatprep.subr.mxu0 0.0
    %2437 = vmatpush1.msra.mxu0 0.0
    %2438 = vmatprep.subr.mxu0 0.0
    %2439 = vmatpush1.msra.mxu0 0.0
    %2440 = vmatprep.subr.mxu0 0.0
    %2441 = vmatpush1.msra.mxu0 0.0
    %2442 = vmatprep.subr.mxu0 0.0
    %2443 = vmatpush1.msra.mxu0 0.0
    %2444 = vmatprep.subr.mxu0 0.0
    %2445 = vmatpush1.msra.mxu0 0.0
    %2446 = vmatprep.subr.mxu0 0.0
    %2447 = vmatpush1.msra.mxu0 0.0
    %2448 = vmatprep.subr.mxu0 0.0
    %2449 = vmatpush1.msra.mxu0 0.0
    %2450 = vmatprep.subr.mxu0 0.0
    %2451 = vmatpush1.msra.mxu0 0.0
    %2452 = vmatprep.subr.mxu0 0.0
    %2453 = vmatpush1.msra.mxu0 0.0
    %2454 = vmatprep.subr.mxu0 0.0
    %2455 = vmatpush1.msra.mxu0 %v1315
    %2456 = vmatprep.subr.mxu0 0.0
    %2457 = vmatpush1.msra.mxu0 %v1310
    %2458 = vmatprep.subr.mxu0 0.0
    %2459 = vmatpush1.msra.mxu0 %v1305
    %2460 = vmatprep.subr.mxu0 0.0
    %2461 = vmatpush1.msra.mxu0 %v1300
    %2462 = vmatprep.subr.mxu0 0.0
    %2463 = vmatpush2.msra.mxu0 0.0
    %2464 = vmatprep.subr.mxu0 0.0
    %2465 = vmatpush2.msra.mxu0 0.0
    %2466 = vmatprep.subr.mxu0 0.0
    %2467 = vmatpush2.msra.mxu0 0.0
    %2468 = vmatprep.subr.mxu0 0.0
    %2469 = vmatpush2.msra.mxu0 0.0
    %2470 = vmatprep.subr.mxu0 0.0
    %2471 = vmatpush2.msra.mxu0 0.0
    %2472 = vmatprep.subr.mxu0 0.0
    %2473 = vmatpush2.msra.mxu0 0.0
    %2474 = vmatprep.subr.mxu0 0.0
    %2475 = vmatpush2.msra.mxu0 0.0
    %2476 = vmatprep.subr.mxu0 0.0
    %2477 = vmatpush2.msra.mxu0 0.0
    %2478 = vmatprep.subr.mxu0 0.0
    %2479 = vmatpush2.msra.mxu0 0.0
    %2480 = vmatprep.subr.mxu0 0.0
    %2481 = vmatpush2.msra.mxu0 0.0
    %2482 = vmatprep.subr.mxu0 0.0
    %2483 = vmatpush2.msra.mxu0 0.0
    %2484 = vmatprep.subr.mxu0 0.0
    %2485 = vmatpush2.msra.mxu0 0.0
    %2486 = vmatprep.subr.mxu0 0.0
    %2487 = vmatpush2.msra.mxu0 0.0
    %2488 = vmatprep.subr.mxu0 0.0
    %2489 = vmatpush2.msra.mxu0 0.0
    %2490 = vmatprep.subr.mxu0 0.0
    %2491 = vmatpush2.msra.mxu0 0.0
    %2492 = vmatprep.subr.mxu0 0.0
    %2493 = vmatpush2.msra.mxu0 0.0
    %2494 = vmatprep.mubr.f32.mxu0 0.0
    %2495 = vmatmul.mubr.f32.gmra.mxu0 %v2419
    %v2496 = vpop.f32.mrf.mxu0
    %v2497 = vadd.f32 0.0, %v2496
    %v2498 = vpop.f32.mrf.mxu0
    %2499 = vmatprep.mubr.f32.mxu0 0.0
    %2500 = vmatmul.mubr.f32.gmra.mxu0 %v2422
    %v2501 = vpop.f32.mrf.mxu0
    %v2502 = vadd.f32 0.0, %v2501
    %v2503 = vpop.f32.mrf.mxu0
    %2504 = vmatprep.mubr.f32.mxu0 0.0
    %2505 = vmatmul.mubr.f32.gmra.mxu0 %v2425
    %v2506 = vpop.f32.mrf.mxu0
    %v2507 = vadd.f32 0.0, %v2506
    %v2508 = vpop.f32.mrf.mxu0
    %2509 = vmatprep.mubr.f32.mxu0 0.0
    %2510 = vmatmul.mubr.f32.gmra.mxu0 %v2428
    %v2511 = vpop.f32.mrf.mxu0
    %v2512 = vadd.f32 0.0, %v2511
    %v2513 = vpop.f32.mrf.mxu0
    %2514 = vdwg.mxu0
    %v2515 = vld [vmem:[%s4 + $0x10] sm:$0xff]
    %v2517 = vsel %vm483, %v2497, 0
    %v2520 = vsel %vm483, %v2502, 0
    %v2523 = vsel %vm483, %v2507, 0
    %v2526 = vsel %vm483, %v2512, 0
    %2528 = vmatprep.subr.mxu0 0.0
    %2529 = vmatpush1.msra.mxu0 0.0
    %2530 = vmatprep.subr.mxu0 0.0
    %2531 = vmatpush1.msra.mxu0 0.0
    %2532 = vmatprep.subr.mxu0 0.0
    %2533 = vmatpush1.msra.mxu0 0.0
    %2534 = vmatprep.subr.mxu0 0.0
    %2535 = vmatpush1.msra.mxu0 0.0
    %2536 = vmatprep.subr.mxu0 0.0
    %2537 = vmatpush1.msra.mxu0 0.0
    %2538 = vmatprep.subr.mxu0 0.0
    %2539 = vmatpush1.msra.mxu0 0.0
    %2540 = vmatprep.subr.mxu0 0.0
    %2541 = vmatpush1.msra.mxu0 0.0
    %2542 = vmatprep.subr.mxu0 0.0
    %2543 = vmatpush1.msra.mxu0 0.0
    %2544 = vmatprep.subr.mxu0 0.0
    %2545 = vmatpush1.msra.mxu0 0.0
    %2546 = vmatprep.subr.mxu0 0.0
    %2547 = vmatpush1.msra.mxu0 0.0
    %2548 = vmatprep.subr.mxu0 0.0
    %2549 = vmatpush1.msra.mxu0 0.0
    %2550 = vmatprep.subr.mxu0 0.0
    %2551 = vmatpush1.msra.mxu0 0.0
    %2552 = vmatprep.subr.mxu0 0.0
    %2553 = vmatpush1.msra.mxu0 0.0
    %2554 = vmatprep.subr.mxu0 0.0
    %2555 = vmatpush1.msra.mxu0 0.0
    %2556 = vmatprep.subr.mxu0 0.0
    %2557 = vmatpush1.msra.mxu0 0.0
    %2558 = vmatprep.subr.mxu0 0.0
    %2559 = vmatpush1.msra.mxu0 %v2515
    %2560 = vmatprep.subr.mxu0 0.0
    %2561 = vmatpush2.msra.mxu0 0.0
    %2562 = vmatprep.subr.mxu0 0.0
    %2563 = vmatpush2.msra.mxu0 0.0
    %2564 = vmatprep.subr.mxu0 0.0
    %2565 = vmatpush2.msra.mxu0 0.0
    %2566 = vmatprep.subr.mxu0 0.0
    %2567 = vmatpush2.msra.mxu0 0.0
    %2568 = vmatprep.subr.mxu0 0.0
    %2569 = vmatpush2.msra.mxu0 0.0
    %2570 = vmatprep.subr.mxu0 0.0
    %2571 = vmatpush2.msra.mxu0 0.0
    %2572 = vmatprep.subr.mxu0 0.0
    %2573 = vmatpush2.msra.mxu0 0.0
    %2574 = vmatprep.subr.mxu0 0.0
    %2575 = vmatpush2.msra.mxu0 0.0
    %2576 = vmatprep.subr.mxu0 0.0
    %2577 = vmatpush2.msra.mxu0 0.0
    %2578 = vmatprep.subr.mxu0 0.0
    %2579 = vmatpush2.msra.mxu0 0.0
    %2580 = vmatprep.subr.mxu0 0.0
    %2581 = vmatpush2.msra.mxu0 0.0
    %2582 = vmatprep.subr.mxu0 0.0
    %2583 = vmatpush2.msra.mxu0 0.0
    %2584 = vmatprep.subr.mxu0 0.0
    %2585 = vmatpush2.msra.mxu0 0.0
    %2586 = vmatprep.subr.mxu0 0.0
    %2587 = vmatpush2.msra.mxu0 0.0
    %2588 = vmatprep.subr.mxu0 0.0
    %2589 = vmatpush2.msra.mxu0 0.0
    %2590 = vmatprep.subr.mxu0 0.0
    %2591 = vmatpush2.msra.mxu0 0.0
    %2592 = vmatprep.mubr.f32.mxu0 0.0
    %2593 = vmatmul.mubr.f32.gmra.mxu0 %v2517
    %v2594 = vpop.f32.mrf.mxu0
    %v2595 = vadd.f32 0.0, %v2594
    %v2596 = vpop.f32.mrf.mxu0
    %2597 = vmatprep.mubr.f32.mxu0 0.0
    %2598 = vmatmul.mubr.f32.gmra.mxu0 %v2520
    %v2599 = vpop.f32.mrf.mxu0
    %v2600 = vadd.f32 0.0, %v2599
    %v2601 = vpop.f32.mrf.mxu0
    %2602 = vmatprep.mubr.f32.mxu0 0.0
    %2603 = vmatmul.mubr.f32.gmra.mxu0 %v2523
    %v2604 = vpop.f32.mrf.mxu0
    %v2605 = vadd.f32 0.0, %v2604
    %v2606 = vpop.f32.mrf.mxu0
    %2607 = vmatprep.mubr.f32.mxu0 0.0
    %2608 = vmatmul.mubr.f32.gmra.mxu0 %v2526
    %v2609 = vpop.f32.mrf.mxu0
    %v2610 = vadd.f32 0.0, %v2609
    %v2611 = vpop.f32.mrf.mxu0
    %2612 = vdwg.mxu0
    %v2613 = vadd.f32 %v2400, %v2595
    %v2614 = vadd.f32 %v2405, %v2600
    %v2615 = vadd.f32 %v2410, %v2605
    %v2616 = vadd.f32 %v2415, %v2610
    %v2618 = vsel %vm98, %v2024, 0
    %v2621 = vsel %vm98, %v2025, 0
    %v2624 = vsel %vm98, %v2026, 0
    %v2627 = vsel %vm98, %v2027, 0
    %2629 = vmatprep.subr.mxu0 0.0
    %2630 = vmatpush1.msra.mxu0 0.0
    %2631 = vmatprep.subr.mxu0 0.0
    %2632 = vmatpush1.msra.mxu0 0.0
    %2633 = vmatprep.subr.mxu0 0.0
    %2634 = vmatpush1.msra.mxu0 0.0
    %2635 = vmatprep.subr.mxu0 0.0
    %2636 = vmatpush1.msra.mxu0 0.0
    %2637 = vmatprep.subr.mxu0 0.0
    %2638 = vmatpush1.msra.mxu0 0.0
    %2639 = vmatprep.subr.mxu0 0.0
    %2640 = vmatpush1.msra.mxu0 0.0
    %2641 = vmatprep.subr.mxu0 0.0
    %2642 = vmatpush1.msra.mxu0 0.0
    %2643 = vmatprep.subr.mxu0 0.0
    %2644 = vmatpush1.msra.mxu0 0.0
    %2645 = vmatprep.subr.mxu0 0.0
    %2646 = vmatpush1.msra.mxu0 0.0
    %2647 = vmatprep.subr.mxu0 0.0
    %2648 = vmatpush1.msra.mxu0 0.0
    %2649 = vmatprep.subr.mxu0 0.0
    %2650 = vmatpush1.msra.mxu0 0.0
    %2651 = vmatprep.subr.mxu0 0.0
    %2652 = vmatpush1.msra.mxu0 0.0
    %2653 = vmatprep.subr.mxu0 0.0
    %2654 = vmatpush1.msra.mxu0 %v1732
    %2655 = vmatprep.subr.mxu0 0.0
    %2656 = vmatpush1.msra.mxu0 %v1727
    %2657 = vmatprep.subr.mxu0 0.0
    %2658 = vmatpush1.msra.mxu0 %v1722
    %2659 = vmatprep.subr.mxu0 0.0
    %2660 = vmatpush1.msra.mxu0 %v1717
    %2661 = vmatprep.subr.mxu0 0.0
    %2662 = vmatpush2.msra.mxu0 0.0
    %2663 = vmatprep.subr.mxu0 0.0
    %2664 = vmatpush2.msra.mxu0 0.0
    %2665 = vmatprep.subr.mxu0 0.0
    %2666 = vmatpush2.msra.mxu0 0.0
    %2667 = vmatprep.subr.mxu0 0.0
    %2668 = vmatpush2.msra.mxu0 0.0
    %2669 = vmatprep.subr.mxu0 0.0
    %2670 = vmatpush2.msra.mxu0 0.0
    %2671 = vmatprep.subr.mxu0 0.0
    %2672 = vmatpush2.msra.mxu0 0.0
    %2673 = vmatprep.subr.mxu0 0.0
    %2674 = vmatpush2.msra.mxu0 0.0
    %2675 = vmatprep.subr.mxu0 0.0
    %2676 = vmatpush2.msra.mxu0 0.0
    %2677 = vmatprep.subr.mxu0 0.0
    %2678 = vmatpush2.msra.mxu0 0.0
    %2679 = vmatprep.subr.mxu0 0.0
    %2680 = vmatpush2.msra.mxu0 0.0
    %2681 = vmatprep.subr.mxu0 0.0
    %2682 = vmatpush2.msra.mxu0 0.0
    %2683 = vmatprep.subr.mxu0 0.0
    %2684 = vmatpush2.msra.mxu0 0.0
    %2685 = vmatprep.subr.mxu0 0.0
    %2686 = vmatpush2.msra.mxu0 0.0
    %2687 = vmatprep.subr.mxu0 0.0
    %2688 = vmatpush2.msra.mxu0 0.0
    %2689 = vmatprep.subr.mxu0 0.0
    %2690 = vmatpush2.msra.mxu0 0.0
    %2691 = vmatprep.subr.mxu0 0.0
    %2692 = vmatpush2.msra.mxu0 0.0
    %2693 = vmatprep.mubr.f32.mxu0 0.0
    %2694 = vmatmul.mubr.f32.gmra.mxu0 %v2618
    %v2695 = vpop.f32.mrf.mxu0
    %v2696 = vadd.f32 0.0, %v2695
    %v2697 = vpop.f32.mrf.mxu0
    %2698 = vmatprep.mubr.f32.mxu0 0.0
    %2699 = vmatmul.mubr.f32.gmra.mxu0 %v2621
    %v2700 = vpop.f32.mrf.mxu0
    %v2701 = vadd.f32 0.0, %v2700
    %v2702 = vpop.f32.mrf.mxu0
    %2703 = vmatprep.mubr.f32.mxu0 0.0
    %2704 = vmatmul.mubr.f32.gmra.mxu0 %v2624
    %v2705 = vpop.f32.mrf.mxu0
    %v2706 = vadd.f32 0.0, %v2705
    %v2707 = vpop.f32.mrf.mxu0
    %2708 = vmatprep.mubr.f32.mxu0 0.0
    %2709 = vmatmul.mubr.f32.gmra.mxu0 %v2627
    %v2710 = vpop.f32.mrf.mxu0
    %v2711 = vadd.f32 0.0, %v2710
    %v2712 = vpop.f32.mrf.mxu0
    %2713 = vdwg.mxu0
    %v2714 = vld [vmem:[%s4 + $0x18] sm:$0xff]
    %v2716 = vsel %vm483, %v2696, 0
    %v2719 = vsel %vm483, %v2701, 0
    %v2722 = vsel %vm483, %v2706, 0
    %v2725 = vsel %vm483, %v2711, 0
    %2727 = vmatprep.subr.mxu0 0.0
    %2728 = vmatpush1.msra.mxu0 0.0
    %2729 = vmatprep.subr.mxu0 0.0
    %2730 = vmatpush1.msra.mxu0 0.0
    %2731 = vmatprep.subr.mxu0 0.0
    %2732 = vmatpush1.msra.mxu0 0.0
    %2733 = vmatprep.subr.mxu0 0.0
    %2734 = vmatpush1.msra.mxu0 0.0
    %2735 = vmatprep.subr.mxu0 0.0
    %2736 = vmatpush1.msra.mxu0 0.0
    %2737 = vmatprep.subr.mxu0 0.0
    %2738 = vmatpush1.msra.mxu0 0.0
    %2739 = vmatprep.subr.mxu0 0.0
    %2740 = vmatpush1.msra.mxu0 0.0
    %2741 = vmatprep.subr.mxu0 0.0
    %2742 = vmatpush1.msra.mxu0 0.0
    %2743 = vmatprep.subr.mxu0 0.0
    %2744 = vmatpush1.msra.mxu0 0.0
    %2745 = vmatprep.subr.mxu0 0.0
    %2746 = vmatpush1.msra.mxu0 0.0
    %2747 = vmatprep.subr.mxu0 0.0
    %2748 = vmatpush1.msra.mxu0 0.0
    %2749 = vmatprep.subr.mxu0 0.0
    %2750 = vmatpush1.msra.mxu0 0.0
    %2751 = vmatprep.subr.mxu0 0.0
    %2752 = vmatpush1.msra.mxu0 0.0
    %2753 = vmatprep.subr.mxu0 0.0
    %2754 = vmatpush1.msra.mxu0 0.0
    %2755 = vmatprep.subr.mxu0 0.0
    %2756 = vmatpush1.msra.mxu0 0.0
    %2757 = vmatprep.subr.mxu0 0.0
    %2758 = vmatpush1.msra.mxu0 %v2714
    %2759 = vmatprep.subr.mxu0 0.0
    %2760 = vmatpush2.msra.mxu0 0.0
    %2761 = vmatprep.subr.mxu0 0.0
    %2762 = vmatpush2.msra.mxu0 0.0
    %2763 = vmatprep.subr.mxu0 0.0
    %2764 = vmatpush2.msra.mxu0 0.0
    %2765 = vmatprep.subr.mxu0 0.0
    %2766 = vmatpush2.msra.mxu0 0.0
    %2767 = vmatprep.subr.mxu0 0.0
    %2768 = vmatpush2.msra.mxu0 0.0
    %2769 = vmatprep.subr.mxu0 0.0
    %2770 = vmatpush2.msra.mxu0 0.0
    %2771 = vmatprep.subr.mxu0 0.0
    %2772 = vmatpush2.msra.mxu0 0.0
    %2773 = vmatprep.subr.mxu0 0.0
    %2774 = vmatpush2.msra.mxu0 0.0
    %2775 = vmatprep.subr.mxu0 0.0
    %2776 = vmatpush2.msra.mxu0 0.0
    %2777 = vmatprep.subr.mxu0 0.0
    %2778 = vmatpush2.msra.mxu0 0.0
    %2779 = vmatprep.subr.mxu0 0.0
    %2780 = vmatpush2.msra.mxu0 0.0
    %2781 = vmatprep.subr.mxu0 0.0
    %2782 = vmatpush2.msra.mxu0 0.0
    %2783 = vmatprep.subr.mxu0 0.0
    %2784 = vmatpush2.msra.mxu0 0.0
    %2785 = vmatprep.subr.mxu0 0.0
    %2786 = vmatpush2.msra.mxu0 0.0
    %2787 = vmatprep.subr.mxu0 0.0
    %2788 = vmatpush2.msra.mxu0 0.0
    %2789 = vmatprep.subr.mxu0 0.0
    %2790 = vmatpush2.msra.mxu0 0.0
    %2791 = vmatprep.mubr.f32.mxu0 0.0
    %2792 = vmatmul.mubr.f32.gmra.mxu0 %v2716
    %v2793 = vpop.f32.mrf.mxu0
    %v2794 = vadd.f32 0.0, %v2793
    %v2795 = vpop.f32.mrf.mxu0
    %2796 = vmatprep.mubr.f32.mxu0 0.0
    %2797 = vmatmul.mubr.f32.gmra.mxu0 %v2719
    %v2798 = vpop.f32.mrf.mxu0
    %v2799 = vadd.f32 0.0, %v2798
    %v2800 = vpop.f32.mrf.mxu0
    %2801 = vmatprep.mubr.f32.mxu0 0.0
    %2802 = vmatmul.mubr.f32.gmra.mxu0 %v2722
    %v2803 = vpop.f32.mrf.mxu0
    %v2804 = vadd.f32 0.0, %v2803
    %v2805 = vpop.f32.mrf.mxu0
    %2806 = vmatprep.mubr.f32.mxu0 0.0
    %2807 = vmatmul.mubr.f32.gmra.mxu0 %v2725
    %v2808 = vpop.f32.mrf.mxu0
    %v2809 = vadd.f32 0.0, %v2808
    %v2810 = vpop.f32.mrf.mxu0
    %2811 = vdwg.mxu0
    %v2812 = vadd.f32 %v2613, %v2794
    %v2813 = vadd.f32 %v2614, %v2799
    %v2814 = vadd.f32 %v2615, %v2804
    %v2815 = vadd.f32 %v2616, %v2809
    %v2816 = vld [vmem:[#allocation7 + $0x4] sm:$0x1]
    %v2817 = vlaneseq
    %v2818 = vshrl.u32 %v2817, 7
    %v2819 = vsub.s32 0, %v2818
    %v2820 = vrot.slane %v2816, %v2819
    %v2821 = vadd.f32 %v2812, %v2820
    %v2822 = vadd.f32 %v2813, %v2820
    %v2823 = vadd.f32 %v2814, %v2820
    %v2824 = vadd.f32 %v2815, %v2820
    %v2825 = vadd.f32 %v2821, %v164
    %v2826 = vadd.f32 %v2822, %v165
    %v2827 = vadd.f32 %v2823, %v166
    %v2828 = vadd.f32 %v2824, %v167
    %v2829 = vld [vmem:[#allocation7 + $0x5] sm:$0x1]
    %v2830 = vld [vmem:[#allocation7 + $0x6] sm:$0x1]
    %v2831 = vsel %vm98, %v2825, 0.0
    %2832 = vadd.xlane.f32.xlu0 %v2831
    %v2833 = vpop.xlane.xlu0 %2832
    %v2834 = vsel %vm98, %v2826, 0.0
    %2835 = vadd.xlane.f32.xlu0 %v2834
    %v2836 = vpop.xlane.xlu0 %2835
    %v2837 = vsel %vm98, %v2827, 0.0
    %2838 = vadd.xlane.f32.xlu0 %v2837
    %v2839 = vpop.xlane.xlu0 %2838
    %v2840 = vsel %vm98, %v2828, 0.0
    %2841 = vadd.xlane.f32.xlu0 %v2840
    %v2842 = vpop.xlane.xlu0 %2841
    %v2843 = vmul.f32 %v2833, %v111
    %v2844 = vmul.f32 %v2836, %v111
    %v2845 = vmul.f32 %v2839, %v111
    %v2846 = vmul.f32 %v2842, %v111
    %v2847 = vsub.f32 %v2825, %v2843
    %v2848 = vsub.f32 %v2826, %v2844
    %v2849 = vsub.f32 %v2827, %v2845
    %v2850 = vsub.f32 %v2828, %v2846
    %v2851 = vmul.f32 %v2847, %v2847
    %v2852 = vmul.f32 %v2848, %v2848
    %v2853 = vmul.f32 %v2849, %v2849
    %v2854 = vmul.f32 %v2850, %v2850
    %v2855 = vsel %vm98, %v2851, 0.0
    %2856 = vadd.xlane.f32.xlu0 %v2855
    %v2857 = vpop.xlane.xlu0 %2856
    %v2858 = vsel %vm98, %v2852, 0.0
    %2859 = vadd.xlane.f32.xlu0 %v2858
    %v2860 = vpop.xlane.xlu0 %2859
    %v2861 = vsel %vm98, %v2853, 0.0
    %2862 = vadd.xlane.f32.xlu0 %v2861
    %v2863 = vpop.xlane.xlu0 %2862
    %v2864 = vsel %vm98, %v2854, 0.0
    %2865 = vadd.xlane.f32.xlu0 %v2864
    %v2866 = vpop.xlane.xlu0 %2865
    %v2867 = vmul.f32 %v2857, %v111
    %v2868 = vmul.f32 %v2860, %v111
    %v2869 = vmul.f32 %v2863, %v111
    %v2870 = vmul.f32 %v2866, %v111
    %v2871 = vadd.f32 %v2867, 1e-12
    %v2872 = vadd.f32 %v2868, 1e-12
    %v2873 = vadd.f32 %v2869, 1e-12
    %v2874 = vadd.f32 %v2870, 1e-12
    %v2875 = vrsqrt.pop %v2871
    %v2876 = vrsqrt.pop %v2872
    %v2877 = vrsqrt.pop %v2873
    %v2878 = vrsqrt.pop %v2874
    %v2879 = vmul.f32 %v2847, %v2875
    %v2880 = vmul.f32 %v2848, %v2876
    %v2881 = vmul.f32 %v2849, %v2877
    %v2882 = vmul.f32 %v2850, %v2878
    %v2883 = vlaneseq
    %v2884 = vshrl.u32 %v2883, 7
    %v2885 = vsub.s32 0, %v2884
    %v2886 = vrot.slane %v2829, %v2885
    %v2887 = vmul.f32 %v2879, %v2886
    %v2888 = vmul.f32 %v2880, %v2886
    %v2889 = vmul.f32 %v2881, %v2886
    %v2890 = vmul.f32 %v2882, %v2886
    %v2891 = vlaneseq
    %v2892 = vshrl.u32 %v2891, 7
    %v2893 = vsub.s32 0, %v2892
    %v2894 = vrot.slane %v2830, %v2893
    %v2895 = vadd.f32 %v2887, %v2894
    %v2896 = vadd.f32 %v2888, %v2894
    %v2897 = vadd.f32 %v2889, %v2894
    %v2898 = vadd.f32 %v2890, %v2894
    %v2899 = vld [vmem:[%s5] sm:$0xff]
    %v2900 = vld [vmem:[%s5 + $0x8] sm:$0xff]
    %v2901 = vld [vmem:[%s5 + $0x10] sm:$0xff]
    %v2902 = vld [vmem:[%s5 + $0x18] sm:$0xff]
    %v2903 = vld [vmem:[#allocation7 + $0x7] sm:$0x1]
    %v2904 = vlaneseq
    %v2905 = vshrl.u32 %v2904, 7
    %v2906 = vsub.s32 0, %v2905
    %v2907 = vrot.slane %v2903, %v2906
    %v2909 = vsel %vm98, %v2895, 0
    %v2912 = vsel %vm98, %v2896, 0
    %v2915 = vsel %vm98, %v2897, 0
    %v2918 = vsel %vm98, %v2898, 0
    %2920 = vmatprep.subr.mxu0 0.0
    %2921 = vmatpush1.msra.mxu0 0.0
    %2922 = vmatprep.subr.mxu0 0.0
    %2923 = vmatpush1.msra.mxu0 0.0
    %2924 = vmatprep.subr.mxu0 0.0
    %2925 = vmatpush1.msra.mxu0 0.0
    %2926 = vmatprep.subr.mxu0 0.0
    %2927 = vmatpush1.msra.mxu0 0.0
    %2928 = vmatprep.subr.mxu0 0.0
    %2929 = vmatpush1.msra.mxu0 0.0
    %2930 = vmatprep.subr.mxu0 0.0
    %2931 = vmatpush1.msra.mxu0 0.0
    %2932 = vmatprep.subr.mxu0 0.0
    %2933 = vmatpush1.msra.mxu0 0.0
    %2934 = vmatprep.subr.mxu0 0.0
    %2935 = vmatpush1.msra.mxu0 0.0
    %2936 = vmatprep.subr.mxu0 0.0
    %2937 = vmatpush1.msra.mxu0 0.0
    %2938 = vmatprep.subr.mxu0 0.0
    %2939 = vmatpush1.msra.mxu0 0.0
    %2940 = vmatprep.subr.mxu0 0.0
    %2941 = vmatpush1.msra.mxu0 0.0
    %2942 = vmatprep.subr.mxu0 0.0
    %2943 = vmatpush1.msra.mxu0 0.0
    %2944 = vmatprep.subr.mxu0 0.0
    %2945 = vmatpush1.msra.mxu0 %v2902
    %2946 = vmatprep.subr.mxu0 0.0
    %2947 = vmatpush1.msra.mxu0 %v2901
    %2948 = vmatprep.subr.mxu0 0.0
    %2949 = vmatpush1.msra.mxu0 %v2900
    %2950 = vmatprep.subr.mxu0 0.0
    %2951 = vmatpush1.msra.mxu0 %v2899
    %2952 = vmatprep.subr.mxu0 0.0
    %2953 = vmatpush2.msra.mxu0 0.0
    %2954 = vmatprep.subr.mxu0 0.0
    %2955 = vmatpush2.msra.mxu0 0.0
    %2956 = vmatprep.subr.mxu0 0.0
    %2957 = vmatpush2.msra.mxu0 0.0
    %2958 = vmatprep.subr.mxu0 0.0
    %2959 = vmatpush2.msra.mxu0 0.0
    %2960 = vmatprep.subr.mxu0 0.0
    %2961 = vmatpush2.msra.mxu0 0.0
    %2962 = vmatprep.subr.mxu0 0.0
    %2963 = vmatpush2.msra.mxu0 0.0
    %2964 = vmatprep.subr.mxu0 0.0
    %2965 = vmatpush2.msra.mxu0 0.0
    %2966 = vmatprep.subr.mxu0 0.0
    %2967 = vmatpush2.msra.mxu0 0.0
    %2968 = vmatprep.subr.mxu0 0.0
    %2969 = vmatpush2.msra.mxu0 0.0
    %2970 = vmatprep.subr.mxu0 0.0
    %2971 = vmatpush2.msra.mxu0 0.0
    %2972 = vmatprep.subr.mxu0 0.0
    %2973 = vmatpush2.msra.mxu0 0.0
    %2974 = vmatprep.subr.mxu0 0.0
    %2975 = vmatpush2.msra.mxu0 0.0
    %2976 = vmatprep.subr.mxu0 0.0
    %2977 = vmatpush2.msra.mxu0 0.0
    %2978 = vmatprep.subr.mxu0 0.0
    %2979 = vmatpush2.msra.mxu0 0.0
    %2980 = vmatprep.subr.mxu0 0.0
    %2981 = vmatpush2.msra.mxu0 0.0
    %2982 = vmatprep.subr.mxu0 0.0
    %2983 = vmatpush2.msra.mxu0 0.0
    %2984 = vmatprep.mubr.f32.mxu0 0.0
    %2985 = vmatmul.mubr.f32.gmra.mxu0 %v2909
    %v2986 = vpop.f32.mrf.mxu0
    %v2987 = vadd.f32 %v2907, %v2986
    %v2988 = vpop.f32.mrf.mxu0
    %2989 = vmatprep.mubr.f32.mxu0 0.0
    %2990 = vmatmul.mubr.f32.gmra.mxu0 %v2912
    %v2991 = vpop.f32.mrf.mxu0
    %v2992 = vadd.f32 %v2907, %v2991
    %v2993 = vpop.f32.mrf.mxu0
    %2994 = vmatprep.mubr.f32.mxu0 0.0
    %2995 = vmatmul.mubr.f32.gmra.mxu0 %v2915
    %v2996 = vpop.f32.mrf.mxu0
    %v2997 = vadd.f32 %v2907, %v2996
    %v2998 = vpop.f32.mrf.mxu0
    %2999 = vmatprep.mubr.f32.mxu0 0.0
    %3000 = vmatmul.mubr.f32.gmra.mxu0 %v2918
    %v3001 = vpop.f32.mrf.mxu0
    %v3002 = vadd.f32 %v2907, %v3001
    %v3003 = vpop.f32.mrf.mxu0
    %3004 = vdwg.mxu0
    %v3005 = vmul.f32 %v2987, 0.5
    %v3006 = vmul.f32 %v2992, 0.5
    %v3007 = vmul.f32 %v2997, 0.5
    %v3008 = vmul.f32 %v3002, 0.5
    %v3009 = vmul.f32 %v2987, 0.044715
    %v3010 = vmul.f32 %v2992, 0.044715
    %v3011 = vmul.f32 %v2997, 0.044715
    %v3012 = vmul.f32 %v3002, 0.044715
    %v3013 = vmul.f32 %v3009, %v2987
    %v3014 = vmul.f32 %v3010, %v2992
    %v3015 = vmul.f32 %v3011, %v2997
    %v3016 = vmul.f32 %v3012, %v3002
    %v3017 = vmul.f32 %v3013, %v2987
    %v3018 = vmul.f32 %v3014, %v2992
    %v3019 = vmul.f32 %v3015, %v2997
    %v3020 = vmul.f32 %v3016, %v3002
    %v3021 = vadd.f32 %v2987, %v3017
    %v3022 = vadd.f32 %v2992, %v3018
    %v3023 = vadd.f32 %v2997, %v3019
    %v3024 = vadd.f32 %v3002, %v3020
    %v3025 = vmul.f32 %v3021, 0.7978846
    %v3026 = vmul.f32 %v3022, 0.7978846
    %v3027 = vmul.f32 %v3023, 0.7978846
    %v3028 = vmul.f32 %v3024, 0.7978846
    %v3029 = vtanh.pop %v3025
    %v3030 = vtanh.pop %v3026
    %v3031 = vtanh.pop %v3027
    %v3032 = vtanh.pop %v3028
    %v3033 = vadd.f32 %v3029, 1.0
    %v3034 = vadd.f32 %v3030, 1.0
    %v3035 = vadd.f32 %v3031, 1.0
    %v3036 = vadd.f32 %v3032, 1.0
    %v3037 = vmul.f32 %v3005, %v3033
    %v3038 = vmul.f32 %v3006, %v3034
    %v3039 = vmul.f32 %v3007, %v3035
    %v3040 = vmul.f32 %v3008, %v3036
    %v3041 = vld [vmem:[%s6] sm:$0xff]
    %v3042 = vld [vmem:[%s6 + $0x8] sm:$0xff]
    %v3043 = vld [vmem:[%s6 + $0x10] sm:$0xff]
    %v3044 = vld [vmem:[%s6 + $0x18] sm:$0xff]
    %v3045 = vld [vmem:[%s6 + $0x20] sm:$0xff]
    %v3046 = vld [vmem:[%s6 + $0x28] sm:$0xff]
    %v3047 = vld [vmem:[%s6 + $0x30] sm:$0xff]
    %v3048 = vld [vmem:[%s6 + $0x38] sm:$0xff]
    %v3049 = vld [vmem:[#allocation7 + $0x8] sm:$0x1]
    %v3050 = vlaneseq
    %v3051 = vshrl.u32 %v3050, 7
    %v3052 = vsub.s32 0, %v3051
    %v3053 = vrot.slane %v3049, %v3052
    %vm3054 = vcmask 523264
    %v3056 = vsel %vm3054, %v3037, 0
    %v3059 = vsel %vm3054, %v3038, 0
    %v3062 = vsel %vm3054, %v3039, 0
    %v3065 = vsel %vm3054, %v3040, 0
    %3067 = vmatprep.subr.mxu0 0.0
    %3068 = vmatpush1.msra.mxu0 0.0
    %3069 = vmatprep.subr.mxu0 0.0
    %3070 = vmatpush1.msra.mxu0 0.0
    %3071 = vmatprep.subr.mxu0 0.0
    %3072 = vmatpush1.msra.mxu0 0.0
    %3073 = vmatprep.subr.mxu0 0.0
    %3074 = vmatpush1.msra.mxu0 0.0
    %3075 = vmatprep.subr.mxu0 0.0
    %3076 = vmatpush1.msra.mxu0 0.0
    %3077 = vmatprep.subr.mxu0 0.0
    %3078 = vmatpush1.msra.mxu0 0.0
    %3079 = vmatprep.subr.mxu0 0.0
    %3080 = vmatpush1.msra.mxu0 0.0
    %3081 = vmatprep.subr.mxu0 0.0
    %3082 = vmatpush1.msra.mxu0 0.0
    %3083 = vmatprep.subr.mxu0 0.0
    %3084 = vmatpush1.msra.mxu0 %v3048
    %3085 = vmatprep.subr.mxu0 0.0
    %3086 = vmatpush1.msra.mxu0 %v3047
    %3087 = vmatprep.subr.mxu0 0.0
    %3088 = vmatpush1.msra.mxu0 %v3046
    %3089 = vmatprep.subr.mxu0 0.0
    %3090 = vmatpush1.msra.mxu0 %v3045
    %3091 = vmatprep.subr.mxu0 0.0
    %3092 = vmatpush1.msra.mxu0 %v3044
    %3093 = vmatprep.subr.mxu0 0.0
    %3094 = vmatpush1.msra.mxu0 %v3043
    %3095 = vmatprep.subr.mxu0 0.0
    %3096 = vmatpush1.msra.mxu0 %v3042
    %3097 = vmatprep.subr.mxu0 0.0
    %3098 = vmatpush1.msra.mxu0 %v3041
    %3099 = vmatprep.subr.mxu0 0.0
    %3100 = vmatpush2.msra.mxu0 0.0
    %3101 = vmatprep.subr.mxu0 0.0
    %3102 = vmatpush2.msra.mxu0 0.0
    %3103 = vmatprep.subr.mxu0 0.0
    %3104 = vmatpush2.msra.mxu0 0.0
    %3105 = vmatprep.subr.mxu0 0.0
    %3106 = vmatpush2.msra.mxu0 0.0
    %3107 = vmatprep.subr.mxu0 0.0
    %3108 = vmatpush2.msra.mxu0 0.0
    %3109 = vmatprep.subr.mxu0 0.0
    %3110 = vmatpush2.msra.mxu0 0.0
    %3111 = vmatprep.subr.mxu0 0.0
    %3112 = vmatpush2.msra.mxu0 0.0
    %3113 = vmatprep.subr.mxu0 0.0
    %3114 = vmatpush2.msra.mxu0 0.0
    %3115 = vmatprep.subr.mxu0 0.0
    %3116 = vmatpush2.msra.mxu0 0.0
    %3117 = vmatprep.subr.mxu0 0.0
    %3118 = vmatpush2.msra.mxu0 0.0
    %3119 = vmatprep.subr.mxu0 0.0
    %3120 = vmatpush2.msra.mxu0 0.0
    %3121 = vmatprep.subr.mxu0 0.0
    %3122 = vmatpush2.msra.mxu0 0.0
    %3123 = vmatprep.subr.mxu0 0.0
    %3124 = vmatpush2.msra.mxu0 0.0
    %3125 = vmatprep.subr.mxu0 0.0
    %3126 = vmatpush2.msra.mxu0 0.0
    %3127 = vmatprep.subr.mxu0 0.0
    %3128 = vmatpush2.msra.mxu0 0.0
    %3129 = vmatprep.subr.mxu0 0.0
    %3130 = vmatpush2.msra.mxu0 0.0
    %3131 = vmatprep.mubr.f32.mxu0 0.0
    %3132 = vmatmul.mubr.f32.gmra.mxu0 %v3056
    %v3133 = vpop.f32.mrf.mxu0
    %v3134 = vadd.f32 %v3053, %v3133
    %v3135 = vpop.f32.mrf.mxu0
    %3136 = vmatprep.mubr.f32.mxu0 0.0
    %3137 = vmatmul.mubr.f32.gmra.mxu0 %v3059
    %v3138 = vpop.f32.mrf.mxu0
    %v3139 = vadd.f32 %v3053, %v3138
    %v3140 = vpop.f32.mrf.mxu0
    %3141 = vmatprep.mubr.f32.mxu0 0.0
    %3142 = vmatmul.mubr.f32.gmra.mxu0 %v3062
    %v3143 = vpop.f32.mrf.mxu0
    %v3144 = vadd.f32 %v3053, %v3143
    %v3145 = vpop.f32.mrf.mxu0
    %3146 = vmatprep.mubr.f32.mxu0 0.0
    %3147 = vmatmul.mubr.f32.gmra.mxu0 %v3065
    %v3148 = vpop.f32.mrf.mxu0
    %v3149 = vadd.f32 %v3053, %v3148
    %v3150 = vpop.f32.mrf.mxu0
    %3151 = vdwg.mxu0
    %v3152 = vadd.f32 %v3134, %v2895
    %v3153 = vadd.f32 %v3139, %v2896
    %v3154 = vadd.f32 %v3144, %v2897
    %v3155 = vadd.f32 %v3149, %v2898
    %v3156 = vld [vmem:[#allocation7 + $0x9] sm:$0x1]
    %v3157 = vld [vmem:[#allocation7 + $0xa] sm:$0x1]
    %v3158 = vsel %vm98, %v3152, 0.0
    %3159 = vadd.xlane.f32.xlu0 %v3158
    %v3160 = vpop.xlane.xlu0 %3159
    %v3161 = vsel %vm98, %v3153, 0.0
    %3162 = vadd.xlane.f32.xlu0 %v3161
    %v3163 = vpop.xlane.xlu0 %3162
    %v3164 = vsel %vm98, %v3154, 0.0
    %3165 = vadd.xlane.f32.xlu0 %v3164
    %v3166 = vpop.xlane.xlu0 %3165
    %v3167 = vsel %vm98, %v3155, 0.0
    %3168 = vadd.xlane.f32.xlu0 %v3167
    %v3169 = vpop.xlane.xlu0 %3168
    %v3170 = vmul.f32 %v3160, %v111
    %v3171 = vmul.f32 %v3163, %v111
    %v3172 = vmul.f32 %v3166, %v111
    %v3173 = vmul.f32 %v3169, %v111
    %v3174 = vsub.f32 %v3152, %v3170
    %v3175 = vsub.f32 %v3153, %v3171
    %v3176 = vsub.f32 %v3154, %v3172
    %v3177 = vsub.f32 %v3155, %v3173
    %v3178 = vmul.f32 %v3174, %v3174
    %v3179 = vmul.f32 %v3175, %v3175
    %v3180 = vmul.f32 %v3176, %v3176
    %v3181 = vmul.f32 %v3177, %v3177
    %v3182 = vsel %vm98, %v3178, 0.0
    %3183 = vadd.xlane.f32.xlu0 %v3182
    %v3184 = vpop.xlane.xlu0 %3183
    %v3185 = vsel %vm98, %v3179, 0.0
    %3186 = vadd.xlane.f32.xlu0 %v3185
    %v3187 = vpop.xlane.xlu0 %3186
    %v3188 = vsel %vm98, %v3180, 0.0
    %3189 = vadd.xlane.f32.xlu0 %v3188
    %v3190 = vpop.xlane.xlu0 %3189
    %v3191 = vsel %vm98, %v3181, 0.0
    %3192 = vadd.xlane.f32.xlu0 %v3191
    %v3193 = vpop.xlane.xlu0 %3192
    %v3194 = vmul.f32 %v3184, %v111
    %v3195 = vmul.f32 %v3187, %v111
    %v3196 = vmul.f32 %v3190, %v111
    %v3197 = vmul.f32 %v3193, %v111
    %v3198 = vadd.f32 %v3194, 1e-12
    %v3199 = vadd.f32 %v3195, 1e-12
    %v3200 = vadd.f32 %v3196, 1e-12
    %v3201 = vadd.f32 %v3197, 1e-12
    %v3202 = vrsqrt.pop %v3198
    %v3203 = vrsqrt.pop %v3199
    %v3204 = vrsqrt.pop %v3200
    %v3205 = vrsqrt.pop %v3201
    %v3206 = vmul.f32 %v3174, %v3202
    %v3207 = vmul.f32 %v3175, %v3203
    %v3208 = vmul.f32 %v3176, %v3204
    %v3209 = vmul.f32 %v3177, %v3205
    %v3210 = vlaneseq
    %v3211 = vshrl.u32 %v3210, 7
    %v3212 = vsub.s32 0, %v3211
    %v3213 = vrot.slane %v3156, %v3212
    %v3214 = vmul.f32 %v3206, %v3213
    %v3215 = vmul.f32 %v3207, %v3213
    %v3216 = vmul.f32 %v3208, %v3213
    %v3217 = vmul.f32 %v3209, %v3213
    %v3218 = vlaneseq
    %v3219 = vshrl.u32 %v3218, 7
    %v3220 = vsub.s32 0, %v3219
    %v3221 = vrot.slane %v3157, %v3220
    %v3222 = vadd.f32 %v3214, %v3221
    %v3223 = vadd.f32 %v3215, %v3221
    %v3224 = vadd.f32 %v3216, %v3221
    %v3225 = vadd.f32 %v3217, %v3221
    %s3226 = scalar_lea.vmem [#allocation10], 32
    %3227 = vst.msk [vmem:[%s3226] sm:$0xff] %vm98, %v3222
    %3228 = vst.msk [vmem:[%s3226 + $0x8] sm:$0xff] %vm98, %v3223
    %3229 = vst.msk [vmem:[%s3226 + $0x10] sm:$0xff] %vm98, %v3224
    %3230 = vst.msk [vmem:[%s3226 + $0x18] sm:$0xff] %vm98, %v3225
    %s3231 = scalar_lea.vmem %s3, 32
    %v3232 = vld [vmem:[%s3231] sm:$0xff]
    %v3233 = vld [vmem:[%s3231 + $0x8] sm:$0xff]
    %v3234 = vld [vmem:[%s3231 + $0x10] sm:$0xff]
    %v3235 = vld [vmem:[%s3231 + $0x18] sm:$0xff]
    %v3236 = vld [vmem:[#allocation7 + $0xb] sm:$0x1]
    %v3237 = vlaneseq
    %v3238 = vshrl.u32 %v3237, 7
    %v3239 = vsub.s32 0, %v3238
    %v3240 = vrot.slane %v3236, %v3239
    %v3242 = vsel %vm98, %v3222, 0
    %v3245 = vsel %vm98, %v3223, 0
    %v3248 = vsel %vm98, %v3224, 0
    %v3251 = vsel %vm98, %v3225, 0
    %3253 = vmatprep.subr.mxu0 0.0
    %3254 = vmatpush1.msra.mxu0 0.0
    %3255 = vmatprep.subr.mxu0 0.0
    %3256 = vmatpush1.msra.mxu0 0.0
    %3257 = vmatprep.subr.mxu0 0.0
    %3258 = vmatpush1.msra.mxu0 0.0
    %3259 = vmatprep.subr.mxu0 0.0
    %3260 = vmatpush1.msra.mxu0 0.0
    %3261 = vmatprep.subr.mxu0 0.0
    %3262 = vmatpush1.msra.mxu0 0.0
    %3263 = vmatprep.subr.mxu0 0.0
    %3264 = vmatpush1.msra.mxu0 0.0
    %3265 = vmatprep.subr.mxu0 0.0
    %3266 = vmatpush1.msra.mxu0 0.0
    %3267 = vmatprep.subr.mxu0 0.0
    %3268 = vmatpush1.msra.mxu0 0.0
    %3269 = vmatprep.subr.mxu0 0.0
    %3270 = vmatpush1.msra.mxu0 0.0
    %3271 = vmatprep.subr.mxu0 0.0
    %3272 = vmatpush1.msra.mxu0 0.0
    %3273 = vmatprep.subr.mxu0 0.0
    %3274 = vmatpush1.msra.mxu0 0.0
    %3275 = vmatprep.subr.mxu0 0.0
    %3276 = vmatpush1.msra.mxu0 0.0
    %3277 = vmatprep.subr.mxu0 0.0
    %3278 = vmatpush1.msra.mxu0 %v3235
    %3279 = vmatprep.subr.mxu0 0.0
    %3280 = vmatpush1.msra.mxu0 %v3234
    %3281 = vmatprep.subr.mxu0 0.0
    %3282 = vmatpush1.msra.mxu0 %v3233
    %3283 = vmatprep.subr.mxu0 0.0
    %3284 = vmatpush1.msra.mxu0 %v3232
    %3285 = vmatprep.subr.mxu0 0.0
    %3286 = vmatpush2.msra.mxu0 0.0
    %3287 = vmatprep.subr.mxu0 0.0
    %3288 = vmatpush2.msra.mxu0 0.0
    %3289 = vmatprep.subr.mxu0 0.0
    %3290 = vmatpush2.msra.mxu0 0.0
    %3291 = vmatprep.subr.mxu0 0.0
    %3292 = vmatpush2.msra.mxu0 0.0
    %3293 = vmatprep.subr.mxu0 0.0
    %3294 = vmatpush2.msra.mxu0 0.0
    %3295 = vmatprep.subr.mxu0 0.0
    %3296 = vmatpush2.msra.mxu0 0.0
    %3297 = vmatprep.subr.mxu0 0.0
    %3298 = vmatpush2.msra.mxu0 0.0
    %3299 = vmatprep.subr.mxu0 0.0
    %3300 = vmatpush2.msra.mxu0 0.0
    %3301 = vmatprep.subr.mxu0 0.0
    %3302 = vmatpush2.msra.mxu0 0.0
    %3303 = vmatprep.subr.mxu0 0.0
    %3304 = vmatpush2.msra.mxu0 0.0
    %3305 = vmatprep.subr.mxu0 0.0
    %3306 = vmatpush2.msra.mxu0 0.0
    %3307 = vmatprep.subr.mxu0 0.0
    %3308 = vmatpush2.msra.mxu0 0.0
    %3309 = vmatprep.subr.mxu0 0.0
    %3310 = vmatpush2.msra.mxu0 0.0
    %3311 = vmatprep.subr.mxu0 0.0
    %3312 = vmatpush2.msra.mxu0 0.0
    %3313 = vmatprep.subr.mxu0 0.0
    %3314 = vmatpush2.msra.mxu0 0.0
    %3315 = vmatprep.subr.mxu0 0.0
    %3316 = vmatpush2.msra.mxu0 0.0
    %3317 = vmatprep.mubr.f32.mxu0 0.0
    %3318 = vmatmul.mubr.f32.gmra.mxu0 %v3242
    %v3319 = vpop.f32.mrf.mxu0
    %v3320 = vadd.f32 %v3240, %v3319
    %v3321 = vpop.f32.mrf.mxu0
    %3322 = vmatprep.mubr.f32.mxu0 0.0
    %3323 = vmatmul.mubr.f32.gmra.mxu0 %v3245
    %v3324 = vpop.f32.mrf.mxu0
    %v3325 = vadd.f32 %v3240, %v3324
    %v3326 = vpop.f32.mrf.mxu0
    %3327 = vmatprep.mubr.f32.mxu0 0.0
    %3328 = vmatmul.mubr.f32.gmra.mxu0 %v3248
    %v3329 = vpop.f32.mrf.mxu0
    %v3330 = vadd.f32 %v3240, %v3329
    %v3331 = vpop.f32.mrf.mxu0
    %3332 = vmatprep.mubr.f32.mxu0 0.0
    %3333 = vmatmul.mubr.f32.gmra.mxu0 %v3251
    %v3334 = vpop.f32.mrf.mxu0
    %v3335 = vadd.f32 %v3240, %v3334
    %v3336 = vpop.f32.mrf.mxu0
    %3337 = vdwg.mxu0
    %3342 = vrot.lane.b32.xlu0 %v3232, 96
    %v3343 = vpop.permute.xlu0 %3342
    %3344 = vrot.lane.b32.xlu0 %v3233, 96
    %v3345 = vpop.permute.xlu0 %3344
    %3346 = vrot.lane.b32.xlu0 %v3234, 96
    %v3347 = vpop.permute.xlu0 %3346
    %3348 = vrot.lane.b32.xlu0 %v3235, 96
    %v3349 = vpop.permute.xlu0 %3348
    %3355 = vrot.lane.b32.xlu0 %v3240, 96
    %v3356 = vpop.permute.xlu0 %3355
    %3358 = vmatprep.subr.mxu0 0.0
    %3359 = vmatpush1.msra.mxu0 0.0
    %3360 = vmatprep.subr.mxu0 0.0
    %3361 = vmatpush1.msra.mxu0 0.0
    %3362 = vmatprep.subr.mxu0 0.0
    %3363 = vmatpush1.msra.mxu0 0.0
    %3364 = vmatprep.subr.mxu0 0.0
    %3365 = vmatpush1.msra.mxu0 0.0
    %3366 = vmatprep.subr.mxu0 0.0
    %3367 = vmatpush1.msra.mxu0 0.0
    %3368 = vmatprep.subr.mxu0 0.0
    %3369 = vmatpush1.msra.mxu0 0.0
    %3370 = vmatprep.subr.mxu0 0.0
    %3371 = vmatpush1.msra.mxu0 0.0
    %3372 = vmatprep.subr.mxu0 0.0
    %3373 = vmatpush1.msra.mxu0 0.0
    %3374 = vmatprep.subr.mxu0 0.0
    %3375 = vmatpush1.msra.mxu0 0.0
    %3376 = vmatprep.subr.mxu0 0.0
    %3377 = vmatpush1.msra.mxu0 0.0
    %3378 = vmatprep.subr.mxu0 0.0
    %3379 = vmatpush1.msra.mxu0 0.0
    %3380 = vmatprep.subr.mxu0 0.0
    %3381 = vmatpush1.msra.mxu0 0.0
    %3382 = vmatprep.subr.mxu0 0.0
    %3383 = vmatpush1.msra.mxu0 %v3349
    %3384 = vmatprep.subr.mxu0 0.0
    %3385 = vmatpush1.msra.mxu0 %v3347
    %3386 = vmatprep.subr.mxu0 0.0
    %3387 = vmatpush1.msra.mxu0 %v3345
    %3388 = vmatprep.subr.mxu0 0.0
    %3389 = vmatpush1.msra.mxu0 %v3343
    %3390 = vmatprep.subr.mxu0 0.0
    %3391 = vmatpush2.msra.mxu0 0.0
    %3392 = vmatprep.subr.mxu0 0.0
    %3393 = vmatpush2.msra.mxu0 0.0
    %3394 = vmatprep.subr.mxu0 0.0
    %3395 = vmatpush2.msra.mxu0 0.0
    %3396 = vmatprep.subr.mxu0 0.0
    %3397 = vmatpush2.msra.mxu0 0.0
    %3398 = vmatprep.subr.mxu0 0.0
    %3399 = vmatpush2.msra.mxu0 0.0
    %3400 = vmatprep.subr.mxu0 0.0
    %3401 = vmatpush2.msra.mxu0 0.0
    %3402 = vmatprep.subr.mxu0 0.0
    %3403 = vmatpush2.msra.mxu0 0.0
    %3404 = vmatprep.subr.mxu0 0.0
    %3405 = vmatpush2.msra.mxu0 0.0
    %3406 = vmatprep.subr.mxu0 0.0
    %3407 = vmatpush2.msra.mxu0 0.0
    %3408 = vmatprep.subr.mxu0 0.0
    %3409 = vmatpush2.msra.mxu0 0.0
    %3410 = vmatprep.subr.mxu0 0.0
    %3411 = vmatpush2.msra.mxu0 0.0
    %3412 = vmatprep.subr.mxu0 0.0
    %3413 = vmatpush2.msra.mxu0 0.0
    %3414 = vmatprep.subr.mxu0 0.0
    %3415 = vmatpush2.msra.mxu0 0.0
    %3416 = vmatprep.subr.mxu0 0.0
    %3417 = vmatpush2.msra.mxu0 0.0
    %3418 = vmatprep.subr.mxu0 0.0
    %3419 = vmatpush2.msra.mxu0 0.0
    %3420 = vmatprep.subr.mxu0 0.0
    %3421 = vmatpush2.msra.mxu0 0.0
    %3422 = vmatprep.mubr.f32.mxu0 0.0
    %3423 = vmatmul.mubr.f32.gmra.mxu0 %v3242
    %v3424 = vpop.f32.mrf.mxu0
    %v3425 = vadd.f32 %v3356, %v3424
    %v3426 = vpop.f32.mrf.mxu0
    %3427 = vmatprep.mubr.f32.mxu0 0.0
    %3428 = vmatmul.mubr.f32.gmra.mxu0 %v3245
    %v3429 = vpop.f32.mrf.mxu0
    %v3430 = vadd.f32 %v3356, %v3429
    %v3431 = vpop.f32.mrf.mxu0
    %3432 = vmatprep.mubr.f32.mxu0 0.0
    %3433 = vmatmul.mubr.f32.gmra.mxu0 %v3248
    %v3434 = vpop.f32.mrf.mxu0
    %v3435 = vadd.f32 %v3356, %v3434
    %v3436 = vpop.f32.mrf.mxu0
    %3437 = vmatprep.mubr.f32.mxu0 0.0
    %3438 = vmatmul.mubr.f32.gmra.mxu0 %v3251
    %v3439 = vpop.f32.mrf.mxu0
    %v3440 = vadd.f32 %v3356, %v3439
    %v3441 = vpop.f32.mrf.mxu0
    %3442 = vdwg.mxu0
    %3443 = vrot.lane.b32.xlu0 %v3232, 64
    %v3444 = vpop.permute.xlu0 %3443
    %3445 = vrot.lane.b32.xlu0 %v3233, 64
    %v3446 = vpop.permute.xlu0 %3445
    %3447 = vrot.lane.b32.xlu0 %v3234, 64
    %v3448 = vpop.permute.xlu0 %3447
    %3449 = vrot.lane.b32.xlu0 %v3235, 64
    %v3450 = vpop.permute.xlu0 %3449
    %3455 = vrot.lane.b32.xlu0 %v3240, 64
    %v3456 = vpop.permute.xlu0 %3455
    %3458 = vmatprep.subr.mxu0 0.0
    %3459 = vmatpush1.msra.mxu0 0.0
    %3460 = vmatprep.subr.mxu0 0.0
    %3461 = vmatpush1.msra.mxu0 0.0
    %3462 = vmatprep.subr.mxu0 0.0
    %3463 = vmatpush1.msra.mxu0 0.0
    %3464 = vmatprep.subr.mxu0 0.0
    %3465 = vmatpush1.msra.mxu0 0.0
    %3466 = vmatprep.subr.mxu0 0.0
    %3467 = vmatpush1.msra.mxu0 0.0
    %3468 = vmatprep.subr.mxu0 0.0
    %3469 = vmatpush1.msra.mxu0 0.0
    %3470 = vmatprep.subr.mxu0 0.0
    %3471 = vmatpush1.msra.mxu0 0.0
    %3472 = vmatprep.subr.mxu0 0.0
    %3473 = vmatpush1.msra.mxu0 0.0
    %3474 = vmatprep.subr.mxu0 0.0
    %3475 = vmatpush1.msra.mxu0 0.0
    %3476 = vmatprep.subr.mxu0 0.0
    %3477 = vmatpush1.msra.mxu0 0.0
    %3478 = vmatprep.subr.mxu0 0.0
    %3479 = vmatpush1.msra.mxu0 0.0
    %3480 = vmatprep.subr.mxu0 0.0
    %3481 = vmatpush1.msra.mxu0 0.0
    %3482 = vmatprep.subr.mxu0 0.0
    %3483 = vmatpush1.msra.mxu0 %v3450
    %3484 = vmatprep.subr.mxu0 0.0
    %3485 = vmatpush1.msra.mxu0 %v3448
    %3486 = vmatprep.subr.mxu0 0.0
    %3487 = vmatpush1.msra.mxu0 %v3446
    %3488 = vmatprep.subr.mxu0 0.0
    %3489 = vmatpush1.msra.mxu0 %v3444
    %3490 = vmatprep.subr.mxu0 0.0
    %3491 = vmatpush2.msra.mxu0 0.0
    %3492 = vmatprep.subr.mxu0 0.0
    %3493 = vmatpush2.msra.mxu0 0.0
    %3494 = vmatprep.subr.mxu0 0.0
    %3495 = vmatpush2.msra.mxu0 0.0
    %3496 = vmatprep.subr.mxu0 0.0
    %3497 = vmatpush2.msra.mxu0 0.0
    %3498 = vmatprep.subr.mxu0 0.0
    %3499 = vmatpush2.msra.mxu0 0.0
    %3500 = vmatprep.subr.mxu0 0.0
    %3501 = vmatpush2.msra.mxu0 0.0
    %3502 = vmatprep.subr.mxu0 0.0
    %3503 = vmatpush2.msra.mxu0 0.0
    %3504 = vmatprep.subr.mxu0 0.0
    %3505 = vmatpush2.msra.mxu0 0.0
    %3506 = vmatprep.subr.mxu0 0.0
    %3507 = vmatpush2.msra.mxu0 0.0
    %3508 = vmatprep.subr.mxu0 0.0
    %3509 = vmatpush2.msra.mxu0 0.0
    %3510 = vmatprep.subr.mxu0 0.0
    %3511 = vmatpush2.msra.mxu0 0.0
    %3512 = vmatprep.subr.mxu0 0.0
    %3513 = vmatpush2.msra.mxu0 0.0
    %3514 = vmatprep.subr.mxu0 0.0
    %3515 = vmatpush2.msra.mxu0 0.0
    %3516 = vmatprep.subr.mxu0 0.0
    %3517 = vmatpush2.msra.mxu0 0.0
    %3518 = vmatprep.subr.mxu0 0.0
    %3519 = vmatpush2.msra.mxu0 0.0
    %3520 = vmatprep.subr.mxu0 0.0
    %3521 = vmatpush2.msra.mxu0 0.0
    %3522 = vmatprep.mubr.f32.mxu0 0.0
    %3523 = vmatmul.mubr.f32.gmra.mxu0 %v3242
    %v3524 = vpop.f32.mrf.mxu0
    %v3525 = vadd.f32 %v3456, %v3524
    %v3526 = vpop.f32.mrf.mxu0
    %3527 = vmatprep.mubr.f32.mxu0 0.0
    %3528 = vmatmul.mubr.f32.gmra.mxu0 %v3245
    %v3529 = vpop.f32.mrf.mxu0
    %v3530 = vadd.f32 %v3456, %v3529
    %v3531 = vpop.f32.mrf.mxu0
    %3532 = vmatprep.mubr.f32.mxu0 0.0
    %3533 = vmatmul.mubr.f32.gmra.mxu0 %v3248
    %v3534 = vpop.f32.mrf.mxu0
    %v3535 = vadd.f32 %v3456, %v3534
    %v3536 = vpop.f32.mrf.mxu0
    %3537 = vmatprep.mubr.f32.mxu0 0.0
    %3538 = vmatmul.mubr.f32.gmra.mxu0 %v3251
    %v3539 = vpop.f32.mrf.mxu0
    %v3540 = vadd.f32 %v3456, %v3539
    %v3541 = vpop.f32.mrf.mxu0
    %3542 = vdwg.mxu0
    %v3544 = vsel %vm483, %v3320, 0
    %v3547 = vsel %vm483, %v3325, 0
    %v3550 = vsel %vm483, %v3330, 0
    %v3553 = vsel %vm483, %v3335, 0
    %v3556 = vsel %vm483, %v3425, 0
    %v3559 = vsel %vm483, %v3430, 0
    %v3562 = vsel %vm483, %v3435, 0
    %v3565 = vsel %vm483, %v3440, 0
    %3567 = vmatprep.subr.mxu0 0.0
    %3568 = vmatpush1.xpose.msra.mxu0 0.0
    %3569 = vmatprep.subr.mxu0 0.0
    %3570 = vmatpush1.xpose.msra.mxu0 0.0
    %3571 = vmatprep.subr.mxu0 0.0
    %3572 = vmatpush1.xpose.msra.mxu0 0.0
    %3573 = vmatprep.subr.mxu0 0.0
    %3574 = vmatpush1.xpose.msra.mxu0 0.0
    %3575 = vmatprep.subr.mxu0 0.0
    %3576 = vmatpush1.xpose.msra.mxu0 0.0
    %3577 = vmatprep.subr.mxu0 0.0
    %3578 = vmatpush1.xpose.msra.mxu0 0.0
    %3579 = vmatprep.subr.mxu0 0.0
    %3580 = vmatpush1.xpose.msra.mxu0 0.0
    %3581 = vmatprep.subr.mxu0 0.0
    %3582 = vmatpush1.xpose.msra.mxu0 0.0
    %3583 = vmatprep.subr.mxu0 0.0
    %3584 = vmatpush1.xpose.msra.mxu0 0.0
    %3585 = vmatprep.subr.mxu0 0.0
    %3586 = vmatpush1.xpose.msra.mxu0 0.0
    %3587 = vmatprep.subr.mxu0 0.0
    %3588 = vmatpush1.xpose.msra.mxu0 0.0
    %3589 = vmatprep.subr.mxu0 0.0
    %3590 = vmatpush1.xpose.msra.mxu0 0.0
    %3591 = vmatprep.subr.mxu0 0.0
    %3592 = vmatpush1.xpose.msra.mxu0 %v3565
    %3593 = vmatprep.subr.mxu0 0.0
    %3594 = vmatpush1.xpose.msra.mxu0 %v3562
    %3595 = vmatprep.subr.mxu0 0.0
    %3596 = vmatpush1.xpose.msra.mxu0 %v3559
    %3597 = vmatprep.subr.mxu0 0.0
    %3598 = vmatpush1.xpose.msra.mxu0 %v3556
    %3599 = vmatprep.subr.mxu0 0.0
    %3600 = vmatpush2.xpose.msra.mxu0 0.0
    %3601 = vmatprep.subr.mxu0 0.0
    %3602 = vmatpush2.xpose.msra.mxu0 0.0
    %3603 = vmatprep.subr.mxu0 0.0
    %3604 = vmatpush2.xpose.msra.mxu0 0.0
    %3605 = vmatprep.subr.mxu0 0.0
    %3606 = vmatpush2.xpose.msra.mxu0 0.0
    %3607 = vmatprep.subr.mxu0 0.0
    %3608 = vmatpush2.xpose.msra.mxu0 0.0
    %3609 = vmatprep.subr.mxu0 0.0
    %3610 = vmatpush2.xpose.msra.mxu0 0.0
    %3611 = vmatprep.subr.mxu0 0.0
    %3612 = vmatpush2.xpose.msra.mxu0 0.0
    %3613 = vmatprep.subr.mxu0 0.0
    %3614 = vmatpush2.xpose.msra.mxu0 0.0
    %3615 = vmatprep.subr.mxu0 0.0
    %3616 = vmatpush2.xpose.msra.mxu0 0.0
    %3617 = vmatprep.subr.mxu0 0.0
    %3618 = vmatpush2.xpose.msra.mxu0 0.0
    %3619 = vmatprep.subr.mxu0 0.0
    %3620 = vmatpush2.xpose.msra.mxu0 0.0
    %3621 = vmatprep.subr.mxu0 0.0
    %3622 = vmatpush2.xpose.msra.mxu0 0.0
    %3623 = vmatprep.subr.mxu0 0.0
    %3624 = vmatpush2.xpose.msra.mxu0 0.0
    %3625 = vmatprep.subr.mxu0 0.0
    %3626 = vmatpush2.xpose.msra.mxu0 0.0
    %3627 = vmatprep.subr.mxu0 0.0
    %3628 = vmatpush2.xpose.msra.mxu0 0.0
    %3629 = vmatprep.subr.mxu0 0.0
    %3630 = vmatpush2.xpose.msra.mxu0 0.0
    %3631 = vmatprep.mubr.f32.mxu0 0.0
    %3632 = vmatmul.mubr.f32.gmra.mxu0 %v3544
    %v3633 = vpop.f32.mrf.mxu0
    %v3634 = vadd.f32 0.0, %v3633
    %v3635 = vpop.f32.mrf.mxu0
    %3636 = vmatprep.mubr.f32.mxu0 0.0
    %3637 = vmatmul.mubr.f32.gmra.mxu0 %v3547
    %v3638 = vpop.f32.mrf.mxu0
    %v3639 = vadd.f32 0.0, %v3638
    %v3640 = vpop.f32.mrf.mxu0
    %3641 = vmatprep.mubr.f32.mxu0 0.0
    %3642 = vmatmul.mubr.f32.gmra.mxu0 %v3550
    %v3643 = vpop.f32.mrf.mxu0
    %v3644 = vadd.f32 0.0, %v3643
    %v3645 = vpop.f32.mrf.mxu0
    %3646 = vmatprep.mubr.f32.mxu0 0.0
    %3647 = vmatmul.mubr.f32.gmra.mxu0 %v3553
    %v3648 = vpop.f32.mrf.mxu0
    %v3649 = vadd.f32 0.0, %v3648
    %v3650 = vpop.f32.mrf.mxu0
    %3651 = vdwg.mxu0
    %v3652 = vmul.f32 %v3634, 0.35355338
    %v3653 = vmul.f32 %v3639, 0.35355338
    %v3654 = vmul.f32 %v3644, 0.35355338
    %v3655 = vmul.f32 %v3649, 0.35355338
    %v3656 = vadd.f32 %v3652, %v88
    %v3657 = vadd.f32 %v3653, %v89
    %v3658 = vadd.f32 %v3654, %v90
    %v3659 = vadd.f32 %v3655, %v91
    %3660 = vrot.lane.b32.xlu0 %v3232, 120
    %v3661 = vpop.permute.xlu0 %3660
    %3662 = vrot.lane.b32.xlu0 %v3233, 120
    %v3663 = vpop.permute.xlu0 %3662
    %3664 = vrot.lane.b32.xlu0 %v3234, 120
    %v3665 = vpop.permute.xlu0 %3664
    %3666 = vrot.lane.b32.xlu0 %v3235, 120
    %v3667 = vpop.permute.xlu0 %3666
    %3672 = vrot.lane.b32.xlu0 %v3240, 120
    %v3673 = vpop.permute.xlu0 %3672
    %3675 = vmatprep.subr.mxu0 0.0
    %3676 = vmatpush1.msra.mxu0 0.0
    %3677 = vmatprep.subr.mxu0 0.0
    %3678 = vmatpush1.msra.mxu0 0.0
    %3679 = vmatprep.subr.mxu0 0.0
    %3680 = vmatpush1.msra.mxu0 0.0
    %3681 = vmatprep.subr.mxu0 0.0
    %3682 = vmatpush1.msra.mxu0 0.0
    %3683 = vmatprep.subr.mxu0 0.0
    %3684 = vmatpush1.msra.mxu0 0.0
    %3685 = vmatprep.subr.mxu0 0.0
    %3686 = vmatpush1.msra.mxu0 0.0
    %3687 = vmatprep.subr.mxu0 0.0
    %3688 = vmatpush1.msra.mxu0 0.0
    %3689 = vmatprep.subr.mxu0 0.0
    %3690 = vmatpush1.msra.mxu0 0.0
    %3691 = vmatprep.subr.mxu0 0.0
    %3692 = vmatpush1.msra.mxu0 0.0
    %3693 = vmatprep.subr.mxu0 0.0
    %3694 = vmatpush1.msra.mxu0 0.0
    %3695 = vmatprep.subr.mxu0 0.0
    %3696 = vmatpush1.msra.mxu0 0.0
    %3697 = vmatprep.subr.mxu0 0.0
    %3698 = vmatpush1.msra.mxu0 0.0
    %3699 = vmatprep.subr.mxu0 0.0
    %3700 = vmatpush1.msra.mxu0 %v3667
    %3701 = vmatprep.subr.mxu0 0.0
    %3702 = vmatpush1.msra.mxu0 %v3665
    %3703 = vmatprep.subr.mxu0 0.0
    %3704 = vmatpush1.msra.mxu0 %v3663
    %3705 = vmatprep.subr.mxu0 0.0
    %3706 = vmatpush1.msra.mxu0 %v3661
    %3707 = vmatprep.subr.mxu0 0.0
    %3708 = vmatpush2.msra.mxu0 0.0
    %3709 = vmatprep.subr.mxu0 0.0
    %3710 = vmatpush2.msra.mxu0 0.0
    %3711 = vmatprep.subr.mxu0 0.0
    %3712 = vmatpush2.msra.mxu0 0.0
    %3713 = vmatprep.subr.mxu0 0.0
    %3714 = vmatpush2.msra.mxu0 0.0
    %3715 = vmatprep.subr.mxu0 0.0
    %3716 = vmatpush2.msra.mxu0 0.0
    %3717 = vmatprep.subr.mxu0 0.0
    %3718 = vmatpush2.msra.mxu0 0.0
    %3719 = vmatprep.subr.mxu0 0.0
    %3720 = vmatpush2.msra.mxu0 0.0
    %3721 = vmatprep.subr.mxu0 0.0
    %3722 = vmatpush2.msra.mxu0 0.0
    %3723 = vmatprep.subr.mxu0 0.0
    %3724 = vmatpush2.msra.mxu0 0.0
    %3725 = vmatprep.subr.mxu0 0.0
    %3726 = vmatpush2.msra.mxu0 0.0
    %3727 = vmatprep.subr.mxu0 0.0
    %3728 = vmatpush2.msra.mxu0 0.0
    %3729 = vmatprep.subr.mxu0 0.0
    %3730 = vmatpush2.msra.mxu0 0.0
    %3731 = vmatprep.subr.mxu0 0.0
    %3732 = vmatpush2.msra.mxu0 0.0
    %3733 = vmatprep.subr.mxu0 0.0
    %3734 = vmatpush2.msra.mxu0 0.0
    %3735 = vmatprep.subr.mxu0 0.0
    %3736 = vmatpush2.msra.mxu0 0.0
    %3737 = vmatprep.subr.mxu0 0.0
    %3738 = vmatpush2.msra.mxu0 0.0
    %3739 = vmatprep.mubr.f32.mxu0 0.0
    %3740 = vmatmul.mubr.f32.gmra.mxu0 %v3242
    %v3741 = vpop.f32.mrf.mxu0
    %v3742 = vadd.f32 %v3673, %v3741
    %v3743 = vpop.f32.mrf.mxu0
    %3744 = vmatprep.mubr.f32.mxu0 0.0
    %3745 = vmatmul.mubr.f32.gmra.mxu0 %v3245
    %v3746 = vpop.f32.mrf.mxu0
    %v3747 = vadd.f32 %v3673, %v3746
    %v3748 = vpop.f32.mrf.mxu0
    %3749 = vmatprep.mubr.f32.mxu0 0.0
    %3750 = vmatmul.mubr.f32.gmra.mxu0 %v3248
    %v3751 = vpop.f32.mrf.mxu0
    %v3752 = vadd.f32 %v3673, %v3751
    %v3753 = vpop.f32.mrf.mxu0
    %3754 = vmatprep.mubr.f32.mxu0 0.0
    %3755 = vmatmul.mubr.f32.gmra.mxu0 %v3251
    %v3756 = vpop.f32.mrf.mxu0
    %v3757 = vadd.f32 %v3673, %v3756
    %v3758 = vpop.f32.mrf.mxu0
    %3759 = vdwg.mxu0
    %3760 = vrot.lane.b32.xlu0 %v3232, 88
    %v3761 = vpop.permute.xlu0 %3760
    %3762 = vrot.lane.b32.xlu0 %v3233, 88
    %v3763 = vpop.permute.xlu0 %3762
    %3764 = vrot.lane.b32.xlu0 %v3234, 88
    %v3765 = vpop.permute.xlu0 %3764
    %3766 = vrot.lane.b32.xlu0 %v3235, 88
    %v3767 = vpop.permute.xlu0 %3766
    %3772 = vrot.lane.b32.xlu0 %v3240, 88
    %v3773 = vpop.permute.xlu0 %3772
    %3775 = vmatprep.subr.mxu0 0.0
    %3776 = vmatpush1.msra.mxu0 0.0
    %3777 = vmatprep.subr.mxu0 0.0
    %3778 = vmatpush1.msra.mxu0 0.0
    %3779 = vmatprep.subr.mxu0 0.0
    %3780 = vmatpush1.msra.mxu0 0.0
    %3781 = vmatprep.subr.mxu0 0.0
    %3782 = vmatpush1.msra.mxu0 0.0
    %3783 = vmatprep.subr.mxu0 0.0
    %3784 = vmatpush1.msra.mxu0 0.0
    %3785 = vmatprep.subr.mxu0 0.0
    %3786 = vmatpush1.msra.mxu0 0.0
    %3787 = vmatprep.subr.mxu0 0.0
    %3788 = vmatpush1.msra.mxu0 0.0
    %3789 = vmatprep.subr.mxu0 0.0
    %3790 = vmatpush1.msra.mxu0 0.0
    %3791 = vmatprep.subr.mxu0 0.0
    %3792 = vmatpush1.msra.mxu0 0.0
    %3793 = vmatprep.subr.mxu0 0.0
    %3794 = vmatpush1.msra.mxu0 0.0
    %3795 = vmatprep.subr.mxu0 0.0
    %3796 = vmatpush1.msra.mxu0 0.0
    %3797 = vmatprep.subr.mxu0 0.0
    %3798 = vmatpush1.msra.mxu0 0.0
    %3799 = vmatprep.subr.mxu0 0.0
    %3800 = vmatpush1.msra.mxu0 %v3767
    %3801 = vmatprep.subr.mxu0 0.0
    %3802 = vmatpush1.msra.mxu0 %v3765
    %3803 = vmatprep.subr.mxu0 0.0
    %3804 = vmatpush1.msra.mxu0 %v3763
    %3805 = vmatprep.subr.mxu0 0.0
    %3806 = vmatpush1.msra.mxu0 %v3761
    %3807 = vmatprep.subr.mxu0 0.0
    %3808 = vmatpush2.msra.mxu0 0.0
    %3809 = vmatprep.subr.mxu0 0.0
    %3810 = vmatpush2.msra.mxu0 0.0
    %3811 = vmatprep.subr.mxu0 0.0
    %3812 = vmatpush2.msra.mxu0 0.0
    %3813 = vmatprep.subr.mxu0 0.0
    %3814 = vmatpush2.msra.mxu0 0.0
    %3815 = vmatprep.subr.mxu0 0.0
    %3816 = vmatpush2.msra.mxu0 0.0
    %3817 = vmatprep.subr.mxu0 0.0
    %3818 = vmatpush2.msra.mxu0 0.0
    %3819 = vmatprep.subr.mxu0 0.0
    %3820 = vmatpush2.msra.mxu0 0.0
    %3821 = vmatprep.subr.mxu0 0.0
    %3822 = vmatpush2.msra.mxu0 0.0
    %3823 = vmatprep.subr.mxu0 0.0
    %3824 = vmatpush2.msra.mxu0 0.0
    %3825 = vmatprep.subr.mxu0 0.0
    %3826 = vmatpush2.msra.mxu0 0.0
    %3827 = vmatprep.subr.mxu0 0.0
    %3828 = vmatpush2.msra.mxu0 0.0
    %3829 = vmatprep.subr.mxu0 0.0
    %3830 = vmatpush2.msra.mxu0 0.0
    %3831 = vmatprep.subr.mxu0 0.0
    %3832 = vmatpush2.msra.mxu0 0.0
    %3833 = vmatprep.subr.mxu0 0.0
    %3834 = vmatpush2.msra.mxu0 0.0
    %3835 = vmatprep.subr.mxu0 0.0
    %3836 = vmatpush2.msra.mxu0 0.0
    %3837 = vmatprep.subr.mxu0 0.0
    %3838 = vmatpush2.msra.mxu0 0.0
    %3839 = vmatprep.mubr.f32.mxu0 0.0
    %3840 = vmatmul.mubr.f32.gmra.mxu0 %v3242
    %v3841 = vpop.f32.mrf.mxu0
    %v3842 = vadd.f32 %v3773, %v3841
    %v3843 = vpop.f32.mrf.mxu0
    %3844 = vmatprep.mubr.f32.mxu0 0.0
    %3845 = vmatmul.mubr.f32.gmra.mxu0 %v3245
    %v3846 = vpop.f32.mrf.mxu0
    %v3847 = vadd.f32 %v3773, %v3846
    %v3848 = vpop.f32.mrf.mxu0
    %3849 = vmatprep.mubr.f32.mxu0 0.0
    %3850 = vmatmul.mubr.f32.gmra.mxu0 %v3248
    %v3851 = vpop.f32.mrf.mxu0
    %v3852 = vadd.f32 %v3773, %v3851
    %v3853 = vpop.f32.mrf.mxu0
    %3854 = vmatprep.mubr.f32.mxu0 0.0
    %3855 = vmatmul.mubr.f32.gmra.mxu0 %v3251
    %v3856 = vpop.f32.mrf.mxu0
    %v3857 = vadd.f32 %v3773, %v3856
    %v3858 = vpop.f32.mrf.mxu0
    %3859 = vdwg.mxu0
    %3860 = vrot.lane.b32.xlu0 %v3232, 56
    %v3861 = vpop.permute.xlu0 %3860
    %3862 = vrot.lane.b32.xlu0 %v3233, 56
    %v3863 = vpop.permute.xlu0 %3862
    %3864 = vrot.lane.b32.xlu0 %v3234, 56
    %v3865 = vpop.permute.xlu0 %3864
    %3866 = vrot.lane.b32.xlu0 %v3235, 56
    %v3867 = vpop.permute.xlu0 %3866
    %3872 = vrot.lane.b32.xlu0 %v3240, 56
    %v3873 = vpop.permute.xlu0 %3872
    %3875 = vmatprep.subr.mxu0 0.0
    %3876 = vmatpush1.msra.mxu0 0.0
    %3877 = vmatprep.subr.mxu0 0.0
    %3878 = vmatpush1.msra.mxu0 0.0
    %3879 = vmatprep.subr.mxu0 0.0
    %3880 = vmatpush1.msra.mxu0 0.0
    %3881 = vmatprep.subr.mxu0 0.0
    %3882 = vmatpush1.msra.mxu0 0.0
    %3883 = vmatprep.subr.mxu0 0.0
    %3884 = vmatpush1.msra.mxu0 0.0
    %3885 = vmatprep.subr.mxu0 0.0
    %3886 = vmatpush1.msra.mxu0 0.0
    %3887 = vmatprep.subr.mxu0 0.0
    %3888 = vmatpush1.msra.mxu0 0.0
    %3889 = vmatprep.subr.mxu0 0.0
    %3890 = vmatpush1.msra.mxu0 0.0
    %3891 = vmatprep.subr.mxu0 0.0
    %3892 = vmatpush1.msra.mxu0 0.0
    %3893 = vmatprep.subr.mxu0 0.0
    %3894 = vmatpush1.msra.mxu0 0.0
    %3895 = vmatprep.subr.mxu0 0.0
    %3896 = vmatpush1.msra.mxu0 0.0
    %3897 = vmatprep.subr.mxu0 0.0
    %3898 = vmatpush1.msra.mxu0 0.0
    %3899 = vmatprep.subr.mxu0 0.0
    %3900 = vmatpush1.msra.mxu0 %v3867
    %3901 = vmatprep.subr.mxu0 0.0
    %3902 = vmatpush1.msra.mxu0 %v3865
    %3903 = vmatprep.subr.mxu0 0.0
    %3904 = vmatpush1.msra.mxu0 %v3863
    %3905 = vmatprep.subr.mxu0 0.0
    %3906 = vmatpush1.msra.mxu0 %v3861
    %3907 = vmatprep.subr.mxu0 0.0
    %3908 = vmatpush2.msra.mxu0 0.0
    %3909 = vmatprep.subr.mxu0 0.0
    %3910 = vmatpush2.msra.mxu0 0.0
    %3911 = vmatprep.subr.mxu0 0.0
    %3912 = vmatpush2.msra.mxu0 0.0
    %3913 = vmatprep.subr.mxu0 0.0
    %3914 = vmatpush2.msra.mxu0 0.0
    %3915 = vmatprep.subr.mxu0 0.0
    %3916 = vmatpush2.msra.mxu0 0.0
    %3917 = vmatprep.subr.mxu0 0.0
    %3918 = vmatpush2.msra.mxu0 0.0
    %3919 = vmatprep.subr.mxu0 0.0
    %3920 = vmatpush2.msra.mxu0 0.0
    %3921 = vmatprep.subr.mxu0 0.0
    %3922 = vmatpush2.msra.mxu0 0.0
    %3923 = vmatprep.subr.mxu0 0.0
    %3924 = vmatpush2.msra.mxu0 0.0
    %3925 = vmatprep.subr.mxu0 0.0
    %3926 = vmatpush2.msra.mxu0 0.0
    %3927 = vmatprep.subr.mxu0 0.0
    %3928 = vmatpush2.msra.mxu0 0.0
    %3929 = vmatprep.subr.mxu0 0.0
    %3930 = vmatpush2.msra.mxu0 0.0
    %3931 = vmatprep.subr.mxu0 0.0
    %3932 = vmatpush2.msra.mxu0 0.0
    %3933 = vmatprep.subr.mxu0 0.0
    %3934 = vmatpush2.msra.mxu0 0.0
    %3935 = vmatprep.subr.mxu0 0.0
    %3936 = vmatpush2.msra.mxu0 0.0
    %3937 = vmatprep.subr.mxu0 0.0
    %3938 = vmatpush2.msra.mxu0 0.0
    %3939 = vmatprep.mubr.f32.mxu0 0.0
    %3940 = vmatmul.mubr.f32.gmra.mxu0 %v3242
    %v3941 = vpop.f32.mrf.mxu0
    %v3942 = vadd.f32 %v3873, %v3941
    %v3943 = vpop.f32.mrf.mxu0
    %3944 = vmatprep.mubr.f32.mxu0 0.0
    %3945 = vmatmul.mubr.f32.gmra.mxu0 %v3245
    %v3946 = vpop.f32.mrf.mxu0
    %v3947 = vadd.f32 %v3873, %v3946
    %v3948 = vpop.f32.mrf.mxu0
    %3949 = vmatprep.mubr.f32.mxu0 0.0
    %3950 = vmatmul.mubr.f32.gmra.mxu0 %v3248
    %v3951 = vpop.f32.mrf.mxu0
    %v3952 = vadd.f32 %v3873, %v3951
    %v3953 = vpop.f32.mrf.mxu0
    %3954 = vmatprep.mubr.f32.mxu0 0.0
    %3955 = vmatmul.mubr.f32.gmra.mxu0 %v3251
    %v3956 = vpop.f32.mrf.mxu0
    %v3957 = vadd.f32 %v3873, %v3956
    %v3958 = vpop.f32.mrf.mxu0
    %3959 = vdwg.mxu0
    %v3961 = vsel %vm483, %v3742, 0
    %v3964 = vsel %vm483, %v3747, 0
    %v3967 = vsel %vm483, %v3752, 0
    %v3970 = vsel %vm483, %v3757, 0
    %v3973 = vsel %vm483, %v3842, 0
    %v3976 = vsel %vm483, %v3847, 0
    %v3979 = vsel %vm483, %v3852, 0
    %v3982 = vsel %vm483, %v3857, 0
    %3984 = vmatprep.subr.mxu0 0.0
    %3985 = vmatpush1.xpose.msra.mxu0 0.0
    %3986 = vmatprep.subr.mxu0 0.0
    %3987 = vmatpush1.xpose.msra.mxu0 0.0
    %3988 = vmatprep.subr.mxu0 0.0
    %3989 = vmatpush1.xpose.msra.mxu0 0.0
    %3990 = vmatprep.subr.mxu0 0.0
    %3991 = vmatpush1.xpose.msra.mxu0 0.0
    %3992 = vmatprep.subr.mxu0 0.0
    %3993 = vmatpush1.xpose.msra.mxu0 0.0
    %3994 = vmatprep.subr.mxu0 0.0
    %3995 = vmatpush1.xpose.msra.mxu0 0.0
    %3996 = vmatprep.subr.mxu0 0.0
    %3997 = vmatpush1.xpose.msra.mxu0 0.0
    %3998 = vmatprep.subr.mxu0 0.0
    %3999 = vmatpush1.xpose.msra.mxu0 0.0
    %4000 = vmatprep.subr.mxu0 0.0
    %4001 = vmatpush1.xpose.msra.mxu0 0.0
    %4002 = vmatprep.subr.mxu0 0.0
    %4003 = vmatpush1.xpose.msra.mxu0 0.0
    %4004 = vmatprep.subr.mxu0 0.0
    %4005 = vmatpush1.xpose.msra.mxu0 0.0
    %4006 = vmatprep.subr.mxu0 0.0
    %4007 = vmatpush1.xpose.msra.mxu0 0.0
    %4008 = vmatprep.subr.mxu0 0.0
    %4009 = vmatpush1.xpose.msra.mxu0 %v3982
    %4010 = vmatprep.subr.mxu0 0.0
    %4011 = vmatpush1.xpose.msra.mxu0 %v3979
    %4012 = vmatprep.subr.mxu0 0.0
    %4013 = vmatpush1.xpose.msra.mxu0 %v3976
    %4014 = vmatprep.subr.mxu0 0.0
    %4015 = vmatpush1.xpose.msra.mxu0 %v3973
    %4016 = vmatprep.subr.mxu0 0.0
    %4017 = vmatpush2.xpose.msra.mxu0 0.0
    %4018 = vmatprep.subr.mxu0 0.0
    %4019 = vmatpush2.xpose.msra.mxu0 0.0
    %4020 = vmatprep.subr.mxu0 0.0
    %4021 = vmatpush2.xpose.msra.mxu0 0.0
    %4022 = vmatprep.subr.mxu0 0.0
    %4023 = vmatpush2.xpose.msra.mxu0 0.0
    %4024 = vmatprep.subr.mxu0 0.0
    %4025 = vmatpush2.xpose.msra.mxu0 0.0
    %4026 = vmatprep.subr.mxu0 0.0
    %4027 = vmatpush2.xpose.msra.mxu0 0.0
    %4028 = vmatprep.subr.mxu0 0.0
    %4029 = vmatpush2.xpose.msra.mxu0 0.0
    %4030 = vmatprep.subr.mxu0 0.0
    %4031 = vmatpush2.xpose.msra.mxu0 0.0
    %4032 = vmatprep.subr.mxu0 0.0
    %4033 = vmatpush2.xpose.msra.mxu0 0.0
    %4034 = vmatprep.subr.mxu0 0.0
    %4035 = vmatpush2.xpose.msra.mxu0 0.0
    %4036 = vmatprep.subr.mxu0 0.0
    %4037 = vmatpush2.xpose.msra.mxu0 0.0
    %4038 = vmatprep.subr.mxu0 0.0
    %4039 = vmatpush2.xpose.msra.mxu0 0.0
    %4040 = vmatprep.subr.mxu0 0.0
    %4041 = vmatpush2.xpose.msra.mxu0 0.0
    %4042 = vmatprep.subr.mxu0 0.0
    %4043 = vmatpush2.xpose.msra.mxu0 0.0
    %4044 = vmatprep.subr.mxu0 0.0
    %4045 = vmatpush2.xpose.msra.mxu0 0.0
    %4046 = vmatprep.subr.mxu0 0.0
    %4047 = vmatpush2.xpose.msra.mxu0 0.0
    %4048 = vmatprep.mubr.f32.mxu0 0.0
    %4049 = vmatmul.mubr.f32.gmra.mxu0 %v3961
    %v4050 = vpop.f32.mrf.mxu0
    %v4051 = vadd.f32 0.0, %v4050
    %v4052 = vpop.f32.mrf.mxu0
    %4053 = vmatprep.mubr.f32.mxu0 0.0
    %4054 = vmatmul.mubr.f32.gmra.mxu0 %v3964
    %v4055 = vpop.f32.mrf.mxu0
    %v4056 = vadd.f32 0.0, %v4055
    %v4057 = vpop.f32.mrf.mxu0
    %4058 = vmatprep.mubr.f32.mxu0 0.0
    %4059 = vmatmul.mubr.f32.gmra.mxu0 %v3967
    %v4060 = vpop.f32.mrf.mxu0
    %v4061 = vadd.f32 0.0, %v4060
    %v4062 = vpop.f32.mrf.mxu0
    %4063 = vmatprep.mubr.f32.mxu0 0.0
    %4064 = vmatmul.mubr.f32.gmra.mxu0 %v3970
    %v4065 = vpop.f32.mrf.mxu0
    %v4066 = vadd.f32 0.0, %v4065
    %v4067 = vpop.f32.mrf.mxu0
    %4068 = vdwg.mxu0
    %v4069 = vmul.f32 %v4051, 0.35355338
    %v4070 = vmul.f32 %v4056, 0.35355338
    %v4071 = vmul.f32 %v4061, 0.35355338
    %v4072 = vmul.f32 %v4066, 0.35355338
    %v4073 = vadd.f32 %v4069, %v88
    %v4074 = vadd.f32 %v4070, %v89
    %v4075 = vadd.f32 %v4071, %v90
    %v4076 = vadd.f32 %v4072, %v91
    %4077 = vrot.lane.b32.xlu0 %v3232, 112
    %v4078 = vpop.permute.xlu0 %4077
    %4079 = vrot.lane.b32.xlu0 %v3233, 112
    %v4080 = vpop.permute.xlu0 %4079
    %4081 = vrot.lane.b32.xlu0 %v3234, 112
    %v4082 = vpop.permute.xlu0 %4081
    %4083 = vrot.lane.b32.xlu0 %v3235, 112
    %v4084 = vpop.permute.xlu0 %4083
    %4089 = vrot.lane.b32.xlu0 %v3240, 112
    %v4090 = vpop.permute.xlu0 %4089
    %4092 = vmatprep.subr.mxu0 0.0
    %4093 = vmatpush1.msra.mxu0 0.0
    %4094 = vmatprep.subr.mxu0 0.0
    %4095 = vmatpush1.msra.mxu0 0.0
    %4096 = vmatprep.subr.mxu0 0.0
    %4097 = vmatpush1.msra.mxu0 0.0
    %4098 = vmatprep.subr.mxu0 0.0
    %4099 = vmatpush1.msra.mxu0 0.0
    %4100 = vmatprep.subr.mxu0 0.0
    %4101 = vmatpush1.msra.mxu0 0.0
    %4102 = vmatprep.subr.mxu0 0.0
    %4103 = vmatpush1.msra.mxu0 0.0
    %4104 = vmatprep.subr.mxu0 0.0
    %4105 = vmatpush1.msra.mxu0 0.0
    %4106 = vmatprep.subr.mxu0 0.0
    %4107 = vmatpush1.msra.mxu0 0.0
    %4108 = vmatprep.subr.mxu0 0.0
    %4109 = vmatpush1.msra.mxu0 0.0
    %4110 = vmatprep.subr.mxu0 0.0
    %4111 = vmatpush1.msra.mxu0 0.0
    %4112 = vmatprep.subr.mxu0 0.0
    %4113 = vmatpush1.msra.mxu0 0.0
    %4114 = vmatprep.subr.mxu0 0.0
    %4115 = vmatpush1.msra.mxu0 0.0
    %4116 = vmatprep.subr.mxu0 0.0
    %4117 = vmatpush1.msra.mxu0 %v4084
    %4118 = vmatprep.subr.mxu0 0.0
    %4119 = vmatpush1.msra.mxu0 %v4082
    %4120 = vmatprep.subr.mxu0 0.0
    %4121 = vmatpush1.msra.mxu0 %v4080
    %4122 = vmatprep.subr.mxu0 0.0
    %4123 = vmatpush1.msra.mxu0 %v4078
    %4124 = vmatprep.subr.mxu0 0.0
    %4125 = vmatpush2.msra.mxu0 0.0
    %4126 = vmatprep.subr.mxu0 0.0
    %4127 = vmatpush2.msra.mxu0 0.0
    %4128 = vmatprep.subr.mxu0 0.0
    %4129 = vmatpush2.msra.mxu0 0.0
    %4130 = vmatprep.subr.mxu0 0.0
    %4131 = vmatpush2.msra.mxu0 0.0
    %4132 = vmatprep.subr.mxu0 0.0
    %4133 = vmatpush2.msra.mxu0 0.0
    %4134 = vmatprep.subr.mxu0 0.0
    %4135 = vmatpush2.msra.mxu0 0.0
    %4136 = vmatprep.subr.mxu0 0.0
    %4137 = vmatpush2.msra.mxu0 0.0
    %4138 = vmatprep.subr.mxu0 0.0
    %4139 = vmatpush2.msra.mxu0 0.0
    %4140 = vmatprep.subr.mxu0 0.0
    %4141 = vmatpush2.msra.mxu0 0.0
    %4142 = vmatprep.subr.mxu0 0.0
    %4143 = vmatpush2.msra.mxu0 0.0
    %4144 = vmatprep.subr.mxu0 0.0
    %4145 = vmatpush2.msra.mxu0 0.0
    %4146 = vmatprep.subr.mxu0 0.0
    %4147 = vmatpush2.msra.mxu0 0.0
    %4148 = vmatprep.subr.mxu0 0.0
    %4149 = vmatpush2.msra.mxu0 0.0
    %4150 = vmatprep.subr.mxu0 0.0
    %4151 = vmatpush2.msra.mxu0 0.0
    %4152 = vmatprep.subr.mxu0 0.0
    %4153 = vmatpush2.msra.mxu0 0.0
    %4154 = vmatprep.subr.mxu0 0.0
    %4155 = vmatpush2.msra.mxu0 0.0
    %4156 = vmatprep.mubr.f32.mxu0 0.0
    %4157 = vmatmul.mubr.f32.gmra.mxu0 %v3242
    %v4158 = vpop.f32.mrf.mxu0
    %v4159 = vadd.f32 %v4090, %v4158
    %v4160 = vpop.f32.mrf.mxu0
    %4161 = vmatprep.mubr.f32.mxu0 0.0
    %4162 = vmatmul.mubr.f32.gmra.mxu0 %v3245
    %v4163 = vpop.f32.mrf.mxu0
    %v4164 = vadd.f32 %v4090, %v4163
    %v4165 = vpop.f32.mrf.mxu0
    %4166 = vmatprep.mubr.f32.mxu0 0.0
    %4167 = vmatmul.mubr.f32.gmra.mxu0 %v3248
    %v4168 = vpop.f32.mrf.mxu0
    %v4169 = vadd.f32 %v4090, %v4168
    %v4170 = vpop.f32.mrf.mxu0
    %4171 = vmatprep.mubr.f32.mxu0 0.0
    %4172 = vmatmul.mubr.f32.gmra.mxu0 %v3251
    %v4173 = vpop.f32.mrf.mxu0
    %v4174 = vadd.f32 %v4090, %v4173
    %v4175 = vpop.f32.mrf.mxu0
    %4176 = vdwg.mxu0
    %4177 = vrot.lane.b32.xlu0 %v3232, 80
    %v4178 = vpop.permute.xlu0 %4177
    %4179 = vrot.lane.b32.xlu0 %v3233, 80
    %v4180 = vpop.permute.xlu0 %4179
    %4181 = vrot.lane.b32.xlu0 %v3234, 80
    %v4182 = vpop.permute.xlu0 %4181
    %4183 = vrot.lane.b32.xlu0 %v3235, 80
    %v4184 = vpop.permute.xlu0 %4183
    %4189 = vrot.lane.b32.xlu0 %v3240, 80
    %v4190 = vpop.permute.xlu0 %4189
    %4192 = vmatprep.subr.mxu0 0.0
    %4193 = vmatpush1.msra.mxu0 0.0
    %4194 = vmatprep.subr.mxu0 0.0
    %4195 = vmatpush1.msra.mxu0 0.0
    %4196 = vmatprep.subr.mxu0 0.0
    %4197 = vmatpush1.msra.mxu0 0.0
    %4198 = vmatprep.subr.mxu0 0.0
    %4199 = vmatpush1.msra.mxu0 0.0
    %4200 = vmatprep.subr.mxu0 0.0
    %4201 = vmatpush1.msra.mxu0 0.0
    %4202 = vmatprep.subr.mxu0 0.0
    %4203 = vmatpush1.msra.mxu0 0.0
    %4204 = vmatprep.subr.mxu0 0.0
    %4205 = vmatpush1.msra.mxu0 0.0
    %4206 = vmatprep.subr.mxu0 0.0
    %4207 = vmatpush1.msra.mxu0 0.0
    %4208 = vmatprep.subr.mxu0 0.0
    %4209 = vmatpush1.msra.mxu0 0.0
    %4210 = vmatprep.subr.mxu0 0.0
    %4211 = vmatpush1.msra.mxu0 0.0
    %4212 = vmatprep.subr.mxu0 0.0
    %4213 = vmatpush1.msra.mxu0 0.0
    %4214 = vmatprep.subr.mxu0 0.0
    %4215 = vmatpush1.msra.mxu0 0.0
    %4216 = vmatprep.subr.mxu0 0.0
    %4217 = vmatpush1.msra.mxu0 %v4184
    %4218 = vmatprep.subr.mxu0 0.0
    %4219 = vmatpush1.msra.mxu0 %v4182
    %4220 = vmatprep.subr.mxu0 0.0
    %4221 = vmatpush1.msra.mxu0 %v4180
    %4222 = vmatprep.subr.mxu0 0.0
    %4223 = vmatpush1.msra.mxu0 %v4178
    %4224 = vmatprep.subr.mxu0 0.0
    %4225 = vmatpush2.msra.mxu0 0.0
    %4226 = vmatprep.subr.mxu0 0.0
    %4227 = vmatpush2.msra.mxu0 0.0
    %4228 = vmatprep.subr.mxu0 0.0
    %4229 = vmatpush2.msra.mxu0 0.0
    %4230 = vmatprep.subr.mxu0 0.0
    %4231 = vmatpush2.msra.mxu0 0.0
    %4232 = vmatprep.subr.mxu0 0.0
    %4233 = vmatpush2.msra.mxu0 0.0
    %4234 = vmatprep.subr.mxu0 0.0
    %4235 = vmatpush2.msra.mxu0 0.0
    %4236 = vmatprep.subr.mxu0 0.0
    %4237 = vmatpush2.msra.mxu0 0.0
    %4238 = vmatprep.subr.mxu0 0.0
    %4239 = vmatpush2.msra.mxu0 0.0
    %4240 = vmatprep.subr.mxu0 0.0
    %4241 = vmatpush2.msra.mxu0 0.0
    %4242 = vmatprep.subr.mxu0 0.0
    %4243 = vmatpush2.msra.mxu0 0.0
    %4244 = vmatprep.subr.mxu0 0.0
    %4245 = vmatpush2.msra.mxu0 0.0
    %4246 = vmatprep.subr.mxu0 0.0
    %4247 = vmatpush2.msra.mxu0 0.0
    %4248 = vmatprep.subr.mxu0 0.0
    %4249 = vmatpush2.msra.mxu0 0.0
    %4250 = vmatprep.subr.mxu0 0.0
    %4251 = vmatpush2.msra.mxu0 0.0
    %4252 = vmatprep.subr.mxu0 0.0
    %4253 = vmatpush2.msra.mxu0 0.0
    %4254 = vmatprep.subr.mxu0 0.0
    %4255 = vmatpush2.msra.mxu0 0.0
    %4256 = vmatprep.mubr.f32.mxu0 0.0
    %4257 = vmatmul.mubr.f32.gmra.mxu0 %v3242
    %v4258 = vpop.f32.mrf.mxu0
    %v4259 = vadd.f32 %v4190, %v4258
    %v4260 = vpop.f32.mrf.mxu0
    %4261 = vmatprep.mubr.f32.mxu0 0.0
    %4262 = vmatmul.mubr.f32.gmra.mxu0 %v3245
    %v4263 = vpop.f32.mrf.mxu0
    %v4264 = vadd.f32 %v4190, %v4263
    %v4265 = vpop.f32.mrf.mxu0
    %4266 = vmatprep.mubr.f32.mxu0 0.0
    %4267 = vmatmul.mubr.f32.gmra.mxu0 %v3248
    %v4268 = vpop.f32.mrf.mxu0
    %v4269 = vadd.f32 %v4190, %v4268
    %v4270 = vpop.f32.mrf.mxu0
    %4271 = vmatprep.mubr.f32.mxu0 0.0
    %4272 = vmatmul.mubr.f32.gmra.mxu0 %v3251
    %v4273 = vpop.f32.mrf.mxu0
    %v4274 = vadd.f32 %v4190, %v4273
    %v4275 = vpop.f32.mrf.mxu0
    %4276 = vdwg.mxu0
    %4277 = vrot.lane.b32.xlu0 %v3232, 48
    %v4278 = vpop.permute.xlu0 %4277
    %4279 = vrot.lane.b32.xlu0 %v3233, 48
    %v4280 = vpop.permute.xlu0 %4279
    %4281 = vrot.lane.b32.xlu0 %v3234, 48
    %v4282 = vpop.permute.xlu0 %4281
    %4283 = vrot.lane.b32.xlu0 %v3235, 48
    %v4284 = vpop.permute.xlu0 %4283
    %4289 = vrot.lane.b32.xlu0 %v3240, 48
    %v4290 = vpop.permute.xlu0 %4289
    %4292 = vmatprep.subr.mxu0 0.0
    %4293 = vmatpush1.msra.mxu0 0.0
    %4294 = vmatprep.subr.mxu0 0.0
    %4295 = vmatpush1.msra.mxu0 0.0
    %4296 = vmatprep.subr.mxu0 0.0
    %4297 = vmatpush1.msra.mxu0 0.0
    %4298 = vmatprep.subr.mxu0 0.0
    %4299 = vmatpush1.msra.mxu0 0.0
    %4300 = vmatprep.subr.mxu0 0.0
    %4301 = vmatpush1.msra.mxu0 0.0
    %4302 = vmatprep.subr.mxu0 0.0
    %4303 = vmatpush1.msra.mxu0 0.0
    %4304 = vmatprep.subr.mxu0 0.0
    %4305 = vmatpush1.msra.mxu0 0.0
    %4306 = vmatprep.subr.mxu0 0.0
    %4307 = vmatpush1.msra.mxu0 0.0
    %4308 = vmatprep.subr.mxu0 0.0
    %4309 = vmatpush1.msra.mxu0 0.0
    %4310 = vmatprep.subr.mxu0 0.0
    %4311 = vmatpush1.msra.mxu0 0.0
    %4312 = vmatprep.subr.mxu0 0.0
    %4313 = vmatpush1.msra.mxu0 0.0
    %4314 = vmatprep.subr.mxu0 0.0
    %4315 = vmatpush1.msra.mxu0 0.0
    %4316 = vmatprep.subr.mxu0 0.0
    %4317 = vmatpush1.msra.mxu0 %v4284
    %4318 = vmatprep.subr.mxu0 0.0
    %4319 = vmatpush1.msra.mxu0 %v4282
    %4320 = vmatprep.subr.mxu0 0.0
    %4321 = vmatpush1.msra.mxu0 %v4280
    %4322 = vmatprep.subr.mxu0 0.0
    %4323 = vmatpush1.msra.mxu0 %v4278
    %4324 = vmatprep.subr.mxu0 0.0
    %4325 = vmatpush2.msra.mxu0 0.0
    %4326 = vmatprep.subr.mxu0 0.0
    %4327 = vmatpush2.msra.mxu0 0.0
    %4328 = vmatprep.subr.mxu0 0.0
    %4329 = vmatpush2.msra.mxu0 0.0
    %4330 = vmatprep.subr.mxu0 0.0
    %4331 = vmatpush2.msra.mxu0 0.0
    %4332 = vmatprep.subr.mxu0 0.0
    %4333 = vmatpush2.msra.mxu0 0.0
    %4334 = vmatprep.subr.mxu0 0.0
    %4335 = vmatpush2.msra.mxu0 0.0
    %4336 = vmatprep.subr.mxu0 0.0
    %4337 = vmatpush2.msra.mxu0 0.0
    %4338 = vmatprep.subr.mxu0 0.0
    %4339 = vmatpush2.msra.mxu0 0.0
    %4340 = vmatprep.subr.mxu0 0.0
    %4341 = vmatpush2.msra.mxu0 0.0
    %4342 = vmatprep.subr.mxu0 0.0
    %4343 = vmatpush2.msra.mxu0 0.0
    %4344 = vmatprep.subr.mxu0 0.0
    %4345 = vmatpush2.msra.mxu0 0.0
    %4346 = vmatprep.subr.mxu0 0.0
    %4347 = vmatpush2.msra.mxu0 0.0
    %4348 = vmatprep.subr.mxu0 0.0
    %4349 = vmatpush2.msra.mxu0 0.0
    %4350 = vmatprep.subr.mxu0 0.0
    %4351 = vmatpush2.msra.mxu0 0.0
    %4352 = vmatprep.subr.mxu0 0.0
    %4353 = vmatpush2.msra.mxu0 0.0
    %4354 = vmatprep.subr.mxu0 0.0
    %4355 = vmatpush2.msra.mxu0 0.0
    %4356 = vmatprep.mubr.f32.mxu0 0.0
    %4357 = vmatmul.mubr.f32.gmra.mxu0 %v3242
    %v4358 = vpop.f32.mrf.mxu0
    %v4359 = vadd.f32 %v4290, %v4358
    %v4360 = vpop.f32.mrf.mxu0
    %4361 = vmatprep.mubr.f32.mxu0 0.0
    %4362 = vmatmul.mubr.f32.gmra.mxu0 %v3245
    %v4363 = vpop.f32.mrf.mxu0
    %v4364 = vadd.f32 %v4290, %v4363
    %v4365 = vpop.f32.mrf.mxu0
    %4366 = vmatprep.mubr.f32.mxu0 0.0
    %4367 = vmatmul.mubr.f32.gmra.mxu0 %v3248
    %v4368 = vpop.f32.mrf.mxu0
    %v4369 = vadd.f32 %v4290, %v4368
    %v4370 = vpop.f32.mrf.mxu0
    %4371 = vmatprep.mubr.f32.mxu0 0.0
    %4372 = vmatmul.mubr.f32.gmra.mxu0 %v3251
    %v4373 = vpop.f32.mrf.mxu0
    %v4374 = vadd.f32 %v4290, %v4373
    %v4375 = vpop.f32.mrf.mxu0
    %4376 = vdwg.mxu0
    %v4378 = vsel %vm483, %v4159, 0
    %v4381 = vsel %vm483, %v4164, 0
    %v4384 = vsel %vm483, %v4169, 0
    %v4387 = vsel %vm483, %v4174, 0
    %v4390 = vsel %vm483, %v4259, 0
    %v4393 = vsel %vm483, %v4264, 0
    %v4396 = vsel %vm483, %v4269, 0
    %v4399 = vsel %vm483, %v4274, 0
    %4401 = vmatprep.subr.mxu0 0.0
    %4402 = vmatpush1.xpose.msra.mxu0 0.0
    %4403 = vmatprep.subr.mxu0 0.0
    %4404 = vmatpush1.xpose.msra.mxu0 0.0
    %4405 = vmatprep.subr.mxu0 0.0
    %4406 = vmatpush1.xpose.msra.mxu0 0.0
    %4407 = vmatprep.subr.mxu0 0.0
    %4408 = vmatpush1.xpose.msra.mxu0 0.0
    %4409 = vmatprep.subr.mxu0 0.0
    %4410 = vmatpush1.xpose.msra.mxu0 0.0
    %4411 = vmatprep.subr.mxu0 0.0
    %4412 = vmatpush1.xpose.msra.mxu0 0.0
    %4413 = vmatprep.subr.mxu0 0.0
    %4414 = vmatpush1.xpose.msra.mxu0 0.0
    %4415 = vmatprep.subr.mxu0 0.0
    %4416 = vmatpush1.xpose.msra.mxu0 0.0
    %4417 = vmatprep.subr.mxu0 0.0
    %4418 = vmatpush1.xpose.msra.mxu0 0.0
    %4419 = vmatprep.subr.mxu0 0.0
    %4420 = vmatpush1.xpose.msra.mxu0 0.0
    %4421 = vmatprep.subr.mxu0 0.0
    %4422 = vmatpush1.xpose.msra.mxu0 0.0
    %4423 = vmatprep.subr.mxu0 0.0
    %4424 = vmatpush1.xpose.msra.mxu0 0.0
    %4425 = vmatprep.subr.mxu0 0.0
    %4426 = vmatpush1.xpose.msra.mxu0 %v4399
    %4427 = vmatprep.subr.mxu0 0.0
    %4428 = vmatpush1.xpose.msra.mxu0 %v4396
    %4429 = vmatprep.subr.mxu0 0.0
    %4430 = vmatpush1.xpose.msra.mxu0 %v4393
    %4431 = vmatprep.subr.mxu0 0.0
    %4432 = vmatpush1.xpose.msra.mxu0 %v4390
    %4433 = vmatprep.subr.mxu0 0.0
    %4434 = vmatpush2.xpose.msra.mxu0 0.0
    %4435 = vmatprep.subr.mxu0 0.0
    %4436 = vmatpush2.xpose.msra.mxu0 0.0
    %4437 = vmatprep.subr.mxu0 0.0
    %4438 = vmatpush2.xpose.msra.mxu0 0.0
    %4439 = vmatprep.subr.mxu0 0.0
    %4440 = vmatpush2.xpose.msra.mxu0 0.0
    %4441 = vmatprep.subr.mxu0 0.0
    %4442 = vmatpush2.xpose.msra.mxu0 0.0
    %4443 = vmatprep.subr.mxu0 0.0
    %4444 = vmatpush2.xpose.msra.mxu0 0.0
    %4445 = vmatprep.subr.mxu0 0.0
    %4446 = vmatpush2.xpose.msra.mxu0 0.0
    %4447 = vmatprep.subr.mxu0 0.0
    %4448 = vmatpush2.xpose.msra.mxu0 0.0
    %4449 = vmatprep.subr.mxu0 0.0
    %4450 = vmatpush2.xpose.msra.mxu0 0.0
    %4451 = vmatprep.subr.mxu0 0.0
    %4452 = vmatpush2.xpose.msra.mxu0 0.0
    %4453 = vmatprep.subr.mxu0 0.0
    %4454 = vmatpush2.xpose.msra.mxu0 0.0
    %4455 = vmatprep.subr.mxu0 0.0
    %4456 = vmatpush2.xpose.msra.mxu0 0.0
    %4457 = vmatprep.subr.mxu0 0.0
    %4458 = vmatpush2.xpose.msra.mxu0 0.0
    %4459 = vmatprep.subr.mxu0 0.0
    %4460 = vmatpush2.xpose.msra.mxu0 0.0
    %4461 = vmatprep.subr.mxu0 0.0
    %4462 = vmatpush2.xpose.msra.mxu0 0.0
    %4463 = vmatprep.subr.mxu0 0.0
    %4464 = vmatpush2.xpose.msra.mxu0 0.0
    %4465 = vmatprep.mubr.f32.mxu0 0.0
    %4466 = vmatmul.mubr.f32.gmra.mxu0 %v4378
    %v4467 = vpop.f32.mrf.mxu0
    %v4468 = vadd.f32 0.0, %v4467
    %v4469 = vpop.f32.mrf.mxu0
    %4470 = vmatprep.mubr.f32.mxu0 0.0
    %4471 = vmatmul.mubr.f32.gmra.mxu0 %v4381
    %v4472 = vpop.f32.mrf.mxu0
    %v4473 = vadd.f32 0.0, %v4472
    %v4474 = vpop.f32.mrf.mxu0
    %4475 = vmatprep.mubr.f32.mxu0 0.0
    %4476 = vmatmul.mubr.f32.gmra.mxu0 %v4384
    %v4477 = vpop.f32.mrf.mxu0
    %v4478 = vadd.f32 0.0, %v4477
    %v4479 = vpop.f32.mrf.mxu0
    %4480 = vmatprep.mubr.f32.mxu0 0.0
    %4481 = vmatmul.mubr.f32.gmra.mxu0 %v4387
    %v4482 = vpop.f32.mrf.mxu0
    %v4483 = vadd.f32 0.0, %v4482
    %v4484 = vpop.f32.mrf.mxu0
    %4485 = vdwg.mxu0
    %v4486 = vmul.f32 %v4468, 0.35355338
    %v4487 = vmul.f32 %v4473, 0.35355338
    %v4488 = vmul.f32 %v4478, 0.35355338
    %v4489 = vmul.f32 %v4483, 0.35355338
    %v4490 = vadd.f32 %v4486, %v88
    %v4491 = vadd.f32 %v4487, %v89
    %v4492 = vadd.f32 %v4488, %v90
    %v4493 = vadd.f32 %v4489, %v91
    %4494 = vrot.lane.b32.xlu0 %v3232, 104
    %v4495 = vpop.permute.xlu0 %4494
    %4496 = vrot.lane.b32.xlu0 %v3233, 104
    %v4497 = vpop.permute.xlu0 %4496
    %4498 = vrot.lane.b32.xlu0 %v3234, 104
    %v4499 = vpop.permute.xlu0 %4498
    %4500 = vrot.lane.b32.xlu0 %v3235, 104
    %v4501 = vpop.permute.xlu0 %4500
    %4506 = vrot.lane.b32.xlu0 %v3240, 104
    %v4507 = vpop.permute.xlu0 %4506
    %4509 = vmatprep.subr.mxu0 0.0
    %4510 = vmatpush1.msra.mxu0 0.0
    %4511 = vmatprep.subr.mxu0 0.0
    %4512 = vmatpush1.msra.mxu0 0.0
    %4513 = vmatprep.subr.mxu0 0.0
    %4514 = vmatpush1.msra.mxu0 0.0
    %4515 = vmatprep.subr.mxu0 0.0
    %4516 = vmatpush1.msra.mxu0 0.0
    %4517 = vmatprep.subr.mxu0 0.0
    %4518 = vmatpush1.msra.mxu0 0.0
    %4519 = vmatprep.subr.mxu0 0.0
    %4520 = vmatpush1.msra.mxu0 0.0
    %4521 = vmatprep.subr.mxu0 0.0
    %4522 = vmatpush1.msra.mxu0 0.0
    %4523 = vmatprep.subr.mxu0 0.0
    %4524 = vmatpush1.msra.mxu0 0.0
    %4525 = vmatprep.subr.mxu0 0.0
    %4526 = vmatpush1.msra.mxu0 0.0
    %4527 = vmatprep.subr.mxu0 0.0
    %4528 = vmatpush1.msra.mxu0 0.0
    %4529 = vmatprep.subr.mxu0 0.0
    %4530 = vmatpush1.msra.mxu0 0.0
    %4531 = vmatprep.subr.mxu0 0.0
    %4532 = vmatpush1.msra.mxu0 0.0
    %4533 = vmatprep.subr.mxu0 0.0
    %4534 = vmatpush1.msra.mxu0 %v4501
    %4535 = vmatprep.subr.mxu0 0.0
    %4536 = vmatpush1.msra.mxu0 %v4499
    %4537 = vmatprep.subr.mxu0 0.0
    %4538 = vmatpush1.msra.mxu0 %v4497
    %4539 = vmatprep.subr.mxu0 0.0
    %4540 = vmatpush1.msra.mxu0 %v4495
    %4541 = vmatprep.subr.mxu0 0.0
    %4542 = vmatpush2.msra.mxu0 0.0
    %4543 = vmatprep.subr.mxu0 0.0
    %4544 = vmatpush2.msra.mxu0 0.0
    %4545 = vmatprep.subr.mxu0 0.0
    %4546 = vmatpush2.msra.mxu0 0.0
    %4547 = vmatprep.subr.mxu0 0.0
    %4548 = vmatpush2.msra.mxu0 0.0
    %4549 = vmatprep.subr.mxu0 0.0
    %4550 = vmatpush2.msra.mxu0 0.0
    %4551 = vmatprep.subr.mxu0 0.0
    %4552 = vmatpush2.msra.mxu0 0.0
    %4553 = vmatprep.subr.mxu0 0.0
    %4554 = vmatpush2.msra.mxu0 0.0
    %4555 = vmatprep.subr.mxu0 0.0
    %4556 = vmatpush2.msra.mxu0 0.0
    %4557 = vmatprep.subr.mxu0 0.0
    %4558 = vmatpush2.msra.mxu0 0.0
    %4559 = vmatprep.subr.mxu0 0.0
    %4560 = vmatpush2.msra.mxu0 0.0
    %4561 = vmatprep.subr.mxu0 0.0
    %4562 = vmatpush2.msra.mxu0 0.0
    %4563 = vmatprep.subr.mxu0 0.0
    %4564 = vmatpush2.msra.mxu0 0.0
    %4565 = vmatprep.subr.mxu0 0.0
    %4566 = vmatpush2.msra.mxu0 0.0
    %4567 = vmatprep.subr.mxu0 0.0
    %4568 = vmatpush2.msra.mxu0 0.0
    %4569 = vmatprep.subr.mxu0 0.0
    %4570 = vmatpush2.msra.mxu0 0.0
    %4571 = vmatprep.subr.mxu0 0.0
    %4572 = vmatpush2.msra.mxu0 0.0
    %4573 = vmatprep.mubr.f32.mxu0 0.0
    %4574 = vmatmul.mubr.f32.gmra.mxu0 %v3242
    %v4575 = vpop.f32.mrf.mxu0
    %v4576 = vadd.f32 %v4507, %v4575
    %v4577 = vpop.f32.mrf.mxu0
    %4578 = vmatprep.mubr.f32.mxu0 0.0
    %4579 = vmatmul.mubr.f32.gmra.mxu0 %v3245
    %v4580 = vpop.f32.mrf.mxu0
    %v4581 = vadd.f32 %v4507, %v4580
    %v4582 = vpop.f32.mrf.mxu0
    %4583 = vmatprep.mubr.f32.mxu0 0.0
    %4584 = vmatmul.mubr.f32.gmra.mxu0 %v3248
    %v4585 = vpop.f32.mrf.mxu0
    %v4586 = vadd.f32 %v4507, %v4585
    %v4587 = vpop.f32.mrf.mxu0
    %4588 = vmatprep.mubr.f32.mxu0 0.0
    %4589 = vmatmul.mubr.f32.gmra.mxu0 %v3251
    %v4590 = vpop.f32.mrf.mxu0
    %v4591 = vadd.f32 %v4507, %v4590
    %v4592 = vpop.f32.mrf.mxu0
    %4593 = vdwg.mxu0
    %4594 = vrot.lane.b32.xlu0 %v3232, 72
    %v4595 = vpop.permute.xlu0 %4594
    %4596 = vrot.lane.b32.xlu0 %v3233, 72
    %v4597 = vpop.permute.xlu0 %4596
    %4598 = vrot.lane.b32.xlu0 %v3234, 72
    %v4599 = vpop.permute.xlu0 %4598
    %4600 = vrot.lane.b32.xlu0 %v3235, 72
    %v4601 = vpop.permute.xlu0 %4600
    %4606 = vrot.lane.b32.xlu0 %v3240, 72
    %v4607 = vpop.permute.xlu0 %4606
    %4609 = vmatprep.subr.mxu0 0.0
    %4610 = vmatpush1.msra.mxu0 0.0
    %4611 = vmatprep.subr.mxu0 0.0
    %4612 = vmatpush1.msra.mxu0 0.0
    %4613 = vmatprep.subr.mxu0 0.0
    %4614 = vmatpush1.msra.mxu0 0.0
    %4615 = vmatprep.subr.mxu0 0.0
    %4616 = vmatpush1.msra.mxu0 0.0
    %4617 = vmatprep.subr.mxu0 0.0
    %4618 = vmatpush1.msra.mxu0 0.0
    %4619 = vmatprep.subr.mxu0 0.0
    %4620 = vmatpush1.msra.mxu0 0.0
    %4621 = vmatprep.subr.mxu0 0.0
    %4622 = vmatpush1.msra.mxu0 0.0
    %4623 = vmatprep.subr.mxu0 0.0
    %4624 = vmatpush1.msra.mxu0 0.0
    %4625 = vmatprep.subr.mxu0 0.0
    %4626 = vmatpush1.msra.mxu0 0.0
    %4627 = vmatprep.subr.mxu0 0.0
    %4628 = vmatpush1.msra.mxu0 0.0
    %4629 = vmatprep.subr.mxu0 0.0
    %4630 = vmatpush1.msra.mxu0 0.0
    %4631 = vmatprep.subr.mxu0 0.0
    %4632 = vmatpush1.msra.mxu0 0.0
    %4633 = vmatprep.subr.mxu0 0.0
    %4634 = vmatpush1.msra.mxu0 %v4601
    %4635 = vmatprep.subr.mxu0 0.0
    %4636 = vmatpush1.msra.mxu0 %v4599
    %4637 = vmatprep.subr.mxu0 0.0
    %4638 = vmatpush1.msra.mxu0 %v4597
    %4639 = vmatprep.subr.mxu0 0.0
    %4640 = vmatpush1.msra.mxu0 %v4595
    %4641 = vmatprep.subr.mxu0 0.0
    %4642 = vmatpush2.msra.mxu0 0.0
    %4643 = vmatprep.subr.mxu0 0.0
    %4644 = vmatpush2.msra.mxu0 0.0
    %4645 = vmatprep.subr.mxu0 0.0
    %4646 = vmatpush2.msra.mxu0 0.0
    %4647 = vmatprep.subr.mxu0 0.0
    %4648 = vmatpush2.msra.mxu0 0.0
    %4649 = vmatprep.subr.mxu0 0.0
    %4650 = vmatpush2.msra.mxu0 0.0
    %4651 = vmatprep.subr.mxu0 0.0
    %4652 = vmatpush2.msra.mxu0 0.0
    %4653 = vmatprep.subr.mxu0 0.0
    %4654 = vmatpush2.msra.mxu0 0.0
    %4655 = vmatprep.subr.mxu0 0.0
    %4656 = vmatpush2.msra.mxu0 0.0
    %4657 = vmatprep.subr.mxu0 0.0
    %4658 = vmatpush2.msra.mxu0 0.0
    %4659 = vmatprep.subr.mxu0 0.0
    %4660 = vmatpush2.msra.mxu0 0.0
    %4661 = vmatprep.subr.mxu0 0.0
    %4662 = vmatpush2.msra.mxu0 0.0
    %4663 = vmatprep.subr.mxu0 0.0
    %4664 = vmatpush2.msra.mxu0 0.0
    %4665 = vmatprep.subr.mxu0 0.0
    %4666 = vmatpush2.msra.mxu0 0.0
    %4667 = vmatprep.subr.mxu0 0.0
    %4668 = vmatpush2.msra.mxu0 0.0
    %4669 = vmatprep.subr.mxu0 0.0
    %4670 = vmatpush2.msra.mxu0 0.0
    %4671 = vmatprep.subr.mxu0 0.0
    %4672 = vmatpush2.msra.mxu0 0.0
    %4673 = vmatprep.mubr.f32.mxu0 0.0
    %4674 = vmatmul.mubr.f32.gmra.mxu0 %v3242
    %v4675 = vpop.f32.mrf.mxu0
    %v4676 = vadd.f32 %v4607, %v4675
    %v4677 = vpop.f32.mrf.mxu0
    %4678 = vmatprep.mubr.f32.mxu0 0.0
    %4679 = vmatmul.mubr.f32.gmra.mxu0 %v3245
    %v4680 = vpop.f32.mrf.mxu0
    %v4681 = vadd.f32 %v4607, %v4680
    %v4682 = vpop.f32.mrf.mxu0
    %4683 = vmatprep.mubr.f32.mxu0 0.0
    %4684 = vmatmul.mubr.f32.gmra.mxu0 %v3248
    %v4685 = vpop.f32.mrf.mxu0
    %v4686 = vadd.f32 %v4607, %v4685
    %v4687 = vpop.f32.mrf.mxu0
    %4688 = vmatprep.mubr.f32.mxu0 0.0
    %4689 = vmatmul.mubr.f32.gmra.mxu0 %v3251
    %v4690 = vpop.f32.mrf.mxu0
    %v4691 = vadd.f32 %v4607, %v4690
    %v4692 = vpop.f32.mrf.mxu0
    %4693 = vdwg.mxu0
    %4694 = vrot.lane.b32.xlu0 %v3232, 40
    %v4695 = vpop.permute.xlu0 %4694
    %4696 = vrot.lane.b32.xlu0 %v3233, 40
    %v4697 = vpop.permute.xlu0 %4696
    %4698 = vrot.lane.b32.xlu0 %v3234, 40
    %v4699 = vpop.permute.xlu0 %4698
    %4700 = vrot.lane.b32.xlu0 %v3235, 40
    %v4701 = vpop.permute.xlu0 %4700
    %4706 = vrot.lane.b32.xlu0 %v3240, 40
    %v4707 = vpop.permute.xlu0 %4706
    %4709 = vmatprep.subr.mxu0 0.0
    %4710 = vmatpush1.msra.mxu0 0.0
    %4711 = vmatprep.subr.mxu0 0.0
    %4712 = vmatpush1.msra.mxu0 0.0
    %4713 = vmatprep.subr.mxu0 0.0
    %4714 = vmatpush1.msra.mxu0 0.0
    %4715 = vmatprep.subr.mxu0 0.0
    %4716 = vmatpush1.msra.mxu0 0.0
    %4717 = vmatprep.subr.mxu0 0.0
    %4718 = vmatpush1.msra.mxu0 0.0
    %4719 = vmatprep.subr.mxu0 0.0
    %4720 = vmatpush1.msra.mxu0 0.0
    %4721 = vmatprep.subr.mxu0 0.0
    %4722 = vmatpush1.msra.mxu0 0.0
    %4723 = vmatprep.subr.mxu0 0.0
    %4724 = vmatpush1.msra.mxu0 0.0
    %4725 = vmatprep.subr.mxu0 0.0
    %4726 = vmatpush1.msra.mxu0 0.0
    %4727 = vmatprep.subr.mxu0 0.0
    %4728 = vmatpush1.msra.mxu0 0.0
    %4729 = vmatprep.subr.mxu0 0.0
    %4730 = vmatpush1.msra.mxu0 0.0
    %4731 = vmatprep.subr.mxu0 0.0
    %4732 = vmatpush1.msra.mxu0 0.0
    %4733 = vmatprep.subr.mxu0 0.0
    %4734 = vmatpush1.msra.mxu0 %v4701
    %4735 = vmatprep.subr.mxu0 0.0
    %4736 = vmatpush1.msra.mxu0 %v4699
    %4737 = vmatprep.subr.mxu0 0.0
    %4738 = vmatpush1.msra.mxu0 %v4697
    %4739 = vmatprep.subr.mxu0 0.0
    %4740 = vmatpush1.msra.mxu0 %v4695
    %4741 = vmatprep.subr.mxu0 0.0
    %4742 = vmatpush2.msra.mxu0 0.0
    %4743 = vmatprep.subr.mxu0 0.0
    %4744 = vmatpush2.msra.mxu0 0.0
    %4745 = vmatprep.subr.mxu0 0.0
    %4746 = vmatpush2.msra.mxu0 0.0
    %4747 = vmatprep.subr.mxu0 0.0
    %4748 = vmatpush2.msra.mxu0 0.0
    %4749 = vmatprep.subr.mxu0 0.0
    %4750 = vmatpush2.msra.mxu0 0.0
    %4751 = vmatprep.subr.mxu0 0.0
    %4752 = vmatpush2.msra.mxu0 0.0
    %4753 = vmatprep.subr.mxu0 0.0
    %4754 = vmatpush2.msra.mxu0 0.0
    %4755 = vmatprep.subr.mxu0 0.0
    %4756 = vmatpush2.msra.mxu0 0.0
    %4757 = vmatprep.subr.mxu0 0.0
    %4758 = vmatpush2.msra.mxu0 0.0
    %4759 = vmatprep.subr.mxu0 0.0
    %4760 = vmatpush2.msra.mxu0 0.0
    %4761 = vmatprep.subr.mxu0 0.0
    %4762 = vmatpush2.msra.mxu0 0.0
    %4763 = vmatprep.subr.mxu0 0.0
    %4764 = vmatpush2.msra.mxu0 0.0
    %4765 = vmatprep.subr.mxu0 0.0
    %4766 = vmatpush2.msra.mxu0 0.0
    %4767 = vmatprep.subr.mxu0 0.0
    %4768 = vmatpush2.msra.mxu0 0.0
    %4769 = vmatprep.subr.mxu0 0.0
    %4770 = vmatpush2.msra.mxu0 0.0
    %4771 = vmatprep.subr.mxu0 0.0
    %4772 = vmatpush2.msra.mxu0 0.0
    %4773 = vmatprep.mubr.f32.mxu0 0.0
    %4774 = vmatmul.mubr.f32.gmra.mxu0 %v3242
    %v4775 = vpop.f32.mrf.mxu0
    %v4776 = vadd.f32 %v4707, %v4775
    %v4777 = vpop.f32.mrf.mxu0
    %4778 = vmatprep.mubr.f32.mxu0 0.0
    %4779 = vmatmul.mubr.f32.gmra.mxu0 %v3245
    %v4780 = vpop.f32.mrf.mxu0
    %v4781 = vadd.f32 %v4707, %v4780
    %v4782 = vpop.f32.mrf.mxu0
    %4783 = vmatprep.mubr.f32.mxu0 0.0
    %4784 = vmatmul.mubr.f32.gmra.mxu0 %v3248
    %v4785 = vpop.f32.mrf.mxu0
    %v4786 = vadd.f32 %v4707, %v4785
    %v4787 = vpop.f32.mrf.mxu0
    %4788 = vmatprep.mubr.f32.mxu0 0.0
    %4789 = vmatmul.mubr.f32.gmra.mxu0 %v3251
    %v4790 = vpop.f32.mrf.mxu0
    %v4791 = vadd.f32 %v4707, %v4790
    %v4792 = vpop.f32.mrf.mxu0
    %4793 = vdwg.mxu0
    %v4795 = vsel %vm483, %v4576, 0
    %v4798 = vsel %vm483, %v4581, 0
    %v4801 = vsel %vm483, %v4586, 0
    %v4804 = vsel %vm483, %v4591, 0
    %v4807 = vsel %vm483, %v4676, 0
    %v4810 = vsel %vm483, %v4681, 0
    %v4813 = vsel %vm483, %v4686, 0
    %v4816 = vsel %vm483, %v4691, 0
    %4818 = vmatprep.subr.mxu0 0.0
    %4819 = vmatpush1.xpose.msra.mxu0 0.0
    %4820 = vmatprep.subr.mxu0 0.0
    %4821 = vmatpush1.xpose.msra.mxu0 0.0
    %4822 = vmatprep.subr.mxu0 0.0
    %4823 = vmatpush1.xpose.msra.mxu0 0.0
    %4824 = vmatprep.subr.mxu0 0.0
    %4825 = vmatpush1.xpose.msra.mxu0 0.0
    %4826 = vmatprep.subr.mxu0 0.0
    %4827 = vmatpush1.xpose.msra.mxu0 0.0
    %4828 = vmatprep.subr.mxu0 0.0
    %4829 = vmatpush1.xpose.msra.mxu0 0.0
    %4830 = vmatprep.subr.mxu0 0.0
    %4831 = vmatpush1.xpose.msra.mxu0 0.0
    %4832 = vmatprep.subr.mxu0 0.0
    %4833 = vmatpush1.xpose.msra.mxu0 0.0
    %4834 = vmatprep.subr.mxu0 0.0
    %4835 = vmatpush1.xpose.msra.mxu0 0.0
    %4836 = vmatprep.subr.mxu0 0.0
    %4837 = vmatpush1.xpose.msra.mxu0 0.0
    %4838 = vmatprep.subr.mxu0 0.0
    %4839 = vmatpush1.xpose.msra.mxu0 0.0
    %4840 = vmatprep.subr.mxu0 0.0
    %4841 = vmatpush1.xpose.msra.mxu0 0.0
    %4842 = vmatprep.subr.mxu0 0.0
    %4843 = vmatpush1.xpose.msra.mxu0 %v4816
    %4844 = vmatprep.subr.mxu0 0.0
    %4845 = vmatpush1.xpose.msra.mxu0 %v4813
    %4846 = vmatprep.subr.mxu0 0.0
    %4847 = vmatpush1.xpose.msra.mxu0 %v4810
    %4848 = vmatprep.subr.mxu0 0.0
    %4849 = vmatpush1.xpose.msra.mxu0 %v4807
    %4850 = vmatprep.subr.mxu0 0.0
    %4851 = vmatpush2.xpose.msra.mxu0 0.0
    %4852 = vmatprep.subr.mxu0 0.0
    %4853 = vmatpush2.xpose.msra.mxu0 0.0
    %4854 = vmatprep.subr.mxu0 0.0
    %4855 = vmatpush2.xpose.msra.mxu0 0.0
    %4856 = vmatprep.subr.mxu0 0.0
    %4857 = vmatpush2.xpose.msra.mxu0 0.0
    %4858 = vmatprep.subr.mxu0 0.0
    %4859 = vmatpush2.xpose.msra.mxu0 0.0
    %4860 = vmatprep.subr.mxu0 0.0
    %4861 = vmatpush2.xpose.msra.mxu0 0.0
    %4862 = vmatprep.subr.mxu0 0.0
    %4863 = vmatpush2.xpose.msra.mxu0 0.0
    %4864 = vmatprep.subr.mxu0 0.0
    %4865 = vmatpush2.xpose.msra.mxu0 0.0
    %4866 = vmatprep.subr.mxu0 0.0
    %4867 = vmatpush2.xpose.msra.mxu0 0.0
    %4868 = vmatprep.subr.mxu0 0.0
    %4869 = vmatpush2.xpose.msra.mxu0 0.0
    %4870 = vmatprep.subr.mxu0 0.0
    %4871 = vmatpush2.xpose.msra.mxu0 0.0
    %4872 = vmatprep.subr.mxu0 0.0
    %4873 = vmatpush2.xpose.msra.mxu0 0.0
    %4874 = vmatprep.subr.mxu0 0.0
    %4875 = vmatpush2.xpose.msra.mxu0 0.0
    %4876 = vmatprep.subr.mxu0 0.0
    %4877 = vmatpush2.xpose.msra.mxu0 0.0
    %4878 = vmatprep.subr.mxu0 0.0
    %4879 = vmatpush2.xpose.msra.mxu0 0.0
    %4880 = vmatprep.subr.mxu0 0.0
    %4881 = vmatpush2.xpose.msra.mxu0 0.0
    %4882 = vmatprep.mubr.f32.mxu0 0.0
    %4883 = vmatmul.mubr.f32.gmra.mxu0 %v4795
    %v4884 = vpop.f32.mrf.mxu0
    %v4885 = vadd.f32 0.0, %v4884
    %v4886 = vpop.f32.mrf.mxu0
    %4887 = vmatprep.mubr.f32.mxu0 0.0
    %4888 = vmatmul.mubr.f32.gmra.mxu0 %v4798
    %v4889 = vpop.f32.mrf.mxu0
    %v4890 = vadd.f32 0.0, %v4889
    %v4891 = vpop.f32.mrf.mxu0
    %4892 = vmatprep.mubr.f32.mxu0 0.0
    %4893 = vmatmul.mubr.f32.gmra.mxu0 %v4801
    %v4894 = vpop.f32.mrf.mxu0
    %v4895 = vadd.f32 0.0, %v4894
    %v4896 = vpop.f32.mrf.mxu0
    %4897 = vmatprep.mubr.f32.mxu0 0.0
    %4898 = vmatmul.mubr.f32.gmra.mxu0 %v4804
    %v4899 = vpop.f32.mrf.mxu0
    %v4900 = vadd.f32 0.0, %v4899
    %v4901 = vpop.f32.mrf.mxu0
    %4902 = vdwg.mxu0
    %v4903 = vmul.f32 %v4885, 0.35355338
    %v4904 = vmul.f32 %v4890, 0.35355338
    %v4905 = vmul.f32 %v4895, 0.35355338
    %v4906 = vmul.f32 %v4900, 0.35355338
    %v4907 = vadd.f32 %v4903, %v88
    %v4908 = vadd.f32 %v4904, %v89
    %v4909 = vadd.f32 %v4905, %v90
    %v4910 = vadd.f32 %v4906, %v91
    %v4911 = vsel %vm98, %v3656, -inf
    %4912 = vmax.xlane.f32.xlu0 %v4911
    %v4913 = vpop.xlane.xlu0 %4912
    %v4914 = vsel %vm98, %v3657, -inf
    %4915 = vmax.xlane.f32.xlu0 %v4914
    %v4916 = vpop.xlane.xlu0 %4915
    %v4917 = vsel %vm98, %v3658, -inf
    %4918 = vmax.xlane.f32.xlu0 %v4917
    %v4919 = vpop.xlane.xlu0 %4918
    %v4920 = vsel %vm98, %v3659, -inf
    %4921 = vmax.xlane.f32.xlu0 %v4920
    %v4922 = vpop.xlane.xlu0 %4921
    %v4923 = vsel %vm98, %v4073, -inf
    %4924 = vmax.xlane.f32.xlu0 %v4923
    %v4925 = vpop.xlane.xlu0 %4924
    %v4926 = vsel %vm98, %v4074, -inf
    %4927 = vmax.xlane.f32.xlu0 %v4926
    %v4928 = vpop.xlane.xlu0 %4927
    %v4929 = vsel %vm98, %v4075, -inf
    %4930 = vmax.xlane.f32.xlu0 %v4929
    %v4931 = vpop.xlane.xlu0 %4930
    %v4932 = vsel %vm98, %v4076, -inf
    %4933 = vmax.xlane.f32.xlu0 %v4932
    %v4934 = vpop.xlane.xlu0 %4933
    %v4935 = vsel %vm98, %v4490, -inf
    %4936 = vmax.xlane.f32.xlu0 %v4935
    %v4937 = vpop.xlane.xlu0 %4936
    %v4938 = vsel %vm98, %v4491, -inf
    %4939 = vmax.xlane.f32.xlu0 %v4938
    %v4940 = vpop.xlane.xlu0 %4939
    %v4941 = vsel %vm98, %v4492, -inf
    %4942 = vmax.xlane.f32.xlu0 %v4941
    %v4943 = vpop.xlane.xlu0 %4942
    %v4944 = vsel %vm98, %v4493, -inf
    %4945 = vmax.xlane.f32.xlu0 %v4944
    %v4946 = vpop.xlane.xlu0 %4945
    %v4947 = vsel %vm98, %v4907, -inf
    %4948 = vmax.xlane.f32.xlu0 %v4947
    %v4949 = vpop.xlane.xlu0 %4948
    %v4950 = vsel %vm98, %v4908, -inf
    %4951 = vmax.xlane.f32.xlu0 %v4950
    %v4952 = vpop.xlane.xlu0 %4951
    %v4953 = vsel %vm98, %v4909, -inf
    %4954 = vmax.xlane.f32.xlu0 %v4953
    %v4955 = vpop.xlane.xlu0 %4954
    %v4956 = vsel %vm98, %v4910, -inf
    %4957 = vmax.xlane.f32.xlu0 %v4956
    %v4958 = vpop.xlane.xlu0 %4957
    %v4959 = vsub.f32 %v3656, %v4913
    %v4960 = vsub.f32 %v3657, %v4916
    %v4961 = vsub.f32 %v3658, %v4919
    %v4962 = vsub.f32 %v3659, %v4922
    %v4963 = vsub.f32 %v4073, %v4925
    %v4964 = vsub.f32 %v4074, %v4928
    %v4965 = vsub.f32 %v4075, %v4931
    %v4966 = vsub.f32 %v4076, %v4934
    %v4967 = vsub.f32 %v4490, %v4937
    %v4968 = vsub.f32 %v4491, %v4940
    %v4969 = vsub.f32 %v4492, %v4943
    %v4970 = vsub.f32 %v4493, %v4946
    %v4971 = vsub.f32 %v4907, %v4949
    %v4972 = vsub.f32 %v4908, %v4952
    %v4973 = vsub.f32 %v4909, %v4955
    %v4974 = vsub.f32 %v4910, %v4958
    %v4975 = vmul.f32 %v4959, 1.442695
    %v4976 = vpow.pop %v4975
    %v4977 = vmul.f32 %v4960, 1.442695
    %v4978 = vpow.pop %v4977
    %v4979 = vmul.f32 %v4961, 1.442695
    %v4980 = vpow.pop %v4979
    %v4981 = vmul.f32 %v4962, 1.442695
    %v4982 = vpow.pop %v4981
    %v4983 = vmul.f32 %v4963, 1.442695
    %v4984 = vpow.pop %v4983
    %v4985 = vmul.f32 %v4964, 1.442695
    %v4986 = vpow.pop %v4985
    %v4987 = vmul.f32 %v4965, 1.442695
    %v4988 = vpow.pop %v4987
    %v4989 = vmul.f32 %v4966, 1.442695
    %v4990 = vpow.pop %v4989
    %v4991 = vmul.f32 %v4967, 1.442695
    %v4992 = vpow.pop %v4991
    %v4993 = vmul.f32 %v4968, 1.442695
    %v4994 = vpow.pop %v4993
    %v4995 = vmul.f32 %v4969, 1.442695
    %v4996 = vpow.pop %v4995
    %v4997 = vmul.f32 %v4970, 1.442695
    %v4998 = vpow.pop %v4997
    %v4999 = vmul.f32 %v4971, 1.442695
    %v5000 = vpow.pop %v4999
    %v5001 = vmul.f32 %v4972, 1.442695
    %v5002 = vpow.pop %v5001
    %v5003 = vmul.f32 %v4973, 1.442695
    %v5004 = vpow.pop %v5003
    %v5005 = vmul.f32 %v4974, 1.442695
    %v5006 = vpow.pop %v5005
    %v5007 = vsel %vm98, %v4976, 0.0
    %5008 = vadd.xlane.f32.xlu0 %v5007
    %v5009 = vpop.xlane.xlu0 %5008
    %v5010 = vsel %vm98, %v4978, 0.0
    %5011 = vadd.xlane.f32.xlu0 %v5010
    %v5012 = vpop.xlane.xlu0 %5011
    %v5013 = vsel %vm98, %v4980, 0.0
    %5014 = vadd.xlane.f32.xlu0 %v5013
    %v5015 = vpop.xlane.xlu0 %5014
    %v5016 = vsel %vm98, %v4982, 0.0
    %5017 = vadd.xlane.f32.xlu0 %v5016
    %v5018 = vpop.xlane.xlu0 %5017
    %v5019 = vsel %vm98, %v4984, 0.0
    %5020 = vadd.xlane.f32.xlu0 %v5019
    %v5021 = vpop.xlane.xlu0 %5020
    %v5022 = vsel %vm98, %v4986, 0.0
    %5023 = vadd.xlane.f32.xlu0 %v5022
    %v5024 = vpop.xlane.xlu0 %5023
    %v5025 = vsel %vm98, %v4988, 0.0
    %5026 = vadd.xlane.f32.xlu0 %v5025
    %v5027 = vpop.xlane.xlu0 %5026
    %v5028 = vsel %vm98, %v4990, 0.0
    %5029 = vadd.xlane.f32.xlu0 %v5028
    %v5030 = vpop.xlane.xlu0 %5029
    %v5031 = vsel %vm98, %v4992, 0.0
    %5032 = vadd.xlane.f32.xlu0 %v5031
    %v5033 = vpop.xlane.xlu0 %5032
    %v5034 = vsel %vm98, %v4994, 0.0
    %5035 = vadd.xlane.f32.xlu0 %v5034
    %v5036 = vpop.xlane.xlu0 %5035
    %v5037 = vsel %vm98, %v4996, 0.0
    %5038 = vadd.xlane.f32.xlu0 %v5037
    %v5039 = vpop.xlane.xlu0 %5038
    %v5040 = vsel %vm98, %v4998, 0.0
    %5041 = vadd.xlane.f32.xlu0 %v5040
    %v5042 = vpop.xlane.xlu0 %5041
    %v5043 = vsel %vm98, %v5000, 0.0
    %5044 = vadd.xlane.f32.xlu0 %v5043
    %v5045 = vpop.xlane.xlu0 %5044
    %v5046 = vsel %vm98, %v5002, 0.0
    %5047 = vadd.xlane.f32.xlu0 %v5046
    %v5048 = vpop.xlane.xlu0 %5047
    %v5049 = vsel %vm98, %v5004, 0.0
    %5050 = vadd.xlane.f32.xlu0 %v5049
    %v5051 = vpop.xlane.xlu0 %5050
    %v5052 = vsel %vm98, %v5006, 0.0
    %5053 = vadd.xlane.f32.xlu0 %v5052
    %v5054 = vpop.xlane.xlu0 %5053
    %v5055 = vrcp.pop %v5009
    %v5056 = vrcp.pop %v5012
    %v5057 = vrcp.pop %v5015
    %v5058 = vrcp.pop %v5018
    %v5059 = vrcp.pop %v5021
    %v5060 = vrcp.pop %v5024
    %v5061 = vrcp.pop %v5027
    %v5062 = vrcp.pop %v5030
    %v5063 = vrcp.pop %v5033
    %v5064 = vrcp.pop %v5036
    %v5065 = vrcp.pop %v5039
    %v5066 = vrcp.pop %v5042
    %v5067 = vrcp.pop %v5045
    %v5068 = vrcp.pop %v5048
    %v5069 = vrcp.pop %v5051
    %v5070 = vrcp.pop %v5054
    %v5071 = vmul.f32 %v4976, %v5055
    %v5072 = vmul.f32 %v4978, %v5056
    %v5073 = vmul.f32 %v4980, %v5057
    %v5074 = vmul.f32 %v4982, %v5058
    %v5075 = vmul.f32 %v4984, %v5059
    %v5076 = vmul.f32 %v4986, %v5060
    %v5077 = vmul.f32 %v4988, %v5061
    %v5078 = vmul.f32 %v4990, %v5062
    %v5079 = vmul.f32 %v4992, %v5063
    %v5080 = vmul.f32 %v4994, %v5064
    %v5081 = vmul.f32 %v4996, %v5065
    %v5082 = vmul.f32 %v4998, %v5066
    %v5083 = vmul.f32 %v5000, %v5067
    %v5084 = vmul.f32 %v5002, %v5068
    %v5085 = vmul.f32 %v5004, %v5069
    %v5086 = vmul.f32 %v5006, %v5070
    %v5088 = vsel %vm98, %v5071, 0
    %v5091 = vsel %vm98, %v5072, 0
    %v5094 = vsel %vm98, %v5073, 0
    %v5097 = vsel %vm98, %v5074, 0
    %5099 = vmatprep.subr.mxu0 0.0
    %5100 = vmatpush1.msra.mxu0 0.0
    %5101 = vmatprep.subr.mxu0 0.0
    %5102 = vmatpush1.msra.mxu0 0.0
    %5103 = vmatprep.subr.mxu0 0.0
    %5104 = vmatpush1.msra.mxu0 0.0
    %5105 = vmatprep.subr.mxu0 0.0
    %5106 = vmatpush1.msra.mxu0 0.0
    %5107 = vmatprep.subr.mxu0 0.0
    %5108 = vmatpush1.msra.mxu0 0.0
    %5109 = vmatprep.subr.mxu0 0.0
    %5110 = vmatpush1.msra.mxu0 0.0
    %5111 = vmatprep.subr.mxu0 0.0
    %5112 = vmatpush1.msra.mxu0 0.0
    %5113 = vmatprep.subr.mxu0 0.0
    %5114 = vmatpush1.msra.mxu0 0.0
    %5115 = vmatprep.subr.mxu0 0.0
    %5116 = vmatpush1.msra.mxu0 0.0
    %5117 = vmatprep.subr.mxu0 0.0
    %5118 = vmatpush1.msra.mxu0 0.0
    %5119 = vmatprep.subr.mxu0 0.0
    %5120 = vmatpush1.msra.mxu0 0.0
    %5121 = vmatprep.subr.mxu0 0.0
    %5122 = vmatpush1.msra.mxu0 0.0
    %5123 = vmatprep.subr.mxu0 0.0
    %5124 = vmatpush1.msra.mxu0 %v3540
    %5125 = vmatprep.subr.mxu0 0.0
    %5126 = vmatpush1.msra.mxu0 %v3535
    %5127 = vmatprep.subr.mxu0 0.0
    %5128 = vmatpush1.msra.mxu0 %v3530
    %5129 = vmatprep.subr.mxu0 0.0
    %5130 = vmatpush1.msra.mxu0 %v3525
    %5131 = vmatprep.subr.mxu0 0.0
    %5132 = vmatpush2.msra.mxu0 0.0
    %5133 = vmatprep.subr.mxu0 0.0
    %5134 = vmatpush2.msra.mxu0 0.0
    %5135 = vmatprep.subr.mxu0 0.0
    %5136 = vmatpush2.msra.mxu0 0.0
    %5137 = vmatprep.subr.mxu0 0.0
    %5138 = vmatpush2.msra.mxu0 0.0
    %5139 = vmatprep.subr.mxu0 0.0
    %5140 = vmatpush2.msra.mxu0 0.0
    %5141 = vmatprep.subr.mxu0 0.0
    %5142 = vmatpush2.msra.mxu0 0.0
    %5143 = vmatprep.subr.mxu0 0.0
    %5144 = vmatpush2.msra.mxu0 0.0
    %5145 = vmatprep.subr.mxu0 0.0
    %5146 = vmatpush2.msra.mxu0 0.0
    %5147 = vmatprep.subr.mxu0 0.0
    %5148 = vmatpush2.msra.mxu0 0.0
    %5149 = vmatprep.subr.mxu0 0.0
    %5150 = vmatpush2.msra.mxu0 0.0
    %5151 = vmatprep.subr.mxu0 0.0
    %5152 = vmatpush2.msra.mxu0 0.0
    %5153 = vmatprep.subr.mxu0 0.0
    %5154 = vmatpush2.msra.mxu0 0.0
    %5155 = vmatprep.subr.mxu0 0.0
    %5156 = vmatpush2.msra.mxu0 0.0
    %5157 = vmatprep.subr.mxu0 0.0
    %5158 = vmatpush2.msra.mxu0 0.0
    %5159 = vmatprep.subr.mxu0 0.0
    %5160 = vmatpush2.msra.mxu0 0.0
    %5161 = vmatprep.subr.mxu0 0.0
    %5162 = vmatpush2.msra.mxu0 0.0
    %5163 = vmatprep.mubr.f32.mxu0 0.0
    %5164 = vmatmul.mubr.f32.gmra.mxu0 %v5088
    %v5165 = vpop.f32.mrf.mxu0
    %v5166 = vadd.f32 0.0, %v5165
    %v5167 = vpop.f32.mrf.mxu0
    %5168 = vmatprep.mubr.f32.mxu0 0.0
    %5169 = vmatmul.mubr.f32.gmra.mxu0 %v5091
    %v5170 = vpop.f32.mrf.mxu0
    %v5171 = vadd.f32 0.0, %v5170
    %v5172 = vpop.f32.mrf.mxu0
    %5173 = vmatprep.mubr.f32.mxu0 0.0
    %5174 = vmatmul.mubr.f32.gmra.mxu0 %v5094
    %v5175 = vpop.f32.mrf.mxu0
    %v5176 = vadd.f32 0.0, %v5175
    %v5177 = vpop.f32.mrf.mxu0
    %5178 = vmatprep.mubr.f32.mxu0 0.0
    %5179 = vmatmul.mubr.f32.gmra.mxu0 %v5097
    %v5180 = vpop.f32.mrf.mxu0
    %v5181 = vadd.f32 0.0, %v5180
    %v5182 = vpop.f32.mrf.mxu0
    %5183 = vdwg.mxu0
    %s5184 = scalar_lea.vmem %s4, 32
    %v5185 = vld [vmem:[%s5184] sm:$0xff]
    %v5187 = vsel %vm98, %v5075, 0
    %v5190 = vsel %vm98, %v5076, 0
    %v5193 = vsel %vm98, %v5077, 0
    %v5196 = vsel %vm98, %v5078, 0
    %5198 = vmatprep.subr.mxu0 0.0
    %5199 = vmatpush1.msra.mxu0 0.0
    %5200 = vmatprep.subr.mxu0 0.0
    %5201 = vmatpush1.msra.mxu0 0.0
    %5202 = vmatprep.subr.mxu0 0.0
    %5203 = vmatpush1.msra.mxu0 0.0
    %5204 = vmatprep.subr.mxu0 0.0
    %5205 = vmatpush1.msra.mxu0 0.0
    %5206 = vmatprep.subr.mxu0 0.0
    %5207 = vmatpush1.msra.mxu0 0.0
    %5208 = vmatprep.subr.mxu0 0.0
    %5209 = vmatpush1.msra.mxu0 0.0
    %5210 = vmatprep.subr.mxu0 0.0
    %5211 = vmatpush1.msra.mxu0 0.0
    %5212 = vmatprep.subr.mxu0 0.0
    %5213 = vmatpush1.msra.mxu0 0.0
    %5214 = vmatprep.subr.mxu0 0.0
    %5215 = vmatpush1.msra.mxu0 0.0
    %5216 = vmatprep.subr.mxu0 0.0
    %5217 = vmatpush1.msra.mxu0 0.0
    %5218 = vmatprep.subr.mxu0 0.0
    %5219 = vmatpush1.msra.mxu0 0.0
    %5220 = vmatprep.subr.mxu0 0.0
    %5221 = vmatpush1.msra.mxu0 0.0
    %5222 = vmatprep.subr.mxu0 0.0
    %5223 = vmatpush1.msra.mxu0 %v3957
    %5224 = vmatprep.subr.mxu0 0.0
    %5225 = vmatpush1.msra.mxu0 %v3952
    %5226 = vmatprep.subr.mxu0 0.0
    %5227 = vmatpush1.msra.mxu0 %v3947
    %5228 = vmatprep.subr.mxu0 0.0
    %5229 = vmatpush1.msra.mxu0 %v3942
    %5230 = vmatprep.subr.mxu0 0.0
    %5231 = vmatpush2.msra.mxu0 0.0
    %5232 = vmatprep.subr.mxu0 0.0
    %5233 = vmatpush2.msra.mxu0 0.0
    %5234 = vmatprep.subr.mxu0 0.0
    %5235 = vmatpush2.msra.mxu0 0.0
    %5236 = vmatprep.subr.mxu0 0.0
    %5237 = vmatpush2.msra.mxu0 0.0
    %5238 = vmatprep.subr.mxu0 0.0
    %5239 = vmatpush2.msra.mxu0 0.0
    %5240 = vmatprep.subr.mxu0 0.0
    %5241 = vmatpush2.msra.mxu0 0.0
    %5242 = vmatprep.subr.mxu0 0.0
    %5243 = vmatpush2.msra.mxu0 0.0
    %5244 = vmatprep.subr.mxu0 0.0
    %5245 = vmatpush2.msra.mxu0 0.0
    %5246 = vmatprep.subr.mxu0 0.0
    %5247 = vmatpush2.msra.mxu0 0.0
    %5248 = vmatprep.subr.mxu0 0.0
    %5249 = vmatpush2.msra.mxu0 0.0
    %5250 = vmatprep.subr.mxu0 0.0
    %5251 = vmatpush2.msra.mxu0 0.0
    %5252 = vmatprep.subr.mxu0 0.0
    %5253 = vmatpush2.msra.mxu0 0.0
    %5254 = vmatprep.subr.mxu0 0.0
    %5255 = vmatpush2.msra.mxu0 0.0
    %5256 = vmatprep.subr.mxu0 0.0
    %5257 = vmatpush2.msra.mxu0 0.0
    %5258 = vmatprep.subr.mxu0 0.0
    %5259 = vmatpush2.msra.mxu0 0.0
    %5260 = vmatprep.subr.mxu0 0.0
    %5261 = vmatpush2.msra.mxu0 0.0
    %5262 = vmatprep.mubr.f32.mxu0 0.0
    %5263 = vmatmul.mubr.f32.gmra.mxu0 %v5187
    %v5264 = vpop.f32.mrf.mxu0
    %v5265 = vadd.f32 0.0, %v5264
    %v5266 = vpop.f32.mrf.mxu0
    %5267 = vmatprep.mubr.f32.mxu0 0.0
    %5268 = vmatmul.mubr.f32.gmra.mxu0 %v5190
    %v5269 = vpop.f32.mrf.mxu0
    %v5270 = vadd.f32 0.0, %v5269
    %v5271 = vpop.f32.mrf.mxu0
    %5272 = vmatprep.mubr.f32.mxu0 0.0
    %5273 = vmatmul.mubr.f32.gmra.mxu0 %v5193
    %v5274 = vpop.f32.mrf.mxu0
    %v5275 = vadd.f32 0.0, %v5274
    %v5276 = vpop.f32.mrf.mxu0
    %5277 = vmatprep.mubr.f32.mxu0 0.0
    %5278 = vmatmul.mubr.f32.gmra.mxu0 %v5196
    %v5279 = vpop.f32.mrf.mxu0
    %v5280 = vadd.f32 0.0, %v5279
    %v5281 = vpop.f32.mrf.mxu0
    %5282 = vdwg.mxu0
    %v5283 = vld [vmem:[%s5184 + $0x8] sm:$0xff]
    %v5285 = vsel %vm483, %v5265, 0
    %v5288 = vsel %vm483, %v5270, 0
    %v5291 = vsel %vm483, %v5275, 0
    %v5294 = vsel %vm483, %v5280, 0
    %5296 = vmatprep.subr.mxu0 0.0
    %5297 = vmatpush1.msra.mxu0 0.0
    %5298 = vmatprep.subr.mxu0 0.0
    %5299 = vmatpush1.msra.mxu0 0.0
    %5300 = vmatprep.subr.mxu0 0.0
    %5301 = vmatpush1.msra.mxu0 0.0
    %5302 = vmatprep.subr.mxu0 0.0
    %5303 = vmatpush1.msra.mxu0 0.0
    %5304 = vmatprep.subr.mxu0 0.0
    %5305 = vmatpush1.msra.mxu0 0.0
    %5306 = vmatprep.subr.mxu0 0.0
    %5307 = vmatpush1.msra.mxu0 0.0
    %5308 = vmatprep.subr.mxu0 0.0
    %5309 = vmatpush1.msra.mxu0 0.0
    %5310 = vmatprep.subr.mxu0 0.0
    %5311 = vmatpush1.msra.mxu0 0.0
    %5312 = vmatprep.subr.mxu0 0.0
    %5313 = vmatpush1.msra.mxu0 0.0
    %5314 = vmatprep.subr.mxu0 0.0
    %5315 = vmatpush1.msra.mxu0 0.0
    %5316 = vmatprep.subr.mxu0 0.0
    %5317 = vmatpush1.msra.mxu0 0.0
    %5318 = vmatprep.subr.mxu0 0.0
    %5319 = vmatpush1.msra.mxu0 0.0
    %5320 = vmatprep.subr.mxu0 0.0
    %5321 = vmatpush1.msra.mxu0 0.0
    %5322 = vmatprep.subr.mxu0 0.0
    %5323 = vmatpush1.msra.mxu0 0.0
    %5324 = vmatprep.subr.mxu0 0.0
    %5325 = vmatpush1.msra.mxu0 0.0
    %5326 = vmatprep.subr.mxu0 0.0
    %5327 = vmatpush1.msra.mxu0 %v5283
    %5328 = vmatprep.subr.mxu0 0.0
    %5329 = vmatpush2.msra.mxu0 0.0
    %5330 = vmatprep.subr.mxu0 0.0
    %5331 = vmatpush2.msra.mxu0 0.0
    %5332 = vmatprep.subr.mxu0 0.0
    %5333 = vmatpush2.msra.mxu0 0.0
    %5334 = vmatprep.subr.mxu0 0.0
    %5335 = vmatpush2.msra.mxu0 0.0
    %5336 = vmatprep.subr.mxu0 0.0
    %5337 = vmatpush2.msra.mxu0 0.0
    %5338 = vmatprep.subr.mxu0 0.0
    %5339 = vmatpush2.msra.mxu0 0.0
    %5340 = vmatprep.subr.mxu0 0.0
    %5341 = vmatpush2.msra.mxu0 0.0
    %5342 = vmatprep.subr.mxu0 0.0
    %5343 = vmatpush2.msra.mxu0 0.0
    %5344 = vmatprep.subr.mxu0 0.0
    %5345 = vmatpush2.msra.mxu0 0.0
    %5346 = vmatprep.subr.mxu0 0.0
    %5347 = vmatpush2.msra.mxu0 0.0
    %5348 = vmatprep.subr.mxu0 0.0
    %5349 = vmatpush2.msra.mxu0 0.0
    %5350 = vmatprep.subr.mxu0 0.0
    %5351 = vmatpush2.msra.mxu0 0.0
    %5352 = vmatprep.subr.mxu0 0.0
    %5353 = vmatpush2.msra.mxu0 0.0
    %5354 = vmatprep.subr.mxu0 0.0
    %5355 = vmatpush2.msra.mxu0 0.0
    %5356 = vmatprep.subr.mxu0 0.0
    %5357 = vmatpush2.msra.mxu0 0.0
    %5358 = vmatprep.subr.mxu0 0.0
    %5359 = vmatpush2.msra.mxu0 0.0
    %5360 = vmatprep.mubr.f32.mxu0 0.0
    %5361 = vmatmul.mubr.f32.gmra.mxu0 %v5285
    %v5362 = vpop.f32.mrf.mxu0
    %v5363 = vadd.f32 0.0, %v5362
    %v5364 = vpop.f32.mrf.mxu0
    %5365 = vmatprep.mubr.f32.mxu0 0.0
    %5366 = vmatmul.mubr.f32.gmra.mxu0 %v5288
    %v5367 = vpop.f32.mrf.mxu0
    %v5368 = vadd.f32 0.0, %v5367
    %v5369 = vpop.f32.mrf.mxu0
    %5370 = vmatprep.mubr.f32.mxu0 0.0
    %5371 = vmatmul.mubr.f32.gmra.mxu0 %v5291
    %v5372 = vpop.f32.mrf.mxu0
    %v5373 = vadd.f32 0.0, %v5372
    %v5374 = vpop.f32.mrf.mxu0
    %5375 = vmatprep.mubr.f32.mxu0 0.0
    %5376 = vmatmul.mubr.f32.gmra.mxu0 %v5294
    %v5377 = vpop.f32.mrf.mxu0
    %v5378 = vadd.f32 0.0, %v5377
    %v5379 = vpop.f32.mrf.mxu0
    %5380 = vdwg.mxu0
    %v5382 = vsel %vm483, %v5166, 0
    %v5385 = vsel %vm483, %v5171, 0
    %v5388 = vsel %vm483, %v5176, 0
    %v5391 = vsel %vm483, %v5181, 0
    %5393 = vmatprep.subr.mxu0 0.0
    %5394 = vmatpush1.msra.mxu0 0.0
    %5395 = vmatprep.subr.mxu0 0.0
    %5396 = vmatpush1.msra.mxu0 0.0
    %5397 = vmatprep.subr.mxu0 0.0
    %5398 = vmatpush1.msra.mxu0 0.0
    %5399 = vmatprep.subr.mxu0 0.0
    %5400 = vmatpush1.msra.mxu0 0.0
    %5401 = vmatprep.subr.mxu0 0.0
    %5402 = vmatpush1.msra.mxu0 0.0
    %5403 = vmatprep.subr.mxu0 0.0
    %5404 = vmatpush1.msra.mxu0 0.0
    %5405 = vmatprep.subr.mxu0 0.0
    %5406 = vmatpush1.msra.mxu0 0.0
    %5407 = vmatprep.subr.mxu0 0.0
    %5408 = vmatpush1.msra.mxu0 0.0
    %5409 = vmatprep.subr.mxu0 0.0
    %5410 = vmatpush1.msra.mxu0 0.0
    %5411 = vmatprep.subr.mxu0 0.0
    %5412 = vmatpush1.msra.mxu0 0.0
    %5413 = vmatprep.subr.mxu0 0.0
    %5414 = vmatpush1.msra.mxu0 0.0
    %5415 = vmatprep.subr.mxu0 0.0
    %5416 = vmatpush1.msra.mxu0 0.0
    %5417 = vmatprep.subr.mxu0 0.0
    %5418 = vmatpush1.msra.mxu0 0.0
    %5419 = vmatprep.subr.mxu0 0.0
    %5420 = vmatpush1.msra.mxu0 0.0
    %5421 = vmatprep.subr.mxu0 0.0
    %5422 = vmatpush1.msra.mxu0 0.0
    %5423 = vmatprep.subr.mxu0 0.0
    %5424 = vmatpush1.msra.mxu0 %v5185
    %5425 = vmatprep.subr.mxu0 0.0
    %5426 = vmatpush2.msra.mxu0 0.0
    %5427 = vmatprep.subr.mxu0 0.0
    %5428 = vmatpush2.msra.mxu0 0.0
    %5429 = vmatprep.subr.mxu0 0.0
    %5430 = vmatpush2.msra.mxu0 0.0
    %5431 = vmatprep.subr.mxu0 0.0
    %5432 = vmatpush2.msra.mxu0 0.0
    %5433 = vmatprep.subr.mxu0 0.0
    %5434 = vmatpush2.msra.mxu0 0.0
    %5435 = vmatprep.subr.mxu0 0.0
    %5436 = vmatpush2.msra.mxu0 0.0
    %5437 = vmatprep.subr.mxu0 0.0
    %5438 = vmatpush2.msra.mxu0 0.0
    %5439 = vmatprep.subr.mxu0 0.0
    %5440 = vmatpush2.msra.mxu0 0.0
    %5441 = vmatprep.subr.mxu0 0.0
    %5442 = vmatpush2.msra.mxu0 0.0
    %5443 = vmatprep.subr.mxu0 0.0
    %5444 = vmatpush2.msra.mxu0 0.0
    %5445 = vmatprep.subr.mxu0 0.0
    %5446 = vmatpush2.msra.mxu0 0.0
    %5447 = vmatprep.subr.mxu0 0.0
    %5448 = vmatpush2.msra.mxu0 0.0
    %5449 = vmatprep.subr.mxu0 0.0
    %5450 = vmatpush2.msra.mxu0 0.0
    %5451 = vmatprep.subr.mxu0 0.0
    %5452 = vmatpush2.msra.mxu0 0.0
    %5453 = vmatprep.subr.mxu0 0.0
    %5454 = vmatpush2.msra.mxu0 0.0
    %5455 = vmatprep.subr.mxu0 0.0
    %5456 = vmatpush2.msra.mxu0 0.0
    %5457 = vmatprep.mubr.f32.mxu0 0.0
    %5458 = vmatmul.mubr.f32.gmra.mxu0 %v5382
    %v5459 = vpop.f32.mrf.mxu0
    %v5460 = vadd.f32 %v5363, %v5459
    %v5461 = vpop.f32.mrf.mxu0
    %5462 = vmatprep.mubr.f32.mxu0 0.0
    %5463 = vmatmul.mubr.f32.gmra.mxu0 %v5385
    %v5464 = vpop.f32.mrf.mxu0
    %v5465 = vadd.f32 %v5368, %v5464
    %v5466 = vpop.f32.mrf.mxu0
    %5467 = vmatprep.mubr.f32.mxu0 0.0
    %5468 = vmatmul.mubr.f32.gmra.mxu0 %v5388
    %v5469 = vpop.f32.mrf.mxu0
    %v5470 = vadd.f32 %v5373, %v5469
    %v5471 = vpop.f32.mrf.mxu0
    %5472 = vmatprep.mubr.f32.mxu0 0.0
    %5473 = vmatmul.mubr.f32.gmra.mxu0 %v5391
    %v5474 = vpop.f32.mrf.mxu0
    %v5475 = vadd.f32 %v5378, %v5474
    %v5476 = vpop.f32.mrf.mxu0
    %5477 = vdwg.mxu0
    %v5479 = vsel %vm98, %v5079, 0
    %v5482 = vsel %vm98, %v5080, 0
    %v5485 = vsel %vm98, %v5081, 0
    %v5488 = vsel %vm98, %v5082, 0
    %5490 = vmatprep.subr.mxu0 0.0
    %5491 = vmatpush1.msra.mxu0 0.0
    %5492 = vmatprep.subr.mxu0 0.0
    %5493 = vmatpush1.msra.mxu0 0.0
    %5494 = vmatprep.subr.mxu0 0.0
    %5495 = vmatpush1.msra.mxu0 0.0
    %5496 = vmatprep.subr.mxu0 0.0
    %5497 = vmatpush1.msra.mxu0 0.0
    %5498 = vmatprep.subr.mxu0 0.0
    %5499 = vmatpush1.msra.mxu0 0.0
    %5500 = vmatprep.subr.mxu0 0.0
    %5501 = vmatpush1.msra.mxu0 0.0
    %5502 = vmatprep.subr.mxu0 0.0
    %5503 = vmatpush1.msra.mxu0 0.0
    %5504 = vmatprep.subr.mxu0 0.0
    %5505 = vmatpush1.msra.mxu0 0.0
    %5506 = vmatprep.subr.mxu0 0.0
    %5507 = vmatpush1.msra.mxu0 0.0
    %5508 = vmatprep.subr.mxu0 0.0
    %5509 = vmatpush1.msra.mxu0 0.0
    %5510 = vmatprep.subr.mxu0 0.0
    %5511 = vmatpush1.msra.mxu0 0.0
    %5512 = vmatprep.subr.mxu0 0.0
    %5513 = vmatpush1.msra.mxu0 0.0
    %5514 = vmatprep.subr.mxu0 0.0
    %5515 = vmatpush1.msra.mxu0 %v4374
    %5516 = vmatprep.subr.mxu0 0.0
    %5517 = vmatpush1.msra.mxu0 %v4369
    %5518 = vmatprep.subr.mxu0 0.0
    %5519 = vmatpush1.msra.mxu0 %v4364
    %5520 = vmatprep.subr.mxu0 0.0
    %5521 = vmatpush1.msra.mxu0 %v4359
    %5522 = vmatprep.subr.mxu0 0.0
    %5523 = vmatpush2.msra.mxu0 0.0
    %5524 = vmatprep.subr.mxu0 0.0
    %5525 = vmatpush2.msra.mxu0 0.0
    %5526 = vmatprep.subr.mxu0 0.0
    %5527 = vmatpush2.msra.mxu0 0.0
    %5528 = vmatprep.subr.mxu0 0.0
    %5529 = vmatpush2.msra.mxu0 0.0
    %5530 = vmatprep.subr.mxu0 0.0
    %5531 = vmatpush2.msra.mxu0 0.0
    %5532 = vmatprep.subr.mxu0 0.0
    %5533 = vmatpush2.msra.mxu0 0.0
    %5534 = vmatprep.subr.mxu0 0.0
    %5535 = vmatpush2.msra.mxu0 0.0
    %5536 = vmatprep.subr.mxu0 0.0
    %5537 = vmatpush2.msra.mxu0 0.0
    %5538 = vmatprep.subr.mxu0 0.0
    %5539 = vmatpush2.msra.mxu0 0.0
    %5540 = vmatprep.subr.mxu0 0.0
    %5541 = vmatpush2.msra.mxu0 0.0
    %5542 = vmatprep.subr.mxu0 0.0
    %5543 = vmatpush2.msra.mxu0 0.0
    %5544 = vmatprep.subr.mxu0 0.0
    %5545 = vmatpush2.msra.mxu0 0.0
    %5546 = vmatprep.subr.mxu0 0.0
    %5547 = vmatpush2.msra.mxu0 0.0
    %5548 = vmatprep.subr.mxu0 0.0
    %5549 = vmatpush2.msra.mxu0 0.0
    %5550 = vmatprep.subr.mxu0 0.0
    %5551 = vmatpush2.msra.mxu0 0.0
    %5552 = vmatprep.subr.mxu0 0.0
    %5553 = vmatpush2.msra.mxu0 0.0
    %5554 = vmatprep.mubr.f32.mxu0 0.0
    %5555 = vmatmul.mubr.f32.gmra.mxu0 %v5479
    %v5556 = vpop.f32.mrf.mxu0
    %v5557 = vadd.f32 0.0, %v5556
    %v5558 = vpop.f32.mrf.mxu0
    %5559 = vmatprep.mubr.f32.mxu0 0.0
    %5560 = vmatmul.mubr.f32.gmra.mxu0 %v5482
    %v5561 = vpop.f32.mrf.mxu0
    %v5562 = vadd.f32 0.0, %v5561
    %v5563 = vpop.f32.mrf.mxu0
    %5564 = vmatprep.mubr.f32.mxu0 0.0
    %5565 = vmatmul.mubr.f32.gmra.mxu0 %v5485
    %v5566 = vpop.f32.mrf.mxu0
    %v5567 = vadd.f32 0.0, %v5566
    %v5568 = vpop.f32.mrf.mxu0
    %5569 = vmatprep.mubr.f32.mxu0 0.0
    %5570 = vmatmul.mubr.f32.gmra.mxu0 %v5488
    %v5571 = vpop.f32.mrf.mxu0
    %v5572 = vadd.f32 0.0, %v5571
    %v5573 = vpop.f32.mrf.mxu0
    %5574 = vdwg.mxu0
    %v5575 = vld [vmem:[%s5184 + $0x10] sm:$0xff]
    %v5577 = vsel %vm483, %v5557, 0
    %v5580 = vsel %vm483, %v5562, 0
    %v5583 = vsel %vm483, %v5567, 0
    %v5586 = vsel %vm483, %v5572, 0
    %5588 = vmatprep.subr.mxu0 0.0
    %5589 = vmatpush1.msra.mxu0 0.0
    %5590 = vmatprep.subr.mxu0 0.0
    %5591 = vmatpush1.msra.mxu0 0.0
    %5592 = vmatprep.subr.mxu0 0.0
    %5593 = vmatpush1.msra.mxu0 0.0
    %5594 = vmatprep.subr.mxu0 0.0
    %5595 = vmatpush1.msra.mxu0 0.0
    %5596 = vmatprep.subr.mxu0 0.0
    %5597 = vmatpush1.msra.mxu0 0.0
    %5598 = vmatprep.subr.mxu0 0.0
    %5599 = vmatpush1.msra.mxu0 0.0
    %5600 = vmatprep.subr.mxu0 0.0
    %5601 = vmatpush1.msra.mxu0 0.0
    %5602 = vmatprep.subr.mxu0 0.0
    %5603 = vmatpush1.msra.mxu0 0.0
    %5604 = vmatprep.subr.mxu0 0.0
    %5605 = vmatpush1.msra.mxu0 0.0
    %5606 = vmatprep.subr.mxu0 0.0
    %5607 = vmatpush1.msra.mxu0 0.0
    %5608 = vmatprep.subr.mxu0 0.0
    %5609 = vmatpush1.msra.mxu0 0.0
    %5610 = vmatprep.subr.mxu0 0.0
    %5611 = vmatpush1.msra.mxu0 0.0
    %5612 = vmatprep.subr.mxu0 0.0
    %5613 = vmatpush1.msra.mxu0 0.0
    %5614 = vmatprep.subr.mxu0 0.0
    %5615 = vmatpush1.msra.mxu0 0.0
    %5616 = vmatprep.subr.mxu0 0.0
    %5617 = vmatpush1.msra.mxu0 0.0
    %5618 = vmatprep.subr.mxu0 0.0
    %5619 = vmatpush1.msra.mxu0 %v5575
    %5620 = vmatprep.subr.mxu0 0.0
    %5621 = vmatpush2.msra.mxu0 0.0
    %5622 = vmatprep.subr.mxu0 0.0
    %5623 = vmatpush2.msra.mxu0 0.0
    %5624 = vmatprep.subr.mxu0 0.0
    %5625 = vmatpush2.msra.mxu0 0.0
    %5626 = vmatprep.subr.mxu0 0.0
    %5627 = vmatpush2.msra.mxu0 0.0
    %5628 = vmatprep.subr.mxu0 0.0
    %5629 = vmatpush2.msra.mxu0 0.0
    %5630 = vmatprep.subr.mxu0 0.0
    %5631 = vmatpush2.msra.mxu0 0.0
    %5632 = vmatprep.subr.mxu0 0.0
    %5633 = vmatpush2.msra.mxu0 0.0
    %5634 = vmatprep.subr.mxu0 0.0
    %5635 = vmatpush2.msra.mxu0 0.0
    %5636 = vmatprep.subr.mxu0 0.0
    %5637 = vmatpush2.msra.mxu0 0.0
    %5638 = vmatprep.subr.mxu0 0.0
    %5639 = vmatpush2.msra.mxu0 0.0
    %5640 = vmatprep.subr.mxu0 0.0
    %5641 = vmatpush2.msra.mxu0 0.0
    %5642 = vmatprep.subr.mxu0 0.0
    %5643 = vmatpush2.msra.mxu0 0.0
    %5644 = vmatprep.subr.mxu0 0.0
    %5645 = vmatpush2.msra.mxu0 0.0
    %5646 = vmatprep.subr.mxu0 0.0
    %5647 = vmatpush2.msra.mxu0 0.0
    %5648 = vmatprep.subr.mxu0 0.0
    %5649 = vmatpush2.msra.mxu0 0.0
    %5650 = vmatprep.subr.mxu0 0.0
    %5651 = vmatpush2.msra.mxu0 0.0
    %5652 = vmatprep.mubr.f32.mxu0 0.0
    %5653 = vmatmul.mubr.f32.gmra.mxu0 %v5577
    %v5654 = vpop.f32.mrf.mxu0
    %v5655 = vadd.f32 0.0, %v5654
    %v5656 = vpop.f32.mrf.mxu0
    %5657 = vmatprep.mubr.f32.mxu0 0.0
    %5658 = vmatmul.mubr.f32.gmra.mxu0 %v5580
    %v5659 = vpop.f32.mrf.mxu0
    %v5660 = vadd.f32 0.0, %v5659
    %v5661 = vpop.f32.mrf.mxu0
    %5662 = vmatprep.mubr.f32.mxu0 0.0
    %5663 = vmatmul.mubr.f32.gmra.mxu0 %v5583
    %v5664 = vpop.f32.mrf.mxu0
    %v5665 = vadd.f32 0.0, %v5664
    %v5666 = vpop.f32.mrf.mxu0
    %5667 = vmatprep.mubr.f32.mxu0 0.0
    %5668 = vmatmul.mubr.f32.gmra.mxu0 %v5586
    %v5669 = vpop.f32.mrf.mxu0
    %v5670 = vadd.f32 0.0, %v5669
    %v5671 = vpop.f32.mrf.mxu0
    %5672 = vdwg.mxu0
    %v5673 = vadd.f32 %v5460, %v5655
    %v5674 = vadd.f32 %v5465, %v5660
    %v5675 = vadd.f32 %v5470, %v5665
    %v5676 = vadd.f32 %v5475, %v5670
    %v5678 = vsel %vm98, %v5083, 0
    %v5681 = vsel %vm98, %v5084, 0
    %v5684 = vsel %vm98, %v5085, 0
    %v5687 = vsel %vm98, %v5086, 0
    %5689 = vmatprep.subr.mxu0 0.0
    %5690 = vmatpush1.msra.mxu0 0.0
    %5691 = vmatprep.subr.mxu0 0.0
    %5692 = vmatpush1.msra.mxu0 0.0
    %5693 = vmatprep.subr.mxu0 0.0
    %5694 = vmatpush1.msra.mxu0 0.0
    %5695 = vmatprep.subr.mxu0 0.0
    %5696 = vmatpush1.msra.mxu0 0.0
    %5697 = vmatprep.subr.mxu0 0.0
    %5698 = vmatpush1.msra.mxu0 0.0
    %5699 = vmatprep.subr.mxu0 0.0
    %5700 = vmatpush1.msra.mxu0 0.0
    %5701 = vmatprep.subr.mxu0 0.0
    %5702 = vmatpush1.msra.mxu0 0.0
    %5703 = vmatprep.subr.mxu0 0.0
    %5704 = vmatpush1.msra.mxu0 0.0
    %5705 = vmatprep.subr.mxu0 0.0
    %5706 = vmatpush1.msra.mxu0 0.0
    %5707 = vmatprep.subr.mxu0 0.0
    %5708 = vmatpush1.msra.mxu0 0.0
    %5709 = vmatprep.subr.mxu0 0.0
    %5710 = vmatpush1.msra.mxu0 0.0
    %5711 = vmatprep.subr.mxu0 0.0
    %5712 = vmatpush1.msra.mxu0 0.0
    %5713 = vmatprep.subr.mxu0 0.0
    %5714 = vmatpush1.msra.mxu0 %v4791
    %5715 = vmatprep.subr.mxu0 0.0
    %5716 = vmatpush1.msra.mxu0 %v4786
    %5717 = vmatprep.subr.mxu0 0.0
    %5718 = vmatpush1.msra.mxu0 %v4781
    %5719 = vmatprep.subr.mxu0 0.0
    %5720 = vmatpush1.msra.mxu0 %v4776
    %5721 = vmatprep.subr.mxu0 0.0
    %5722 = vmatpush2.msra.mxu0 0.0
    %5723 = vmatprep.subr.mxu0 0.0
    %5724 = vmatpush2.msra.mxu0 0.0
    %5725 = vmatprep.subr.mxu0 0.0
    %5726 = vmatpush2.msra.mxu0 0.0
    %5727 = vmatprep.subr.mxu0 0.0
    %5728 = vmatpush2.msra.mxu0 0.0
    %5729 = vmatprep.subr.mxu0 0.0
    %5730 = vmatpush2.msra.mxu0 0.0
    %5731 = vmatprep.subr.mxu0 0.0
    %5732 = vmatpush2.msra.mxu0 0.0
    %5733 = vmatprep.subr.mxu0 0.0
    %5734 = vmatpush2.msra.mxu0 0.0
    %5735 = vmatprep.subr.mxu0 0.0
    %5736 = vmatpush2.msra.mxu0 0.0
    %5737 = vmatprep.subr.mxu0 0.0
    %5738 = vmatpush2.msra.mxu0 0.0
    %5739 = vmatprep.subr.mxu0 0.0
    %5740 = vmatpush2.msra.mxu0 0.0
    %5741 = vmatprep.subr.mxu0 0.0
    %5742 = vmatpush2.msra.mxu0 0.0
    %5743 = vmatprep.subr.mxu0 0.0
    %5744 = vmatpush2.msra.mxu0 0.0
    %5745 = vmatprep.subr.mxu0 0.0
    %5746 = vmatpush2.msra.mxu0 0.0
    %5747 = vmatprep.subr.mxu0 0.0
    %5748 = vmatpush2.msra.mxu0 0.0
    %5749 = vmatprep.subr.mxu0 0.0
    %5750 = vmatpush2.msra.mxu0 0.0
    %5751 = vmatprep.subr.mxu0 0.0
    %5752 = vmatpush2.msra.mxu0 0.0
    %5753 = vmatprep.mubr.f32.mxu0 0.0
    %5754 = vmatmul.mubr.f32.gmra.mxu0 %v5678
    %v5755 = vpop.f32.mrf.mxu0
    %v5756 = vadd.f32 0.0, %v5755
    %v5757 = vpop.f32.mrf.mxu0
    %5758 = vmatprep.mubr.f32.mxu0 0.0
    %5759 = vmatmul.mubr.f32.gmra.mxu0 %v5681
    %v5760 = vpop.f32.mrf.mxu0
    %v5761 = vadd.f32 0.0, %v5760
    %v5762 = vpop.f32.mrf.mxu0
    %5763 = vmatprep.mubr.f32.mxu0 0.0
    %5764 = vmatmul.mubr.f32.gmra.mxu0 %v5684
    %v5765 = vpop.f32.mrf.mxu0
    %v5766 = vadd.f32 0.0, %v5765
    %v5767 = vpop.f32.mrf.mxu0
    %5768 = vmatprep.mubr.f32.mxu0 0.0
    %5769 = vmatmul.mubr.f32.gmra.mxu0 %v5687
    %v5770 = vpop.f32.mrf.mxu0
    %v5771 = vadd.f32 0.0, %v5770
    %v5772 = vpop.f32.mrf.mxu0
    %5773 = vdwg.mxu0
    %v5774 = vld [vmem:[%s5184 + $0x18] sm:$0xff]
    %v5776 = vsel %vm483, %v5756, 0
    %v5779 = vsel %vm483, %v5761, 0
    %v5782 = vsel %vm483, %v5766, 0
    %v5785 = vsel %vm483, %v5771, 0
    %5787 = vmatprep.subr.mxu0 0.0
    %5788 = vmatpush1.msra.mxu0 0.0
    %5789 = vmatprep.subr.mxu0 0.0
    %5790 = vmatpush1.msra.mxu0 0.0
    %5791 = vmatprep.subr.mxu0 0.0
    %5792 = vmatpush1.msra.mxu0 0.0
    %5793 = vmatprep.subr.mxu0 0.0
    %5794 = vmatpush1.msra.mxu0 0.0
    %5795 = vmatprep.subr.mxu0 0.0
    %5796 = vmatpush1.msra.mxu0 0.0
    %5797 = vmatprep.subr.mxu0 0.0
    %5798 = vmatpush1.msra.mxu0 0.0
    %5799 = vmatprep.subr.mxu0 0.0
    %5800 = vmatpush1.msra.mxu0 0.0
    %5801 = vmatprep.subr.mxu0 0.0
    %5802 = vmatpush1.msra.mxu0 0.0
    %5803 = vmatprep.subr.mxu0 0.0
    %5804 = vmatpush1.msra.mxu0 0.0
    %5805 = vmatprep.subr.mxu0 0.0
    %5806 = vmatpush1.msra.mxu0 0.0
    %5807 = vmatprep.subr.mxu0 0.0
    %5808 = vmatpush1.msra.mxu0 0.0
    %5809 = vmatprep.subr.mxu0 0.0
    %5810 = vmatpush1.msra.mxu0 0.0
    %5811 = vmatprep.subr.mxu0 0.0
    %5812 = vmatpush1.msra.mxu0 0.0
    %5813 = vmatprep.subr.mxu0 0.0
    %5814 = vmatpush1.msra.mxu0 0.0
    %5815 = vmatprep.subr.mxu0 0.0
    %5816 = vmatpush1.msra.mxu0 0.0
    %5817 = vmatprep.subr.mxu0 0.0
    %5818 = vmatpush1.msra.mxu0 %v5774
    %5819 = vmatprep.subr.mxu0 0.0
    %5820 = vmatpush2.msra.mxu0 0.0
    %5821 = vmatprep.subr.mxu0 0.0
    %5822 = vmatpush2.msra.mxu0 0.0
    %5823 = vmatprep.subr.mxu0 0.0
    %5824 = vmatpush2.msra.mxu0 0.0
    %5825 = vmatprep.subr.mxu0 0.0
    %5826 = vmatpush2.msra.mxu0 0.0
    %5827 = vmatprep.subr.mxu0 0.0
    %5828 = vmatpush2.msra.mxu0 0.0
    %5829 = vmatprep.subr.mxu0 0.0
    %5830 = vmatpush2.msra.mxu0 0.0
    %5831 = vmatprep.subr.mxu0 0.0
    %5832 = vmatpush2.msra.mxu0 0.0
    %5833 = vmatprep.subr.mxu0 0.0
    %5834 = vmatpush2.msra.mxu0 0.0
    %5835 = vmatprep.subr.mxu0 0.0
    %5836 = vmatpush2.msra.mxu0 0.0
    %5837 = vmatprep.subr.mxu0 0.0
    %5838 = vmatpush2.msra.mxu0 0.0
    %5839 = vmatprep.subr.mxu0 0.0
    %5840 = vmatpush2.msra.mxu0 0.0
    %5841 = vmatprep.subr.mxu0 0.0
    %5842 = vmatpush2.msra.mxu0 0.0
    %5843 = vmatprep.subr.mxu0 0.0
    %5844 = vmatpush2.msra.mxu0 0.0
    %5845 = vmatprep.subr.mxu0 0.0
    %5846 = vmatpush2.msra.mxu0 0.0
    %5847 = vmatprep.subr.mxu0 0.0
    %5848 = vmatpush2.msra.mxu0 0.0
    %5849 = vmatprep.subr.mxu0 0.0
    %5850 = vmatpush2.msra.mxu0 0.0
    %5851 = vmatprep.mubr.f32.mxu0 0.0
    %5852 = vmatmul.mubr.f32.gmra.mxu0 %v5776
    %v5853 = vpop.f32.mrf.mxu0
    %v5854 = vadd.f32 0.0, %v5853
    %v5855 = vpop.f32.mrf.mxu0
    %5856 = vmatprep.mubr.f32.mxu0 0.0
    %5857 = vmatmul.mubr.f32.gmra.mxu0 %v5779
    %v5858 = vpop.f32.mrf.mxu0
    %v5859 = vadd.f32 0.0, %v5858
    %v5860 = vpop.f32.mrf.mxu0
    %5861 = vmatprep.mubr.f32.mxu0 0.0
    %5862 = vmatmul.mubr.f32.gmra.mxu0 %v5782
    %v5863 = vpop.f32.mrf.mxu0
    %v5864 = vadd.f32 0.0, %v5863
    %v5865 = vpop.f32.mrf.mxu0
    %5866 = vmatprep.mubr.f32.mxu0 0.0
    %5867 = vmatmul.mubr.f32.gmra.mxu0 %v5785
    %v5868 = vpop.f32.mrf.mxu0
    %v5869 = vadd.f32 0.0, %v5868
    %v5870 = vpop.f32.mrf.mxu0
    %5871 = vdwg.mxu0
    %v5872 = vadd.f32 %v5673, %v5854
    %v5873 = vadd.f32 %v5674, %v5859
    %v5874 = vadd.f32 %v5675, %v5864
    %v5875 = vadd.f32 %v5676, %v5869
    %v5876 = vld [vmem:[#allocation7 + $0xc] sm:$0x1]
    %v5877 = vlaneseq
    %v5878 = vshrl.u32 %v5877, 7
    %v5879 = vsub.s32 0, %v5878
    %v5880 = vrot.slane %v5876, %v5879
    %v5881 = vadd.f32 %v5872, %v5880
    %v5882 = vadd.f32 %v5873, %v5880
    %v5883 = vadd.f32 %v5874, %v5880
    %v5884 = vadd.f32 %v5875, %v5880
    %v5885 = vadd.f32 %v5881, %v3222
    %v5886 = vadd.f32 %v5882, %v3223
    %v5887 = vadd.f32 %v5883, %v3224
    %v5888 = vadd.f32 %v5884, %v3225
    %v5889 = vld [vmem:[#allocation7 + $0xd] sm:$0x1]
    %v5890 = vld [vmem:[#allocation7 + $0xe] sm:$0x1]
    %v5891 = vsel %vm98, %v5885, 0.0
    %5892 = vadd.xlane.f32.xlu0 %v5891
    %v5893 = vpop.xlane.xlu0 %5892
    %v5894 = vsel %vm98, %v5886, 0.0
    %5895 = vadd.xlane.f32.xlu0 %v5894
    %v5896 = vpop.xlane.xlu0 %5895
    %v5897 = vsel %vm98, %v5887, 0.0
    %5898 = vadd.xlane.f32.xlu0 %v5897
    %v5899 = vpop.xlane.xlu0 %5898
    %v5900 = vsel %vm98, %v5888, 0.0
    %5901 = vadd.xlane.f32.xlu0 %v5900
    %v5902 = vpop.xlane.xlu0 %5901
    %v5903 = vmul.f32 %v5893, %v111
    %v5904 = vmul.f32 %v5896, %v111
    %v5905 = vmul.f32 %v5899, %v111
    %v5906 = vmul.f32 %v5902, %v111
    %v5907 = vsub.f32 %v5885, %v5903
    %v5908 = vsub.f32 %v5886, %v5904
    %v5909 = vsub.f32 %v5887, %v5905
    %v5910 = vsub.f32 %v5888, %v5906
    %v5911 = vmul.f32 %v5907, %v5907
    %v5912 = vmul.f32 %v5908, %v5908
    %v5913 = vmul.f32 %v5909, %v5909
    %v5914 = vmul.f32 %v5910, %v5910
    %v5915 = vsel %vm98, %v5911, 0.0
    %5916 = vadd.xlane.f32.xlu0 %v5915
    %v5917 = vpop.xlane.xlu0 %5916
    %v5918 = vsel %vm98, %v5912, 0.0
    %5919 = vadd.xlane.f32.xlu0 %v5918
    %v5920 = vpop.xlane.xlu0 %5919
    %v5921 = vsel %vm98, %v5913, 0.0
    %5922 = vadd.xlane.f32.xlu0 %v5921
    %v5923 = vpop.xlane.xlu0 %5922
    %v5924 = vsel %vm98, %v5914, 0.0
    %5925 = vadd.xlane.f32.xlu0 %v5924
    %v5926 = vpop.xlane.xlu0 %5925
    %v5927 = vmul.f32 %v5917, %v111
    %v5928 = vmul.f32 %v5920, %v111
    %v5929 = vmul.f32 %v5923, %v111
    %v5930 = vmul.f32 %v5926, %v111
    %v5931 = vadd.f32 %v5927, 1e-12
    %v5932 = vadd.f32 %v5928, 1e-12
    %v5933 = vadd.f32 %v5929, 1e-12
    %v5934 = vadd.f32 %v5930, 1e-12
    %v5935 = vrsqrt.pop %v5931
    %v5936 = vrsqrt.pop %v5932
    %v5937 = vrsqrt.pop %v5933
    %v5938 = vrsqrt.pop %v5934
    %v5939 = vmul.f32 %v5907, %v5935
    %v5940 = vmul.f32 %v5908, %v5936
    %v5941 = vmul.f32 %v5909, %v5937
    %v5942 = vmul.f32 %v5910, %v5938
    %v5943 = vlaneseq
    %v5944 = vshrl.u32 %v5943, 7
    %v5945 = vsub.s32 0, %v5944
    %v5946 = vrot.slane %v5889, %v5945
    %v5947 = vmul.f32 %v5939, %v5946
    %v5948 = vmul.f32 %v5940, %v5946
    %v5949 = vmul.f32 %v5941, %v5946
    %v5950 = vmul.f32 %v5942, %v5946
    %v5951 = vlaneseq
    %v5952 = vshrl.u32 %v5951, 7
    %v5953 = vsub.s32 0, %v5952
    %v5954 = vrot.slane %v5890, %v5953
    %v5955 = vadd.f32 %v5947, %v5954
    %v5956 = vadd.f32 %v5948, %v5954
    %v5957 = vadd.f32 %v5949, %v5954
    %v5958 = vadd.f32 %v5950, %v5954
    %s5959 = scalar_lea.vmem %s5, 32
    %v5960 = vld [vmem:[%s5959] sm:$0xff]
    %v5961 = vld [vmem:[%s5959 + $0x8] sm:$0xff]
    %v5962 = vld [vmem:[%s5959 + $0x10] sm:$0xff]
    %v5963 = vld [vmem:[%s5959 + $0x18] sm:$0xff]
    %v5964 = vld [vmem:[#allocation7 + $0xf] sm:$0x1]
    %v5965 = vlaneseq
    %v5966 = vshrl.u32 %v5965, 7
    %v5967 = vsub.s32 0, %v5966
    %v5968 = vrot.slane %v5964, %v5967
    %v5970 = vsel %vm98, %v5955, 0
    %v5973 = vsel %vm98, %v5956, 0
    %v5976 = vsel %vm98, %v5957, 0
    %v5979 = vsel %vm98, %v5958, 0
    %5981 = vmatprep.subr.mxu0 0.0
    %5982 = vmatpush1.msra.mxu0 0.0
    %5983 = vmatprep.subr.mxu0 0.0
    %5984 = vmatpush1.msra.mxu0 0.0
    %5985 = vmatprep.subr.mxu0 0.0
    %5986 = vmatpush1.msra.mxu0 0.0
    %5987 = vmatprep.subr.mxu0 0.0
    %5988 = vmatpush1.msra.mxu0 0.0
    %5989 = vmatprep.subr.mxu0 0.0
    %5990 = vmatpush1.msra.mxu0 0.0
    %5991 = vmatprep.subr.mxu0 0.0
    %5992 = vmatpush1.msra.mxu0 0.0
    %5993 = vmatprep.subr.mxu0 0.0
    %5994 = vmatpush1.msra.mxu0 0.0
    %5995 = vmatprep.subr.mxu0 0.0
    %5996 = vmatpush1.msra.mxu0 0.0
    %5997 = vmatprep.subr.mxu0 0.0
    %5998 = vmatpush1.msra.mxu0 0.0
    %5999 = vmatprep.subr.mxu0 0.0
    %6000 = vmatpush1.msra.mxu0 0.0
    %6001 = vmatprep.subr.mxu0 0.0
    %6002 = vmatpush1.msra.mxu0 0.0
    %6003 = vmatprep.subr.mxu0 0.0
    %6004 = vmatpush1.msra.mxu0 0.0
    %6005 = vmatprep.subr.mxu0 0.0
    %6006 = vmatpush1.msra.mxu0 %v5963
    %6007 = vmatprep.subr.mxu0 0.0
    %6008 = vmatpush1.msra.mxu0 %v5962
    %6009 = vmatprep.subr.mxu0 0.0
    %6010 = vmatpush1.msra.mxu0 %v5961
    %6011 = vmatprep.subr.mxu0 0.0
    %6012 = vmatpush1.msra.mxu0 %v5960
    %6013 = vmatprep.subr.mxu0 0.0
    %6014 = vmatpush2.msra.mxu0 0.0
    %6015 = vmatprep.subr.mxu0 0.0
    %6016 = vmatpush2.msra.mxu0 0.0
    %6017 = vmatprep.subr.mxu0 0.0
    %6018 = vmatpush2.msra.mxu0 0.0
    %6019 = vmatprep.subr.mxu0 0.0
    %6020 = vmatpush2.msra.mxu0 0.0
    %6021 = vmatprep.subr.mxu0 0.0
    %6022 = vmatpush2.msra.mxu0 0.0
    %6023 = vmatprep.subr.mxu0 0.0
    %6024 = vmatpush2.msra.mxu0 0.0
    %6025 = vmatprep.subr.mxu0 0.0
    %6026 = vmatpush2.msra.mxu0 0.0
    %6027 = vmatprep.subr.mxu0 0.0
    %6028 = vmatpush2.msra.mxu0 0.0
    %6029 = vmatprep.subr.mxu0 0.0
    %6030 = vmatpush2.msra.mxu0 0.0
    %6031 = vmatprep.subr.mxu0 0.0
    %6032 = vmatpush2.msra.mxu0 0.0
    %6033 = vmatprep.subr.mxu0 0.0
    %6034 = vmatpush2.msra.mxu0 0.0
    %6035 = vmatprep.subr.mxu0 0.0
    %6036 = vmatpush2.msra.mxu0 0.0
    %6037 = vmatprep.subr.mxu0 0.0
    %6038 = vmatpush2.msra.mxu0 0.0
    %6039 = vmatprep.subr.mxu0 0.0
    %6040 = vmatpush2.msra.mxu0 0.0
    %6041 = vmatprep.subr.mxu0 0.0
    %6042 = vmatpush2.msra.mxu0 0.0
    %6043 = vmatprep.subr.mxu0 0.0
    %6044 = vmatpush2.msra.mxu0 0.0
    %6045 = vmatprep.mubr.f32.mxu0 0.0
    %6046 = vmatmul.mubr.f32.gmra.mxu0 %v5970
    %v6047 = vpop.f32.mrf.mxu0
    %v6048 = vadd.f32 %v5968, %v6047
    %v6049 = vpop.f32.mrf.mxu0
    %6050 = vmatprep.mubr.f32.mxu0 0.0
    %6051 = vmatmul.mubr.f32.gmra.mxu0 %v5973
    %v6052 = vpop.f32.mrf.mxu0
    %v6053 = vadd.f32 %v5968, %v6052
    %v6054 = vpop.f32.mrf.mxu0
    %6055 = vmatprep.mubr.f32.mxu0 0.0
    %6056 = vmatmul.mubr.f32.gmra.mxu0 %v5976
    %v6057 = vpop.f32.mrf.mxu0
    %v6058 = vadd.f32 %v5968, %v6057
    %v6059 = vpop.f32.mrf.mxu0
    %6060 = vmatprep.mubr.f32.mxu0 0.0
    %6061 = vmatmul.mubr.f32.gmra.mxu0 %v5979
    %v6062 = vpop.f32.mrf.mxu0
    %v6063 = vadd.f32 %v5968, %v6062
    %v6064 = vpop.f32.mrf.mxu0
    %6065 = vdwg.mxu0
    %v6066 = vmul.f32 %v6048, 0.5
    %v6067 = vmul.f32 %v6053, 0.5
    %v6068 = vmul.f32 %v6058, 0.5
    %v6069 = vmul.f32 %v6063, 0.5
    %v6070 = vmul.f32 %v6048, 0.044715
    %v6071 = vmul.f32 %v6053, 0.044715
    %v6072 = vmul.f32 %v6058, 0.044715
    %v6073 = vmul.f32 %v6063, 0.044715
    %v6074 = vmul.f32 %v6070, %v6048
    %v6075 = vmul.f32 %v6071, %v6053
    %v6076 = vmul.f32 %v6072, %v6058
    %v6077 = vmul.f32 %v6073, %v6063
    %v6078 = vmul.f32 %v6074, %v6048
    %v6079 = vmul.f32 %v6075, %v6053
    %v6080 = vmul.f32 %v6076, %v6058
    %v6081 = vmul.f32 %v6077, %v6063
    %v6082 = vadd.f32 %v6048, %v6078
    %v6083 = vadd.f32 %v6053, %v6079
    %v6084 = vadd.f32 %v6058, %v6080
    %v6085 = vadd.f32 %v6063, %v6081
    %v6086 = vmul.f32 %v6082, 0.7978846
    %v6087 = vmul.f32 %v6083, 0.7978846
    %v6088 = vmul.f32 %v6084, 0.7978846
    %v6089 = vmul.f32 %v6085, 0.7978846
    %v6090 = vtanh.pop %v6086
    %v6091 = vtanh.pop %v6087
    %v6092 = vtanh.pop %v6088
    %v6093 = vtanh.pop %v6089
    %v6094 = vadd.f32 %v6090, 1.0
    %v6095 = vadd.f32 %v6091, 1.0
    %v6096 = vadd.f32 %v6092, 1.0
    %v6097 = vadd.f32 %v6093, 1.0
    %v6098 = vmul.f32 %v6066, %v6094
    %v6099 = vmul.f32 %v6067, %v6095
    %v6100 = vmul.f32 %v6068, %v6096
    %v6101 = vmul.f32 %v6069, %v6097
    %s6102 = scalar_lea.vmem %s6, 64
    %v6103 = vld [vmem:[%s6102] sm:$0xff]
    %v6104 = vld [vmem:[%s6102 + $0x8] sm:$0xff]
    %v6105 = vld [vmem:[%s6102 + $0x10] sm:$0xff]
    %v6106 = vld [vmem:[%s6102 + $0x18] sm:$0xff]
    %v6107 = vld [vmem:[%s6102 + $0x20] sm:$0xff]
    %v6108 = vld [vmem:[%s6102 + $0x28] sm:$0xff]
    %v6109 = vld [vmem:[%s6102 + $0x30] sm:$0xff]
    %v6110 = vld [vmem:[%s6102 + $0x38] sm:$0xff]
    %v6111 = vld [vmem:[#allocation7 + $0x10] sm:$0x1]
    %v6112 = vlaneseq
    %v6113 = vshrl.u32 %v6112, 7
    %v6114 = vsub.s32 0, %v6113
    %v6115 = vrot.slane %v6111, %v6114
    %v6117 = vsel %vm3054, %v6098, 0
    %v6120 = vsel %vm3054, %v6099, 0
    %v6123 = vsel %vm3054, %v6100, 0
    %v6126 = vsel %vm3054, %v6101, 0
    %6128 = vmatprep.subr.mxu0 0.0
    %6129 = vmatpush1.msra.mxu0 0.0
    %6130 = vmatprep.subr.mxu0 0.0
    %6131 = vmatpush1.msra.mxu0 0.0
    %6132 = vmatprep.subr.mxu0 0.0
    %6133 = vmatpush1.msra.mxu0 0.0
    %6134 = vmatprep.subr.mxu0 0.0
    %6135 = vmatpush1.msra.mxu0 0.0
    %6136 = vmatprep.subr.mxu0 0.0
    %6137 = vmatpush1.msra.mxu0 0.0
    %6138 = vmatprep.subr.mxu0 0.0
    %6139 = vmatpush1.msra.mxu0 0.0
    %6140 = vmatprep.subr.mxu0 0.0
    %6141 = vmatpush1.msra.mxu0 0.0
    %6142 = vmatprep.subr.mxu0 0.0
    %6143 = vmatpush1.msra.mxu0 0.0
    %6144 = vmatprep.subr.mxu0 0.0
    %6145 = vmatpush1.msra.mxu0 %v6110
    %6146 = vmatprep.subr.mxu0 0.0
    %6147 = vmatpush1.msra.mxu0 %v6109
    %6148 = vmatprep.subr.mxu0 0.0
    %6149 = vmatpush1.msra.mxu0 %v6108
    %6150 = vmatprep.subr.mxu0 0.0
    %6151 = vmatpush1.msra.mxu0 %v6107
    %6152 = vmatprep.subr.mxu0 0.0
    %6153 = vmatpush1.msra.mxu0 %v6106
    %6154 = vmatprep.subr.mxu0 0.0
    %6155 = vmatpush1.msra.mxu0 %v6105
    %6156 = vmatprep.subr.mxu0 0.0
    %6157 = vmatpush1.msra.mxu0 %v6104
    %6158 = vmatprep.subr.mxu0 0.0
    %6159 = vmatpush1.msra.mxu0 %v6103
    %6160 = vmatprep.subr.mxu0 0.0
    %6161 = vmatpush2.msra.mxu0 0.0
    %6162 = vmatprep.subr.mxu0 0.0
    %6163 = vmatpush2.msra.mxu0 0.0
    %6164 = vmatprep.subr.mxu0 0.0
    %6165 = vmatpush2.msra.mxu0 0.0
    %6166 = vmatprep.subr.mxu0 0.0
    %6167 = vmatpush2.msra.mxu0 0.0
    %6168 = vmatprep.subr.mxu0 0.0
    %6169 = vmatpush2.msra.mxu0 0.0
    %6170 = vmatprep.subr.mxu0 0.0
    %6171 = vmatpush2.msra.mxu0 0.0
    %6172 = vmatprep.subr.mxu0 0.0
    %6173 = vmatpush2.msra.mxu0 0.0
    %6174 = vmatprep.subr.mxu0 0.0
    %6175 = vmatpush2.msra.mxu0 0.0
    %6176 = vmatprep.subr.mxu0 0.0
    %6177 = vmatpush2.msra.mxu0 0.0
    %6178 = vmatprep.subr.mxu0 0.0
    %6179 = vmatpush2.msra.mxu0 0.0
    %6180 = vmatprep.subr.mxu0 0.0
    %6181 = vmatpush2.msra.mxu0 0.0
    %6182 = vmatprep.subr.mxu0 0.0
    %6183 = vmatpush2.msra.mxu0 0.0
    %6184 = vmatprep.subr.mxu0 0.0
    %6185 = vmatpush2.msra.mxu0 0.0
    %6186 = vmatprep.subr.mxu0 0.0
    %6187 = vmatpush2.msra.mxu0 0.0
    %6188 = vmatprep.subr.mxu0 0.0
    %6189 = vmatpush2.msra.mxu0 0.0
    %6190 = vmatprep.subr.mxu0 0.0
    %6191 = vmatpush2.msra.mxu0 0.0
    %6192 = vmatprep.mubr.f32.mxu0 0.0
    %6193 = vmatmul.mubr.f32.gmra.mxu0 %v6117
    %v6194 = vpop.f32.mrf.mxu0
    %v6195 = vadd.f32 %v6115, %v6194
    %v6196 = vpop.f32.mrf.mxu0
    %6197 = vmatprep.mubr.f32.mxu0 0.0
    %6198 = vmatmul.mubr.f32.gmra.mxu0 %v6120
    %v6199 = vpop.f32.mrf.mxu0
    %v6200 = vadd.f32 %v6115, %v6199
    %v6201 = vpop.f32.mrf.mxu0
    %6202 = vmatprep.mubr.f32.mxu0 0.0
    %6203 = vmatmul.mubr.f32.gmra.mxu0 %v6123
    %v6204 = vpop.f32.mrf.mxu0
    %v6205 = vadd.f32 %v6115, %v6204
    %v6206 = vpop.f32.mrf.mxu0
    %6207 = vmatprep.mubr.f32.mxu0 0.0
    %6208 = vmatmul.mubr.f32.gmra.mxu0 %v6126
    %v6209 = vpop.f32.mrf.mxu0
    %v6210 = vadd.f32 %v6115, %v6209
    %v6211 = vpop.f32.mrf.mxu0
    %6212 = vdwg.mxu0
    %v6213 = vadd.f32 %v6195, %v5955
    %v6214 = vadd.f32 %v6200, %v5956
    %v6215 = vadd.f32 %v6205, %v5957
    %v6216 = vadd.f32 %v6210, %v5958
    %v6217 = vld [vmem:[#allocation7 + $0x11] sm:$0x1]
    %v6218 = vld [vmem:[#allocation7 + $0x12] sm:$0x1]
    %v6219 = vsel %vm98, %v6213, 0.0
    %6220 = vadd.xlane.f32.xlu0 %v6219
    %v6221 = vpop.xlane.xlu0 %6220
    %v6222 = vsel %vm98, %v6214, 0.0
    %6223 = vadd.xlane.f32.xlu0 %v6222
    %v6224 = vpop.xlane.xlu0 %6223
    %v6225 = vsel %vm98, %v6215, 0.0
    %6226 = vadd.xlane.f32.xlu0 %v6225
    %v6227 = vpop.xlane.xlu0 %6226
    %v6228 = vsel %vm98, %v6216, 0.0
    %6229 = vadd.xlane.f32.xlu0 %v6228
    %v6230 = vpop.xlane.xlu0 %6229
    %v6231 = vmul.f32 %v6221, %v111
    %v6232 = vmul.f32 %v6224, %v111
    %v6233 = vmul.f32 %v6227, %v111
    %v6234 = vmul.f32 %v6230, %v111
    %v6235 = vsub.f32 %v6213, %v6231
    %v6236 = vsub.f32 %v6214, %v6232
    %v6237 = vsub.f32 %v6215, %v6233
    %v6238 = vsub.f32 %v6216, %v6234
    %v6239 = vmul.f32 %v6235, %v6235
    %v6240 = vmul.f32 %v6236, %v6236
    %v6241 = vmul.f32 %v6237, %v6237
    %v6242 = vmul.f32 %v6238, %v6238
    %v6243 = vsel %vm98, %v6239, 0.0
    %6244 = vadd.xlane.f32.xlu0 %v6243
    %v6245 = vpop.xlane.xlu0 %6244
    %v6246 = vsel %vm98, %v6240, 0.0
    %6247 = vadd.xlane.f32.xlu0 %v6246
    %v6248 = vpop.xlane.xlu0 %6247
    %v6249 = vsel %vm98, %v6241, 0.0
    %6250 = vadd.xlane.f32.xlu0 %v6249
    %v6251 = vpop.xlane.xlu0 %6250
    %v6252 = vsel %vm98, %v6242, 0.0
    %6253 = vadd.xlane.f32.xlu0 %v6252
    %v6254 = vpop.xlane.xlu0 %6253
    %v6255 = vmul.f32 %v6245, %v111
    %v6256 = vmul.f32 %v6248, %v111
    %v6257 = vmul.f32 %v6251, %v111
    %v6258 = vmul.f32 %v6254, %v111
    %v6259 = vadd.f32 %v6255, 1e-12
    %v6260 = vadd.f32 %v6256, 1e-12
    %v6261 = vadd.f32 %v6257, 1e-12
    %v6262 = vadd.f32 %v6258, 1e-12
    %v6263 = vrsqrt.pop %v6259
    %v6264 = vrsqrt.pop %v6260
    %v6265 = vrsqrt.pop %v6261
    %v6266 = vrsqrt.pop %v6262
    %v6267 = vmul.f32 %v6235, %v6263
    %v6268 = vmul.f32 %v6236, %v6264
    %v6269 = vmul.f32 %v6237, %v6265
    %v6270 = vmul.f32 %v6238, %v6266
    %v6271 = vlaneseq
    %v6272 = vshrl.u32 %v6271, 7
    %v6273 = vsub.s32 0, %v6272
    %v6274 = vrot.slane %v6217, %v6273
    %v6275 = vmul.f32 %v6267, %v6274
    %v6276 = vmul.f32 %v6268, %v6274
    %v6277 = vmul.f32 %v6269, %v6274
    %v6278 = vmul.f32 %v6270, %v6274
    %v6279 = vlaneseq
    %v6280 = vshrl.u32 %v6279, 7
    %v6281 = vsub.s32 0, %v6280
    %v6282 = vrot.slane %v6218, %v6281
    %v6283 = vadd.f32 %v6275, %v6282
    %v6284 = vadd.f32 %v6276, %v6282
    %v6285 = vadd.f32 %v6277, %v6282
    %v6286 = vadd.f32 %v6278, %v6282
    %s6287 = scalar_lea.vmem [#allocation10], 64
    %6288 = vst.msk [vmem:[%s6287] sm:$0xff] %vm98, %v6283
    %6289 = vst.msk [vmem:[%s6287 + $0x8] sm:$0xff] %vm98, %v6284
    %6290 = vst.msk [vmem:[%s6287 + $0x10] sm:$0xff] %vm98, %v6285
    %6291 = vst.msk [vmem:[%s6287 + $0x18] sm:$0xff] %vm98, %v6286
    %v6293 = vrot.slane %v6284, 7
    %v6296 = vrot.slane %v6285, 6
    %v6299 = vrot.slane %v6286, 5
    %vm6301 = vcmask 1040384
    %v6302 = vsel %vm6301, %v6283, %v6293
    %vm6303 = vcmask 1041408
    %v6304 = vsel %vm6303, %v6302, %v6296
    %vm6305 = vcmask 1042432
    %v6306 = vsel %vm6305, %v6304, %v6299
    %v6307 = vld [vmem:[#allocation8] sm:$0xff]
    %v6308 = vld [vmem:[#allocation8 + $0x8] sm:$0xff]
    %v6309 = vld [vmem:[#allocation8 + $0x10] sm:$0xff]
    %v6310 = vld [vmem:[#allocation8 + $0x18] sm:$0xff]
    %v6311 = vld [vmem:[#allocation7 + $0x2] sm:$0x1]
    %v6312 = vlaneseq
    %v6313 = vshrl.u32 %v6312, 7
    %v6314 = vsub.s32 0, %v6313
    %v6315 = vrot.slane %v6311, %v6314
    %v6317 = vsel %vm98, %v6306, 0
    %6319 = vmatprep.subr.mxu0 0.0
    %6320 = vmatpush1.msra.mxu0 0.0
    %6321 = vmatprep.subr.mxu0 0.0
    %6322 = vmatpush1.msra.mxu0 0.0
    %6323 = vmatprep.subr.mxu0 0.0
    %6324 = vmatpush1.msra.mxu0 0.0
    %6325 = vmatprep.subr.mxu0 0.0
    %6326 = vmatpush1.msra.mxu0 0.0
    %6327 = vmatprep.subr.mxu0 0.0
    %6328 = vmatpush1.msra.mxu0 0.0
    %6329 = vmatprep.subr.mxu0 0.0
    %6330 = vmatpush1.msra.mxu0 0.0
    %6331 = vmatprep.subr.mxu0 0.0
    %6332 = vmatpush1.msra.mxu0 0.0
    %6333 = vmatprep.subr.mxu0 0.0
    %6334 = vmatpush1.msra.mxu0 0.0
    %6335 = vmatprep.subr.mxu0 0.0
    %6336 = vmatpush1.msra.mxu0 0.0
    %6337 = vmatprep.subr.mxu0 0.0
    %6338 = vmatpush1.msra.mxu0 0.0
    %6339 = vmatprep.subr.mxu0 0.0
    %6340 = vmatpush1.msra.mxu0 0.0
    %6341 = vmatprep.subr.mxu0 0.0
    %6342 = vmatpush1.msra.mxu0 0.0
    %6343 = vmatprep.subr.mxu0 0.0
    %6344 = vmatpush1.msra.mxu0 %v6310
    %6345 = vmatprep.subr.mxu0 0.0
    %6346 = vmatpush1.msra.mxu0 %v6309
    %6347 = vmatprep.subr.mxu0 0.0
    %6348 = vmatpush1.msra.mxu0 %v6308
    %6349 = vmatprep.subr.mxu0 0.0
    %6350 = vmatpush1.msra.mxu0 %v6307
    %6351 = vmatprep.subr.mxu0 0.0
    %6352 = vmatpush2.msra.mxu0 0.0
    %6353 = vmatprep.subr.mxu0 0.0
    %6354 = vmatpush2.msra.mxu0 0.0
    %6355 = vmatprep.subr.mxu0 0.0
    %6356 = vmatpush2.msra.mxu0 0.0
    %6357 = vmatprep.subr.mxu0 0.0
    %6358 = vmatpush2.msra.mxu0 0.0
    %6359 = vmatprep.subr.mxu0 0.0
    %6360 = vmatpush2.msra.mxu0 0.0
    %6361 = vmatprep.subr.mxu0 0.0
    %6362 = vmatpush2.msra.mxu0 0.0
    %6363 = vmatprep.subr.mxu0 0.0
    %6364 = vmatpush2.msra.mxu0 0.0
    %6365 = vmatprep.subr.mxu0 0.0
    %6366 = vmatpush2.msra.mxu0 0.0
    %6367 = vmatprep.subr.mxu0 0.0
    %6368 = vmatpush2.msra.mxu0 0.0
    %6369 = vmatprep.subr.mxu0 0.0
    %6370 = vmatpush2.msra.mxu0 0.0
    %6371 = vmatprep.subr.mxu0 0.0
    %6372 = vmatpush2.msra.mxu0 0.0
    %6373 = vmatprep.subr.mxu0 0.0
    %6374 = vmatpush2.msra.mxu0 0.0
    %6375 = vmatprep.subr.mxu0 0.0
    %6376 = vmatpush2.msra.mxu0 0.0
    %6377 = vmatprep.subr.mxu0 0.0
    %6378 = vmatpush2.msra.mxu0 0.0
    %6379 = vmatprep.subr.mxu0 0.0
    %6380 = vmatpush2.msra.mxu0 0.0
    %6381 = vmatprep.subr.mxu0 0.0
    %6382 = vmatpush2.msra.mxu0 0.0
    %6383 = vmatprep.mubr.f32.mxu0 0.0
    %6384 = vmatmul.mubr.f32.gmra.mxu0 %v6317
    %v6385 = vpop.f32.mrf.mxu0
    %v6386 = vadd.f32 %v6315, %v6385
    %v6387 = vpop.f32.mrf.mxu0
    %6388 = vdwg.mxu0
    %v6389 = vtanh.pop %v6386
    %vm6390 = vcmask 257024
    %6391 = vst.msk [vmem:[#allocation11] sm:$0xf] %vm6390, %v6389
    // Predicated region
    $region50: #{tpu_custom_call.1} parent=1 // pred_check
      _
    $region51: #{tpu_custom_call.1} parent=1 // pred_check_branch
      %6393 = sbr.rel (0) target = $region53
    $region52: #{tpu_custom_call.1} parent=1 // pred_region
      %s6395 = ssub.s32 1536, 1536
      %6396 = vsyncadd [#allocation4], %s6395
      %s6397 = sshll.u32 [#allocation10], 4
      %s6398 = int_to_ptr.vmem [resolvable:$true] %s6397
      %6403 = dma.vmem_to_hbm [thread:$0]  %s6398, 1536, %s8, [#allocation4], 128, 128, 8
    $region53: #{tpu_custom_call.1} parent=1 // pred_fallthru
      _
    // Predicated region
    $region54: #{tpu_custom_call.1} parent=1 // pred_check
      _
    $region55: #{tpu_custom_call.1} parent=1 // pred_check_branch
      %6405 = sbr.rel (0) target = $region57
    $region56: #{tpu_custom_call.1} parent=1 // pred_region
      %s6407 = ssub.s32 64, 64
      %6408 = vsyncadd [#allocation12], %s6407
      %s6410 = sshll.u32 [#allocation11], 4
      %s6411 = int_to_ptr.vmem [resolvable:$true] %s6410
      %6413 = dma.vmem_to_hbm [thread:$0]  %s6411, 64, %s9, [#allocation12]
    $region57: #{tpu_custom_call.1} parent=1 // pred_fallthru
      _
    // Predicated region
    $region58: #{tpu_custom_call.1} parent=1 // pred_check
      _
    $region59: #{tpu_custom_call.1} parent=1 // pred_check_branch
      %6415 = sbr.rel (0) target = $region61
    $region60: #{tpu_custom_call.1} parent=1 // pred_region
      %6416 = dma.done [#allocation4], 1536
    $region61: #{tpu_custom_call.1} parent=1 // pred_fallthru
      _
    // Predicated region
    $region62: #{tpu_custom_call.1} parent=1 // pred_check
      _
    $region63: #{tpu_custom_call.1} parent=1 // pred_check_branch
      %6418 = sbr.rel (0) target = $region65
    $region64: #{tpu_custom_call.1} parent=1 // pred_region
      %6419 = dma.done [#allocation12], 64
    $region65: #{tpu_custom_call.1} parent=1 // pred_fallthru
      _
    %6420 = vsyncpa [#allocation3], 1
    %6421 = vsyncpa [#allocation6], 1
    %6422 = vsyncpa [#allocation9], 1
    %6423 = vsyncpa [#allocation4], 1
    %6424 = vsyncpa [#allocation12], 1

</llo_original>
